<compile_context>
chip_gen: v5e
topology: v5e:2x2
jax: 0.10.0
libtpu: 0.0.40
codegen_flags: <defaults>
</compile_context>

<pallas_src>
import functools

import jax
import jax.numpy as jnp
from jax.experimental import pallas as pl
from jax.experimental.pallas import tpu as pltpu

LANE = 128


def _round_up(n, m):
    return ((n + m - 1) // m) * m


# Padded hidden widths (lane-aligned). Zero padding is numerically inert.
H1_PAD = _round_up(4000, LANE)   # 4096: fc1 output / fc3 input
H3_PAD = _round_up(2000, LANE)   # 2048: fc3 output / fc4 input
H4_PAD = _round_up(1000, LANE)   # 1024: fc4 output / fc5 input
H5_PAD = _round_up(500, LANE)    # 512:  fc5 output / fc2 input


# ----------------------------------------------------------------------------
# Kernel 1: linear (+ReLU), weights streamed over the output (N) axis.
#   x : (B, K)  bf16, fully resident (tiny at small batch)
#   w : (K, tn) bf16 tile, streamed from HBM (the dominant HBM traffic)
#   b : (1, tn) f32
#   o : (B, tn) bf16
# ----------------------------------------------------------------------------
def _linear_kernel(x_ref, w_ref, b_ref, o_ref, *, relu):
    y = jnp.dot(x_ref[...], w_ref[...], preferred_element_type=jnp.float32)
    y = y + b_ref[...]
    if relu:
        y = jnp.maximum(y, 0.0)
    o_ref[...] = y.astype(o_ref.dtype)


def linear_n_tiled(x, w_t, b, *, tn, relu=True, out_dtype=jnp.bfloat16):
    """y = relu(x @ w_t + b). w_t is (K, N) bf16; b is (1, N) f32; N % tn == 0."""
    B, K = x.shape
    K2, N = w_t.shape
    assert K == K2 and N % tn == 0 and tn % LANE == 0
    return pl.pallas_call(
        functools.partial(_linear_kernel, relu=relu),
        out_shape=jax.ShapeDtypeStruct((B, N), out_dtype),
        grid_spec=pltpu.PrefetchScalarGridSpec(
            num_scalar_prefetch=0,
            grid=(N // tn,),
            in_specs=[
                pl.BlockSpec((B, K), lambda n: (0, 0)),   # activations (resident)
                pl.BlockSpec((K, tn), lambda n: (0, n)),  # weight tile (streamed)
                pl.BlockSpec((1, tn), lambda n: (0, n)),  # bias tile
            ],
            out_specs=pl.BlockSpec((B, tn), lambda n: (0, n)),
        ),
        compiler_params=pltpu.CompilerParams(
            dimension_semantics=("parallel",),  # lets v7x split N across its 2 TCs
        ),
    )(x, w_t, b)


# ----------------------------------------------------------------------------
# Kernel 2: fused head  fc5 -> relu -> fc2 -> log_softmax.
# Only ~1 MB of bf16 weights -> VMEM-resident, single launch, negligible DMA.
# ----------------------------------------------------------------------------
def _head_kernel(x_ref, w5_ref, b5_ref, w2_ref, b2_ref, o_ref):
    h = jnp.dot(x_ref[...], w5_ref[...], preferred_element_type=jnp.float32)
    h = jnp.maximum(h + b5_ref[...], 0.0).astype(jnp.bfloat16)

    logits = jnp.dot(h, w2_ref[...], preferred_element_type=jnp.float32)
    logits = logits + b2_ref[...]

    m = jnp.max(logits, axis=-1, keepdims=True)
    s = logits - m
    lse = jnp.log(jnp.sum(jnp.exp(s), axis=-1, keepdims=True))
    o_ref[...] = (s - lse).astype(o_ref.dtype)


def head_fused(x, w5, b5, w2, b2):
    B, _ = x.shape
    N = w2.shape[1]  # = num_classes (NOT padded; log_softmax must see only real logits)
    operands = (x, w5, b5, w2, b2)
    in_specs = [pl.BlockSpec(a.shape, lambda i: (0, 0)) for a in operands]
    return pl.pallas_call(
        _head_kernel,
        out_shape=jax.ShapeDtypeStruct((B, N), jnp.float32),
        grid_spec=pltpu.PrefetchScalarGridSpec(
            num_scalar_prefetch=0,
            grid=(1,),
            in_specs=in_specs,
            out_specs=pl.BlockSpec((B, N), lambda i: (0, 0)),
        ),
        compiler_params=pltpu.CompilerParams(
            dimension_semantics=("arbitrary",),
        ),
    )(*operands)


# ----------------------------------------------------------------------------
# Parameters (PyTorch-shaped) + one-time bf16 / padded / transposed preparation.
# ----------------------------------------------------------------------------
def init_params(key, num_classes=5):
    shapes = {
        "fc1": (4000, 2000),
        "fc3": (2000, 4000),
        "fc4": (1000, 2000),
        "fc5": (500, 1000),
        "fc2": (num_classes, 500),
    }
    params = {}
    for name, (out_f, in_f) in shapes.items():
        key, kw, kb = jax.random.split(key, 3)
        scale = 1.0 / jnp.sqrt(jnp.float32(in_f))
        w = jax.random.uniform(kw, (out_f, in_f), jnp.float32, -scale, scale)
        b = jax.random.uniform(kb, (out_f,), jnp.float32, -scale, scale)
        params[name] = (w, b)
    return params


def prepare_params(params):
    """Transpose to (in, out), cast weights to bf16, zero-pad hidden dims so every
    streamed tile and activation is (8,128)-aligned.  Done once, outside kernels."""
    def prep(name, pad_rows, pad_cols):
        w, b = params[name]
        w_t = jnp.pad(w.T.astype(jnp.bfloat16), ((0, pad_rows), (0, pad_cols)))
        b2 = jnp.pad(b, (0, pad_cols)).reshape(1, -1).astype(jnp.float32)
        return w_t, b2

    return {
        "fc1": prep("fc1", 0, H1_PAD - 4000),                 # (2000, 4096)
        "fc3": prep("fc3", H1_PAD - 4000, H3_PAD - 2000),     # (4096, 2048)
        "fc4": prep("fc4", H3_PAD - 2000, H4_PAD - 1000),     # (2048, 1024)
        "fc5": prep("fc5", H4_PAD - 1000, H5_PAD - 500),      # (1024, 512)
        "fc2": prep("fc2", H5_PAD - 500, 0),                  # (512, 5) - class dim NOT padded
    }


@jax.jit
def forward(prepped, x):
    x = x.astype(jnp.bfloat16)
    w, b = prepped["fc1"]
    h = linear_n_tiled(x, w, b, tn=512, relu=True)     # (B, 4096), grid 8
    w, b = prepped["fc3"]
    h = linear_n_tiled(h, w, b, tn=256, relu=True)     # (B, 2048), grid 8
    # dropout inactive (drop_state=False in the reference module)
    w, b = prepped["fc4"]
    h = linear_n_tiled(h, w, b, tn=256, relu=True)     # (B, 1024), grid 4
    w5, b5 = prepped["fc5"]
    w2, b2 = prepped["fc2"]
    return head_fused(h, w5, b5, w2, b2)               # (B, 5) log-probs


def forward_ref(params, x):
    """Plain-JAX reference applying the same bf16 weight/activation rounding."""
    def lin(h, name, relu):
        w, b = params[name]
        y = jnp.dot(h.astype(jnp.bfloat16), w.T.astype(jnp.bfloat16),
                    preferred_element_type=jnp.float32) + b
        return jnp.maximum(y, 0.0) if relu else y

    h = lin(x, "fc1", True)
    h = lin(h, "fc3", True)
    h = lin(h, "fc4", True)
    h = lin(h, "fc5", True)
    logits = lin(h, "fc2", False)
    return jax.nn.log_softmax(logits, axis=-1)


if __name__ == "__main__":
    key = jax.random.PRNGKey(0)
    kp, kx = jax.random.split(key)
    params = init_params(kp, num_classes=5)
    prepped = prepare_params(params)

    batch = 8  # small batch; input feature dim fixed at 2000 by the module
    x = jax.random.normal(kx, (batch, 2000), jnp.float32)

    out = jax.block_until_ready(forward(prepped, x))
    ref = forward_ref(params, x)

    assert out.shape == (batch, 5)
    assert bool(jnp.isfinite(out).all())
    assert jnp.allclose(out, ref, atol=2e-2, rtol=2e-2), float(
        jnp.max(jnp.abs(out - ref))
    )

    print("KERNEL_OK")
</pallas_src>

<mosaic_0001>
module attributes {stable_mosaic.version = 11 : i64} {
  func.func @_linear_kernel(%arg0: i32, %arg1: memref<8x4096xbf16, #tpu.memory_space<vmem>>, %arg2: memref<4096x256xbf16, #tpu.memory_space<vmem>>, %arg3: memref<1x256xf32, #tpu.memory_space<vmem>>, %arg4: memref<8x256xbf16, #tpu.memory_space<vmem>>) attributes {dimension_semantics = [#tpu.dimension_semantics<parallel>], iteration_bounds = array<i64: 8>, scalar_prefetch = 0 : i64, scratch_operands = 0 : i64, tpu.core_type = #tpu.core_type<tc>, window_params = [{pipeline_mode = #tpu.pipeline_mode<synchronous>, transform_indices = @transform_0, window_bounds = array<i64: 8, 4096>}, {transform_indices = @transform_1, window_bounds = array<i64: 4096, 256>}, {transform_indices = @transform_2, window_bounds = array<i64: 1, 256>}, {transform_indices = @transform_3, window_bounds = array<i64: 8, 256>}]} {
    %c0 = arith.constant 0 : index
    %c0_0 = arith.constant 0 : index
    %0 = vector.load %arg1[%c0, %c0_0] : memref<8x4096xbf16, #tpu.memory_space<vmem>>, vector<8x4096xbf16>
    %c0_1 = arith.constant 0 : index
    %c0_2 = arith.constant 0 : index
    %1 = vector.load %arg2[%c0_1, %c0_2] : memref<4096x256xbf16, #tpu.memory_space<vmem>>, vector<4096x256xbf16>
    %cst = arith.constant dense<0.000000e+00> : vector<8x256xf32>
    %2 = tpu.matmul %0, %1, %cst {dimension_numbers = #tpu.dot_dimension_numbers<[1], [0], [0], [1], [0, 0, 1, 1], [], []>} : vector<8x4096xbf16>, vector<4096x256xbf16>, vector<8x256xf32> -> vector<8x256xf32>
    %c0_3 = arith.constant 0 : index
    %c0_4 = arith.constant 0 : index
    %3 = vector.load %arg3[%c0_3, %c0_4] : memref<1x256xf32, #tpu.memory_space<vmem>>, vector<1x256xf32>
    %4 = vector.broadcast %3 : vector<1x256xf32> to vector<8x256xf32>
    %5 = arith.addf %2, %4 : vector<8x256xf32>
    %cst_5 = arith.constant 0.000000e+00 : f32
    %6 = vector.broadcast %cst_5 : f32 to vector<8x256xf32>
    %7 = arith.maximumf %5, %6 : vector<8x256xf32>
    %8 = arith.truncf %7 : vector<8x256xf32> to vector<8x256xbf16>
    %c0_6 = arith.constant 0 : index
    %c0_7 = arith.constant 0 : index
    %9 = vector.load %arg4[%c0_6, %c0_7] : memref<8x256xbf16, #tpu.memory_space<vmem>>, vector<8x256xbf16>
    tpu.vector_store %arg4[%c0_6, %c0_7], %8 {strides = array<i32>} : memref<8x256xbf16, #tpu.memory_space<vmem>>, vector<8x256xbf16>,
    return
  }
  func.func @transform_0(%arg0: i32) -> (i32, i32) {
    %c0_i32 = arith.constant 0 : i32
    %c0_i32_0 = arith.constant 0 : i32
    %c0_i32_1 = arith.constant 0 : i32
    return %c0_i32, %c0_i32_0 : i32, i32
  }
  func.func @transform_1(%arg0: i32) -> (i32, i32) {
    %c0_i32 = arith.constant 0 : i32
    %c0_i32_0 = arith.constant 0 : i32
    return %c0_i32, %arg0 : i32, i32
  }
  func.func @transform_2(%arg0: i32) -> (i32, i32) {
    %c0_i32 = arith.constant 0 : i32
    %c0_i32_0 = arith.constant 0 : i32
    return %c0_i32, %arg0 : i32, i32
  }
  func.func @transform_3(%arg0: i32) -> (i32, i32) {
    %c0_i32 = arith.constant 0 : i32
    %c0_i32_0 = arith.constant 0 : i32
    return %c0_i32, %arg0 : i32, i32
  }
}

module attributes {stable_mosaic.version = 11 : i64} {
  func.func @_linear_kernel(%arg0: i32, %arg1: memref<8x2048xbf16, #tpu.memory_space<vmem>>, %arg2: memref<2048x256xbf16, #tpu.memory_space<vmem>>, %arg3: memref<1x256xf32, #tpu.memory_space<vmem>>, %arg4: memref<8x256xbf16, #tpu.memory_space<vmem>>) attributes {dimension_semantics = [#tpu.dimension_semantics<parallel>], iteration_bounds = array<i64: 4>, scalar_prefetch = 0 : i64, scratch_operands = 0 : i64, tpu.core_type = #tpu.core_type<tc>, window_params = [{pipeline_mode = #tpu.pipeline_mode<synchronous>, transform_indices = @transform_0, window_bounds = array<i64: 8, 2048>}, {transform_indices = @transform_1, window_bounds = array<i64: 2048, 256>}, {transform_indices = @transform_2, window_bounds = array<i64: 1, 256>}, {transform_indices = @transform_3, window_bounds = array<i64: 8, 256>}]} {
    %c0 = arith.constant 0 : index
    %c0_0 = arith.constant 0 : index
    %0 = vector.load %arg1[%c0, %c0_0] : memref<8x2048xbf16, #tpu.memory_space<vmem>>, vector<8x2048xbf16>
    %c0_1 = arith.constant 0 : index
    %c0_2 = arith.constant 0 : index
    %1 = vector.load %arg2[%c0_1, %c0_2] : memref<2048x256xbf16, #tpu.memory_space<vmem>>, vector<2048x256xbf16>
    %cst = arith.constant dense<0.000000e+00> : vector<8x256xf32>
    %2 = tpu.matmul %0, %1, %cst {dimension_numbers = #tpu.dot_dimension_numbers<[1], [0], [0], [1], [0, 0, 1, 1], [], []>} : vector<8x2048xbf16>, vector<2048x256xbf16>, vector<8x256xf32> -> vector<8x256xf32>
    %c0_3 = arith.constant 0 : index
    %c0_4 = arith.constant 0 : index
    %3 = vector.load %arg3[%c0_3, %c0_4] : memref<1x256xf32, #tpu.memory_space<vmem>>, vector<1x256xf32>
    %4 = vector.broadcast %3 : vector<1x256xf32> to vector<8x256xf32>
    %5 = arith.addf %2, %4 : vector<8x256xf32>
    %cst_5 = arith.constant 0.000000e+00 : f32
    %6 = vector.broadcast %cst_5 : f32 to vector<8x256xf32>
    %7 = arith.maximumf %5, %6 : vector<8x256xf32>
    %8 = arith.truncf %7 : vector<8x256xf32> to vector<8x256xbf16>
    %c0_6 = arith.constant 0 : index
    %c0_7 = arith.constant 0 : index
    %9 = vector.load %arg4[%c0_6, %c0_7] : memref<8x256xbf16, #tpu.memory_space<vmem>>, vector<8x256xbf16>
    tpu.vector_store %arg4[%c0_6, %c0_7], %8 {strides = array<i32>} : memref<8x256xbf16, #tpu.memory_space<vmem>>, vector<8x256xbf16>,
    return
  }
  func.func @transform_0(%arg0: i32) -> (i32, i32) {
    %c0_i32 = arith.constant 0 : i32
    %c0_i32_0 = arith.constant 0 : i32
    %c0_i32_1 = arith.constant 0 : i32
    return %c0_i32, %c0_i32_0 : i32, i32
  }
  func.func @transform_1(%arg0: i32) -> (i32, i32) {
    %c0_i32 = arith.constant 0 : i32
    %c0_i32_0 = arith.constant 0 : i32
    return %c0_i32, %arg0 : i32, i32
  }
  func.func @transform_2(%arg0: i32) -> (i32, i32) {
    %c0_i32 = arith.constant 0 : i32
    %c0_i32_0 = arith.constant 0 : i32
    return %c0_i32, %arg0 : i32, i32
  }
  func.func @transform_3(%arg0: i32) -> (i32, i32) {
    %c0_i32 = arith.constant 0 : i32
    %c0_i32_0 = arith.constant 0 : i32
    return %c0_i32, %arg0 : i32, i32
  }
}

module attributes {stable_mosaic.version = 11 : i64} {
  func.func @_linear_kernel(%arg0: i32, %arg1: memref<8x2000xbf16, #tpu.memory_space<vmem>>, %arg2: memref<2000x512xbf16, #tpu.memory_space<vmem>>, %arg3: memref<1x512xf32, #tpu.memory_space<vmem>>, %arg4: memref<8x512xbf16, #tpu.memory_space<vmem>>) attributes {dimension_semantics = [#tpu.dimension_semantics<parallel>], iteration_bounds = array<i64: 8>, scalar_prefetch = 0 : i64, scratch_operands = 0 : i64, tpu.core_type = #tpu.core_type<tc>, window_params = [{pipeline_mode = #tpu.pipeline_mode<synchronous>, transform_indices = @transform_0, window_bounds = array<i64: 8, 2000>}, {transform_indices = @transform_1, window_bounds = array<i64: 2000, 512>}, {transform_indices = @transform_2, window_bounds = array<i64: 1, 512>}, {transform_indices = @transform_3, window_bounds = array<i64: 8, 512>}]} {
    %c0 = arith.constant 0 : index
    %c0_0 = arith.constant 0 : index
    %0 = vector.load %arg1[%c0, %c0_0] : memref<8x2000xbf16, #tpu.memory_space<vmem>>, vector<8x2000xbf16>
    %c0_1 = arith.constant 0 : index
    %c0_2 = arith.constant 0 : index
    %1 = vector.load %arg2[%c0_1, %c0_2] : memref<2000x512xbf16, #tpu.memory_space<vmem>>, vector<2000x512xbf16>
    %cst = arith.constant dense<0.000000e+00> : vector<8x512xf32>
    %2 = tpu.matmul %0, %1, %cst {dimension_numbers = #tpu.dot_dimension_numbers<[1], [0], [0], [1], [0, 0, 1, 1], [], []>} : vector<8x2000xbf16>, vector<2000x512xbf16>, vector<8x512xf32> -> vector<8x512xf32>
    %c0_3 = arith.constant 0 : index
    %c0_4 = arith.constant 0 : index
    %3 = vector.load %arg3[%c0_3, %c0_4] : memref<1x512xf32, #tpu.memory_space<vmem>>, vector<1x512xf32>
    %4 = vector.broadcast %3 : vector<1x512xf32> to vector<8x512xf32>
    %5 = arith.addf %2, %4 : vector<8x512xf32>
    %cst_5 = arith.constant 0.000000e+00 : f32
    %6 = vector.broadcast %cst_5 : f32 to vector<8x512xf32>
    %7 = arith.maximumf %5, %6 : vector<8x512xf32>
    %8 = arith.truncf %7 : vector<8x512xf32> to vector<8x512xbf16>
    %c0_6 = arith.constant 0 : index
    %c0_7 = arith.constant 0 : index
    %9 = vector.load %arg4[%c0_6, %c0_7] : memref<8x512xbf16, #tpu.memory_space<vmem>>, vector<8x512xbf16>
    tpu.vector_store %arg4[%c0_6, %c0_7], %8 {strides = array<i32>} : memref<8x512xbf16, #tpu.memory_space<vmem>>, vector<8x512xbf16>,
    return
  }
  func.func @transform_0(%arg0: i32) -> (i32, i32) {
    %c0_i32 = arith.constant 0 : i32
    %c0_i32_0 = arith.constant 0 : i32
    %c0_i32_1 = arith.constant 0 : i32
    return %c0_i32, %c0_i32_0 : i32, i32
  }
  func.func @transform_1(%arg0: i32) -> (i32, i32) {
    %c0_i32 = arith.constant 0 : i32
    %c0_i32_0 = arith.constant 0 : i32
    return %c0_i32, %arg0 : i32, i32
  }
  func.func @transform_2(%arg0: i32) -> (i32, i32) {
    %c0_i32 = arith.constant 0 : i32
    %c0_i32_0 = arith.constant 0 : i32
    return %c0_i32, %arg0 : i32, i32
  }
  func.func @transform_3(%arg0: i32) -> (i32, i32) {
    %c0_i32 = arith.constant 0 : i32
    %c0_i32_0 = arith.constant 0 : i32
    return %c0_i32, %arg0 : i32, i32
  }
}

module attributes {stable_mosaic.version = 11 : i64} {
  func.func @_head_kernel(%arg0: i32, %arg1: memref<8x1024xbf16, #tpu.memory_space<vmem>>, %arg2: memref<1024x512xbf16, #tpu.memory_space<vmem>>, %arg3: memref<1x512xf32, #tpu.memory_space<vmem>>, %arg4: memref<512x5xbf16, #tpu.memory_space<vmem>>, %arg5: memref<1x5xf32, #tpu.memory_space<vmem>>, %arg6: memref<8x5xf32, #tpu.memory_space<vmem>>) attributes {dimension_semantics = [#tpu.dimension_semantics<arbitrary>], iteration_bounds = array<i64: 1>, scalar_prefetch = 0 : i64, scratch_operands = 0 : i64, tpu.core_type = #tpu.core_type<tc>, window_params = [{pipeline_mode = #tpu.pipeline_mode<synchronous>, transform_indices = @transform_0, window_bounds = array<i64: 8, 1024>}, {pipeline_mode = #tpu.pipeline_mode<synchronous>, transform_indices = @transform_1, window_bounds = array<i64: 1024, 512>}, {pipeline_mode = #tpu.pipeline_mode<synchronous>, transform_indices = @transform_2, window_bounds = array<i64: 1, 512>}, {pipeline_mode = #tpu.pipeline_mode<synchronous>, transform_indices = @transform_3, window_bounds = array<i64: 512, 5>}, {pipeline_mode = #tpu.pipeline_mode<synchronous>, transform_indices = @transform_4, window_bounds = array<i64: 1, 5>}, {pipeline_mode = #tpu.pipeline_mode<synchronous>, transform_indices = @transform_5, window_bounds = array<i64: 8, 5>}]} {
    %c0 = arith.constant 0 : index
    %c0_0 = arith.constant 0 : index
    %0 = vector.load %arg1[%c0, %c0_0] : memref<8x1024xbf16, #tpu.memory_space<vmem>>, vector<8x1024xbf16>
    %c0_1 = arith.constant 0 : index
    %c0_2 = arith.constant 0 : index
    %1 = vector.load %arg2[%c0_1, %c0_2] : memref<1024x512xbf16, #tpu.memory_space<vmem>>, vector<1024x512xbf16>
    %cst = arith.constant dense<0.000000e+00> : vector<8x512xf32>
    %2 = tpu.matmul %0, %1, %cst {dimension_numbers = #tpu.dot_dimension_numbers<[1], [0], [0], [1], [0, 0, 1, 1], [], []>} : vector<8x1024xbf16>, vector<1024x512xbf16>, vector<8x512xf32> -> vector<8x512xf32>
    %c0_3 = arith.constant 0 : index
    %c0_4 = arith.constant 0 : index
    %3 = vector.load %arg3[%c0_3, %c0_4] : memref<1x512xf32, #tpu.memory_space<vmem>>, vector<1x512xf32>
    %4 = vector.broadcast %3 : vector<1x512xf32> to vector<8x512xf32>
    %5 = arith.addf %2, %4 : vector<8x512xf32>
    %cst_5 = arith.constant 0.000000e+00 : f32
    %6 = vector.broadcast %cst_5 : f32 to vector<8x512xf32>
    %7 = arith.maximumf %5, %6 : vector<8x512xf32>
    %8 = arith.truncf %7 : vector<8x512xf32> to vector<8x512xbf16>
    %c0_6 = arith.constant 0 : index
    %c0_7 = arith.constant 0 : index
    %9 = vector.load %arg4[%c0_6, %c0_7] : memref<512x5xbf16, #tpu.memory_space<vmem>>, vector<512x5xbf16>
    %cst_8 = arith.constant dense<0.000000e+00> : vector<8x5xf32>
    %10 = tpu.matmul %8, %9, %cst_8 {dimension_numbers = #tpu.dot_dimension_numbers<[1], [0], [0], [1], [0, 0, 1, 1], [], []>} : vector<8x512xbf16>, vector<512x5xbf16>, vector<8x5xf32> -> vector<8x5xf32>
    %c0_9 = arith.constant 0 : index
    %c0_10 = arith.constant 0 : index
    %11 = vector.load %arg5[%c0_9, %c0_10] : memref<1x5xf32, #tpu.memory_space<vmem>>, vector<1x5xf32>
    %12 = vector.broadcast %11 : vector<1x5xf32> to vector<8x5xf32>
    %13 = arith.addf %10, %12 : vector<8x5xf32>
    %cst_11 = arith.constant dense<0xFF800000> : vector<8xf32>
    %14 = vector.multi_reduction <maximumf>, %13, %cst_11 [1] : vector<8x5xf32> to vector<8xf32>
    %15 = vector.shape_cast %14 : vector<8xf32> to vector<8x1xf32>
    %16 = vector.broadcast %15 : vector<8x1xf32> to vector<8x5xf32>
    %17 = arith.subf %13, %16 : vector<8x5xf32>
    %18 = math.exp %17 : vector<8x5xf32>
    %cst_12 = arith.constant dense<0.000000e+00> : vector<8xf32>
    %19 = vector.multi_reduction <add>, %18, %cst_12 [1] : vector<8x5xf32> to vector<8xf32>
    %20 = vector.shape_cast %19 : vector<8xf32> to vector<8x1xf32>
    %21 = math.log %20 : vector<8x1xf32>
    %22 = vector.broadcast %21 : vector<8x1xf32> to vector<8x5xf32>
    %23 = arith.subf %17, %22 : vector<8x5xf32>
    %c0_13 = arith.constant 0 : index
    %c0_14 = arith.constant 0 : index
    %24 = vector.load %arg6[%c0_13, %c0_14] : memref<8x5xf32, #tpu.memory_space<vmem>>, vector<8x5xf32>
    tpu.vector_store %arg6[%c0_13, %c0_14], %23 {strides = array<i32>} : memref<8x5xf32, #tpu.memory_space<vmem>>, vector<8x5xf32>,
    return
  }
  func.func @transform_0(%arg0: i32) -> (i32, i32) {
    %c0_i32 = arith.constant 0 : i32
    %c0_i32_0 = arith.constant 0 : i32
    %c0_i32_1 = arith.constant 0 : i32
    return %c0_i32, %c0_i32_0 : i32, i32
  }
  func.func @transform_1(%arg0: i32) -> (i32, i32) {
    %c0_i32 = arith.constant 0 : i32
    %c0_i32_0 = arith.constant 0 : i32
    %c0_i32_1 = arith.constant 0 : i32
    return %c0_i32, %c0_i32_0 : i32, i32
  }
  func.func @transform_2(%arg0: i32) -> (i32, i32) {
    %c0_i32 = arith.constant 0 : i32
    %c0_i32_0 = arith.constant 0 : i32
    %c0_i32_1 = arith.constant 0 : i32
    return %c0_i32, %c0_i32_0 : i32, i32
  }
  func.func @transform_3(%arg0: i32) -> (i32, i32) {
    %c0_i32 = arith.constant 0 : i32
    %c0_i32_0 = arith.constant 0 : i32
    %c0_i32_1 = arith.constant 0 : i32
    return %c0_i32, %c0_i32_0 : i32, i32
  }
  func.func @transform_4(%arg0: i32) -> (i32, i32) {
    %c0_i32 = arith.constant 0 : i32
    %c0_i32_0 = arith.constant 0 : i32
    %c0_i32_1 = arith.constant 0 : i32
    return %c0_i32, %c0_i32_0 : i32, i32
  }
  func.func @transform_5(%arg0: i32) -> (i32, i32) {
    %c0_i32 = arith.constant 0 : i32
    %c0_i32_0 = arith.constant 0 : i32
    %c0_i32_1 = arith.constant 0 : i32
    return %c0_i32, %c0_i32_0 : i32, i32
  }
}

</mosaic_0001>

<llo_original>
// kernel: forward.6
$region0: #{forward.6}
  #allocation0 [shape = 'u32[]', space=smem, size = 0x4, offset = 0x4, fixed_abs, tag = 'smem constant byte address 0x4 - core index']
  #allocation1 [shape = 'u32[72,128]{1,0:T(1,128)}', space=vmem, size = 0x9000, scoped, tag = 'internal scratch']
  %s0 = inlined_call_operand.vmem [shape: bf16[8,2048], index: 0, kind: input, shape index: {}]
  %s1 = inlined_call_operand.hbm [shape: bf16[2048,1024], index: 1, kind: input, shape index: {}]
  %s2 = inlined_call_operand.hbm [shape: f32[1,1024], index: 2, kind: input, shape index: {}]
  %s3 = inlined_call_operand.vmem [shape: bf16[8,1024], index: 3, kind: output, shape index: {}]
  %s4 = sld [smem:[#allocation0]]
  $region53: #{forward.6} parent=0
    _
  %s6 = ssub.s32 1, %s4
  %s7 = scalar_select 0, %s6, %s4
  $region1: #{forward.6} parent=0
    #allocation2 [shape = 'u8[2097152]{0}', space=vmem, size = 0x200000, scoped, tag = 'input window, operand 1']
    #allocation3 [shape = 's32[2]{0}', space=sflag, size = 0x8, scoped, tag = 'scoped memory for forward.6']
    #allocation4 [shape = 'u8[2048]{0}', space=vmem, size = 0x800, scoped, tag = 'input window, operand 2']
    #allocation5 [shape = 's32[2]{0}', space=sflag, size = 0x8, scoped, tag = 'scoped memory for forward.6']
    %8 = vsyncpa [#allocation3], 0
    %s9 = scalar_lea.sflag [#allocation3], 1
    %10 = vsyncpa %s9, 0
    %11 = vsyncpa [#allocation5], 0
    %s12 = scalar_lea.sflag [#allocation5], 1
    %13 = vsyncpa %s12, 0
    loop: start=0, step=1, limit=6
    $region2: #{forward.6} parent=1 // loop_pre_header
      _
    $region3: #{forward.6} parent=1 // loop_header
      %s15 = sphi 0, %s19
      %p16 = scmp.ge.s32.totalorder %s15, 6
      %s23 = sphi 0, %s23
      %s25 = sphi 0, %s23
      %s26 = sphi 0, %s25
      %s40 = sphi 0, %s26
      %s46 = sphi 0, %s48
      %s49 = sphi 0, %s46
      %s50 = sphi 0, %s49
      %s66 = sphi 0, %s50
      %s72 = sphi 0, %s74
      %s75 = sphi 0, %s72
      %s76 = sphi 0, %s75
      %s92 = sphi 0, %s76
      %s98 = sphi 0, %s100
      %s101 = sphi 0, %s98
      %s102 = sphi 0, %s101
      %s118 = sphi 0, %s102
    $region4: #{forward.6} parent=1 // loop_header_branch
      %18 = sbr.rel (%p16) target = $region8
    $region5: #{forward.6} parent=1 // loop_body
      %s20 = ssub.s32 %s15, 1
      %s21 = ssub.s32 %s15, 2
      %s22 = sadd.s32 %s15, 1
      %s24 = sadd.s32 %s23, 1
      %p27 = scmp.eq.s32.totalorder %s15, 3
      %p28 = scmp.ne.s32.totalorder %s23, %s25
      %p29 = scmp.eq.s32.totalorder %s15, 0
      %p30 = por %p28, %p29
      %p31 = scmp.ne.s32.totalorder %s23, %s25
      %p32 = scmp.eq.s32.totalorder %s20, 3
      %p33 = por %p31, %p32
      %p34 = scmp.ne.s32.totalorder %s25, %s26
      %p35 = scmp.eq.s32.totalorder %s20, 0
      %p36 = por %p34, %p35
      %p37 = scmp.ne.s32.totalorder %s25, %s26
      %p38 = scmp.eq.s32.totalorder %s21, 3
      %p39 = por %p37, %p38
      %p41 = scmp.ne.s32.totalorder %s26, %s40
      %p42 = scmp.eq.s32.totalorder %s21, 0
      %p43 = por %p41, %p42
      %s44 = ssub.s32 %s15, %s22
      %p45 = scmp.eq.s32.totalorder %s44, 0
      %s47 = sadd.s32 %s46, 1
      %s48 = scalar_select %p45, %s46, %s47
      %p51 = pneg %p45
      %p52 = scmp.eq.s32.totalorder %s15, 3
      %p53 = por %p51, %p52
      %p54 = scmp.ne.s32.totalorder %s46, %s49
      %p55 = scmp.eq.s32.totalorder %s15, 0
      %p56 = por %p54, %p55
      %p57 = scmp.ne.s32.totalorder %s46, %s49
      %p58 = scmp.eq.s32.totalorder %s20, 3
      %p59 = por %p57, %p58
      %p60 = scmp.ne.s32.totalorder %s49, %s50
      %p61 = scmp.eq.s32.totalorder %s20, 0
      %p62 = por %p60, %p61
      %p63 = scmp.ne.s32.totalorder %s49, %s50
      %p64 = scmp.eq.s32.totalorder %s21, 3
      %p65 = por %p63, %p64
      %p67 = scmp.ne.s32.totalorder %s50, %s66
      %p68 = scmp.eq.s32.totalorder %s21, 0
      %p69 = por %p67, %p68
      %s70 = ssub.s32 %s15, %s22
      %p71 = scmp.eq.s32.totalorder %s70, 0
      %s73 = sadd.s32 %s72, 1
      %s74 = scalar_select %p71, %s72, %s73
      %p77 = pneg %p71
      %p78 = scmp.eq.s32.totalorder %s15, 3
      %p79 = por %p77, %p78
      %p80 = scmp.ne.s32.totalorder %s72, %s75
      %p81 = scmp.eq.s32.totalorder %s15, 0
      %p82 = por %p80, %p81
      %p83 = scmp.ne.s32.totalorder %s72, %s75
      %p84 = scmp.eq.s32.totalorder %s20, 3
      %p85 = por %p83, %p84
      %p86 = scmp.ne.s32.totalorder %s75, %s76
      %p87 = scmp.eq.s32.totalorder %s20, 0
      %p88 = por %p86, %p87
      %p89 = scmp.ne.s32.totalorder %s75, %s76
      %p90 = scmp.eq.s32.totalorder %s21, 3
      %p91 = por %p89, %p90
      %p93 = scmp.ne.s32.totalorder %s76, %s92
      %p94 = scmp.eq.s32.totalorder %s21, 0
      %p95 = por %p93, %p94
      %s96 = ssub.s32 %s15, %s22
      %p97 = scmp.eq.s32.totalorder %s96, 0
      %s99 = sadd.s32 %s98, 1
      %s100 = scalar_select %p97, %s98, %s99
      %p103 = pneg %p97
      %p104 = scmp.eq.s32.totalorder %s15, 3
      %p105 = por %p103, %p104
      %p106 = scmp.ne.s32.totalorder %s98, %s101
      %p107 = scmp.eq.s32.totalorder %s15, 0
      %p108 = por %p106, %p107
      %p109 = scmp.ne.s32.totalorder %s98, %s101
      %p110 = scmp.eq.s32.totalorder %s20, 3
      %p111 = por %p109, %p110
      %p112 = scmp.ne.s32.totalorder %s101, %s102
      %p113 = scmp.eq.s32.totalorder %s20, 0
      %p114 = por %p112, %p113
      %p115 = scmp.ne.s32.totalorder %s101, %s102
      %p116 = scmp.eq.s32.totalorder %s21, 3
      %p117 = por %p115, %p116
      %p119 = scmp.ne.s32.totalorder %s102, %s118
      %p120 = scmp.eq.s32.totalorder %s21, 0
      %p121 = por %p119, %p120
      %p122 = scmp.le.s32.totalorder 1, %s15
      %p123 = scmp.lt.s32.totalorder %s15, 5
      %p124 = pnand %p122, %p123
      %p125 = pneg %p124
      // Predicated region
      $region9: #{forward.6} parent=5 // pred_check
        _
      $region10: #{forward.6} parent=5 // pred_check_branch
        %127 = sbr.rel (%p124) target = $region12
      $region11: #{forward.6} parent=5 // pred_region
        %s128 = ssub.s32 %s15, 1
        // Predicated region
        $region13: #{forward.6} parent=11 // pred_check
          %p129 = pneg %p36
        $region14: #{forward.6} parent=11 // pred_check_branch
          %131 = sbr.rel (%p129) target = $region16
        $region15: #{forward.6} parent=11 // pred_region
          _
        $region16: #{forward.6} parent=11 // pred_fallthru
          _
      $region12: #{forward.6} parent=5 // pred_fallthru
        _
      %p132 = scmp.lt.s32.totalorder %s15, 4
      // Predicated region
      $region17: #{forward.6} parent=5 // pred_check
        %p133 = pneg %p132
      $region18: #{forward.6} parent=5 // pred_check_branch
        %135 = sbr.rel (%p133) target = $region20
      $region19: #{forward.6} parent=5 // pred_region
        // Predicated region
        $region21: #{forward.6} parent=19 // pred_check
          %p136 = pneg %p56
        $region22: #{forward.6} parent=19 // pred_check_branch
          %138 = sbr.rel (%p136) target = $region24
        $region23: #{forward.6} parent=19 // pred_region
          %s139 = sand.u32 %s46, 1
          %s140 = scalar_lea.sflag [#allocation3], %s139
          %s141 = sand.u32 %s46, 1
          %s142 = smul.addr %s141, 2048
          %s143 = scalar_lea.vmem [#allocation2], %s142
          %s144 = smul.u32 2, %s15
          %146 = vsyncadd %s140, 0
          %s147 = smul.addr %s144, 4
          %s148 = scalar_lea.hbm %s1, %s147
          %s149 = sshll.u32 %s148, 4
          %s150 = int_to_ptr.hbm [resolvable:$true] %s149
          %s151 = sshll.u32 %s143, 4
          %s152 = int_to_ptr.vmem [resolvable:$true] %s151
          %157 = dma.hbm_to_vmem [thread:$0]  %s150, 32768, %s152, %s140, 512, 128, 8
        $region24: #{forward.6} parent=19 // pred_fallthru
          _
        // Predicated region
        $region25: #{forward.6} parent=19 // pred_check
          %p158 = pneg %p82
        $region26: #{forward.6} parent=19 // pred_check_branch
          %160 = sbr.rel (%p158) target = $region28
        $region27: #{forward.6} parent=19 // pred_region
          %s161 = sand.u32 %s72, 1
          %s162 = scalar_lea.sflag [#allocation5], %s161
          %s163 = sand.u32 %s72, 1
          %s164 = smul.addr %s163, 2
          %s165 = scalar_lea.vmem [#allocation4], %s164
          %s166 = smul.u32 2, %s15
          %168 = vsyncadd %s162, 0
          %s169 = scalar_lea.hbm %s2, %s166
          %s171 = sshll.u32 %s169, 4
          %s172 = int_to_ptr.hbm [resolvable:$true] %s171
          %s173 = sshll.u32 %s165, 4
          %s174 = int_to_ptr.vmem [resolvable:$true] %s173
          %176 = dma.hbm_to_vmem [thread:$0]  %s172, 32, %s174, %s162
        $region28: #{forward.6} parent=19 // pred_fallthru
          _
      $region20: #{forward.6} parent=5 // pred_fallthru
        _
      %p177 = scmp.le.s32.totalorder 1, %s15
      %p178 = scmp.lt.s32.totalorder %s15, 5
      %p179 = pnand %p177, %p178
      %p180 = pneg %p179
      // Predicated region
      $region29: #{forward.6} parent=5 // pred_check
        _
      $region30: #{forward.6} parent=5 // pred_check_branch
        %182 = sbr.rel (%p179) target = $region32
      $region31: #{forward.6} parent=5 // pred_region
        %s183 = ssub.s32 %s15, 1
        %s184 = sand.u32 %s49, 1
        %s185 = scalar_lea.sflag [#allocation3], %s184
        %s186 = sand.u32 %s49, 1
        %s187 = smul.addr %s186, 2048
        %s188 = scalar_lea.vmem [#allocation2], %s187
        // Predicated region
        $region33: #{forward.6} parent=31 // pred_check
          %p189 = pneg %p62
        $region34: #{forward.6} parent=31 // pred_check_branch
          %191 = sbr.rel (%p189) target = $region36
        $region35: #{forward.6} parent=31 // pred_region
          %193 = dma.done %s185, 32768
        $region36: #{forward.6} parent=31 // pred_fallthru
          _
        %s194 = sand.u32 %s75, 1
        %s195 = scalar_lea.sflag [#allocation5], %s194
        %s196 = sand.u32 %s75, 1
        %s197 = smul.addr %s196, 2
        %s198 = scalar_lea.vmem [#allocation4], %s197
        // Predicated region
        $region37: #{forward.6} parent=31 // pred_check
          %p199 = pneg %p88
        $region38: #{forward.6} parent=31 // pred_check_branch
          %201 = sbr.rel (%p199) target = $region40
        $region39: #{forward.6} parent=31 // pred_region
          %203 = dma.done %s195, 32
        $region40: #{forward.6} parent=31 // pred_fallthru
          _
        %p204 = pneg %p36
        %p205 = pneg %p33
        %s206 = sand.u32 %s49, 1
        %s207 = scalar_lea.sflag [#allocation3], %s206
        %s208 = sand.u32 %s49, 1
        %s209 = smul.addr %s208, 2048
        %s210 = scalar_lea.vmem [#allocation2], %s209
        %p211 = pneg %p62
        %p212 = pneg %p59
        %s213 = sand.u32 %s75, 1
        %s214 = scalar_lea.sflag [#allocation5], %s213
        %s215 = sand.u32 %s75, 1
        %s216 = smul.addr %s215, 2
        %s217 = scalar_lea.vmem [#allocation4], %s216
        %p218 = pneg %p88
        %p219 = pneg %p85
        %p220 = pneg %p114
        %p221 = pneg %p111
        %s222 = smul.u32 2, %s20
        %p223 = scmp.lt.s32.totalorder %s222, 7
        %s224 = scalar_select %p223, %s222, 7
        %s225 = smul.addr %s224, 4
        %s226 = scalar_lea.vmem %s3, %s225
        %s227 = smul.u32 2, %s20
        %s228 = smul.u32 2, %s20
        %s229 = smul.u32 2, %s20
        %p230 = scmp.lt.s32.totalorder %s229, 7
        %s231 = scalar_select %p230, %s229, 7
        %s232 = smul.addr %s231, 4
        %s233 = scalar_lea.vmem %s3, %s232
        %s234 = smul.u32 2, %s20
        %v235 = vld [vmem:[%s0] sm:$0xff]
        %v236 = vld [vmem:[%s0 + $0x8] sm:$0xff]
        %v237 = vld [vmem:[%s0 + $0x10] sm:$0xff]
        %v238 = vld [vmem:[%s0 + $0x18] sm:$0xff]
        %v239 = vld [vmem:[%s0 + $0x20] sm:$0xff]
        %v240 = vld [vmem:[%s0 + $0x28] sm:$0xff]
        %v241 = vld [vmem:[%s0 + $0x30] sm:$0xff]
        %v242 = vld [vmem:[%s0 + $0x38] sm:$0xff]
        %v243 = vld [vmem:[%s188] sm:$0xff]
        %v244 = vld [vmem:[%s188 + $0x8] sm:$0xff]
        %v245 = vld [vmem:[%s188 + $0x10] sm:$0xff]
        %v246 = vld [vmem:[%s188 + $0x18] sm:$0xff]
        %v247 = vld [vmem:[%s188 + $0x20] sm:$0xff]
        %v248 = vld [vmem:[%s188 + $0x28] sm:$0xff]
        %v249 = vld [vmem:[%s188 + $0x30] sm:$0xff]
        %v250 = vld [vmem:[%s188 + $0x38] sm:$0xff]
        %v251 = vld [vmem:[%s188 + $0x40] sm:$0xff]
        %v252 = vld [vmem:[%s188 + $0x48] sm:$0xff]
        %v253 = vld [vmem:[%s188 + $0x50] sm:$0xff]
        %v254 = vld [vmem:[%s188 + $0x58] sm:$0xff]
        %v255 = vld [vmem:[%s188 + $0x60] sm:$0xff]
        %v256 = vld [vmem:[%s188 + $0x68] sm:$0xff]
        %v257 = vld [vmem:[%s188 + $0x70] sm:$0xff]
        %v258 = vld [vmem:[%s188 + $0x78] sm:$0xff]
        %v259 = vld [vmem:[%s188 + $0x80] sm:$0xff]
        %v260 = vld [vmem:[%s188 + $0x88] sm:$0xff]
        %v261 = vld [vmem:[%s188 + $0x90] sm:$0xff]
        %v262 = vld [vmem:[%s188 + $0x98] sm:$0xff]
        %v263 = vld [vmem:[%s188 + $0xa0] sm:$0xff]
        %v264 = vld [vmem:[%s188 + $0xa8] sm:$0xff]
        %v265 = vld [vmem:[%s188 + $0xb0] sm:$0xff]
        %v266 = vld [vmem:[%s188 + $0xb8] sm:$0xff]
        %v267 = vld [vmem:[%s188 + $0xc0] sm:$0xff]
        %v268 = vld [vmem:[%s188 + $0xc8] sm:$0xff]
        %v269 = vld [vmem:[%s188 + $0xd0] sm:$0xff]
        %v270 = vld [vmem:[%s188 + $0xd8] sm:$0xff]
        %v271 = vld [vmem:[%s188 + $0xe0] sm:$0xff]
        %v272 = vld [vmem:[%s188 + $0xe8] sm:$0xff]
        %v273 = vld [vmem:[%s188 + $0xf0] sm:$0xff]
        %v274 = vld [vmem:[%s188 + $0xf8] sm:$0xff]
        %v275 = vld [vmem:[%s188 + $0x100] sm:$0xff]
        %v276 = vld [vmem:[%s188 + $0x108] sm:$0xff]
        %v277 = vld [vmem:[%s188 + $0x110] sm:$0xff]
        %v278 = vld [vmem:[%s188 + $0x118] sm:$0xff]
        %v279 = vld [vmem:[%s188 + $0x120] sm:$0xff]
        %v280 = vld [vmem:[%s188 + $0x128] sm:$0xff]
        %v281 = vld [vmem:[%s188 + $0x130] sm:$0xff]
        %v282 = vld [vmem:[%s188 + $0x138] sm:$0xff]
        %v283 = vld [vmem:[%s188 + $0x140] sm:$0xff]
        %v284 = vld [vmem:[%s188 + $0x148] sm:$0xff]
        %v285 = vld [vmem:[%s188 + $0x150] sm:$0xff]
        %v286 = vld [vmem:[%s188 + $0x158] sm:$0xff]
        %v287 = vld [vmem:[%s188 + $0x160] sm:$0xff]
        %v288 = vld [vmem:[%s188 + $0x168] sm:$0xff]
        %v289 = vld [vmem:[%s188 + $0x170] sm:$0xff]
        %v290 = vld [vmem:[%s188 + $0x178] sm:$0xff]
        %v291 = vld [vmem:[%s188 + $0x180] sm:$0xff]
        %v292 = vld [vmem:[%s188 + $0x188] sm:$0xff]
        %v293 = vld [vmem:[%s188 + $0x190] sm:$0xff]
        %v294 = vld [vmem:[%s188 + $0x198] sm:$0xff]
        %v295 = vld [vmem:[%s188 + $0x1a0] sm:$0xff]
        %v296 = vld [vmem:[%s188 + $0x1a8] sm:$0xff]
        %v297 = vld [vmem:[%s188 + $0x1b0] sm:$0xff]
        %v298 = vld [vmem:[%s188 + $0x1b8] sm:$0xff]
        %v299 = vld [vmem:[%s188 + $0x1c0] sm:$0xff]
        %v300 = vld [vmem:[%s188 + $0x1c8] sm:$0xff]
        %v301 = vld [vmem:[%s188 + $0x1d0] sm:$0xff]
        %v302 = vld [vmem:[%s188 + $0x1d8] sm:$0xff]
        %v303 = vld [vmem:[%s188 + $0x1e0] sm:$0xff]
        %v304 = vld [vmem:[%s188 + $0x1e8] sm:$0xff]
        %v305 = vld [vmem:[%s188 + $0x1f0] sm:$0xff]
        %v306 = vld [vmem:[%s188 + $0x1f8] sm:$0xff]
        %v307 = vld [vmem:[%s188 + $0x200] sm:$0xff]
        %v308 = vld [vmem:[%s188 + $0x208] sm:$0xff]
        %v309 = vld [vmem:[%s188 + $0x210] sm:$0xff]
        %v310 = vld [vmem:[%s188 + $0x218] sm:$0xff]
        %v311 = vld [vmem:[%s188 + $0x220] sm:$0xff]
        %v312 = vld [vmem:[%s188 + $0x228] sm:$0xff]
        %v313 = vld [vmem:[%s188 + $0x230] sm:$0xff]
        %v314 = vld [vmem:[%s188 + $0x238] sm:$0xff]
        %v315 = vld [vmem:[%s188 + $0x240] sm:$0xff]
        %v316 = vld [vmem:[%s188 + $0x248] sm:$0xff]
        %v317 = vld [vmem:[%s188 + $0x250] sm:$0xff]
        %v318 = vld [vmem:[%s188 + $0x258] sm:$0xff]
        %v319 = vld [vmem:[%s188 + $0x260] sm:$0xff]
        %v320 = vld [vmem:[%s188 + $0x268] sm:$0xff]
        %v321 = vld [vmem:[%s188 + $0x270] sm:$0xff]
        %v322 = vld [vmem:[%s188 + $0x278] sm:$0xff]
        %v323 = vld [vmem:[%s188 + $0x280] sm:$0xff]
        %v324 = vld [vmem:[%s188 + $0x288] sm:$0xff]
        %v325 = vld [vmem:[%s188 + $0x290] sm:$0xff]
        %v326 = vld [vmem:[%s188 + $0x298] sm:$0xff]
        %v327 = vld [vmem:[%s188 + $0x2a0] sm:$0xff]
        %v328 = vld [vmem:[%s188 + $0x2a8] sm:$0xff]
        %v329 = vld [vmem:[%s188 + $0x2b0] sm:$0xff]
        %v330 = vld [vmem:[%s188 + $0x2b8] sm:$0xff]
        %v331 = vld [vmem:[%s188 + $0x2c0] sm:$0xff]
        %v332 = vld [vmem:[%s188 + $0x2c8] sm:$0xff]
        %v333 = vld [vmem:[%s188 + $0x2d0] sm:$0xff]
        %v334 = vld [vmem:[%s188 + $0x2d8] sm:$0xff]
        %v335 = vld [vmem:[%s188 + $0x2e0] sm:$0xff]
        %v336 = vld [vmem:[%s188 + $0x2e8] sm:$0xff]
        %v337 = vld [vmem:[%s188 + $0x2f0] sm:$0xff]
        %v338 = vld [vmem:[%s188 + $0x2f8] sm:$0xff]
        %v339 = vld [vmem:[%s188 + $0x300] sm:$0xff]
        %v340 = vld [vmem:[%s188 + $0x308] sm:$0xff]
        %v341 = vld [vmem:[%s188 + $0x310] sm:$0xff]
        %v342 = vld [vmem:[%s188 + $0x318] sm:$0xff]
        %v343 = vld [vmem:[%s188 + $0x320] sm:$0xff]
        %v344 = vld [vmem:[%s188 + $0x328] sm:$0xff]
        %v345 = vld [vmem:[%s188 + $0x330] sm:$0xff]
        %v346 = vld [vmem:[%s188 + $0x338] sm:$0xff]
        %v347 = vld [vmem:[%s188 + $0x340] sm:$0xff]
        %v348 = vld [vmem:[%s188 + $0x348] sm:$0xff]
        %v349 = vld [vmem:[%s188 + $0x350] sm:$0xff]
        %v350 = vld [vmem:[%s188 + $0x358] sm:$0xff]
        %v351 = vld [vmem:[%s188 + $0x360] sm:$0xff]
        %v352 = vld [vmem:[%s188 + $0x368] sm:$0xff]
        %v353 = vld [vmem:[%s188 + $0x370] sm:$0xff]
        %v354 = vld [vmem:[%s188 + $0x378] sm:$0xff]
        %v355 = vld [vmem:[%s188 + $0x380] sm:$0xff]
        %v356 = vld [vmem:[%s188 + $0x388] sm:$0xff]
        %v357 = vld [vmem:[%s188 + $0x390] sm:$0xff]
        %v358 = vld [vmem:[%s188 + $0x398] sm:$0xff]
        %v359 = vld [vmem:[%s188 + $0x3a0] sm:$0xff]
        %v360 = vld [vmem:[%s188 + $0x3a8] sm:$0xff]
        %v361 = vld [vmem:[%s188 + $0x3b0] sm:$0xff]
        %v362 = vld [vmem:[%s188 + $0x3b8] sm:$0xff]
        %v363 = vld [vmem:[%s188 + $0x3c0] sm:$0xff]
        %v364 = vld [vmem:[%s188 + $0x3c8] sm:$0xff]
        %v365 = vld [vmem:[%s188 + $0x3d0] sm:$0xff]
        %v366 = vld [vmem:[%s188 + $0x3d8] sm:$0xff]
        %v367 = vld [vmem:[%s188 + $0x3e0] sm:$0xff]
        %v368 = vld [vmem:[%s188 + $0x3e8] sm:$0xff]
        %v369 = vld [vmem:[%s188 + $0x3f0] sm:$0xff]
        %v370 = vld [vmem:[%s188 + $0x3f8] sm:$0xff]
        %v371 = vld [vmem:[%s188 + $0x400] sm:$0xff]
        %v372 = vld [vmem:[%s188 + $0x408] sm:$0xff]
        %v373 = vld [vmem:[%s188 + $0x410] sm:$0xff]
        %v374 = vld [vmem:[%s188 + $0x418] sm:$0xff]
        %v375 = vld [vmem:[%s188 + $0x420] sm:$0xff]
        %v376 = vld [vmem:[%s188 + $0x428] sm:$0xff]
        %v377 = vld [vmem:[%s188 + $0x430] sm:$0xff]
        %v378 = vld [vmem:[%s188 + $0x438] sm:$0xff]
        %v379 = vld [vmem:[%s188 + $0x440] sm:$0xff]
        %v380 = vld [vmem:[%s188 + $0x448] sm:$0xff]
        %v381 = vld [vmem:[%s188 + $0x450] sm:$0xff]
        %v382 = vld [vmem:[%s188 + $0x458] sm:$0xff]
        %v383 = vld [vmem:[%s188 + $0x460] sm:$0xff]
        %v384 = vld [vmem:[%s188 + $0x468] sm:$0xff]
        %v385 = vld [vmem:[%s188 + $0x470] sm:$0xff]
        %v386 = vld [vmem:[%s188 + $0x478] sm:$0xff]
        %v387 = vld [vmem:[%s188 + $0x480] sm:$0xff]
        %v388 = vld [vmem:[%s188 + $0x488] sm:$0xff]
        %v389 = vld [vmem:[%s188 + $0x490] sm:$0xff]
        %v390 = vld [vmem:[%s188 + $0x498] sm:$0xff]
        %v391 = vld [vmem:[%s188 + $0x4a0] sm:$0xff]
        %v392 = vld [vmem:[%s188 + $0x4a8] sm:$0xff]
        %v393 = vld [vmem:[%s188 + $0x4b0] sm:$0xff]
        %v394 = vld [vmem:[%s188 + $0x4b8] sm:$0xff]
        %v395 = vld [vmem:[%s188 + $0x4c0] sm:$0xff]
        %v396 = vld [vmem:[%s188 + $0x4c8] sm:$0xff]
        %v397 = vld [vmem:[%s188 + $0x4d0] sm:$0xff]
        %v398 = vld [vmem:[%s188 + $0x4d8] sm:$0xff]
        %v399 = vld [vmem:[%s188 + $0x4e0] sm:$0xff]
        %v400 = vld [vmem:[%s188 + $0x4e8] sm:$0xff]
        %v401 = vld [vmem:[%s188 + $0x4f0] sm:$0xff]
        %v402 = vld [vmem:[%s188 + $0x4f8] sm:$0xff]
        %v403 = vld [vmem:[%s188 + $0x500] sm:$0xff]
        %v404 = vld [vmem:[%s188 + $0x508] sm:$0xff]
        %v405 = vld [vmem:[%s188 + $0x510] sm:$0xff]
        %v406 = vld [vmem:[%s188 + $0x518] sm:$0xff]
        %v407 = vld [vmem:[%s188 + $0x520] sm:$0xff]
        %v408 = vld [vmem:[%s188 + $0x528] sm:$0xff]
        %v409 = vld [vmem:[%s188 + $0x530] sm:$0xff]
        %v410 = vld [vmem:[%s188 + $0x538] sm:$0xff]
        %v411 = vld [vmem:[%s188 + $0x540] sm:$0xff]
        %v412 = vld [vmem:[%s188 + $0x548] sm:$0xff]
        %v413 = vld [vmem:[%s188 + $0x550] sm:$0xff]
        %v414 = vld [vmem:[%s188 + $0x558] sm:$0xff]
        %v415 = vld [vmem:[%s188 + $0x560] sm:$0xff]
        %v416 = vld [vmem:[%s188 + $0x568] sm:$0xff]
        %v417 = vld [vmem:[%s188 + $0x570] sm:$0xff]
        %v418 = vld [vmem:[%s188 + $0x578] sm:$0xff]
        %v419 = vld [vmem:[%s188 + $0x580] sm:$0xff]
        %v420 = vld [vmem:[%s188 + $0x588] sm:$0xff]
        %v421 = vld [vmem:[%s188 + $0x590] sm:$0xff]
        %v422 = vld [vmem:[%s188 + $0x598] sm:$0xff]
        %v423 = vld [vmem:[%s188 + $0x5a0] sm:$0xff]
        %v424 = vld [vmem:[%s188 + $0x5a8] sm:$0xff]
        %v425 = vld [vmem:[%s188 + $0x5b0] sm:$0xff]
        %v426 = vld [vmem:[%s188 + $0x5b8] sm:$0xff]
        %v427 = vld [vmem:[%s188 + $0x5c0] sm:$0xff]
        %v428 = vld [vmem:[%s188 + $0x5c8] sm:$0xff]
        %v429 = vld [vmem:[%s188 + $0x5d0] sm:$0xff]
        %v430 = vld [vmem:[%s188 + $0x5d8] sm:$0xff]
        %v431 = vld [vmem:[%s188 + $0x5e0] sm:$0xff]
        %v432 = vld [vmem:[%s188 + $0x5e8] sm:$0xff]
        %v433 = vld [vmem:[%s188 + $0x5f0] sm:$0xff]
        %v434 = vld [vmem:[%s188 + $0x5f8] sm:$0xff]
        %v435 = vld [vmem:[%s188 + $0x600] sm:$0xff]
        %v436 = vld [vmem:[%s188 + $0x608] sm:$0xff]
        %v437 = vld [vmem:[%s188 + $0x610] sm:$0xff]
        %v438 = vld [vmem:[%s188 + $0x618] sm:$0xff]
        %v439 = vld [vmem:[%s188 + $0x620] sm:$0xff]
        %v440 = vld [vmem:[%s188 + $0x628] sm:$0xff]
        %v441 = vld [vmem:[%s188 + $0x630] sm:$0xff]
        %v442 = vld [vmem:[%s188 + $0x638] sm:$0xff]
        %v443 = vld [vmem:[%s188 + $0x640] sm:$0xff]
        %v444 = vld [vmem:[%s188 + $0x648] sm:$0xff]
        %v445 = vld [vmem:[%s188 + $0x650] sm:$0xff]
        %v446 = vld [vmem:[%s188 + $0x658] sm:$0xff]
        %v447 = vld [vmem:[%s188 + $0x660] sm:$0xff]
        %v448 = vld [vmem:[%s188 + $0x668] sm:$0xff]
        %v449 = vld [vmem:[%s188 + $0x670] sm:$0xff]
        %v450 = vld [vmem:[%s188 + $0x678] sm:$0xff]
        %v451 = vld [vmem:[%s188 + $0x680] sm:$0xff]
        %v452 = vld [vmem:[%s188 + $0x688] sm:$0xff]
        %v453 = vld [vmem:[%s188 + $0x690] sm:$0xff]
        %v454 = vld [vmem:[%s188 + $0x698] sm:$0xff]
        %v455 = vld [vmem:[%s188 + $0x6a0] sm:$0xff]
        %v456 = vld [vmem:[%s188 + $0x6a8] sm:$0xff]
        %v457 = vld [vmem:[%s188 + $0x6b0] sm:$0xff]
        %v458 = vld [vmem:[%s188 + $0x6b8] sm:$0xff]
        %v459 = vld [vmem:[%s188 + $0x6c0] sm:$0xff]
        %v460 = vld [vmem:[%s188 + $0x6c8] sm:$0xff]
        %v461 = vld [vmem:[%s188 + $0x6d0] sm:$0xff]
        %v462 = vld [vmem:[%s188 + $0x6d8] sm:$0xff]
        %v463 = vld [vmem:[%s188 + $0x6e0] sm:$0xff]
        %v464 = vld [vmem:[%s188 + $0x6e8] sm:$0xff]
        %v465 = vld [vmem:[%s188 + $0x6f0] sm:$0xff]
        %v466 = vld [vmem:[%s188 + $0x6f8] sm:$0xff]
        %v467 = vld [vmem:[%s188 + $0x700] sm:$0xff]
        %v468 = vld [vmem:[%s188 + $0x708] sm:$0xff]
        %v469 = vld [vmem:[%s188 + $0x710] sm:$0xff]
        %v470 = vld [vmem:[%s188 + $0x718] sm:$0xff]
        %v471 = vld [vmem:[%s188 + $0x720] sm:$0xff]
        %v472 = vld [vmem:[%s188 + $0x728] sm:$0xff]
        %v473 = vld [vmem:[%s188 + $0x730] sm:$0xff]
        %v474 = vld [vmem:[%s188 + $0x738] sm:$0xff]
        %v475 = vld [vmem:[%s188 + $0x740] sm:$0xff]
        %v476 = vld [vmem:[%s188 + $0x748] sm:$0xff]
        %v477 = vld [vmem:[%s188 + $0x750] sm:$0xff]
        %v478 = vld [vmem:[%s188 + $0x758] sm:$0xff]
        %v479 = vld [vmem:[%s188 + $0x760] sm:$0xff]
        %v480 = vld [vmem:[%s188 + $0x768] sm:$0xff]
        %v481 = vld [vmem:[%s188 + $0x770] sm:$0xff]
        %v482 = vld [vmem:[%s188 + $0x778] sm:$0xff]
        %v483 = vld [vmem:[%s188 + $0x780] sm:$0xff]
        %v484 = vld [vmem:[%s188 + $0x788] sm:$0xff]
        %v485 = vld [vmem:[%s188 + $0x790] sm:$0xff]
        %v486 = vld [vmem:[%s188 + $0x798] sm:$0xff]
        %v487 = vld [vmem:[%s188 + $0x7a0] sm:$0xff]
        %v488 = vld [vmem:[%s188 + $0x7a8] sm:$0xff]
        %v489 = vld [vmem:[%s188 + $0x7b0] sm:$0xff]
        %v490 = vld [vmem:[%s188 + $0x7b8] sm:$0xff]
        %v491 = vld [vmem:[%s188 + $0x7c0] sm:$0xff]
        %v492 = vld [vmem:[%s188 + $0x7c8] sm:$0xff]
        %v493 = vld [vmem:[%s188 + $0x7d0] sm:$0xff]
        %v494 = vld [vmem:[%s188 + $0x7d8] sm:$0xff]
        %v495 = vld [vmem:[%s188 + $0x7e0] sm:$0xff]
        %v496 = vld [vmem:[%s188 + $0x7e8] sm:$0xff]
        %v497 = vld [vmem:[%s188 + $0x7f0] sm:$0xff]
        %v498 = vld [vmem:[%s188 + $0x7f8] sm:$0xff]
        %v499 = vld [vmem:[%s198] sm:$0x3]
        %v501 = vperm.slane %v499, 0
        %v502 = vperm.slane %v499, 1
        %v513 = vunpack.c.l.b16 %v235
        %v514 = vunpack.c.h.b16 %v235
        %v515 = vunpack.c.l.b16 %v236
        %v516 = vunpack.c.h.b16 %v236
        %v517 = vunpack.c.l.b16 %v237
        %v518 = vunpack.c.h.b16 %v237
        %v519 = vunpack.c.l.b16 %v238
        %v520 = vunpack.c.h.b16 %v238
        %v521 = vunpack.c.l.b16 %v239
        %v522 = vunpack.c.h.b16 %v239
        %v523 = vunpack.c.l.b16 %v240
        %v524 = vunpack.c.h.b16 %v240
        %v525 = vunpack.c.l.b16 %v241
        %v526 = vunpack.c.h.b16 %v241
        %v527 = vunpack.c.l.b16 %v242
        %v528 = vunpack.c.h.b16 %v242
        %v529 = vpack.c.b16 %v513, %v513
        %v530 = vpack.c.b16 %v514, %v514
        %v531 = vpack.c.b16 %v515, %v515
        %v532 = vpack.c.b16 %v516, %v516
        %v533 = vpack.c.b16 %v517, %v517
        %v534 = vpack.c.b16 %v518, %v518
        %v535 = vpack.c.b16 %v519, %v519
        %v536 = vpack.c.b16 %v520, %v520
        %v537 = vpack.c.b16 %v521, %v521
        %v538 = vpack.c.b16 %v522, %v522
        %v539 = vpack.c.b16 %v523, %v523
        %v540 = vpack.c.b16 %v524, %v524
        %v541 = vpack.c.b16 %v525, %v525
        %v542 = vpack.c.b16 %v526, %v526
        %v543 = vpack.c.b16 %v527, %v527
        %v544 = vpack.c.b16 %v528, %v528
        %v817 = vunpack.c.l.b16 %v243
        %v818 = vunpack.c.h.b16 %v243
        %v819 = vunpack.c.l.b16 %v244
        %v820 = vunpack.c.h.b16 %v244
        %v821 = vunpack.c.l.b16 %v245
        %v822 = vunpack.c.h.b16 %v245
        %v823 = vunpack.c.l.b16 %v246
        %v824 = vunpack.c.h.b16 %v246
        %v825 = vunpack.c.l.b16 %v247
        %v826 = vunpack.c.h.b16 %v247
        %v827 = vunpack.c.l.b16 %v248
        %v828 = vunpack.c.h.b16 %v248
        %v829 = vunpack.c.l.b16 %v249
        %v830 = vunpack.c.h.b16 %v249
        %v831 = vunpack.c.l.b16 %v250
        %v832 = vunpack.c.h.b16 %v250
        %v833 = vunpack.c.l.b16 %v251
        %v834 = vunpack.c.h.b16 %v251
        %v835 = vunpack.c.l.b16 %v252
        %v836 = vunpack.c.h.b16 %v252
        %v837 = vunpack.c.l.b16 %v253
        %v838 = vunpack.c.h.b16 %v253
        %v839 = vunpack.c.l.b16 %v254
        %v840 = vunpack.c.h.b16 %v254
        %v841 = vunpack.c.l.b16 %v255
        %v842 = vunpack.c.h.b16 %v255
        %v843 = vunpack.c.l.b16 %v256
        %v844 = vunpack.c.h.b16 %v256
        %v845 = vunpack.c.l.b16 %v257
        %v846 = vunpack.c.h.b16 %v257
        %v847 = vunpack.c.l.b16 %v258
        %v848 = vunpack.c.h.b16 %v258
        %v849 = vunpack.c.l.b16 %v259
        %v850 = vunpack.c.h.b16 %v259
        %v851 = vunpack.c.l.b16 %v260
        %v852 = vunpack.c.h.b16 %v260
        %v853 = vunpack.c.l.b16 %v261
        %v854 = vunpack.c.h.b16 %v261
        %v855 = vunpack.c.l.b16 %v262
        %v856 = vunpack.c.h.b16 %v262
        %v857 = vunpack.c.l.b16 %v263
        %v858 = vunpack.c.h.b16 %v263
        %v859 = vunpack.c.l.b16 %v264
        %v860 = vunpack.c.h.b16 %v264
        %v861 = vunpack.c.l.b16 %v265
        %v862 = vunpack.c.h.b16 %v265
        %v863 = vunpack.c.l.b16 %v266
        %v864 = vunpack.c.h.b16 %v266
        %v865 = vunpack.c.l.b16 %v267
        %v866 = vunpack.c.h.b16 %v267
        %v867 = vunpack.c.l.b16 %v268
        %v868 = vunpack.c.h.b16 %v268
        %v869 = vunpack.c.l.b16 %v269
        %v870 = vunpack.c.h.b16 %v269
        %v871 = vunpack.c.l.b16 %v270
        %v872 = vunpack.c.h.b16 %v270
        %v873 = vunpack.c.l.b16 %v271
        %v874 = vunpack.c.h.b16 %v271
        %v875 = vunpack.c.l.b16 %v272
        %v876 = vunpack.c.h.b16 %v272
        %v877 = vunpack.c.l.b16 %v273
        %v878 = vunpack.c.h.b16 %v273
        %v879 = vunpack.c.l.b16 %v274
        %v880 = vunpack.c.h.b16 %v274
        %v881 = vunpack.c.l.b16 %v275
        %v882 = vunpack.c.h.b16 %v275
        %v883 = vunpack.c.l.b16 %v276
        %v884 = vunpack.c.h.b16 %v276
        %v885 = vunpack.c.l.b16 %v277
        %v886 = vunpack.c.h.b16 %v277
        %v887 = vunpack.c.l.b16 %v278
        %v888 = vunpack.c.h.b16 %v278
        %v889 = vunpack.c.l.b16 %v279
        %v890 = vunpack.c.h.b16 %v279
        %v891 = vunpack.c.l.b16 %v280
        %v892 = vunpack.c.h.b16 %v280
        %v893 = vunpack.c.l.b16 %v281
        %v894 = vunpack.c.h.b16 %v281
        %v895 = vunpack.c.l.b16 %v282
        %v896 = vunpack.c.h.b16 %v282
        %v897 = vunpack.c.l.b16 %v283
        %v898 = vunpack.c.h.b16 %v283
        %v899 = vunpack.c.l.b16 %v284
        %v900 = vunpack.c.h.b16 %v284
        %v901 = vunpack.c.l.b16 %v285
        %v902 = vunpack.c.h.b16 %v285
        %v903 = vunpack.c.l.b16 %v286
        %v904 = vunpack.c.h.b16 %v286
        %v905 = vunpack.c.l.b16 %v287
        %v906 = vunpack.c.h.b16 %v287
        %v907 = vunpack.c.l.b16 %v288
        %v908 = vunpack.c.h.b16 %v288
        %v909 = vunpack.c.l.b16 %v289
        %v910 = vunpack.c.h.b16 %v289
        %v911 = vunpack.c.l.b16 %v290
        %v912 = vunpack.c.h.b16 %v290
        %v913 = vunpack.c.l.b16 %v291
        %v914 = vunpack.c.h.b16 %v291
        %v915 = vunpack.c.l.b16 %v292
        %v916 = vunpack.c.h.b16 %v292
        %v917 = vunpack.c.l.b16 %v293
        %v918 = vunpack.c.h.b16 %v293
        %v919 = vunpack.c.l.b16 %v294
        %v920 = vunpack.c.h.b16 %v294
        %v921 = vunpack.c.l.b16 %v295
        %v922 = vunpack.c.h.b16 %v295
        %v923 = vunpack.c.l.b16 %v296
        %v924 = vunpack.c.h.b16 %v296
        %v925 = vunpack.c.l.b16 %v297
        %v926 = vunpack.c.h.b16 %v297
        %v927 = vunpack.c.l.b16 %v298
        %v928 = vunpack.c.h.b16 %v298
        %v929 = vunpack.c.l.b16 %v299
        %v930 = vunpack.c.h.b16 %v299
        %v931 = vunpack.c.l.b16 %v300
        %v932 = vunpack.c.h.b16 %v300
        %v933 = vunpack.c.l.b16 %v301
        %v934 = vunpack.c.h.b16 %v301
        %v935 = vunpack.c.l.b16 %v302
        %v936 = vunpack.c.h.b16 %v302
        %v937 = vunpack.c.l.b16 %v303
        %v938 = vunpack.c.h.b16 %v303
        %v939 = vunpack.c.l.b16 %v304
        %v940 = vunpack.c.h.b16 %v304
        %v941 = vunpack.c.l.b16 %v305
        %v942 = vunpack.c.h.b16 %v305
        %v943 = vunpack.c.l.b16 %v306
        %v944 = vunpack.c.h.b16 %v306
        %v945 = vunpack.c.l.b16 %v307
        %v946 = vunpack.c.h.b16 %v307
        %v947 = vunpack.c.l.b16 %v308
        %v948 = vunpack.c.h.b16 %v308
        %v949 = vunpack.c.l.b16 %v309
        %v950 = vunpack.c.h.b16 %v309
        %v951 = vunpack.c.l.b16 %v310
        %v952 = vunpack.c.h.b16 %v310
        %v953 = vunpack.c.l.b16 %v311
        %v954 = vunpack.c.h.b16 %v311
        %v955 = vunpack.c.l.b16 %v312
        %v956 = vunpack.c.h.b16 %v312
        %v957 = vunpack.c.l.b16 %v313
        %v958 = vunpack.c.h.b16 %v313
        %v959 = vunpack.c.l.b16 %v314
        %v960 = vunpack.c.h.b16 %v314
        %v961 = vunpack.c.l.b16 %v315
        %v962 = vunpack.c.h.b16 %v315
        %v963 = vunpack.c.l.b16 %v316
        %v964 = vunpack.c.h.b16 %v316
        %v965 = vunpack.c.l.b16 %v317
        %v966 = vunpack.c.h.b16 %v317
        %v967 = vunpack.c.l.b16 %v318
        %v968 = vunpack.c.h.b16 %v318
        %v969 = vunpack.c.l.b16 %v319
        %v970 = vunpack.c.h.b16 %v319
        %v971 = vunpack.c.l.b16 %v320
        %v972 = vunpack.c.h.b16 %v320
        %v973 = vunpack.c.l.b16 %v321
        %v974 = vunpack.c.h.b16 %v321
        %v975 = vunpack.c.l.b16 %v322
        %v976 = vunpack.c.h.b16 %v322
        %v977 = vunpack.c.l.b16 %v323
        %v978 = vunpack.c.h.b16 %v323
        %v979 = vunpack.c.l.b16 %v324
        %v980 = vunpack.c.h.b16 %v324
        %v981 = vunpack.c.l.b16 %v325
        %v982 = vunpack.c.h.b16 %v325
        %v983 = vunpack.c.l.b16 %v326
        %v984 = vunpack.c.h.b16 %v326
        %v985 = vunpack.c.l.b16 %v327
        %v986 = vunpack.c.h.b16 %v327
        %v987 = vunpack.c.l.b16 %v328
        %v988 = vunpack.c.h.b16 %v328
        %v989 = vunpack.c.l.b16 %v329
        %v990 = vunpack.c.h.b16 %v329
        %v991 = vunpack.c.l.b16 %v330
        %v992 = vunpack.c.h.b16 %v330
        %v993 = vunpack.c.l.b16 %v331
        %v994 = vunpack.c.h.b16 %v331
        %v995 = vunpack.c.l.b16 %v332
        %v996 = vunpack.c.h.b16 %v332
        %v997 = vunpack.c.l.b16 %v333
        %v998 = vunpack.c.h.b16 %v333
        %v999 = vunpack.c.l.b16 %v334
        %v1000 = vunpack.c.h.b16 %v334
        %v1001 = vunpack.c.l.b16 %v335
        %v1002 = vunpack.c.h.b16 %v335
        %v1003 = vunpack.c.l.b16 %v336
        %v1004 = vunpack.c.h.b16 %v336
        %v1005 = vunpack.c.l.b16 %v337
        %v1006 = vunpack.c.h.b16 %v337
        %v1007 = vunpack.c.l.b16 %v338
        %v1008 = vunpack.c.h.b16 %v338
        %v1009 = vunpack.c.l.b16 %v339
        %v1010 = vunpack.c.h.b16 %v339
        %v1011 = vunpack.c.l.b16 %v340
        %v1012 = vunpack.c.h.b16 %v340
        %v1013 = vunpack.c.l.b16 %v341
        %v1014 = vunpack.c.h.b16 %v341
        %v1015 = vunpack.c.l.b16 %v342
        %v1016 = vunpack.c.h.b16 %v342
        %v1017 = vunpack.c.l.b16 %v343
        %v1018 = vunpack.c.h.b16 %v343
        %v1019 = vunpack.c.l.b16 %v344
        %v1020 = vunpack.c.h.b16 %v344
        %v1021 = vunpack.c.l.b16 %v345
        %v1022 = vunpack.c.h.b16 %v345
        %v1023 = vunpack.c.l.b16 %v346
        %v1024 = vunpack.c.h.b16 %v346
        %v1025 = vunpack.c.l.b16 %v347
        %v1026 = vunpack.c.h.b16 %v347
        %v1027 = vunpack.c.l.b16 %v348
        %v1028 = vunpack.c.h.b16 %v348
        %v1029 = vunpack.c.l.b16 %v349
        %v1030 = vunpack.c.h.b16 %v349
        %v1031 = vunpack.c.l.b16 %v350
        %v1032 = vunpack.c.h.b16 %v350
        %v1033 = vunpack.c.l.b16 %v351
        %v1034 = vunpack.c.h.b16 %v351
        %v1035 = vunpack.c.l.b16 %v352
        %v1036 = vunpack.c.h.b16 %v352
        %v1037 = vunpack.c.l.b16 %v353
        %v1038 = vunpack.c.h.b16 %v353
        %v1039 = vunpack.c.l.b16 %v354
        %v1040 = vunpack.c.h.b16 %v354
        %v1041 = vunpack.c.l.b16 %v355
        %v1042 = vunpack.c.h.b16 %v355
        %v1043 = vunpack.c.l.b16 %v356
        %v1044 = vunpack.c.h.b16 %v356
        %v1045 = vunpack.c.l.b16 %v357
        %v1046 = vunpack.c.h.b16 %v357
        %v1047 = vunpack.c.l.b16 %v358
        %v1048 = vunpack.c.h.b16 %v358
        %v1049 = vunpack.c.l.b16 %v359
        %v1050 = vunpack.c.h.b16 %v359
        %v1051 = vunpack.c.l.b16 %v360
        %v1052 = vunpack.c.h.b16 %v360
        %v1053 = vunpack.c.l.b16 %v361
        %v1054 = vunpack.c.h.b16 %v361
        %v1055 = vunpack.c.l.b16 %v362
        %v1056 = vunpack.c.h.b16 %v362
        %v1057 = vunpack.c.l.b16 %v363
        %v1058 = vunpack.c.h.b16 %v363
        %v1059 = vunpack.c.l.b16 %v364
        %v1060 = vunpack.c.h.b16 %v364
        %v1061 = vunpack.c.l.b16 %v365
        %v1062 = vunpack.c.h.b16 %v365
        %v1063 = vunpack.c.l.b16 %v366
        %v1064 = vunpack.c.h.b16 %v366
        %v1065 = vunpack.c.l.b16 %v367
        %v1066 = vunpack.c.h.b16 %v367
        %v1067 = vunpack.c.l.b16 %v368
        %v1068 = vunpack.c.h.b16 %v368
        %v1069 = vunpack.c.l.b16 %v369
        %v1070 = vunpack.c.h.b16 %v369
        %v1071 = vunpack.c.l.b16 %v370
        %v1072 = vunpack.c.h.b16 %v370
        %v1073 = vunpack.c.l.b16 %v371
        %v1074 = vunpack.c.h.b16 %v371
        %v1075 = vunpack.c.l.b16 %v372
        %v1076 = vunpack.c.h.b16 %v372
        %v1077 = vunpack.c.l.b16 %v373
        %v1078 = vunpack.c.h.b16 %v373
        %v1079 = vunpack.c.l.b16 %v374
        %v1080 = vunpack.c.h.b16 %v374
        %v1081 = vunpack.c.l.b16 %v375
        %v1082 = vunpack.c.h.b16 %v375
        %v1083 = vunpack.c.l.b16 %v376
        %v1084 = vunpack.c.h.b16 %v376
        %v1085 = vunpack.c.l.b16 %v377
        %v1086 = vunpack.c.h.b16 %v377
        %v1087 = vunpack.c.l.b16 %v378
        %v1088 = vunpack.c.h.b16 %v378
        %v1089 = vunpack.c.l.b16 %v379
        %v1090 = vunpack.c.h.b16 %v379
        %v1091 = vunpack.c.l.b16 %v380
        %v1092 = vunpack.c.h.b16 %v380
        %v1093 = vunpack.c.l.b16 %v381
        %v1094 = vunpack.c.h.b16 %v381
        %v1095 = vunpack.c.l.b16 %v382
        %v1096 = vunpack.c.h.b16 %v382
        %v1097 = vunpack.c.l.b16 %v383
        %v1098 = vunpack.c.h.b16 %v383
        %v1099 = vunpack.c.l.b16 %v384
        %v1100 = vunpack.c.h.b16 %v384
        %v1101 = vunpack.c.l.b16 %v385
        %v1102 = vunpack.c.h.b16 %v385
        %v1103 = vunpack.c.l.b16 %v386
        %v1104 = vunpack.c.h.b16 %v386
        %v1105 = vunpack.c.l.b16 %v387
        %v1106 = vunpack.c.h.b16 %v387
        %v1107 = vunpack.c.l.b16 %v388
        %v1108 = vunpack.c.h.b16 %v388
        %v1109 = vunpack.c.l.b16 %v389
        %v1110 = vunpack.c.h.b16 %v389
        %v1111 = vunpack.c.l.b16 %v390
        %v1112 = vunpack.c.h.b16 %v390
        %v1113 = vunpack.c.l.b16 %v391
        %v1114 = vunpack.c.h.b16 %v391
        %v1115 = vunpack.c.l.b16 %v392
        %v1116 = vunpack.c.h.b16 %v392
        %v1117 = vunpack.c.l.b16 %v393
        %v1118 = vunpack.c.h.b16 %v393
        %v1119 = vunpack.c.l.b16 %v394
        %v1120 = vunpack.c.h.b16 %v394
        %v1121 = vunpack.c.l.b16 %v395
        %v1122 = vunpack.c.h.b16 %v395
        %v1123 = vunpack.c.l.b16 %v396
        %v1124 = vunpack.c.h.b16 %v396
        %v1125 = vunpack.c.l.b16 %v397
        %v1126 = vunpack.c.h.b16 %v397
        %v1127 = vunpack.c.l.b16 %v398
        %v1128 = vunpack.c.h.b16 %v398
        %v1129 = vunpack.c.l.b16 %v399
        %v1130 = vunpack.c.h.b16 %v399
        %v1131 = vunpack.c.l.b16 %v400
        %v1132 = vunpack.c.h.b16 %v400
        %v1133 = vunpack.c.l.b16 %v401
        %v1134 = vunpack.c.h.b16 %v401
        %v1135 = vunpack.c.l.b16 %v402
        %v1136 = vunpack.c.h.b16 %v402
        %v1137 = vunpack.c.l.b16 %v403
        %v1138 = vunpack.c.h.b16 %v403
        %v1139 = vunpack.c.l.b16 %v404
        %v1140 = vunpack.c.h.b16 %v404
        %v1141 = vunpack.c.l.b16 %v405
        %v1142 = vunpack.c.h.b16 %v405
        %v1143 = vunpack.c.l.b16 %v406
        %v1144 = vunpack.c.h.b16 %v406
        %v1145 = vunpack.c.l.b16 %v407
        %v1146 = vunpack.c.h.b16 %v407
        %v1147 = vunpack.c.l.b16 %v408
        %v1148 = vunpack.c.h.b16 %v408
        %v1149 = vunpack.c.l.b16 %v409
        %v1150 = vunpack.c.h.b16 %v409
        %v1151 = vunpack.c.l.b16 %v410
        %v1152 = vunpack.c.h.b16 %v410
        %v1153 = vunpack.c.l.b16 %v411
        %v1154 = vunpack.c.h.b16 %v411
        %v1155 = vunpack.c.l.b16 %v412
        %v1156 = vunpack.c.h.b16 %v412
        %v1157 = vunpack.c.l.b16 %v413
        %v1158 = vunpack.c.h.b16 %v413
        %v1159 = vunpack.c.l.b16 %v414
        %v1160 = vunpack.c.h.b16 %v414
        %v1161 = vunpack.c.l.b16 %v415
        %v1162 = vunpack.c.h.b16 %v415
        %v1163 = vunpack.c.l.b16 %v416
        %v1164 = vunpack.c.h.b16 %v416
        %v1165 = vunpack.c.l.b16 %v417
        %v1166 = vunpack.c.h.b16 %v417
        %v1167 = vunpack.c.l.b16 %v418
        %v1168 = vunpack.c.h.b16 %v418
        %v1169 = vunpack.c.l.b16 %v419
        %v1170 = vunpack.c.h.b16 %v419
        %v1171 = vunpack.c.l.b16 %v420
        %v1172 = vunpack.c.h.b16 %v420
        %v1173 = vunpack.c.l.b16 %v421
        %v1174 = vunpack.c.h.b16 %v421
        %v1175 = vunpack.c.l.b16 %v422
        %v1176 = vunpack.c.h.b16 %v422
        %v1177 = vunpack.c.l.b16 %v423
        %v1178 = vunpack.c.h.b16 %v423
        %v1179 = vunpack.c.l.b16 %v424
        %v1180 = vunpack.c.h.b16 %v424
        %v1181 = vunpack.c.l.b16 %v425
        %v1182 = vunpack.c.h.b16 %v425
        %v1183 = vunpack.c.l.b16 %v426
        %v1184 = vunpack.c.h.b16 %v426
        %v1185 = vunpack.c.l.b16 %v427
        %v1186 = vunpack.c.h.b16 %v427
        %v1187 = vunpack.c.l.b16 %v428
        %v1188 = vunpack.c.h.b16 %v428
        %v1189 = vunpack.c.l.b16 %v429
        %v1190 = vunpack.c.h.b16 %v429
        %v1191 = vunpack.c.l.b16 %v430
        %v1192 = vunpack.c.h.b16 %v430
        %v1193 = vunpack.c.l.b16 %v431
        %v1194 = vunpack.c.h.b16 %v431
        %v1195 = vunpack.c.l.b16 %v432
        %v1196 = vunpack.c.h.b16 %v432
        %v1197 = vunpack.c.l.b16 %v433
        %v1198 = vunpack.c.h.b16 %v433
        %v1199 = vunpack.c.l.b16 %v434
        %v1200 = vunpack.c.h.b16 %v434
        %v1201 = vunpack.c.l.b16 %v435
        %v1202 = vunpack.c.h.b16 %v435
        %v1203 = vunpack.c.l.b16 %v436
        %v1204 = vunpack.c.h.b16 %v436
        %v1205 = vunpack.c.l.b16 %v437
        %v1206 = vunpack.c.h.b16 %v437
        %v1207 = vunpack.c.l.b16 %v438
        %v1208 = vunpack.c.h.b16 %v438
        %v1209 = vunpack.c.l.b16 %v439
        %v1210 = vunpack.c.h.b16 %v439
        %v1211 = vunpack.c.l.b16 %v440
        %v1212 = vunpack.c.h.b16 %v440
        %v1213 = vunpack.c.l.b16 %v441
        %v1214 = vunpack.c.h.b16 %v441
        %v1215 = vunpack.c.l.b16 %v442
        %v1216 = vunpack.c.h.b16 %v442
        %v1217 = vunpack.c.l.b16 %v443
        %v1218 = vunpack.c.h.b16 %v443
        %v1219 = vunpack.c.l.b16 %v444
        %v1220 = vunpack.c.h.b16 %v444
        %v1221 = vunpack.c.l.b16 %v445
        %v1222 = vunpack.c.h.b16 %v445
        %v1223 = vunpack.c.l.b16 %v446
        %v1224 = vunpack.c.h.b16 %v446
        %v1225 = vunpack.c.l.b16 %v447
        %v1226 = vunpack.c.h.b16 %v447
        %v1227 = vunpack.c.l.b16 %v448
        %v1228 = vunpack.c.h.b16 %v448
        %v1229 = vunpack.c.l.b16 %v449
        %v1230 = vunpack.c.h.b16 %v449
        %v1231 = vunpack.c.l.b16 %v450
        %v1232 = vunpack.c.h.b16 %v450
        %v1233 = vunpack.c.l.b16 %v451
        %v1234 = vunpack.c.h.b16 %v451
        %v1235 = vunpack.c.l.b16 %v452
        %v1236 = vunpack.c.h.b16 %v452
        %v1237 = vunpack.c.l.b16 %v453
        %v1238 = vunpack.c.h.b16 %v453
        %v1239 = vunpack.c.l.b16 %v454
        %v1240 = vunpack.c.h.b16 %v454
        %v1241 = vunpack.c.l.b16 %v455
        %v1242 = vunpack.c.h.b16 %v455
        %v1243 = vunpack.c.l.b16 %v456
        %v1244 = vunpack.c.h.b16 %v456
        %v1245 = vunpack.c.l.b16 %v457
        %v1246 = vunpack.c.h.b16 %v457
        %v1247 = vunpack.c.l.b16 %v458
        %v1248 = vunpack.c.h.b16 %v458
        %v1249 = vunpack.c.l.b16 %v459
        %v1250 = vunpack.c.h.b16 %v459
        %v1251 = vunpack.c.l.b16 %v460
        %v1252 = vunpack.c.h.b16 %v460
        %v1253 = vunpack.c.l.b16 %v461
        %v1254 = vunpack.c.h.b16 %v461
        %v1255 = vunpack.c.l.b16 %v462
        %v1256 = vunpack.c.h.b16 %v462
        %v1257 = vunpack.c.l.b16 %v463
        %v1258 = vunpack.c.h.b16 %v463
        %v1259 = vunpack.c.l.b16 %v464
        %v1260 = vunpack.c.h.b16 %v464
        %v1261 = vunpack.c.l.b16 %v465
        %v1262 = vunpack.c.h.b16 %v465
        %v1263 = vunpack.c.l.b16 %v466
        %v1264 = vunpack.c.h.b16 %v466
        %v1265 = vunpack.c.l.b16 %v467
        %v1266 = vunpack.c.h.b16 %v467
        %v1267 = vunpack.c.l.b16 %v468
        %v1268 = vunpack.c.h.b16 %v468
        %v1269 = vunpack.c.l.b16 %v469
        %v1270 = vunpack.c.h.b16 %v469
        %v1271 = vunpack.c.l.b16 %v470
        %v1272 = vunpack.c.h.b16 %v470
        %v1273 = vunpack.c.l.b16 %v471
        %v1274 = vunpack.c.h.b16 %v471
        %v1275 = vunpack.c.l.b16 %v472
        %v1276 = vunpack.c.h.b16 %v472
        %v1277 = vunpack.c.l.b16 %v473
        %v1278 = vunpack.c.h.b16 %v473
        %v1279 = vunpack.c.l.b16 %v474
        %v1280 = vunpack.c.h.b16 %v474
        %v1281 = vunpack.c.l.b16 %v475
        %v1282 = vunpack.c.h.b16 %v475
        %v1283 = vunpack.c.l.b16 %v476
        %v1284 = vunpack.c.h.b16 %v476
        %v1285 = vunpack.c.l.b16 %v477
        %v1286 = vunpack.c.h.b16 %v477
        %v1287 = vunpack.c.l.b16 %v478
        %v1288 = vunpack.c.h.b16 %v478
        %v1289 = vunpack.c.l.b16 %v479
        %v1290 = vunpack.c.h.b16 %v479
        %v1291 = vunpack.c.l.b16 %v480
        %v1292 = vunpack.c.h.b16 %v480
        %v1293 = vunpack.c.l.b16 %v481
        %v1294 = vunpack.c.h.b16 %v481
        %v1295 = vunpack.c.l.b16 %v482
        %v1296 = vunpack.c.h.b16 %v482
        %v1297 = vunpack.c.l.b16 %v483
        %v1298 = vunpack.c.h.b16 %v483
        %v1299 = vunpack.c.l.b16 %v484
        %v1300 = vunpack.c.h.b16 %v484
        %v1301 = vunpack.c.l.b16 %v485
        %v1302 = vunpack.c.h.b16 %v485
        %v1303 = vunpack.c.l.b16 %v486
        %v1304 = vunpack.c.h.b16 %v486
        %v1305 = vunpack.c.l.b16 %v487
        %v1306 = vunpack.c.h.b16 %v487
        %v1307 = vunpack.c.l.b16 %v488
        %v1308 = vunpack.c.h.b16 %v488
        %v1309 = vunpack.c.l.b16 %v489
        %v1310 = vunpack.c.h.b16 %v489
        %v1311 = vunpack.c.l.b16 %v490
        %v1312 = vunpack.c.h.b16 %v490
        %v1313 = vunpack.c.l.b16 %v491
        %v1314 = vunpack.c.h.b16 %v491
        %v1315 = vunpack.c.l.b16 %v492
        %v1316 = vunpack.c.h.b16 %v492
        %v1317 = vunpack.c.l.b16 %v493
        %v1318 = vunpack.c.h.b16 %v493
        %v1319 = vunpack.c.l.b16 %v494
        %v1320 = vunpack.c.h.b16 %v494
        %v1321 = vunpack.c.l.b16 %v495
        %v1322 = vunpack.c.h.b16 %v495
        %v1323 = vunpack.c.l.b16 %v496
        %v1324 = vunpack.c.h.b16 %v496
        %v1325 = vunpack.c.l.b16 %v497
        %v1326 = vunpack.c.h.b16 %v497
        %v1327 = vunpack.c.l.b16 %v498
        %v1328 = vunpack.c.h.b16 %v498
        %v1329 = vpack.c.b16 %v819, %v817
        %v1330 = vpack.c.b16 %v820, %v818
        %v1331 = vpack.c.b16 %v823, %v821
        %v1332 = vpack.c.b16 %v824, %v822
        %v1333 = vpack.c.b16 %v827, %v825
        %v1334 = vpack.c.b16 %v828, %v826
        %v1335 = vpack.c.b16 %v831, %v829
        %v1336 = vpack.c.b16 %v832, %v830
        %v1337 = vpack.c.b16 %v835, %v833
        %v1338 = vpack.c.b16 %v836, %v834
        %v1339 = vpack.c.b16 %v839, %v837
        %v1340 = vpack.c.b16 %v840, %v838
        %v1341 = vpack.c.b16 %v843, %v841
        %v1342 = vpack.c.b16 %v844, %v842
        %v1343 = vpack.c.b16 %v847, %v845
        %v1344 = vpack.c.b16 %v848, %v846
        %v1345 = vpack.c.b16 %v851, %v849
        %v1346 = vpack.c.b16 %v852, %v850
        %v1347 = vpack.c.b16 %v855, %v853
        %v1348 = vpack.c.b16 %v856, %v854
        %v1349 = vpack.c.b16 %v859, %v857
        %v1350 = vpack.c.b16 %v860, %v858
        %v1351 = vpack.c.b16 %v863, %v861
        %v1352 = vpack.c.b16 %v864, %v862
        %v1353 = vpack.c.b16 %v867, %v865
        %v1354 = vpack.c.b16 %v868, %v866
        %v1355 = vpack.c.b16 %v871, %v869
        %v1356 = vpack.c.b16 %v872, %v870
        %v1357 = vpack.c.b16 %v875, %v873
        %v1358 = vpack.c.b16 %v876, %v874
        %v1359 = vpack.c.b16 %v879, %v877
        %v1360 = vpack.c.b16 %v880, %v878
        %v1361 = vpack.c.b16 %v883, %v881
        %v1362 = vpack.c.b16 %v884, %v882
        %v1363 = vpack.c.b16 %v887, %v885
        %v1364 = vpack.c.b16 %v888, %v886
        %v1365 = vpack.c.b16 %v891, %v889
        %v1366 = vpack.c.b16 %v892, %v890
        %v1367 = vpack.c.b16 %v895, %v893
        %v1368 = vpack.c.b16 %v896, %v894
        %v1369 = vpack.c.b16 %v899, %v897
        %v1370 = vpack.c.b16 %v900, %v898
        %v1371 = vpack.c.b16 %v903, %v901
        %v1372 = vpack.c.b16 %v904, %v902
        %v1373 = vpack.c.b16 %v907, %v905
        %v1374 = vpack.c.b16 %v908, %v906
        %v1375 = vpack.c.b16 %v911, %v909
        %v1376 = vpack.c.b16 %v912, %v910
        %v1377 = vpack.c.b16 %v915, %v913
        %v1378 = vpack.c.b16 %v916, %v914
        %v1379 = vpack.c.b16 %v919, %v917
        %v1380 = vpack.c.b16 %v920, %v918
        %v1381 = vpack.c.b16 %v923, %v921
        %v1382 = vpack.c.b16 %v924, %v922
        %v1383 = vpack.c.b16 %v927, %v925
        %v1384 = vpack.c.b16 %v928, %v926
        %v1385 = vpack.c.b16 %v931, %v929
        %v1386 = vpack.c.b16 %v932, %v930
        %v1387 = vpack.c.b16 %v935, %v933
        %v1388 = vpack.c.b16 %v936, %v934
        %v1389 = vpack.c.b16 %v939, %v937
        %v1390 = vpack.c.b16 %v940, %v938
        %v1391 = vpack.c.b16 %v943, %v941
        %v1392 = vpack.c.b16 %v944, %v942
        %v1393 = vpack.c.b16 %v947, %v945
        %v1394 = vpack.c.b16 %v948, %v946
        %v1395 = vpack.c.b16 %v951, %v949
        %v1396 = vpack.c.b16 %v952, %v950
        %v1397 = vpack.c.b16 %v955, %v953
        %v1398 = vpack.c.b16 %v956, %v954
        %v1399 = vpack.c.b16 %v959, %v957
        %v1400 = vpack.c.b16 %v960, %v958
        %v1401 = vpack.c.b16 %v963, %v961
        %v1402 = vpack.c.b16 %v964, %v962
        %v1403 = vpack.c.b16 %v967, %v965
        %v1404 = vpack.c.b16 %v968, %v966
        %v1405 = vpack.c.b16 %v971, %v969
        %v1406 = vpack.c.b16 %v972, %v970
        %v1407 = vpack.c.b16 %v975, %v973
        %v1408 = vpack.c.b16 %v976, %v974
        %v1409 = vpack.c.b16 %v979, %v977
        %v1410 = vpack.c.b16 %v980, %v978
        %v1411 = vpack.c.b16 %v983, %v981
        %v1412 = vpack.c.b16 %v984, %v982
        %v1413 = vpack.c.b16 %v987, %v985
        %v1414 = vpack.c.b16 %v988, %v986
        %v1415 = vpack.c.b16 %v991, %v989
        %v1416 = vpack.c.b16 %v992, %v990
        %v1417 = vpack.c.b16 %v995, %v993
        %v1418 = vpack.c.b16 %v996, %v994
        %v1419 = vpack.c.b16 %v999, %v997
        %v1420 = vpack.c.b16 %v1000, %v998
        %v1421 = vpack.c.b16 %v1003, %v1001
        %v1422 = vpack.c.b16 %v1004, %v1002
        %v1423 = vpack.c.b16 %v1007, %v1005
        %v1424 = vpack.c.b16 %v1008, %v1006
        %v1425 = vpack.c.b16 %v1011, %v1009
        %v1426 = vpack.c.b16 %v1012, %v1010
        %v1427 = vpack.c.b16 %v1015, %v1013
        %v1428 = vpack.c.b16 %v1016, %v1014
        %v1429 = vpack.c.b16 %v1019, %v1017
        %v1430 = vpack.c.b16 %v1020, %v1018
        %v1431 = vpack.c.b16 %v1023, %v1021
        %v1432 = vpack.c.b16 %v1024, %v1022
        %v1433 = vpack.c.b16 %v1027, %v1025
        %v1434 = vpack.c.b16 %v1028, %v1026
        %v1435 = vpack.c.b16 %v1031, %v1029
        %v1436 = vpack.c.b16 %v1032, %v1030
        %v1437 = vpack.c.b16 %v1035, %v1033
        %v1438 = vpack.c.b16 %v1036, %v1034
        %v1439 = vpack.c.b16 %v1039, %v1037
        %v1440 = vpack.c.b16 %v1040, %v1038
        %v1441 = vpack.c.b16 %v1043, %v1041
        %v1442 = vpack.c.b16 %v1044, %v1042
        %v1443 = vpack.c.b16 %v1047, %v1045
        %v1444 = vpack.c.b16 %v1048, %v1046
        %v1445 = vpack.c.b16 %v1051, %v1049
        %v1446 = vpack.c.b16 %v1052, %v1050
        %v1447 = vpack.c.b16 %v1055, %v1053
        %v1448 = vpack.c.b16 %v1056, %v1054
        %v1449 = vpack.c.b16 %v1059, %v1057
        %v1450 = vpack.c.b16 %v1060, %v1058
        %v1451 = vpack.c.b16 %v1063, %v1061
        %v1452 = vpack.c.b16 %v1064, %v1062
        %v1453 = vpack.c.b16 %v1067, %v1065
        %v1454 = vpack.c.b16 %v1068, %v1066
        %v1455 = vpack.c.b16 %v1071, %v1069
        %v1456 = vpack.c.b16 %v1072, %v1070
        %v1457 = vpack.c.b16 %v1075, %v1073
        %v1458 = vpack.c.b16 %v1076, %v1074
        %v1459 = vpack.c.b16 %v1079, %v1077
        %v1460 = vpack.c.b16 %v1080, %v1078
        %v1461 = vpack.c.b16 %v1083, %v1081
        %v1462 = vpack.c.b16 %v1084, %v1082
        %v1463 = vpack.c.b16 %v1087, %v1085
        %v1464 = vpack.c.b16 %v1088, %v1086
        %v1465 = vpack.c.b16 %v1091, %v1089
        %v1466 = vpack.c.b16 %v1092, %v1090
        %v1467 = vpack.c.b16 %v1095, %v1093
        %v1468 = vpack.c.b16 %v1096, %v1094
        %v1469 = vpack.c.b16 %v1099, %v1097
        %v1470 = vpack.c.b16 %v1100, %v1098
        %v1471 = vpack.c.b16 %v1103, %v1101
        %v1472 = vpack.c.b16 %v1104, %v1102
        %v1473 = vpack.c.b16 %v1107, %v1105
        %v1474 = vpack.c.b16 %v1108, %v1106
        %v1475 = vpack.c.b16 %v1111, %v1109
        %v1476 = vpack.c.b16 %v1112, %v1110
        %v1477 = vpack.c.b16 %v1115, %v1113
        %v1478 = vpack.c.b16 %v1116, %v1114
        %v1479 = vpack.c.b16 %v1119, %v1117
        %v1480 = vpack.c.b16 %v1120, %v1118
        %v1481 = vpack.c.b16 %v1123, %v1121
        %v1482 = vpack.c.b16 %v1124, %v1122
        %v1483 = vpack.c.b16 %v1127, %v1125
        %v1484 = vpack.c.b16 %v1128, %v1126
        %v1485 = vpack.c.b16 %v1131, %v1129
        %v1486 = vpack.c.b16 %v1132, %v1130
        %v1487 = vpack.c.b16 %v1135, %v1133
        %v1488 = vpack.c.b16 %v1136, %v1134
        %v1489 = vpack.c.b16 %v1139, %v1137
        %v1490 = vpack.c.b16 %v1140, %v1138
        %v1491 = vpack.c.b16 %v1143, %v1141
        %v1492 = vpack.c.b16 %v1144, %v1142
        %v1493 = vpack.c.b16 %v1147, %v1145
        %v1494 = vpack.c.b16 %v1148, %v1146
        %v1495 = vpack.c.b16 %v1151, %v1149
        %v1496 = vpack.c.b16 %v1152, %v1150
        %v1497 = vpack.c.b16 %v1155, %v1153
        %v1498 = vpack.c.b16 %v1156, %v1154
        %v1499 = vpack.c.b16 %v1159, %v1157
        %v1500 = vpack.c.b16 %v1160, %v1158
        %v1501 = vpack.c.b16 %v1163, %v1161
        %v1502 = vpack.c.b16 %v1164, %v1162
        %v1503 = vpack.c.b16 %v1167, %v1165
        %v1504 = vpack.c.b16 %v1168, %v1166
        %v1505 = vpack.c.b16 %v1171, %v1169
        %v1506 = vpack.c.b16 %v1172, %v1170
        %v1507 = vpack.c.b16 %v1175, %v1173
        %v1508 = vpack.c.b16 %v1176, %v1174
        %v1509 = vpack.c.b16 %v1179, %v1177
        %v1510 = vpack.c.b16 %v1180, %v1178
        %v1511 = vpack.c.b16 %v1183, %v1181
        %v1512 = vpack.c.b16 %v1184, %v1182
        %v1513 = vpack.c.b16 %v1187, %v1185
        %v1514 = vpack.c.b16 %v1188, %v1186
        %v1515 = vpack.c.b16 %v1191, %v1189
        %v1516 = vpack.c.b16 %v1192, %v1190
        %v1517 = vpack.c.b16 %v1195, %v1193
        %v1518 = vpack.c.b16 %v1196, %v1194
        %v1519 = vpack.c.b16 %v1199, %v1197
        %v1520 = vpack.c.b16 %v1200, %v1198
        %v1521 = vpack.c.b16 %v1203, %v1201
        %v1522 = vpack.c.b16 %v1204, %v1202
        %v1523 = vpack.c.b16 %v1207, %v1205
        %v1524 = vpack.c.b16 %v1208, %v1206
        %v1525 = vpack.c.b16 %v1211, %v1209
        %v1526 = vpack.c.b16 %v1212, %v1210
        %v1527 = vpack.c.b16 %v1215, %v1213
        %v1528 = vpack.c.b16 %v1216, %v1214
        %v1529 = vpack.c.b16 %v1219, %v1217
        %v1530 = vpack.c.b16 %v1220, %v1218
        %v1531 = vpack.c.b16 %v1223, %v1221
        %v1532 = vpack.c.b16 %v1224, %v1222
        %v1533 = vpack.c.b16 %v1227, %v1225
        %v1534 = vpack.c.b16 %v1228, %v1226
        %v1535 = vpack.c.b16 %v1231, %v1229
        %v1536 = vpack.c.b16 %v1232, %v1230
        %v1537 = vpack.c.b16 %v1235, %v1233
        %v1538 = vpack.c.b16 %v1236, %v1234
        %v1539 = vpack.c.b16 %v1239, %v1237
        %v1540 = vpack.c.b16 %v1240, %v1238
        %v1541 = vpack.c.b16 %v1243, %v1241
        %v1542 = vpack.c.b16 %v1244, %v1242
        %v1543 = vpack.c.b16 %v1247, %v1245
        %v1544 = vpack.c.b16 %v1248, %v1246
        %v1545 = vpack.c.b16 %v1251, %v1249
        %v1546 = vpack.c.b16 %v1252, %v1250
        %v1547 = vpack.c.b16 %v1255, %v1253
        %v1548 = vpack.c.b16 %v1256, %v1254
        %v1549 = vpack.c.b16 %v1259, %v1257
        %v1550 = vpack.c.b16 %v1260, %v1258
        %v1551 = vpack.c.b16 %v1263, %v1261
        %v1552 = vpack.c.b16 %v1264, %v1262
        %v1553 = vpack.c.b16 %v1267, %v1265
        %v1554 = vpack.c.b16 %v1268, %v1266
        %v1555 = vpack.c.b16 %v1271, %v1269
        %v1556 = vpack.c.b16 %v1272, %v1270
        %v1557 = vpack.c.b16 %v1275, %v1273
        %v1558 = vpack.c.b16 %v1276, %v1274
        %v1559 = vpack.c.b16 %v1279, %v1277
        %v1560 = vpack.c.b16 %v1280, %v1278
        %v1561 = vpack.c.b16 %v1283, %v1281
        %v1562 = vpack.c.b16 %v1284, %v1282
        %v1563 = vpack.c.b16 %v1287, %v1285
        %v1564 = vpack.c.b16 %v1288, %v1286
        %v1565 = vpack.c.b16 %v1291, %v1289
        %v1566 = vpack.c.b16 %v1292, %v1290
        %v1567 = vpack.c.b16 %v1295, %v1293
        %v1568 = vpack.c.b16 %v1296, %v1294
        %v1569 = vpack.c.b16 %v1299, %v1297
        %v1570 = vpack.c.b16 %v1300, %v1298
        %v1571 = vpack.c.b16 %v1303, %v1301
        %v1572 = vpack.c.b16 %v1304, %v1302
        %v1573 = vpack.c.b16 %v1307, %v1305
        %v1574 = vpack.c.b16 %v1308, %v1306
        %v1575 = vpack.c.b16 %v1311, %v1309
        %v1576 = vpack.c.b16 %v1312, %v1310
        %v1577 = vpack.c.b16 %v1315, %v1313
        %v1578 = vpack.c.b16 %v1316, %v1314
        %v1579 = vpack.c.b16 %v1319, %v1317
        %v1580 = vpack.c.b16 %v1320, %v1318
        %v1581 = vpack.c.b16 %v1323, %v1321
        %v1582 = vpack.c.b16 %v1324, %v1322
        %v1583 = vpack.c.b16 %v1327, %v1325
        %v1584 = vpack.c.b16 %v1328, %v1326
        %1841 = vmatpush.bf16.msra.mxu0 %v1343
        %1842 = vmatpush.bf16.msra.mxu0 %v1341
        %1843 = vmatpush.bf16.msra.mxu0 %v1339
        %1844 = vmatpush.bf16.msra.mxu0 %v1337
        %1845 = vmatpush.bf16.msra.mxu0 %v1335
        %1846 = vmatpush.bf16.msra.mxu0 %v1333
        %1847 = vmatpush.bf16.msra.mxu0 %v1331
        %1848 = vmatpush.bf16.msra.mxu0 %v1329
        %1849 = vmatmul.bf16.gmra.mxu0 %v529
        %v1850 = vpop.f32.mrf.mxu0
        %v1851 = vadd.f32 %v501, %v1850
        %v1852 = vpop.f32.mrf.mxu0
        %1853 = vdwg.mxu0
        %1854 = vmatpush.bf16.msra.mxu0 %v1359
        %1855 = vmatpush.bf16.msra.mxu0 %v1357
        %1856 = vmatpush.bf16.msra.mxu0 %v1355
        %1857 = vmatpush.bf16.msra.mxu0 %v1353
        %1858 = vmatpush.bf16.msra.mxu0 %v1351
        %1859 = vmatpush.bf16.msra.mxu0 %v1349
        %1860 = vmatpush.bf16.msra.mxu0 %v1347
        %1861 = vmatpush.bf16.msra.mxu0 %v1345
        %1862 = vmatmul.bf16.gmra.mxu0 %v530
        %v1863 = vpop.f32.mrf.mxu0
        %v1864 = vadd.f32 %v1851, %v1863
        %v1865 = vpop.f32.mrf.mxu0
        %1866 = vdwg.mxu0
        %1867 = vmatpush.bf16.msra.mxu0 %v1375
        %1868 = vmatpush.bf16.msra.mxu0 %v1373
        %1869 = vmatpush.bf16.msra.mxu0 %v1371
        %1870 = vmatpush.bf16.msra.mxu0 %v1369
        %1871 = vmatpush.bf16.msra.mxu0 %v1367
        %1872 = vmatpush.bf16.msra.mxu0 %v1365
        %1873 = vmatpush.bf16.msra.mxu0 %v1363
        %1874 = vmatpush.bf16.msra.mxu0 %v1361
        %1875 = vmatmul.bf16.gmra.mxu0 %v531
        %v1876 = vpop.f32.mrf.mxu0
        %v1877 = vadd.f32 %v1864, %v1876
        %v1878 = vpop.f32.mrf.mxu0
        %1879 = vdwg.mxu0
        %1880 = vmatpush.bf16.msra.mxu0 %v1391
        %1881 = vmatpush.bf16.msra.mxu0 %v1389
        %1882 = vmatpush.bf16.msra.mxu0 %v1387
        %1883 = vmatpush.bf16.msra.mxu0 %v1385
        %1884 = vmatpush.bf16.msra.mxu0 %v1383
        %1885 = vmatpush.bf16.msra.mxu0 %v1381
        %1886 = vmatpush.bf16.msra.mxu0 %v1379
        %1887 = vmatpush.bf16.msra.mxu0 %v1377
        %1888 = vmatmul.bf16.gmra.mxu0 %v532
        %v1889 = vpop.f32.mrf.mxu0
        %v1890 = vadd.f32 %v1877, %v1889
        %v1891 = vpop.f32.mrf.mxu0
        %1892 = vdwg.mxu0
        %1893 = vmatpush.bf16.msra.mxu0 %v1407
        %1894 = vmatpush.bf16.msra.mxu0 %v1405
        %1895 = vmatpush.bf16.msra.mxu0 %v1403
        %1896 = vmatpush.bf16.msra.mxu0 %v1401
        %1897 = vmatpush.bf16.msra.mxu0 %v1399
        %1898 = vmatpush.bf16.msra.mxu0 %v1397
        %1899 = vmatpush.bf16.msra.mxu0 %v1395
        %1900 = vmatpush.bf16.msra.mxu0 %v1393
        %1901 = vmatmul.bf16.gmra.mxu0 %v533
        %v1902 = vpop.f32.mrf.mxu0
        %v1903 = vadd.f32 %v1890, %v1902
        %v1904 = vpop.f32.mrf.mxu0
        %1905 = vdwg.mxu0
        %1906 = vmatpush.bf16.msra.mxu0 %v1423
        %1907 = vmatpush.bf16.msra.mxu0 %v1421
        %1908 = vmatpush.bf16.msra.mxu0 %v1419
        %1909 = vmatpush.bf16.msra.mxu0 %v1417
        %1910 = vmatpush.bf16.msra.mxu0 %v1415
        %1911 = vmatpush.bf16.msra.mxu0 %v1413
        %1912 = vmatpush.bf16.msra.mxu0 %v1411
        %1913 = vmatpush.bf16.msra.mxu0 %v1409
        %1914 = vmatmul.bf16.gmra.mxu0 %v534
        %v1915 = vpop.f32.mrf.mxu0
        %v1916 = vadd.f32 %v1903, %v1915
        %v1917 = vpop.f32.mrf.mxu0
        %1918 = vdwg.mxu0
        %1919 = vmatpush.bf16.msra.mxu0 %v1439
        %1920 = vmatpush.bf16.msra.mxu0 %v1437
        %1921 = vmatpush.bf16.msra.mxu0 %v1435
        %1922 = vmatpush.bf16.msra.mxu0 %v1433
        %1923 = vmatpush.bf16.msra.mxu0 %v1431
        %1924 = vmatpush.bf16.msra.mxu0 %v1429
        %1925 = vmatpush.bf16.msra.mxu0 %v1427
        %1926 = vmatpush.bf16.msra.mxu0 %v1425
        %1927 = vmatmul.bf16.gmra.mxu0 %v535
        %v1928 = vpop.f32.mrf.mxu0
        %v1929 = vadd.f32 %v1916, %v1928
        %v1930 = vpop.f32.mrf.mxu0
        %1931 = vdwg.mxu0
        %1932 = vmatpush.bf16.msra.mxu0 %v1455
        %1933 = vmatpush.bf16.msra.mxu0 %v1453
        %1934 = vmatpush.bf16.msra.mxu0 %v1451
        %1935 = vmatpush.bf16.msra.mxu0 %v1449
        %1936 = vmatpush.bf16.msra.mxu0 %v1447
        %1937 = vmatpush.bf16.msra.mxu0 %v1445
        %1938 = vmatpush.bf16.msra.mxu0 %v1443
        %1939 = vmatpush.bf16.msra.mxu0 %v1441
        %1940 = vmatmul.bf16.gmra.mxu0 %v536
        %v1941 = vpop.f32.mrf.mxu0
        %v1942 = vadd.f32 %v1929, %v1941
        %v1943 = vpop.f32.mrf.mxu0
        %1944 = vdwg.mxu0
        %1945 = vmatpush.bf16.msra.mxu0 %v1471
        %1946 = vmatpush.bf16.msra.mxu0 %v1469
        %1947 = vmatpush.bf16.msra.mxu0 %v1467
        %1948 = vmatpush.bf16.msra.mxu0 %v1465
        %1949 = vmatpush.bf16.msra.mxu0 %v1463
        %1950 = vmatpush.bf16.msra.mxu0 %v1461
        %1951 = vmatpush.bf16.msra.mxu0 %v1459
        %1952 = vmatpush.bf16.msra.mxu0 %v1457
        %1953 = vmatmul.bf16.gmra.mxu0 %v537
        %v1954 = vpop.f32.mrf.mxu0
        %v1955 = vadd.f32 %v1942, %v1954
        %v1956 = vpop.f32.mrf.mxu0
        %1957 = vdwg.mxu0
        %1958 = vmatpush.bf16.msra.mxu0 %v1487
        %1959 = vmatpush.bf16.msra.mxu0 %v1485
        %1960 = vmatpush.bf16.msra.mxu0 %v1483
        %1961 = vmatpush.bf16.msra.mxu0 %v1481
        %1962 = vmatpush.bf16.msra.mxu0 %v1479
        %1963 = vmatpush.bf16.msra.mxu0 %v1477
        %1964 = vmatpush.bf16.msra.mxu0 %v1475
        %1965 = vmatpush.bf16.msra.mxu0 %v1473
        %1966 = vmatmul.bf16.gmra.mxu0 %v538
        %v1967 = vpop.f32.mrf.mxu0
        %v1968 = vadd.f32 %v1955, %v1967
        %v1969 = vpop.f32.mrf.mxu0
        %1970 = vdwg.mxu0
        %1971 = vmatpush.bf16.msra.mxu0 %v1503
        %1972 = vmatpush.bf16.msra.mxu0 %v1501
        %1973 = vmatpush.bf16.msra.mxu0 %v1499
        %1974 = vmatpush.bf16.msra.mxu0 %v1497
        %1975 = vmatpush.bf16.msra.mxu0 %v1495
        %1976 = vmatpush.bf16.msra.mxu0 %v1493
        %1977 = vmatpush.bf16.msra.mxu0 %v1491
        %1978 = vmatpush.bf16.msra.mxu0 %v1489
        %1979 = vmatmul.bf16.gmra.mxu0 %v539
        %v1980 = vpop.f32.mrf.mxu0
        %v1981 = vadd.f32 %v1968, %v1980
        %v1982 = vpop.f32.mrf.mxu0
        %1983 = vdwg.mxu0
        %1984 = vmatpush.bf16.msra.mxu0 %v1519
        %1985 = vmatpush.bf16.msra.mxu0 %v1517
        %1986 = vmatpush.bf16.msra.mxu0 %v1515
        %1987 = vmatpush.bf16.msra.mxu0 %v1513
        %1988 = vmatpush.bf16.msra.mxu0 %v1511
        %1989 = vmatpush.bf16.msra.mxu0 %v1509
        %1990 = vmatpush.bf16.msra.mxu0 %v1507
        %1991 = vmatpush.bf16.msra.mxu0 %v1505
        %1992 = vmatmul.bf16.gmra.mxu0 %v540
        %v1993 = vpop.f32.mrf.mxu0
        %v1994 = vadd.f32 %v1981, %v1993
        %v1995 = vpop.f32.mrf.mxu0
        %1996 = vdwg.mxu0
        %1997 = vmatpush.bf16.msra.mxu0 %v1535
        %1998 = vmatpush.bf16.msra.mxu0 %v1533
        %1999 = vmatpush.bf16.msra.mxu0 %v1531
        %2000 = vmatpush.bf16.msra.mxu0 %v1529
        %2001 = vmatpush.bf16.msra.mxu0 %v1527
        %2002 = vmatpush.bf16.msra.mxu0 %v1525
        %2003 = vmatpush.bf16.msra.mxu0 %v1523
        %2004 = vmatpush.bf16.msra.mxu0 %v1521
        %2005 = vmatmul.bf16.gmra.mxu0 %v541
        %v2006 = vpop.f32.mrf.mxu0
        %v2007 = vadd.f32 %v1994, %v2006
        %v2008 = vpop.f32.mrf.mxu0
        %2009 = vdwg.mxu0
        %2010 = vmatpush.bf16.msra.mxu0 %v1551
        %2011 = vmatpush.bf16.msra.mxu0 %v1549
        %2012 = vmatpush.bf16.msra.mxu0 %v1547
        %2013 = vmatpush.bf16.msra.mxu0 %v1545
        %2014 = vmatpush.bf16.msra.mxu0 %v1543
        %2015 = vmatpush.bf16.msra.mxu0 %v1541
        %2016 = vmatpush.bf16.msra.mxu0 %v1539
        %2017 = vmatpush.bf16.msra.mxu0 %v1537
        %2018 = vmatmul.bf16.gmra.mxu0 %v542
        %v2019 = vpop.f32.mrf.mxu0
        %v2020 = vadd.f32 %v2007, %v2019
        %v2021 = vpop.f32.mrf.mxu0
        %2022 = vdwg.mxu0
        %2023 = vmatpush.bf16.msra.mxu0 %v1567
        %2024 = vmatpush.bf16.msra.mxu0 %v1565
        %2025 = vmatpush.bf16.msra.mxu0 %v1563
        %2026 = vmatpush.bf16.msra.mxu0 %v1561
        %2027 = vmatpush.bf16.msra.mxu0 %v1559
        %2028 = vmatpush.bf16.msra.mxu0 %v1557
        %2029 = vmatpush.bf16.msra.mxu0 %v1555
        %2030 = vmatpush.bf16.msra.mxu0 %v1553
        %2031 = vmatmul.bf16.gmra.mxu0 %v543
        %v2032 = vpop.f32.mrf.mxu0
        %v2033 = vadd.f32 %v2020, %v2032
        %v2034 = vpop.f32.mrf.mxu0
        %2035 = vdwg.mxu0
        %2036 = vmatpush.bf16.msra.mxu0 %v1583
        %2037 = vmatpush.bf16.msra.mxu0 %v1581
        %2038 = vmatpush.bf16.msra.mxu0 %v1579
        %2039 = vmatpush.bf16.msra.mxu0 %v1577
        %2040 = vmatpush.bf16.msra.mxu0 %v1575
        %2041 = vmatpush.bf16.msra.mxu0 %v1573
        %2042 = vmatpush.bf16.msra.mxu0 %v1571
        %2043 = vmatpush.bf16.msra.mxu0 %v1569
        %2044 = vmatmul.bf16.gmra.mxu0 %v544
        %v2045 = vpop.f32.mrf.mxu0
        %v2046 = vadd.f32 %v2033, %v2045
        %v2047 = vpop.f32.mrf.mxu0
        %2048 = vdwg.mxu0
        %2049 = vmatpush.bf16.msra.mxu0 %v1344
        %2050 = vmatpush.bf16.msra.mxu0 %v1342
        %2051 = vmatpush.bf16.msra.mxu0 %v1340
        %2052 = vmatpush.bf16.msra.mxu0 %v1338
        %2053 = vmatpush.bf16.msra.mxu0 %v1336
        %2054 = vmatpush.bf16.msra.mxu0 %v1334
        %2055 = vmatpush.bf16.msra.mxu0 %v1332
        %2056 = vmatpush.bf16.msra.mxu0 %v1330
        %2057 = vmatmul.bf16.gmra.mxu0 %v529
        %v2058 = vpop.f32.mrf.mxu0
        %v2059 = vadd.f32 %v502, %v2058
        %v2060 = vpop.f32.mrf.mxu0
        %2061 = vdwg.mxu0
        %2062 = vmatpush.bf16.msra.mxu0 %v1360
        %2063 = vmatpush.bf16.msra.mxu0 %v1358
        %2064 = vmatpush.bf16.msra.mxu0 %v1356
        %2065 = vmatpush.bf16.msra.mxu0 %v1354
        %2066 = vmatpush.bf16.msra.mxu0 %v1352
        %2067 = vmatpush.bf16.msra.mxu0 %v1350
        %2068 = vmatpush.bf16.msra.mxu0 %v1348
        %2069 = vmatpush.bf16.msra.mxu0 %v1346
        %2070 = vmatmul.bf16.gmra.mxu0 %v530
        %v2071 = vpop.f32.mrf.mxu0
        %v2072 = vadd.f32 %v2059, %v2071
        %v2073 = vpop.f32.mrf.mxu0
        %2074 = vdwg.mxu0
        %2075 = vmatpush.bf16.msra.mxu0 %v1376
        %2076 = vmatpush.bf16.msra.mxu0 %v1374
        %2077 = vmatpush.bf16.msra.mxu0 %v1372
        %2078 = vmatpush.bf16.msra.mxu0 %v1370
        %2079 = vmatpush.bf16.msra.mxu0 %v1368
        %2080 = vmatpush.bf16.msra.mxu0 %v1366
        %2081 = vmatpush.bf16.msra.mxu0 %v1364
        %2082 = vmatpush.bf16.msra.mxu0 %v1362
        %2083 = vmatmul.bf16.gmra.mxu0 %v531
        %v2084 = vpop.f32.mrf.mxu0
        %v2085 = vadd.f32 %v2072, %v2084
        %v2086 = vpop.f32.mrf.mxu0
        %2087 = vdwg.mxu0
        %2088 = vmatpush.bf16.msra.mxu0 %v1392
        %2089 = vmatpush.bf16.msra.mxu0 %v1390
        %2090 = vmatpush.bf16.msra.mxu0 %v1388
        %2091 = vmatpush.bf16.msra.mxu0 %v1386
        %2092 = vmatpush.bf16.msra.mxu0 %v1384
        %2093 = vmatpush.bf16.msra.mxu0 %v1382
        %2094 = vmatpush.bf16.msra.mxu0 %v1380
        %2095 = vmatpush.bf16.msra.mxu0 %v1378
        %2096 = vmatmul.bf16.gmra.mxu0 %v532
        %v2097 = vpop.f32.mrf.mxu0
        %v2098 = vadd.f32 %v2085, %v2097
        %v2099 = vpop.f32.mrf.mxu0
        %2100 = vdwg.mxu0
        %2101 = vmatpush.bf16.msra.mxu0 %v1408
        %2102 = vmatpush.bf16.msra.mxu0 %v1406
        %2103 = vmatpush.bf16.msra.mxu0 %v1404
        %2104 = vmatpush.bf16.msra.mxu0 %v1402
        %2105 = vmatpush.bf16.msra.mxu0 %v1400
        %2106 = vmatpush.bf16.msra.mxu0 %v1398
        %2107 = vmatpush.bf16.msra.mxu0 %v1396
        %2108 = vmatpush.bf16.msra.mxu0 %v1394
        %2109 = vmatmul.bf16.gmra.mxu0 %v533
        %v2110 = vpop.f32.mrf.mxu0
        %v2111 = vadd.f32 %v2098, %v2110
        %v2112 = vpop.f32.mrf.mxu0
        %2113 = vdwg.mxu0
        %2114 = vmatpush.bf16.msra.mxu0 %v1424
        %2115 = vmatpush.bf16.msra.mxu0 %v1422
        %2116 = vmatpush.bf16.msra.mxu0 %v1420
        %2117 = vmatpush.bf16.msra.mxu0 %v1418
        %2118 = vmatpush.bf16.msra.mxu0 %v1416
        %2119 = vmatpush.bf16.msra.mxu0 %v1414
        %2120 = vmatpush.bf16.msra.mxu0 %v1412
        %2121 = vmatpush.bf16.msra.mxu0 %v1410
        %2122 = vmatmul.bf16.gmra.mxu0 %v534
        %v2123 = vpop.f32.mrf.mxu0
        %v2124 = vadd.f32 %v2111, %v2123
        %v2125 = vpop.f32.mrf.mxu0
        %2126 = vdwg.mxu0
        %2127 = vmatpush.bf16.msra.mxu0 %v1440
        %2128 = vmatpush.bf16.msra.mxu0 %v1438
        %2129 = vmatpush.bf16.msra.mxu0 %v1436
        %2130 = vmatpush.bf16.msra.mxu0 %v1434
        %2131 = vmatpush.bf16.msra.mxu0 %v1432
        %2132 = vmatpush.bf16.msra.mxu0 %v1430
        %2133 = vmatpush.bf16.msra.mxu0 %v1428
        %2134 = vmatpush.bf16.msra.mxu0 %v1426
        %2135 = vmatmul.bf16.gmra.mxu0 %v535
        %v2136 = vpop.f32.mrf.mxu0
        %v2137 = vadd.f32 %v2124, %v2136
        %v2138 = vpop.f32.mrf.mxu0
        %2139 = vdwg.mxu0
        %2140 = vmatpush.bf16.msra.mxu0 %v1456
        %2141 = vmatpush.bf16.msra.mxu0 %v1454
        %2142 = vmatpush.bf16.msra.mxu0 %v1452
        %2143 = vmatpush.bf16.msra.mxu0 %v1450
        %2144 = vmatpush.bf16.msra.mxu0 %v1448
        %2145 = vmatpush.bf16.msra.mxu0 %v1446
        %2146 = vmatpush.bf16.msra.mxu0 %v1444
        %2147 = vmatpush.bf16.msra.mxu0 %v1442
        %2148 = vmatmul.bf16.gmra.mxu0 %v536
        %v2149 = vpop.f32.mrf.mxu0
        %v2150 = vadd.f32 %v2137, %v2149
        %v2151 = vpop.f32.mrf.mxu0
        %2152 = vdwg.mxu0
        %2153 = vmatpush.bf16.msra.mxu0 %v1472
        %2154 = vmatpush.bf16.msra.mxu0 %v1470
        %2155 = vmatpush.bf16.msra.mxu0 %v1468
        %2156 = vmatpush.bf16.msra.mxu0 %v1466
        %2157 = vmatpush.bf16.msra.mxu0 %v1464
        %2158 = vmatpush.bf16.msra.mxu0 %v1462
        %2159 = vmatpush.bf16.msra.mxu0 %v1460
        %2160 = vmatpush.bf16.msra.mxu0 %v1458
        %2161 = vmatmul.bf16.gmra.mxu0 %v537
        %v2162 = vpop.f32.mrf.mxu0
        %v2163 = vadd.f32 %v2150, %v2162
        %v2164 = vpop.f32.mrf.mxu0
        %2165 = vdwg.mxu0
        %2166 = vmatpush.bf16.msra.mxu0 %v1488
        %2167 = vmatpush.bf16.msra.mxu0 %v1486
        %2168 = vmatpush.bf16.msra.mxu0 %v1484
        %2169 = vmatpush.bf16.msra.mxu0 %v1482
        %2170 = vmatpush.bf16.msra.mxu0 %v1480
        %2171 = vmatpush.bf16.msra.mxu0 %v1478
        %2172 = vmatpush.bf16.msra.mxu0 %v1476
        %2173 = vmatpush.bf16.msra.mxu0 %v1474
        %2174 = vmatmul.bf16.gmra.mxu0 %v538
        %v2175 = vpop.f32.mrf.mxu0
        %v2176 = vadd.f32 %v2163, %v2175
        %v2177 = vpop.f32.mrf.mxu0
        %2178 = vdwg.mxu0
        %2179 = vmatpush.bf16.msra.mxu0 %v1504
        %2180 = vmatpush.bf16.msra.mxu0 %v1502
        %2181 = vmatpush.bf16.msra.mxu0 %v1500
        %2182 = vmatpush.bf16.msra.mxu0 %v1498
        %2183 = vmatpush.bf16.msra.mxu0 %v1496
        %2184 = vmatpush.bf16.msra.mxu0 %v1494
        %2185 = vmatpush.bf16.msra.mxu0 %v1492
        %2186 = vmatpush.bf16.msra.mxu0 %v1490
        %2187 = vmatmul.bf16.gmra.mxu0 %v539
        %v2188 = vpop.f32.mrf.mxu0
        %v2189 = vadd.f32 %v2176, %v2188
        %v2190 = vpop.f32.mrf.mxu0
        %2191 = vdwg.mxu0
        %2192 = vmatpush.bf16.msra.mxu0 %v1520
        %2193 = vmatpush.bf16.msra.mxu0 %v1518
        %2194 = vmatpush.bf16.msra.mxu0 %v1516
        %2195 = vmatpush.bf16.msra.mxu0 %v1514
        %2196 = vmatpush.bf16.msra.mxu0 %v1512
        %2197 = vmatpush.bf16.msra.mxu0 %v1510
        %2198 = vmatpush.bf16.msra.mxu0 %v1508
        %2199 = vmatpush.bf16.msra.mxu0 %v1506
        %2200 = vmatmul.bf16.gmra.mxu0 %v540
        %v2201 = vpop.f32.mrf.mxu0
        %v2202 = vadd.f32 %v2189, %v2201
        %v2203 = vpop.f32.mrf.mxu0
        %2204 = vdwg.mxu0
        %2205 = vmatpush.bf16.msra.mxu0 %v1536
        %2206 = vmatpush.bf16.msra.mxu0 %v1534
        %2207 = vmatpush.bf16.msra.mxu0 %v1532
        %2208 = vmatpush.bf16.msra.mxu0 %v1530
        %2209 = vmatpush.bf16.msra.mxu0 %v1528
        %2210 = vmatpush.bf16.msra.mxu0 %v1526
        %2211 = vmatpush.bf16.msra.mxu0 %v1524
        %2212 = vmatpush.bf16.msra.mxu0 %v1522
        %2213 = vmatmul.bf16.gmra.mxu0 %v541
        %v2214 = vpop.f32.mrf.mxu0
        %v2215 = vadd.f32 %v2202, %v2214
        %v2216 = vpop.f32.mrf.mxu0
        %2217 = vdwg.mxu0
        %2218 = vmatpush.bf16.msra.mxu0 %v1552
        %2219 = vmatpush.bf16.msra.mxu0 %v1550
        %2220 = vmatpush.bf16.msra.mxu0 %v1548
        %2221 = vmatpush.bf16.msra.mxu0 %v1546
        %2222 = vmatpush.bf16.msra.mxu0 %v1544
        %2223 = vmatpush.bf16.msra.mxu0 %v1542
        %2224 = vmatpush.bf16.msra.mxu0 %v1540
        %2225 = vmatpush.bf16.msra.mxu0 %v1538
        %2226 = vmatmul.bf16.gmra.mxu0 %v542
        %v2227 = vpop.f32.mrf.mxu0
        %v2228 = vadd.f32 %v2215, %v2227
        %v2229 = vpop.f32.mrf.mxu0
        %2230 = vdwg.mxu0
        %2231 = vmatpush.bf16.msra.mxu0 %v1568
        %2232 = vmatpush.bf16.msra.mxu0 %v1566
        %2233 = vmatpush.bf16.msra.mxu0 %v1564
        %2234 = vmatpush.bf16.msra.mxu0 %v1562
        %2235 = vmatpush.bf16.msra.mxu0 %v1560
        %2236 = vmatpush.bf16.msra.mxu0 %v1558
        %2237 = vmatpush.bf16.msra.mxu0 %v1556
        %2238 = vmatpush.bf16.msra.mxu0 %v1554
        %2239 = vmatmul.bf16.gmra.mxu0 %v543
        %v2240 = vpop.f32.mrf.mxu0
        %v2241 = vadd.f32 %v2228, %v2240
        %v2242 = vpop.f32.mrf.mxu0
        %2243 = vdwg.mxu0
        %2244 = vmatpush.bf16.msra.mxu0 %v1584
        %2245 = vmatpush.bf16.msra.mxu0 %v1582
        %2246 = vmatpush.bf16.msra.mxu0 %v1580
        %2247 = vmatpush.bf16.msra.mxu0 %v1578
        %2248 = vmatpush.bf16.msra.mxu0 %v1576
        %2249 = vmatpush.bf16.msra.mxu0 %v1574
        %2250 = vmatpush.bf16.msra.mxu0 %v1572
        %2251 = vmatpush.bf16.msra.mxu0 %v1570
        %2252 = vmatmul.bf16.gmra.mxu0 %v544
        %v2253 = vpop.f32.mrf.mxu0
        %v2254 = vadd.f32 %v2241, %v2253
        %v2255 = vpop.f32.mrf.mxu0
        %2256 = vdwg.mxu0
        %v2257 = vmax.f32 %v2046, 0.0
        %v2258 = vmax.f32 %v2254, 0.0
        %v2259 = vpack.c.bf16 %v2258, %v2257
        %2260 = vst [vmem:[%s233] sm:$0xff] %v2259
        %s2261 = smul.u32 2, %s20
        %p2262 = scmp.lt.s32.totalorder %s2261, 7
        %s2263 = scalar_select %p2262, %s2261, 7
        %s2264 = smul.addr %s2263, 4
        %s2265 = scalar_lea.vmem %s3, %s2264
        // Predicated region
        $region41: #{forward.6} parent=31 // pred_check
          %p2266 = pneg %p111
        $region42: #{forward.6} parent=31 // pred_check_branch
          %2268 = sbr.rel (%p2266) target = $region44
        $region43: #{forward.6} parent=31 // pred_region
          %s2269 = smul.u32 2, %s20
        $region44: #{forward.6} parent=31 // pred_fallthru
          _
      $region32: #{forward.6} parent=5 // pred_fallthru
        _
      %p2270 = scmp.le.s32.totalorder 2, %s15
      // Predicated region
      $region45: #{forward.6} parent=5 // pred_check
        %p2271 = pneg %p2270
      $region46: #{forward.6} parent=5 // pred_check_branch
        %2273 = sbr.rel (%p2271) target = $region48
      $region47: #{forward.6} parent=5 // pred_region
        %s2274 = ssub.s32 %s15, 2
        // Predicated region
        $region49: #{forward.6} parent=47 // pred_check
          %p2275 = pneg %p117
        $region50: #{forward.6} parent=47 // pred_check_branch
          %2277 = sbr.rel (%p2275) target = $region52
        $region51: #{forward.6} parent=47 // pred_region
          %s2278 = smul.u32 2, %s21
          %p2279 = scmp.lt.s32.totalorder %s2278, 7
          %s2280 = scalar_select %p2279, %s2278, 7
          %s2281 = smul.addr %s2280, 4
          %s2282 = scalar_lea.vmem %s3, %s2281
        $region52: #{forward.6} parent=47 // pred_fallthru
          _
      $region48: #{forward.6} parent=5 // pred_fallthru
        _
    $region6: #{forward.6} parent=1 // loop_footer
      %s19 = sadd.s32 1, %s15
    $region7: #{forward.6} parent=1 // loop_footer_branch
      %14 = sbr.rel target = $region3
    $region8: #{forward.6} parent=1 // loop_exit
      _
    %2283 = vsyncpa [#allocation3], 1
    %s2284 = scalar_lea.sflag [#allocation3], 1
    %2285 = vsyncpa %s2284, 1
    %2286 = vsyncpa [#allocation5], 1
    %s2287 = scalar_lea.sflag [#allocation5], 1
    %2288 = vsyncpa %s2287, 1

// kernel: forward.4
$region0: #{forward.4}
  #allocation0 [shape = 'u32[]', space=smem, size = 0x4, offset = 0x4, fixed_abs, tag = 'smem constant byte address 0x4 - core index']
  #allocation1 [shape = 'u32[72,128]{1,0:T(1,128)}', space=vmem, size = 0x9000, scoped, tag = 'internal scratch']
  %s0 = inlined_call_operand.vmem [shape: bf16[8,2000], index: 0, kind: input, shape index: {}]
  %s1 = inlined_call_operand.hbm [shape: bf16[2000,4096], index: 1, kind: input, shape index: {}]
  %s2 = inlined_call_operand.hbm [shape: f32[1,4096], index: 2, kind: input, shape index: {}]
  %s3 = inlined_call_operand.vmem [shape: bf16[8,4096], index: 3, kind: output, shape index: {}]
  %s4 = sld [smem:[#allocation0]]
  $region53: #{forward.4} parent=0
    _
  %s6 = ssub.s32 1, %s4
  %s7 = scalar_select 0, %s6, %s4
  $region1: #{forward.4} parent=0
    #allocation2 [shape = 'u8[4096000]{0}', space=vmem, size = 0x3e8000, scoped, tag = 'input window, operand 1']
    #allocation3 [shape = 's32[2]{0}', space=sflag, size = 0x8, scoped, tag = 'scoped memory for forward.4']
    #allocation4 [shape = 'u8[4096]{0}', space=vmem, size = 0x1000, scoped, tag = 'input window, operand 2']
    #allocation5 [shape = 's32[2]{0}', space=sflag, size = 0x8, scoped, tag = 'scoped memory for forward.4']
    %8 = vsyncpa [#allocation3], 0
    %s9 = scalar_lea.sflag [#allocation3], 1
    %10 = vsyncpa %s9, 0
    %11 = vsyncpa [#allocation5], 0
    %s12 = scalar_lea.sflag [#allocation5], 1
    %13 = vsyncpa %s12, 0
    loop: start=0, step=1, limit=10
    $region2: #{forward.4} parent=1 // loop_pre_header
      _
    $region3: #{forward.4} parent=1 // loop_header
      %s15 = sphi 0, %s19
      %p16 = scmp.ge.s32.totalorder %s15, 10
      %s23 = sphi 0, %s23
      %s25 = sphi 0, %s23
      %s26 = sphi 0, %s25
      %s40 = sphi 0, %s26
      %s46 = sphi 0, %s48
      %s49 = sphi 0, %s46
      %s50 = sphi 0, %s49
      %s66 = sphi 0, %s50
      %s72 = sphi 0, %s74
      %s75 = sphi 0, %s72
      %s76 = sphi 0, %s75
      %s92 = sphi 0, %s76
      %s98 = sphi 0, %s100
      %s101 = sphi 0, %s98
      %s102 = sphi 0, %s101
      %s118 = sphi 0, %s102
    $region4: #{forward.4} parent=1 // loop_header_branch
      %18 = sbr.rel (%p16) target = $region8
    $region5: #{forward.4} parent=1 // loop_body
      %s20 = ssub.s32 %s15, 1
      %s21 = ssub.s32 %s15, 2
      %s22 = sadd.s32 %s15, 1
      %s24 = sadd.s32 %s23, 1
      %p27 = scmp.eq.s32.totalorder %s15, 7
      %p28 = scmp.ne.s32.totalorder %s23, %s25
      %p29 = scmp.eq.s32.totalorder %s15, 0
      %p30 = por %p28, %p29
      %p31 = scmp.ne.s32.totalorder %s23, %s25
      %p32 = scmp.eq.s32.totalorder %s20, 7
      %p33 = por %p31, %p32
      %p34 = scmp.ne.s32.totalorder %s25, %s26
      %p35 = scmp.eq.s32.totalorder %s20, 0
      %p36 = por %p34, %p35
      %p37 = scmp.ne.s32.totalorder %s25, %s26
      %p38 = scmp.eq.s32.totalorder %s21, 7
      %p39 = por %p37, %p38
      %p41 = scmp.ne.s32.totalorder %s26, %s40
      %p42 = scmp.eq.s32.totalorder %s21, 0
      %p43 = por %p41, %p42
      %s44 = ssub.s32 %s15, %s22
      %p45 = scmp.eq.s32.totalorder %s44, 0
      %s47 = sadd.s32 %s46, 1
      %s48 = scalar_select %p45, %s46, %s47
      %p51 = pneg %p45
      %p52 = scmp.eq.s32.totalorder %s15, 7
      %p53 = por %p51, %p52
      %p54 = scmp.ne.s32.totalorder %s46, %s49
      %p55 = scmp.eq.s32.totalorder %s15, 0
      %p56 = por %p54, %p55
      %p57 = scmp.ne.s32.totalorder %s46, %s49
      %p58 = scmp.eq.s32.totalorder %s20, 7
      %p59 = por %p57, %p58
      %p60 = scmp.ne.s32.totalorder %s49, %s50
      %p61 = scmp.eq.s32.totalorder %s20, 0
      %p62 = por %p60, %p61
      %p63 = scmp.ne.s32.totalorder %s49, %s50
      %p64 = scmp.eq.s32.totalorder %s21, 7
      %p65 = por %p63, %p64
      %p67 = scmp.ne.s32.totalorder %s50, %s66
      %p68 = scmp.eq.s32.totalorder %s21, 0
      %p69 = por %p67, %p68
      %s70 = ssub.s32 %s15, %s22
      %p71 = scmp.eq.s32.totalorder %s70, 0
      %s73 = sadd.s32 %s72, 1
      %s74 = scalar_select %p71, %s72, %s73
      %p77 = pneg %p71
      %p78 = scmp.eq.s32.totalorder %s15, 7
      %p79 = por %p77, %p78
      %p80 = scmp.ne.s32.totalorder %s72, %s75
      %p81 = scmp.eq.s32.totalorder %s15, 0
      %p82 = por %p80, %p81
      %p83 = scmp.ne.s32.totalorder %s72, %s75
      %p84 = scmp.eq.s32.totalorder %s20, 7
      %p85 = por %p83, %p84
      %p86 = scmp.ne.s32.totalorder %s75, %s76
      %p87 = scmp.eq.s32.totalorder %s20, 0
      %p88 = por %p86, %p87
      %p89 = scmp.ne.s32.totalorder %s75, %s76
      %p90 = scmp.eq.s32.totalorder %s21, 7
      %p91 = por %p89, %p90
      %p93 = scmp.ne.s32.totalorder %s76, %s92
      %p94 = scmp.eq.s32.totalorder %s21, 0
      %p95 = por %p93, %p94
      %s96 = ssub.s32 %s15, %s22
      %p97 = scmp.eq.s32.totalorder %s96, 0
      %s99 = sadd.s32 %s98, 1
      %s100 = scalar_select %p97, %s98, %s99
      %p103 = pneg %p97
      %p104 = scmp.eq.s32.totalorder %s15, 7
      %p105 = por %p103, %p104
      %p106 = scmp.ne.s32.totalorder %s98, %s101
      %p107 = scmp.eq.s32.totalorder %s15, 0
      %p108 = por %p106, %p107
      %p109 = scmp.ne.s32.totalorder %s98, %s101
      %p110 = scmp.eq.s32.totalorder %s20, 7
      %p111 = por %p109, %p110
      %p112 = scmp.ne.s32.totalorder %s101, %s102
      %p113 = scmp.eq.s32.totalorder %s20, 0
      %p114 = por %p112, %p113
      %p115 = scmp.ne.s32.totalorder %s101, %s102
      %p116 = scmp.eq.s32.totalorder %s21, 7
      %p117 = por %p115, %p116
      %p119 = scmp.ne.s32.totalorder %s102, %s118
      %p120 = scmp.eq.s32.totalorder %s21, 0
      %p121 = por %p119, %p120
      %p122 = scmp.le.s32.totalorder 1, %s15
      %p123 = scmp.lt.s32.totalorder %s15, 9
      %p124 = pnand %p122, %p123
      %p125 = pneg %p124
      // Predicated region
      $region9: #{forward.4} parent=5 // pred_check
        _
      $region10: #{forward.4} parent=5 // pred_check_branch
        %127 = sbr.rel (%p124) target = $region12
      $region11: #{forward.4} parent=5 // pred_region
        %s128 = ssub.s32 %s15, 1
        // Predicated region
        $region13: #{forward.4} parent=11 // pred_check
          %p129 = pneg %p36
        $region14: #{forward.4} parent=11 // pred_check_branch
          %131 = sbr.rel (%p129) target = $region16
        $region15: #{forward.4} parent=11 // pred_region
          _
        $region16: #{forward.4} parent=11 // pred_fallthru
          _
      $region12: #{forward.4} parent=5 // pred_fallthru
        _
      %p132 = scmp.lt.s32.totalorder %s15, 8
      // Predicated region
      $region17: #{forward.4} parent=5 // pred_check
        %p133 = pneg %p132
      $region18: #{forward.4} parent=5 // pred_check_branch
        %135 = sbr.rel (%p133) target = $region20
      $region19: #{forward.4} parent=5 // pred_region
        // Predicated region
        $region21: #{forward.4} parent=19 // pred_check
          %p136 = pneg %p56
        $region22: #{forward.4} parent=19 // pred_check_branch
          %138 = sbr.rel (%p136) target = $region24
        $region23: #{forward.4} parent=19 // pred_region
          %s139 = sand.u32 %s46, 1
          %s140 = scalar_lea.sflag [#allocation3], %s139
          %s141 = sand.u32 %s46, 1
          %s142 = smul.addr %s141, 4000
          %s143 = scalar_lea.vmem [#allocation2], %s142
          %s144 = smul.u32 4, %s15
          %146 = vsyncadd %s140, 0
          %s147 = smul.addr %s144, 4
          %s148 = scalar_lea.hbm %s1, %s147
          %s149 = sshll.u32 %s148, 4
          %s150 = int_to_ptr.hbm [resolvable:$true] %s149
          %s151 = sshll.u32 %s143, 4
          %s152 = int_to_ptr.vmem [resolvable:$true] %s151
          %157 = dma.hbm_to_vmem [thread:$0]  %s150, 64000, %s152, %s140, 2048, 256, 16
        $region24: #{forward.4} parent=19 // pred_fallthru
          _
        // Predicated region
        $region25: #{forward.4} parent=19 // pred_check
          %p158 = pneg %p82
        $region26: #{forward.4} parent=19 // pred_check_branch
          %160 = sbr.rel (%p158) target = $region28
        $region27: #{forward.4} parent=19 // pred_region
          %s161 = sand.u32 %s72, 1
          %s162 = scalar_lea.sflag [#allocation5], %s161
          %s163 = sand.u32 %s72, 1
          %s164 = smul.addr %s163, 4
          %s165 = scalar_lea.vmem [#allocation4], %s164
          %s166 = smul.u32 4, %s15
          %168 = vsyncadd %s162, 0
          %s169 = scalar_lea.hbm %s2, %s166
          %s171 = sshll.u32 %s169, 4
          %s172 = int_to_ptr.hbm [resolvable:$true] %s171
          %s173 = sshll.u32 %s165, 4
          %s174 = int_to_ptr.vmem [resolvable:$true] %s173
          %176 = dma.hbm_to_vmem [thread:$0]  %s172, 64, %s174, %s162
        $region28: #{forward.4} parent=19 // pred_fallthru
          _
      $region20: #{forward.4} parent=5 // pred_fallthru
        _
      %p177 = scmp.le.s32.totalorder 1, %s15
      %p178 = scmp.lt.s32.totalorder %s15, 9
      %p179 = pnand %p177, %p178
      %p180 = pneg %p179
      // Predicated region
      $region29: #{forward.4} parent=5 // pred_check
        _
      $region30: #{forward.4} parent=5 // pred_check_branch
        %182 = sbr.rel (%p179) target = $region32
      $region31: #{forward.4} parent=5 // pred_region
        %s183 = ssub.s32 %s15, 1
        %s184 = sand.u32 %s49, 1
        %s185 = scalar_lea.sflag [#allocation3], %s184
        %s186 = sand.u32 %s49, 1
        %s187 = smul.addr %s186, 4000
        %s188 = scalar_lea.vmem [#allocation2], %s187
        // Predicated region
        $region33: #{forward.4} parent=31 // pred_check
          %p189 = pneg %p62
        $region34: #{forward.4} parent=31 // pred_check_branch
          %191 = sbr.rel (%p189) target = $region36
        $region35: #{forward.4} parent=31 // pred_region
          %193 = dma.done %s185, 64000
        $region36: #{forward.4} parent=31 // pred_fallthru
          _
        %s194 = sand.u32 %s75, 1
        %s195 = scalar_lea.sflag [#allocation5], %s194
        %s196 = sand.u32 %s75, 1
        %s197 = smul.addr %s196, 4
        %s198 = scalar_lea.vmem [#allocation4], %s197
        // Predicated region
        $region37: #{forward.4} parent=31 // pred_check
          %p199 = pneg %p88
        $region38: #{forward.4} parent=31 // pred_check_branch
          %201 = sbr.rel (%p199) target = $region40
        $region39: #{forward.4} parent=31 // pred_region
          %203 = dma.done %s195, 64
        $region40: #{forward.4} parent=31 // pred_fallthru
          _
        %p204 = pneg %p36
        %p205 = pneg %p33
        %s206 = sand.u32 %s49, 1
        %s207 = scalar_lea.sflag [#allocation3], %s206
        %s208 = sand.u32 %s49, 1
        %s209 = smul.addr %s208, 4000
        %s210 = scalar_lea.vmem [#allocation2], %s209
        %p211 = pneg %p62
        %p212 = pneg %p59
        %s213 = sand.u32 %s75, 1
        %s214 = scalar_lea.sflag [#allocation5], %s213
        %s215 = sand.u32 %s75, 1
        %s216 = smul.addr %s215, 4
        %s217 = scalar_lea.vmem [#allocation4], %s216
        %p218 = pneg %p88
        %p219 = pneg %p85
        %p220 = pneg %p114
        %p221 = pneg %p111
        %s222 = smul.u32 4, %s20
        %p223 = scmp.lt.s32.totalorder %s222, 31
        %s224 = scalar_select %p223, %s222, 31
        %s225 = smul.addr %s224, 4
        %s226 = scalar_lea.vmem %s3, %s225
        %s227 = smul.u32 4, %s20
        %s228 = smul.u32 4, %s20
        %s229 = smul.u32 4, %s20
        %p230 = scmp.lt.s32.totalorder %s229, 31
        %s231 = scalar_select %p230, %s229, 31
        %s232 = smul.addr %s231, 4
        %s233 = scalar_lea.vmem %s3, %s232
        %s234 = smul.u32 4, %s20
        %v236 = vld [vmem:[%s0] sm:$0xff]
        %v237 = vld [vmem:[%s0 + $0x8] sm:$0xff]
        %v238 = vld [vmem:[%s0 + $0x10] sm:$0xff]
        %v239 = vld [vmem:[%s0 + $0x18] sm:$0xff]
        %v240 = vld [vmem:[%s0 + $0x20] sm:$0xff]
        %v241 = vld [vmem:[%s0 + $0x28] sm:$0xff]
        %v242 = vld [vmem:[%s0 + $0x30] sm:$0xff]
        %v243 = vld [vmem:[%s0 + $0x38] sm:$0xff]
        %v244 = vld [vmem:[%s188] sm:$0xff]
        %v245 = vld [vmem:[%s188 + $0x8] sm:$0xff]
        %v246 = vld [vmem:[%s188 + $0x10] sm:$0xff]
        %v247 = vld [vmem:[%s188 + $0x18] sm:$0xff]
        %v248 = vld [vmem:[%s188 + $0x20] sm:$0xff]
        %v249 = vld [vmem:[%s188 + $0x28] sm:$0xff]
        %v250 = vld [vmem:[%s188 + $0x30] sm:$0xff]
        %v251 = vld [vmem:[%s188 + $0x38] sm:$0xff]
        %v252 = vld [vmem:[%s188 + $0x40] sm:$0xff]
        %v253 = vld [vmem:[%s188 + $0x48] sm:$0xff]
        %v254 = vld [vmem:[%s188 + $0x50] sm:$0xff]
        %v255 = vld [vmem:[%s188 + $0x58] sm:$0xff]
        %v256 = vld [vmem:[%s188 + $0x60] sm:$0xff]
        %v257 = vld [vmem:[%s188 + $0x68] sm:$0xff]
        %v258 = vld [vmem:[%s188 + $0x70] sm:$0xff]
        %v259 = vld [vmem:[%s188 + $0x78] sm:$0xff]
        %v260 = vld [vmem:[%s188 + $0x80] sm:$0xff]
        %v261 = vld [vmem:[%s188 + $0x88] sm:$0xff]
        %v262 = vld [vmem:[%s188 + $0x90] sm:$0xff]
        %v263 = vld [vmem:[%s188 + $0x98] sm:$0xff]
        %v264 = vld [vmem:[%s188 + $0xa0] sm:$0xff]
        %v265 = vld [vmem:[%s188 + $0xa8] sm:$0xff]
        %v266 = vld [vmem:[%s188 + $0xb0] sm:$0xff]
        %v267 = vld [vmem:[%s188 + $0xb8] sm:$0xff]
        %v268 = vld [vmem:[%s188 + $0xc0] sm:$0xff]
        %v269 = vld [vmem:[%s188 + $0xc8] sm:$0xff]
        %v270 = vld [vmem:[%s188 + $0xd0] sm:$0xff]
        %v271 = vld [vmem:[%s188 + $0xd8] sm:$0xff]
        %v272 = vld [vmem:[%s188 + $0xe0] sm:$0xff]
        %v273 = vld [vmem:[%s188 + $0xe8] sm:$0xff]
        %v274 = vld [vmem:[%s188 + $0xf0] sm:$0xff]
        %v275 = vld [vmem:[%s188 + $0xf8] sm:$0xff]
        %v276 = vld [vmem:[%s188 + $0x100] sm:$0xff]
        %v277 = vld [vmem:[%s188 + $0x108] sm:$0xff]
        %v278 = vld [vmem:[%s188 + $0x110] sm:$0xff]
        %v279 = vld [vmem:[%s188 + $0x118] sm:$0xff]
        %v280 = vld [vmem:[%s188 + $0x120] sm:$0xff]
        %v281 = vld [vmem:[%s188 + $0x128] sm:$0xff]
        %v282 = vld [vmem:[%s188 + $0x130] sm:$0xff]
        %v283 = vld [vmem:[%s188 + $0x138] sm:$0xff]
        %v284 = vld [vmem:[%s188 + $0x140] sm:$0xff]
        %v285 = vld [vmem:[%s188 + $0x148] sm:$0xff]
        %v286 = vld [vmem:[%s188 + $0x150] sm:$0xff]
        %v287 = vld [vmem:[%s188 + $0x158] sm:$0xff]
        %v288 = vld [vmem:[%s188 + $0x160] sm:$0xff]
        %v289 = vld [vmem:[%s188 + $0x168] sm:$0xff]
        %v290 = vld [vmem:[%s188 + $0x170] sm:$0xff]
        %v291 = vld [vmem:[%s188 + $0x178] sm:$0xff]
        %v292 = vld [vmem:[%s188 + $0x180] sm:$0xff]
        %v293 = vld [vmem:[%s188 + $0x188] sm:$0xff]
        %v294 = vld [vmem:[%s188 + $0x190] sm:$0xff]
        %v295 = vld [vmem:[%s188 + $0x198] sm:$0xff]
        %v296 = vld [vmem:[%s188 + $0x1a0] sm:$0xff]
        %v297 = vld [vmem:[%s188 + $0x1a8] sm:$0xff]
        %v298 = vld [vmem:[%s188 + $0x1b0] sm:$0xff]
        %v299 = vld [vmem:[%s188 + $0x1b8] sm:$0xff]
        %v300 = vld [vmem:[%s188 + $0x1c0] sm:$0xff]
        %v301 = vld [vmem:[%s188 + $0x1c8] sm:$0xff]
        %v302 = vld [vmem:[%s188 + $0x1d0] sm:$0xff]
        %v303 = vld [vmem:[%s188 + $0x1d8] sm:$0xff]
        %v304 = vld [vmem:[%s188 + $0x1e0] sm:$0xff]
        %v305 = vld [vmem:[%s188 + $0x1e8] sm:$0xff]
        %v306 = vld [vmem:[%s188 + $0x1f0] sm:$0xff]
        %v307 = vld [vmem:[%s188 + $0x1f8] sm:$0xff]
        %v308 = vld [vmem:[%s188 + $0x200] sm:$0xff]
        %v309 = vld [vmem:[%s188 + $0x208] sm:$0xff]
        %v310 = vld [vmem:[%s188 + $0x210] sm:$0xff]
        %v311 = vld [vmem:[%s188 + $0x218] sm:$0xff]
        %v312 = vld [vmem:[%s188 + $0x220] sm:$0xff]
        %v313 = vld [vmem:[%s188 + $0x228] sm:$0xff]
        %v314 = vld [vmem:[%s188 + $0x230] sm:$0xff]
        %v315 = vld [vmem:[%s188 + $0x238] sm:$0xff]
        %v316 = vld [vmem:[%s188 + $0x240] sm:$0xff]
        %v317 = vld [vmem:[%s188 + $0x248] sm:$0xff]
        %v318 = vld [vmem:[%s188 + $0x250] sm:$0xff]
        %v319 = vld [vmem:[%s188 + $0x258] sm:$0xff]
        %v320 = vld [vmem:[%s188 + $0x260] sm:$0xff]
        %v321 = vld [vmem:[%s188 + $0x268] sm:$0xff]
        %v322 = vld [vmem:[%s188 + $0x270] sm:$0xff]
        %v323 = vld [vmem:[%s188 + $0x278] sm:$0xff]
        %v324 = vld [vmem:[%s188 + $0x280] sm:$0xff]
        %v325 = vld [vmem:[%s188 + $0x288] sm:$0xff]
        %v326 = vld [vmem:[%s188 + $0x290] sm:$0xff]
        %v327 = vld [vmem:[%s188 + $0x298] sm:$0xff]
        %v328 = vld [vmem:[%s188 + $0x2a0] sm:$0xff]
        %v329 = vld [vmem:[%s188 + $0x2a8] sm:$0xff]
        %v330 = vld [vmem:[%s188 + $0x2b0] sm:$0xff]
        %v331 = vld [vmem:[%s188 + $0x2b8] sm:$0xff]
        %v332 = vld [vmem:[%s188 + $0x2c0] sm:$0xff]
        %v333 = vld [vmem:[%s188 + $0x2c8] sm:$0xff]
        %v334 = vld [vmem:[%s188 + $0x2d0] sm:$0xff]
        %v335 = vld [vmem:[%s188 + $0x2d8] sm:$0xff]
        %v336 = vld [vmem:[%s188 + $0x2e0] sm:$0xff]
        %v337 = vld [vmem:[%s188 + $0x2e8] sm:$0xff]
        %v338 = vld [vmem:[%s188 + $0x2f0] sm:$0xff]
        %v339 = vld [vmem:[%s188 + $0x2f8] sm:$0xff]
        %v340 = vld [vmem:[%s188 + $0x300] sm:$0xff]
        %v341 = vld [vmem:[%s188 + $0x308] sm:$0xff]
        %v342 = vld [vmem:[%s188 + $0x310] sm:$0xff]
        %v343 = vld [vmem:[%s188 + $0x318] sm:$0xff]
        %v344 = vld [vmem:[%s188 + $0x320] sm:$0xff]
        %v345 = vld [vmem:[%s188 + $0x328] sm:$0xff]
        %v346 = vld [vmem:[%s188 + $0x330] sm:$0xff]
        %v347 = vld [vmem:[%s188 + $0x338] sm:$0xff]
        %v348 = vld [vmem:[%s188 + $0x340] sm:$0xff]
        %v349 = vld [vmem:[%s188 + $0x348] sm:$0xff]
        %v350 = vld [vmem:[%s188 + $0x350] sm:$0xff]
        %v351 = vld [vmem:[%s188 + $0x358] sm:$0xff]
        %v352 = vld [vmem:[%s188 + $0x360] sm:$0xff]
        %v353 = vld [vmem:[%s188 + $0x368] sm:$0xff]
        %v354 = vld [vmem:[%s188 + $0x370] sm:$0xff]
        %v355 = vld [vmem:[%s188 + $0x378] sm:$0xff]
        %v356 = vld [vmem:[%s188 + $0x380] sm:$0xff]
        %v357 = vld [vmem:[%s188 + $0x388] sm:$0xff]
        %v358 = vld [vmem:[%s188 + $0x390] sm:$0xff]
        %v359 = vld [vmem:[%s188 + $0x398] sm:$0xff]
        %v360 = vld [vmem:[%s188 + $0x3a0] sm:$0xff]
        %v361 = vld [vmem:[%s188 + $0x3a8] sm:$0xff]
        %v362 = vld [vmem:[%s188 + $0x3b0] sm:$0xff]
        %v363 = vld [vmem:[%s188 + $0x3b8] sm:$0xff]
        %v364 = vld [vmem:[%s188 + $0x3c0] sm:$0xff]
        %v365 = vld [vmem:[%s188 + $0x3c8] sm:$0xff]
        %v366 = vld [vmem:[%s188 + $0x3d0] sm:$0xff]
        %v367 = vld [vmem:[%s188 + $0x3d8] sm:$0xff]
        %v368 = vld [vmem:[%s188 + $0x3e0] sm:$0xff]
        %v369 = vld [vmem:[%s188 + $0x3e8] sm:$0xff]
        %v370 = vld [vmem:[%s188 + $0x3f0] sm:$0xff]
        %v371 = vld [vmem:[%s188 + $0x3f8] sm:$0xff]
        %v372 = vld [vmem:[%s188 + $0x400] sm:$0xff]
        %v373 = vld [vmem:[%s188 + $0x408] sm:$0xff]
        %v374 = vld [vmem:[%s188 + $0x410] sm:$0xff]
        %v375 = vld [vmem:[%s188 + $0x418] sm:$0xff]
        %v376 = vld [vmem:[%s188 + $0x420] sm:$0xff]
        %v377 = vld [vmem:[%s188 + $0x428] sm:$0xff]
        %v378 = vld [vmem:[%s188 + $0x430] sm:$0xff]
        %v379 = vld [vmem:[%s188 + $0x438] sm:$0xff]
        %v380 = vld [vmem:[%s188 + $0x440] sm:$0xff]
        %v381 = vld [vmem:[%s188 + $0x448] sm:$0xff]
        %v382 = vld [vmem:[%s188 + $0x450] sm:$0xff]
        %v383 = vld [vmem:[%s188 + $0x458] sm:$0xff]
        %v384 = vld [vmem:[%s188 + $0x460] sm:$0xff]
        %v385 = vld [vmem:[%s188 + $0x468] sm:$0xff]
        %v386 = vld [vmem:[%s188 + $0x470] sm:$0xff]
        %v387 = vld [vmem:[%s188 + $0x478] sm:$0xff]
        %v388 = vld [vmem:[%s188 + $0x480] sm:$0xff]
        %v389 = vld [vmem:[%s188 + $0x488] sm:$0xff]
        %v390 = vld [vmem:[%s188 + $0x490] sm:$0xff]
        %v391 = vld [vmem:[%s188 + $0x498] sm:$0xff]
        %v392 = vld [vmem:[%s188 + $0x4a0] sm:$0xff]
        %v393 = vld [vmem:[%s188 + $0x4a8] sm:$0xff]
        %v394 = vld [vmem:[%s188 + $0x4b0] sm:$0xff]
        %v395 = vld [vmem:[%s188 + $0x4b8] sm:$0xff]
        %v396 = vld [vmem:[%s188 + $0x4c0] sm:$0xff]
        %v397 = vld [vmem:[%s188 + $0x4c8] sm:$0xff]
        %v398 = vld [vmem:[%s188 + $0x4d0] sm:$0xff]
        %v399 = vld [vmem:[%s188 + $0x4d8] sm:$0xff]
        %v400 = vld [vmem:[%s188 + $0x4e0] sm:$0xff]
        %v401 = vld [vmem:[%s188 + $0x4e8] sm:$0xff]
        %v402 = vld [vmem:[%s188 + $0x4f0] sm:$0xff]
        %v403 = vld [vmem:[%s188 + $0x4f8] sm:$0xff]
        %v404 = vld [vmem:[%s188 + $0x500] sm:$0xff]
        %v405 = vld [vmem:[%s188 + $0x508] sm:$0xff]
        %v406 = vld [vmem:[%s188 + $0x510] sm:$0xff]
        %v407 = vld [vmem:[%s188 + $0x518] sm:$0xff]
        %v408 = vld [vmem:[%s188 + $0x520] sm:$0xff]
        %v409 = vld [vmem:[%s188 + $0x528] sm:$0xff]
        %v410 = vld [vmem:[%s188 + $0x530] sm:$0xff]
        %v411 = vld [vmem:[%s188 + $0x538] sm:$0xff]
        %v412 = vld [vmem:[%s188 + $0x540] sm:$0xff]
        %v413 = vld [vmem:[%s188 + $0x548] sm:$0xff]
        %v414 = vld [vmem:[%s188 + $0x550] sm:$0xff]
        %v415 = vld [vmem:[%s188 + $0x558] sm:$0xff]
        %v416 = vld [vmem:[%s188 + $0x560] sm:$0xff]
        %v417 = vld [vmem:[%s188 + $0x568] sm:$0xff]
        %v418 = vld [vmem:[%s188 + $0x570] sm:$0xff]
        %v419 = vld [vmem:[%s188 + $0x578] sm:$0xff]
        %v420 = vld [vmem:[%s188 + $0x580] sm:$0xff]
        %v421 = vld [vmem:[%s188 + $0x588] sm:$0xff]
        %v422 = vld [vmem:[%s188 + $0x590] sm:$0xff]
        %v423 = vld [vmem:[%s188 + $0x598] sm:$0xff]
        %v424 = vld [vmem:[%s188 + $0x5a0] sm:$0xff]
        %v425 = vld [vmem:[%s188 + $0x5a8] sm:$0xff]
        %v426 = vld [vmem:[%s188 + $0x5b0] sm:$0xff]
        %v427 = vld [vmem:[%s188 + $0x5b8] sm:$0xff]
        %v428 = vld [vmem:[%s188 + $0x5c0] sm:$0xff]
        %v429 = vld [vmem:[%s188 + $0x5c8] sm:$0xff]
        %v430 = vld [vmem:[%s188 + $0x5d0] sm:$0xff]
        %v431 = vld [vmem:[%s188 + $0x5d8] sm:$0xff]
        %v432 = vld [vmem:[%s188 + $0x5e0] sm:$0xff]
        %v433 = vld [vmem:[%s188 + $0x5e8] sm:$0xff]
        %v434 = vld [vmem:[%s188 + $0x5f0] sm:$0xff]
        %v435 = vld [vmem:[%s188 + $0x5f8] sm:$0xff]
        %v436 = vld [vmem:[%s188 + $0x600] sm:$0xff]
        %v437 = vld [vmem:[%s188 + $0x608] sm:$0xff]
        %v438 = vld [vmem:[%s188 + $0x610] sm:$0xff]
        %v439 = vld [vmem:[%s188 + $0x618] sm:$0xff]
        %v440 = vld [vmem:[%s188 + $0x620] sm:$0xff]
        %v441 = vld [vmem:[%s188 + $0x628] sm:$0xff]
        %v442 = vld [vmem:[%s188 + $0x630] sm:$0xff]
        %v443 = vld [vmem:[%s188 + $0x638] sm:$0xff]
        %v444 = vld [vmem:[%s188 + $0x640] sm:$0xff]
        %v445 = vld [vmem:[%s188 + $0x648] sm:$0xff]
        %v446 = vld [vmem:[%s188 + $0x650] sm:$0xff]
        %v447 = vld [vmem:[%s188 + $0x658] sm:$0xff]
        %v448 = vld [vmem:[%s188 + $0x660] sm:$0xff]
        %v449 = vld [vmem:[%s188 + $0x668] sm:$0xff]
        %v450 = vld [vmem:[%s188 + $0x670] sm:$0xff]
        %v451 = vld [vmem:[%s188 + $0x678] sm:$0xff]
        %v452 = vld [vmem:[%s188 + $0x680] sm:$0xff]
        %v453 = vld [vmem:[%s188 + $0x688] sm:$0xff]
        %v454 = vld [vmem:[%s188 + $0x690] sm:$0xff]
        %v455 = vld [vmem:[%s188 + $0x698] sm:$0xff]
        %v456 = vld [vmem:[%s188 + $0x6a0] sm:$0xff]
        %v457 = vld [vmem:[%s188 + $0x6a8] sm:$0xff]
        %v458 = vld [vmem:[%s188 + $0x6b0] sm:$0xff]
        %v459 = vld [vmem:[%s188 + $0x6b8] sm:$0xff]
        %v460 = vld [vmem:[%s188 + $0x6c0] sm:$0xff]
        %v461 = vld [vmem:[%s188 + $0x6c8] sm:$0xff]
        %v462 = vld [vmem:[%s188 + $0x6d0] sm:$0xff]
        %v463 = vld [vmem:[%s188 + $0x6d8] sm:$0xff]
        %v464 = vld [vmem:[%s188 + $0x6e0] sm:$0xff]
        %v465 = vld [vmem:[%s188 + $0x6e8] sm:$0xff]
        %v466 = vld [vmem:[%s188 + $0x6f0] sm:$0xff]
        %v467 = vld [vmem:[%s188 + $0x6f8] sm:$0xff]
        %v468 = vld [vmem:[%s188 + $0x700] sm:$0xff]
        %v469 = vld [vmem:[%s188 + $0x708] sm:$0xff]
        %v470 = vld [vmem:[%s188 + $0x710] sm:$0xff]
        %v471 = vld [vmem:[%s188 + $0x718] sm:$0xff]
        %v472 = vld [vmem:[%s188 + $0x720] sm:$0xff]
        %v473 = vld [vmem:[%s188 + $0x728] sm:$0xff]
        %v474 = vld [vmem:[%s188 + $0x730] sm:$0xff]
        %v475 = vld [vmem:[%s188 + $0x738] sm:$0xff]
        %v476 = vld [vmem:[%s188 + $0x740] sm:$0xff]
        %v477 = vld [vmem:[%s188 + $0x748] sm:$0xff]
        %v478 = vld [vmem:[%s188 + $0x750] sm:$0xff]
        %v479 = vld [vmem:[%s188 + $0x758] sm:$0xff]
        %v480 = vld [vmem:[%s188 + $0x760] sm:$0xff]
        %v481 = vld [vmem:[%s188 + $0x768] sm:$0xff]
        %v482 = vld [vmem:[%s188 + $0x770] sm:$0xff]
        %v483 = vld [vmem:[%s188 + $0x778] sm:$0xff]
        %v484 = vld [vmem:[%s188 + $0x780] sm:$0xff]
        %v485 = vld [vmem:[%s188 + $0x788] sm:$0xff]
        %v486 = vld [vmem:[%s188 + $0x790] sm:$0xff]
        %v487 = vld [vmem:[%s188 + $0x798] sm:$0xff]
        %v488 = vld [vmem:[%s188 + $0x7a0] sm:$0xff]
        %v489 = vld [vmem:[%s188 + $0x7a8] sm:$0xff]
        %v490 = vld [vmem:[%s188 + $0x7b0] sm:$0xff]
        %v491 = vld [vmem:[%s188 + $0x7b8] sm:$0xff]
        %v492 = vld [vmem:[%s188 + $0x7c0] sm:$0xff]
        %v493 = vld [vmem:[%s188 + $0x7c8] sm:$0xff]
        %v494 = vld [vmem:[%s188 + $0x7d0] sm:$0xff]
        %v495 = vld [vmem:[%s188 + $0x7d8] sm:$0xff]
        %v496 = vld [vmem:[%s188 + $0x7e0] sm:$0xff]
        %v497 = vld [vmem:[%s188 + $0x7e8] sm:$0xff]
        %v498 = vld [vmem:[%s188 + $0x7f0] sm:$0xff]
        %v499 = vld [vmem:[%s188 + $0x7f8] sm:$0xff]
        %v500 = vld [vmem:[%s188 + $0x800] sm:$0xff]
        %v501 = vld [vmem:[%s188 + $0x808] sm:$0xff]
        %v502 = vld [vmem:[%s188 + $0x810] sm:$0xff]
        %v503 = vld [vmem:[%s188 + $0x818] sm:$0xff]
        %v504 = vld [vmem:[%s188 + $0x820] sm:$0xff]
        %v505 = vld [vmem:[%s188 + $0x828] sm:$0xff]
        %v506 = vld [vmem:[%s188 + $0x830] sm:$0xff]
        %v507 = vld [vmem:[%s188 + $0x838] sm:$0xff]
        %v508 = vld [vmem:[%s188 + $0x840] sm:$0xff]
        %v509 = vld [vmem:[%s188 + $0x848] sm:$0xff]
        %v510 = vld [vmem:[%s188 + $0x850] sm:$0xff]
        %v511 = vld [vmem:[%s188 + $0x858] sm:$0xff]
        %v512 = vld [vmem:[%s188 + $0x860] sm:$0xff]
        %v513 = vld [vmem:[%s188 + $0x868] sm:$0xff]
        %v514 = vld [vmem:[%s188 + $0x870] sm:$0xff]
        %v515 = vld [vmem:[%s188 + $0x878] sm:$0xff]
        %v516 = vld [vmem:[%s188 + $0x880] sm:$0xff]
        %v517 = vld [vmem:[%s188 + $0x888] sm:$0xff]
        %v518 = vld [vmem:[%s188 + $0x890] sm:$0xff]
        %v519 = vld [vmem:[%s188 + $0x898] sm:$0xff]
        %v520 = vld [vmem:[%s188 + $0x8a0] sm:$0xff]
        %v521 = vld [vmem:[%s188 + $0x8a8] sm:$0xff]
        %v522 = vld [vmem:[%s188 + $0x8b0] sm:$0xff]
        %v523 = vld [vmem:[%s188 + $0x8b8] sm:$0xff]
        %v524 = vld [vmem:[%s188 + $0x8c0] sm:$0xff]
        %v525 = vld [vmem:[%s188 + $0x8c8] sm:$0xff]
        %v526 = vld [vmem:[%s188 + $0x8d0] sm:$0xff]
        %v527 = vld [vmem:[%s188 + $0x8d8] sm:$0xff]
        %v528 = vld [vmem:[%s188 + $0x8e0] sm:$0xff]
        %v529 = vld [vmem:[%s188 + $0x8e8] sm:$0xff]
        %v530 = vld [vmem:[%s188 + $0x8f0] sm:$0xff]
        %v531 = vld [vmem:[%s188 + $0x8f8] sm:$0xff]
        %v532 = vld [vmem:[%s188 + $0x900] sm:$0xff]
        %v533 = vld [vmem:[%s188 + $0x908] sm:$0xff]
        %v534 = vld [vmem:[%s188 + $0x910] sm:$0xff]
        %v535 = vld [vmem:[%s188 + $0x918] sm:$0xff]
        %v536 = vld [vmem:[%s188 + $0x920] sm:$0xff]
        %v537 = vld [vmem:[%s188 + $0x928] sm:$0xff]
        %v538 = vld [vmem:[%s188 + $0x930] sm:$0xff]
        %v539 = vld [vmem:[%s188 + $0x938] sm:$0xff]
        %v540 = vld [vmem:[%s188 + $0x940] sm:$0xff]
        %v541 = vld [vmem:[%s188 + $0x948] sm:$0xff]
        %v542 = vld [vmem:[%s188 + $0x950] sm:$0xff]
        %v543 = vld [vmem:[%s188 + $0x958] sm:$0xff]
        %v544 = vld [vmem:[%s188 + $0x960] sm:$0xff]
        %v545 = vld [vmem:[%s188 + $0x968] sm:$0xff]
        %v546 = vld [vmem:[%s188 + $0x970] sm:$0xff]
        %v547 = vld [vmem:[%s188 + $0x978] sm:$0xff]
        %v548 = vld [vmem:[%s188 + $0x980] sm:$0xff]
        %v549 = vld [vmem:[%s188 + $0x988] sm:$0xff]
        %v550 = vld [vmem:[%s188 + $0x990] sm:$0xff]
        %v551 = vld [vmem:[%s188 + $0x998] sm:$0xff]
        %v552 = vld [vmem:[%s188 + $0x9a0] sm:$0xff]
        %v553 = vld [vmem:[%s188 + $0x9a8] sm:$0xff]
        %v554 = vld [vmem:[%s188 + $0x9b0] sm:$0xff]
        %v555 = vld [vmem:[%s188 + $0x9b8] sm:$0xff]
        %v556 = vld [vmem:[%s188 + $0x9c0] sm:$0xff]
        %v557 = vld [vmem:[%s188 + $0x9c8] sm:$0xff]
        %v558 = vld [vmem:[%s188 + $0x9d0] sm:$0xff]
        %v559 = vld [vmem:[%s188 + $0x9d8] sm:$0xff]
        %v560 = vld [vmem:[%s188 + $0x9e0] sm:$0xff]
        %v561 = vld [vmem:[%s188 + $0x9e8] sm:$0xff]
        %v562 = vld [vmem:[%s188 + $0x9f0] sm:$0xff]
        %v563 = vld [vmem:[%s188 + $0x9f8] sm:$0xff]
        %v564 = vld [vmem:[%s188 + $0xa00] sm:$0xff]
        %v565 = vld [vmem:[%s188 + $0xa08] sm:$0xff]
        %v566 = vld [vmem:[%s188 + $0xa10] sm:$0xff]
        %v567 = vld [vmem:[%s188 + $0xa18] sm:$0xff]
        %v568 = vld [vmem:[%s188 + $0xa20] sm:$0xff]
        %v569 = vld [vmem:[%s188 + $0xa28] sm:$0xff]
        %v570 = vld [vmem:[%s188 + $0xa30] sm:$0xff]
        %v571 = vld [vmem:[%s188 + $0xa38] sm:$0xff]
        %v572 = vld [vmem:[%s188 + $0xa40] sm:$0xff]
        %v573 = vld [vmem:[%s188 + $0xa48] sm:$0xff]
        %v574 = vld [vmem:[%s188 + $0xa50] sm:$0xff]
        %v575 = vld [vmem:[%s188 + $0xa58] sm:$0xff]
        %v576 = vld [vmem:[%s188 + $0xa60] sm:$0xff]
        %v577 = vld [vmem:[%s188 + $0xa68] sm:$0xff]
        %v578 = vld [vmem:[%s188 + $0xa70] sm:$0xff]
        %v579 = vld [vmem:[%s188 + $0xa78] sm:$0xff]
        %v580 = vld [vmem:[%s188 + $0xa80] sm:$0xff]
        %v581 = vld [vmem:[%s188 + $0xa88] sm:$0xff]
        %v582 = vld [vmem:[%s188 + $0xa90] sm:$0xff]
        %v583 = vld [vmem:[%s188 + $0xa98] sm:$0xff]
        %v584 = vld [vmem:[%s188 + $0xaa0] sm:$0xff]
        %v585 = vld [vmem:[%s188 + $0xaa8] sm:$0xff]
        %v586 = vld [vmem:[%s188 + $0xab0] sm:$0xff]
        %v587 = vld [vmem:[%s188 + $0xab8] sm:$0xff]
        %v588 = vld [vmem:[%s188 + $0xac0] sm:$0xff]
        %v589 = vld [vmem:[%s188 + $0xac8] sm:$0xff]
        %v590 = vld [vmem:[%s188 + $0xad0] sm:$0xff]
        %v591 = vld [vmem:[%s188 + $0xad8] sm:$0xff]
        %v592 = vld [vmem:[%s188 + $0xae0] sm:$0xff]
        %v593 = vld [vmem:[%s188 + $0xae8] sm:$0xff]
        %v594 = vld [vmem:[%s188 + $0xaf0] sm:$0xff]
        %v595 = vld [vmem:[%s188 + $0xaf8] sm:$0xff]
        %v596 = vld [vmem:[%s188 + $0xb00] sm:$0xff]
        %v597 = vld [vmem:[%s188 + $0xb08] sm:$0xff]
        %v598 = vld [vmem:[%s188 + $0xb10] sm:$0xff]
        %v599 = vld [vmem:[%s188 + $0xb18] sm:$0xff]
        %v600 = vld [vmem:[%s188 + $0xb20] sm:$0xff]
        %v601 = vld [vmem:[%s188 + $0xb28] sm:$0xff]
        %v602 = vld [vmem:[%s188 + $0xb30] sm:$0xff]
        %v603 = vld [vmem:[%s188 + $0xb38] sm:$0xff]
        %v604 = vld [vmem:[%s188 + $0xb40] sm:$0xff]
        %v605 = vld [vmem:[%s188 + $0xb48] sm:$0xff]
        %v606 = vld [vmem:[%s188 + $0xb50] sm:$0xff]
        %v607 = vld [vmem:[%s188 + $0xb58] sm:$0xff]
        %v608 = vld [vmem:[%s188 + $0xb60] sm:$0xff]
        %v609 = vld [vmem:[%s188 + $0xb68] sm:$0xff]
        %v610 = vld [vmem:[%s188 + $0xb70] sm:$0xff]
        %v611 = vld [vmem:[%s188 + $0xb78] sm:$0xff]
        %v612 = vld [vmem:[%s188 + $0xb80] sm:$0xff]
        %v613 = vld [vmem:[%s188 + $0xb88] sm:$0xff]
        %v614 = vld [vmem:[%s188 + $0xb90] sm:$0xff]
        %v615 = vld [vmem:[%s188 + $0xb98] sm:$0xff]
        %v616 = vld [vmem:[%s188 + $0xba0] sm:$0xff]
        %v617 = vld [vmem:[%s188 + $0xba8] sm:$0xff]
        %v618 = vld [vmem:[%s188 + $0xbb0] sm:$0xff]
        %v619 = vld [vmem:[%s188 + $0xbb8] sm:$0xff]
        %v620 = vld [vmem:[%s188 + $0xbc0] sm:$0xff]
        %v621 = vld [vmem:[%s188 + $0xbc8] sm:$0xff]
        %v622 = vld [vmem:[%s188 + $0xbd0] sm:$0xff]
        %v623 = vld [vmem:[%s188 + $0xbd8] sm:$0xff]
        %v624 = vld [vmem:[%s188 + $0xbe0] sm:$0xff]
        %v625 = vld [vmem:[%s188 + $0xbe8] sm:$0xff]
        %v626 = vld [vmem:[%s188 + $0xbf0] sm:$0xff]
        %v627 = vld [vmem:[%s188 + $0xbf8] sm:$0xff]
        %v628 = vld [vmem:[%s188 + $0xc00] sm:$0xff]
        %v629 = vld [vmem:[%s188 + $0xc08] sm:$0xff]
        %v630 = vld [vmem:[%s188 + $0xc10] sm:$0xff]
        %v631 = vld [vmem:[%s188 + $0xc18] sm:$0xff]
        %v632 = vld [vmem:[%s188 + $0xc20] sm:$0xff]
        %v633 = vld [vmem:[%s188 + $0xc28] sm:$0xff]
        %v634 = vld [vmem:[%s188 + $0xc30] sm:$0xff]
        %v635 = vld [vmem:[%s188 + $0xc38] sm:$0xff]
        %v636 = vld [vmem:[%s188 + $0xc40] sm:$0xff]
        %v637 = vld [vmem:[%s188 + $0xc48] sm:$0xff]
        %v638 = vld [vmem:[%s188 + $0xc50] sm:$0xff]
        %v639 = vld [vmem:[%s188 + $0xc58] sm:$0xff]
        %v640 = vld [vmem:[%s188 + $0xc60] sm:$0xff]
        %v641 = vld [vmem:[%s188 + $0xc68] sm:$0xff]
        %v642 = vld [vmem:[%s188 + $0xc70] sm:$0xff]
        %v643 = vld [vmem:[%s188 + $0xc78] sm:$0xff]
        %v644 = vld [vmem:[%s188 + $0xc80] sm:$0xff]
        %v645 = vld [vmem:[%s188 + $0xc88] sm:$0xff]
        %v646 = vld [vmem:[%s188 + $0xc90] sm:$0xff]
        %v647 = vld [vmem:[%s188 + $0xc98] sm:$0xff]
        %v648 = vld [vmem:[%s188 + $0xca0] sm:$0xff]
        %v649 = vld [vmem:[%s188 + $0xca8] sm:$0xff]
        %v650 = vld [vmem:[%s188 + $0xcb0] sm:$0xff]
        %v651 = vld [vmem:[%s188 + $0xcb8] sm:$0xff]
        %v652 = vld [vmem:[%s188 + $0xcc0] sm:$0xff]
        %v653 = vld [vmem:[%s188 + $0xcc8] sm:$0xff]
        %v654 = vld [vmem:[%s188 + $0xcd0] sm:$0xff]
        %v655 = vld [vmem:[%s188 + $0xcd8] sm:$0xff]
        %v656 = vld [vmem:[%s188 + $0xce0] sm:$0xff]
        %v657 = vld [vmem:[%s188 + $0xce8] sm:$0xff]
        %v658 = vld [vmem:[%s188 + $0xcf0] sm:$0xff]
        %v659 = vld [vmem:[%s188 + $0xcf8] sm:$0xff]
        %v660 = vld [vmem:[%s188 + $0xd00] sm:$0xff]
        %v661 = vld [vmem:[%s188 + $0xd08] sm:$0xff]
        %v662 = vld [vmem:[%s188 + $0xd10] sm:$0xff]
        %v663 = vld [vmem:[%s188 + $0xd18] sm:$0xff]
        %v664 = vld [vmem:[%s188 + $0xd20] sm:$0xff]
        %v665 = vld [vmem:[%s188 + $0xd28] sm:$0xff]
        %v666 = vld [vmem:[%s188 + $0xd30] sm:$0xff]
        %v667 = vld [vmem:[%s188 + $0xd38] sm:$0xff]
        %v668 = vld [vmem:[%s188 + $0xd40] sm:$0xff]
        %v669 = vld [vmem:[%s188 + $0xd48] sm:$0xff]
        %v670 = vld [vmem:[%s188 + $0xd50] sm:$0xff]
        %v671 = vld [vmem:[%s188 + $0xd58] sm:$0xff]
        %v672 = vld [vmem:[%s188 + $0xd60] sm:$0xff]
        %v673 = vld [vmem:[%s188 + $0xd68] sm:$0xff]
        %v674 = vld [vmem:[%s188 + $0xd70] sm:$0xff]
        %v675 = vld [vmem:[%s188 + $0xd78] sm:$0xff]
        %v676 = vld [vmem:[%s188 + $0xd80] sm:$0xff]
        %v677 = vld [vmem:[%s188 + $0xd88] sm:$0xff]
        %v678 = vld [vmem:[%s188 + $0xd90] sm:$0xff]
        %v679 = vld [vmem:[%s188 + $0xd98] sm:$0xff]
        %v680 = vld [vmem:[%s188 + $0xda0] sm:$0xff]
        %v681 = vld [vmem:[%s188 + $0xda8] sm:$0xff]
        %v682 = vld [vmem:[%s188 + $0xdb0] sm:$0xff]
        %v683 = vld [vmem:[%s188 + $0xdb8] sm:$0xff]
        %v684 = vld [vmem:[%s188 + $0xdc0] sm:$0xff]
        %v685 = vld [vmem:[%s188 + $0xdc8] sm:$0xff]
        %v686 = vld [vmem:[%s188 + $0xdd0] sm:$0xff]
        %v687 = vld [vmem:[%s188 + $0xdd8] sm:$0xff]
        %v688 = vld [vmem:[%s188 + $0xde0] sm:$0xff]
        %v689 = vld [vmem:[%s188 + $0xde8] sm:$0xff]
        %v690 = vld [vmem:[%s188 + $0xdf0] sm:$0xff]
        %v691 = vld [vmem:[%s188 + $0xdf8] sm:$0xff]
        %v692 = vld [vmem:[%s188 + $0xe00] sm:$0xff]
        %v693 = vld [vmem:[%s188 + $0xe08] sm:$0xff]
        %v694 = vld [vmem:[%s188 + $0xe10] sm:$0xff]
        %v695 = vld [vmem:[%s188 + $0xe18] sm:$0xff]
        %v696 = vld [vmem:[%s188 + $0xe20] sm:$0xff]
        %v697 = vld [vmem:[%s188 + $0xe28] sm:$0xff]
        %v698 = vld [vmem:[%s188 + $0xe30] sm:$0xff]
        %v699 = vld [vmem:[%s188 + $0xe38] sm:$0xff]
        %v700 = vld [vmem:[%s188 + $0xe40] sm:$0xff]
        %v701 = vld [vmem:[%s188 + $0xe48] sm:$0xff]
        %v702 = vld [vmem:[%s188 + $0xe50] sm:$0xff]
        %v703 = vld [vmem:[%s188 + $0xe58] sm:$0xff]
        %v704 = vld [vmem:[%s188 + $0xe60] sm:$0xff]
        %v705 = vld [vmem:[%s188 + $0xe68] sm:$0xff]
        %v706 = vld [vmem:[%s188 + $0xe70] sm:$0xff]
        %v707 = vld [vmem:[%s188 + $0xe78] sm:$0xff]
        %v708 = vld [vmem:[%s188 + $0xe80] sm:$0xff]
        %v709 = vld [vmem:[%s188 + $0xe88] sm:$0xff]
        %v710 = vld [vmem:[%s188 + $0xe90] sm:$0xff]
        %v711 = vld [vmem:[%s188 + $0xe98] sm:$0xff]
        %v712 = vld [vmem:[%s188 + $0xea0] sm:$0xff]
        %v713 = vld [vmem:[%s188 + $0xea8] sm:$0xff]
        %v714 = vld [vmem:[%s188 + $0xeb0] sm:$0xff]
        %v715 = vld [vmem:[%s188 + $0xeb8] sm:$0xff]
        %v716 = vld [vmem:[%s188 + $0xec0] sm:$0xff]
        %v717 = vld [vmem:[%s188 + $0xec8] sm:$0xff]
        %v718 = vld [vmem:[%s188 + $0xed0] sm:$0xff]
        %v719 = vld [vmem:[%s188 + $0xed8] sm:$0xff]
        %v720 = vld [vmem:[%s188 + $0xee0] sm:$0xff]
        %v721 = vld [vmem:[%s188 + $0xee8] sm:$0xff]
        %v722 = vld [vmem:[%s188 + $0xef0] sm:$0xff]
        %v723 = vld [vmem:[%s188 + $0xef8] sm:$0xff]
        %v724 = vld [vmem:[%s188 + $0xf00] sm:$0xff]
        %v725 = vld [vmem:[%s188 + $0xf08] sm:$0xff]
        %v726 = vld [vmem:[%s188 + $0xf10] sm:$0xff]
        %v727 = vld [vmem:[%s188 + $0xf18] sm:$0xff]
        %v728 = vld [vmem:[%s188 + $0xf20] sm:$0xff]
        %v729 = vld [vmem:[%s188 + $0xf28] sm:$0xff]
        %v730 = vld [vmem:[%s188 + $0xf30] sm:$0xff]
        %v731 = vld [vmem:[%s188 + $0xf38] sm:$0xff]
        %v732 = vld [vmem:[%s188 + $0xf40] sm:$0xff]
        %v733 = vld [vmem:[%s188 + $0xf48] sm:$0xff]
        %v734 = vld [vmem:[%s188 + $0xf50] sm:$0xff]
        %v735 = vld [vmem:[%s188 + $0xf58] sm:$0xff]
        %v736 = vld [vmem:[%s188 + $0xf60] sm:$0xff]
        %v737 = vld [vmem:[%s188 + $0xf68] sm:$0xff]
        %v738 = vld [vmem:[%s188 + $0xf70] sm:$0xff]
        %v739 = vld [vmem:[%s188 + $0xf78] sm:$0xff]
        %v740 = vld [vmem:[%s188 + $0xf80] sm:$0xff]
        %v741 = vld [vmem:[%s188 + $0xf88] sm:$0xff]
        %v742 = vld [vmem:[%s188 + $0xf90] sm:$0xff]
        %v743 = vld [vmem:[%s188 + $0xf98] sm:$0xff]
        %v744 = vld [vmem:[%s198] sm:$0xf]
        %v746 = vperm.slane %v744, 0
        %v747 = vperm.slane %v744, 1
        %v748 = vperm.slane %v744, 2
        %v749 = vperm.slane %v744, 3
        %v762 = vunpack.c.l.b16 %v236
        %v763 = vunpack.c.h.b16 %v236
        %v764 = vunpack.c.l.b16 %v237
        %v765 = vunpack.c.h.b16 %v237
        %v766 = vunpack.c.l.b16 %v238
        %v767 = vunpack.c.h.b16 %v238
        %v768 = vunpack.c.l.b16 %v239
        %v769 = vunpack.c.h.b16 %v239
        %v770 = vunpack.c.l.b16 %v240
        %v771 = vunpack.c.h.b16 %v240
        %v772 = vunpack.c.l.b16 %v241
        %v773 = vunpack.c.h.b16 %v241
        %v774 = vunpack.c.l.b16 %v242
        %v775 = vunpack.c.h.b16 %v242
        %v776 = vunpack.c.l.b16 %v243
        %v777 = vunpack.c.h.b16 %v243
        %v778 = vpack.c.b16 %v762, %v762
        %v779 = vpack.c.b16 %v763, %v763
        %v780 = vpack.c.b16 %v764, %v764
        %v781 = vpack.c.b16 %v765, %v765
        %v782 = vpack.c.b16 %v766, %v766
        %v783 = vpack.c.b16 %v767, %v767
        %v784 = vpack.c.b16 %v768, %v768
        %v785 = vpack.c.b16 %v769, %v769
        %v786 = vpack.c.b16 %v770, %v770
        %v787 = vpack.c.b16 %v771, %v771
        %v788 = vpack.c.b16 %v772, %v772
        %v789 = vpack.c.b16 %v773, %v773
        %v790 = vpack.c.b16 %v774, %v774
        %v791 = vpack.c.b16 %v775, %v775
        %v792 = vpack.c.b16 %v776, %v776
        %v793 = vpack.c.b16 %v777, %v777
        %v1309 = vunpack.c.l.b16 %v244
        %v1310 = vunpack.c.h.b16 %v244
        %v1311 = vunpack.c.l.b16 %v245
        %v1312 = vunpack.c.h.b16 %v245
        %v1313 = vunpack.c.l.b16 %v246
        %v1314 = vunpack.c.h.b16 %v246
        %v1315 = vunpack.c.l.b16 %v247
        %v1316 = vunpack.c.h.b16 %v247
        %v1317 = vunpack.c.l.b16 %v248
        %v1318 = vunpack.c.h.b16 %v248
        %v1319 = vunpack.c.l.b16 %v249
        %v1320 = vunpack.c.h.b16 %v249
        %v1321 = vunpack.c.l.b16 %v250
        %v1322 = vunpack.c.h.b16 %v250
        %v1323 = vunpack.c.l.b16 %v251
        %v1324 = vunpack.c.h.b16 %v251
        %v1325 = vunpack.c.l.b16 %v252
        %v1326 = vunpack.c.h.b16 %v252
        %v1327 = vunpack.c.l.b16 %v253
        %v1328 = vunpack.c.h.b16 %v253
        %v1329 = vunpack.c.l.b16 %v254
        %v1330 = vunpack.c.h.b16 %v254
        %v1331 = vunpack.c.l.b16 %v255
        %v1332 = vunpack.c.h.b16 %v255
        %v1333 = vunpack.c.l.b16 %v256
        %v1334 = vunpack.c.h.b16 %v256
        %v1335 = vunpack.c.l.b16 %v257
        %v1336 = vunpack.c.h.b16 %v257
        %v1337 = vunpack.c.l.b16 %v258
        %v1338 = vunpack.c.h.b16 %v258
        %v1339 = vunpack.c.l.b16 %v259
        %v1340 = vunpack.c.h.b16 %v259
        %v1341 = vunpack.c.l.b16 %v260
        %v1342 = vunpack.c.h.b16 %v260
        %v1343 = vunpack.c.l.b16 %v261
        %v1344 = vunpack.c.h.b16 %v261
        %v1345 = vunpack.c.l.b16 %v262
        %v1346 = vunpack.c.h.b16 %v262
        %v1347 = vunpack.c.l.b16 %v263
        %v1348 = vunpack.c.h.b16 %v263
        %v1349 = vunpack.c.l.b16 %v264
        %v1350 = vunpack.c.h.b16 %v264
        %v1351 = vunpack.c.l.b16 %v265
        %v1352 = vunpack.c.h.b16 %v265
        %v1353 = vunpack.c.l.b16 %v266
        %v1354 = vunpack.c.h.b16 %v266
        %v1355 = vunpack.c.l.b16 %v267
        %v1356 = vunpack.c.h.b16 %v267
        %v1357 = vunpack.c.l.b16 %v268
        %v1358 = vunpack.c.h.b16 %v268
        %v1359 = vunpack.c.l.b16 %v269
        %v1360 = vunpack.c.h.b16 %v269
        %v1361 = vunpack.c.l.b16 %v270
        %v1362 = vunpack.c.h.b16 %v270
        %v1363 = vunpack.c.l.b16 %v271
        %v1364 = vunpack.c.h.b16 %v271
        %v1365 = vunpack.c.l.b16 %v272
        %v1366 = vunpack.c.h.b16 %v272
        %v1367 = vunpack.c.l.b16 %v273
        %v1368 = vunpack.c.h.b16 %v273
        %v1369 = vunpack.c.l.b16 %v274
        %v1370 = vunpack.c.h.b16 %v274
        %v1371 = vunpack.c.l.b16 %v275
        %v1372 = vunpack.c.h.b16 %v275
        %v1373 = vunpack.c.l.b16 %v276
        %v1374 = vunpack.c.h.b16 %v276
        %v1375 = vunpack.c.l.b16 %v277
        %v1376 = vunpack.c.h.b16 %v277
        %v1377 = vunpack.c.l.b16 %v278
        %v1378 = vunpack.c.h.b16 %v278
        %v1379 = vunpack.c.l.b16 %v279
        %v1380 = vunpack.c.h.b16 %v279
        %v1381 = vunpack.c.l.b16 %v280
        %v1382 = vunpack.c.h.b16 %v280
        %v1383 = vunpack.c.l.b16 %v281
        %v1384 = vunpack.c.h.b16 %v281
        %v1385 = vunpack.c.l.b16 %v282
        %v1386 = vunpack.c.h.b16 %v282
        %v1387 = vunpack.c.l.b16 %v283
        %v1388 = vunpack.c.h.b16 %v283
        %v1389 = vunpack.c.l.b16 %v284
        %v1390 = vunpack.c.h.b16 %v284
        %v1391 = vunpack.c.l.b16 %v285
        %v1392 = vunpack.c.h.b16 %v285
        %v1393 = vunpack.c.l.b16 %v286
        %v1394 = vunpack.c.h.b16 %v286
        %v1395 = vunpack.c.l.b16 %v287
        %v1396 = vunpack.c.h.b16 %v287
        %v1397 = vunpack.c.l.b16 %v288
        %v1398 = vunpack.c.h.b16 %v288
        %v1399 = vunpack.c.l.b16 %v289
        %v1400 = vunpack.c.h.b16 %v289
        %v1401 = vunpack.c.l.b16 %v290
        %v1402 = vunpack.c.h.b16 %v290
        %v1403 = vunpack.c.l.b16 %v291
        %v1404 = vunpack.c.h.b16 %v291
        %v1405 = vunpack.c.l.b16 %v292
        %v1406 = vunpack.c.h.b16 %v292
        %v1407 = vunpack.c.l.b16 %v293
        %v1408 = vunpack.c.h.b16 %v293
        %v1409 = vunpack.c.l.b16 %v294
        %v1410 = vunpack.c.h.b16 %v294
        %v1411 = vunpack.c.l.b16 %v295
        %v1412 = vunpack.c.h.b16 %v295
        %v1413 = vunpack.c.l.b16 %v296
        %v1414 = vunpack.c.h.b16 %v296
        %v1415 = vunpack.c.l.b16 %v297
        %v1416 = vunpack.c.h.b16 %v297
        %v1417 = vunpack.c.l.b16 %v298
        %v1418 = vunpack.c.h.b16 %v298
        %v1419 = vunpack.c.l.b16 %v299
        %v1420 = vunpack.c.h.b16 %v299
        %v1421 = vunpack.c.l.b16 %v300
        %v1422 = vunpack.c.h.b16 %v300
        %v1423 = vunpack.c.l.b16 %v301
        %v1424 = vunpack.c.h.b16 %v301
        %v1425 = vunpack.c.l.b16 %v302
        %v1426 = vunpack.c.h.b16 %v302
        %v1427 = vunpack.c.l.b16 %v303
        %v1428 = vunpack.c.h.b16 %v303
        %v1429 = vunpack.c.l.b16 %v304
        %v1430 = vunpack.c.h.b16 %v304
        %v1431 = vunpack.c.l.b16 %v305
        %v1432 = vunpack.c.h.b16 %v305
        %v1433 = vunpack.c.l.b16 %v306
        %v1434 = vunpack.c.h.b16 %v306
        %v1435 = vunpack.c.l.b16 %v307
        %v1436 = vunpack.c.h.b16 %v307
        %v1437 = vunpack.c.l.b16 %v308
        %v1438 = vunpack.c.h.b16 %v308
        %v1439 = vunpack.c.l.b16 %v309
        %v1440 = vunpack.c.h.b16 %v309
        %v1441 = vunpack.c.l.b16 %v310
        %v1442 = vunpack.c.h.b16 %v310
        %v1443 = vunpack.c.l.b16 %v311
        %v1444 = vunpack.c.h.b16 %v311
        %v1445 = vunpack.c.l.b16 %v312
        %v1446 = vunpack.c.h.b16 %v312
        %v1447 = vunpack.c.l.b16 %v313
        %v1448 = vunpack.c.h.b16 %v313
        %v1449 = vunpack.c.l.b16 %v314
        %v1450 = vunpack.c.h.b16 %v314
        %v1451 = vunpack.c.l.b16 %v315
        %v1452 = vunpack.c.h.b16 %v315
        %v1453 = vunpack.c.l.b16 %v316
        %v1454 = vunpack.c.h.b16 %v316
        %v1455 = vunpack.c.l.b16 %v317
        %v1456 = vunpack.c.h.b16 %v317
        %v1457 = vunpack.c.l.b16 %v318
        %v1458 = vunpack.c.h.b16 %v318
        %v1459 = vunpack.c.l.b16 %v319
        %v1460 = vunpack.c.h.b16 %v319
        %v1461 = vunpack.c.l.b16 %v320
        %v1462 = vunpack.c.h.b16 %v320
        %v1463 = vunpack.c.l.b16 %v321
        %v1464 = vunpack.c.h.b16 %v321
        %v1465 = vunpack.c.l.b16 %v322
        %v1466 = vunpack.c.h.b16 %v322
        %v1467 = vunpack.c.l.b16 %v323
        %v1468 = vunpack.c.h.b16 %v323
        %v1469 = vunpack.c.l.b16 %v324
        %v1470 = vunpack.c.h.b16 %v324
        %v1471 = vunpack.c.l.b16 %v325
        %v1472 = vunpack.c.h.b16 %v325
        %v1473 = vunpack.c.l.b16 %v326
        %v1474 = vunpack.c.h.b16 %v326
        %v1475 = vunpack.c.l.b16 %v327
        %v1476 = vunpack.c.h.b16 %v327
        %v1477 = vunpack.c.l.b16 %v328
        %v1478 = vunpack.c.h.b16 %v328
        %v1479 = vunpack.c.l.b16 %v329
        %v1480 = vunpack.c.h.b16 %v329
        %v1481 = vunpack.c.l.b16 %v330
        %v1482 = vunpack.c.h.b16 %v330
        %v1483 = vunpack.c.l.b16 %v331
        %v1484 = vunpack.c.h.b16 %v331
        %v1485 = vunpack.c.l.b16 %v332
        %v1486 = vunpack.c.h.b16 %v332
        %v1487 = vunpack.c.l.b16 %v333
        %v1488 = vunpack.c.h.b16 %v333
        %v1489 = vunpack.c.l.b16 %v334
        %v1490 = vunpack.c.h.b16 %v334
        %v1491 = vunpack.c.l.b16 %v335
        %v1492 = vunpack.c.h.b16 %v335
        %v1493 = vunpack.c.l.b16 %v336
        %v1494 = vunpack.c.h.b16 %v336
        %v1495 = vunpack.c.l.b16 %v337
        %v1496 = vunpack.c.h.b16 %v337
        %v1497 = vunpack.c.l.b16 %v338
        %v1498 = vunpack.c.h.b16 %v338
        %v1499 = vunpack.c.l.b16 %v339
        %v1500 = vunpack.c.h.b16 %v339
        %v1501 = vunpack.c.l.b16 %v340
        %v1502 = vunpack.c.h.b16 %v340
        %v1503 = vunpack.c.l.b16 %v341
        %v1504 = vunpack.c.h.b16 %v341
        %v1505 = vunpack.c.l.b16 %v342
        %v1506 = vunpack.c.h.b16 %v342
        %v1507 = vunpack.c.l.b16 %v343
        %v1508 = vunpack.c.h.b16 %v343
        %v1509 = vunpack.c.l.b16 %v344
        %v1510 = vunpack.c.h.b16 %v344
        %v1511 = vunpack.c.l.b16 %v345
        %v1512 = vunpack.c.h.b16 %v345
        %v1513 = vunpack.c.l.b16 %v346
        %v1514 = vunpack.c.h.b16 %v346
        %v1515 = vunpack.c.l.b16 %v347
        %v1516 = vunpack.c.h.b16 %v347
        %v1517 = vunpack.c.l.b16 %v348
        %v1518 = vunpack.c.h.b16 %v348
        %v1519 = vunpack.c.l.b16 %v349
        %v1520 = vunpack.c.h.b16 %v349
        %v1521 = vunpack.c.l.b16 %v350
        %v1522 = vunpack.c.h.b16 %v350
        %v1523 = vunpack.c.l.b16 %v351
        %v1524 = vunpack.c.h.b16 %v351
        %v1525 = vunpack.c.l.b16 %v352
        %v1526 = vunpack.c.h.b16 %v352
        %v1527 = vunpack.c.l.b16 %v353
        %v1528 = vunpack.c.h.b16 %v353
        %v1529 = vunpack.c.l.b16 %v354
        %v1530 = vunpack.c.h.b16 %v354
        %v1531 = vunpack.c.l.b16 %v355
        %v1532 = vunpack.c.h.b16 %v355
        %v1533 = vunpack.c.l.b16 %v356
        %v1534 = vunpack.c.h.b16 %v356
        %v1535 = vunpack.c.l.b16 %v357
        %v1536 = vunpack.c.h.b16 %v357
        %v1537 = vunpack.c.l.b16 %v358
        %v1538 = vunpack.c.h.b16 %v358
        %v1539 = vunpack.c.l.b16 %v359
        %v1540 = vunpack.c.h.b16 %v359
        %v1541 = vunpack.c.l.b16 %v360
        %v1542 = vunpack.c.h.b16 %v360
        %v1543 = vunpack.c.l.b16 %v361
        %v1544 = vunpack.c.h.b16 %v361
        %v1545 = vunpack.c.l.b16 %v362
        %v1546 = vunpack.c.h.b16 %v362
        %v1547 = vunpack.c.l.b16 %v363
        %v1548 = vunpack.c.h.b16 %v363
        %v1549 = vunpack.c.l.b16 %v364
        %v1550 = vunpack.c.h.b16 %v364
        %v1551 = vunpack.c.l.b16 %v365
        %v1552 = vunpack.c.h.b16 %v365
        %v1553 = vunpack.c.l.b16 %v366
        %v1554 = vunpack.c.h.b16 %v366
        %v1555 = vunpack.c.l.b16 %v367
        %v1556 = vunpack.c.h.b16 %v367
        %v1557 = vunpack.c.l.b16 %v368
        %v1558 = vunpack.c.h.b16 %v368
        %v1559 = vunpack.c.l.b16 %v369
        %v1560 = vunpack.c.h.b16 %v369
        %v1561 = vunpack.c.l.b16 %v370
        %v1562 = vunpack.c.h.b16 %v370
        %v1563 = vunpack.c.l.b16 %v371
        %v1564 = vunpack.c.h.b16 %v371
        %v1565 = vunpack.c.l.b16 %v372
        %v1566 = vunpack.c.h.b16 %v372
        %v1567 = vunpack.c.l.b16 %v373
        %v1568 = vunpack.c.h.b16 %v373
        %v1569 = vunpack.c.l.b16 %v374
        %v1570 = vunpack.c.h.b16 %v374
        %v1571 = vunpack.c.l.b16 %v375
        %v1572 = vunpack.c.h.b16 %v375
        %v1573 = vunpack.c.l.b16 %v376
        %v1574 = vunpack.c.h.b16 %v376
        %v1575 = vunpack.c.l.b16 %v377
        %v1576 = vunpack.c.h.b16 %v377
        %v1577 = vunpack.c.l.b16 %v378
        %v1578 = vunpack.c.h.b16 %v378
        %v1579 = vunpack.c.l.b16 %v379
        %v1580 = vunpack.c.h.b16 %v379
        %v1581 = vunpack.c.l.b16 %v380
        %v1582 = vunpack.c.h.b16 %v380
        %v1583 = vunpack.c.l.b16 %v381
        %v1584 = vunpack.c.h.b16 %v381
        %v1585 = vunpack.c.l.b16 %v382
        %v1586 = vunpack.c.h.b16 %v382
        %v1587 = vunpack.c.l.b16 %v383
        %v1588 = vunpack.c.h.b16 %v383
        %v1589 = vunpack.c.l.b16 %v384
        %v1590 = vunpack.c.h.b16 %v384
        %v1591 = vunpack.c.l.b16 %v385
        %v1592 = vunpack.c.h.b16 %v385
        %v1593 = vunpack.c.l.b16 %v386
        %v1594 = vunpack.c.h.b16 %v386
        %v1595 = vunpack.c.l.b16 %v387
        %v1596 = vunpack.c.h.b16 %v387
        %v1597 = vunpack.c.l.b16 %v388
        %v1598 = vunpack.c.h.b16 %v388
        %v1599 = vunpack.c.l.b16 %v389
        %v1600 = vunpack.c.h.b16 %v389
        %v1601 = vunpack.c.l.b16 %v390
        %v1602 = vunpack.c.h.b16 %v390
        %v1603 = vunpack.c.l.b16 %v391
        %v1604 = vunpack.c.h.b16 %v391
        %v1605 = vunpack.c.l.b16 %v392
        %v1606 = vunpack.c.h.b16 %v392
        %v1607 = vunpack.c.l.b16 %v393
        %v1608 = vunpack.c.h.b16 %v393
        %v1609 = vunpack.c.l.b16 %v394
        %v1610 = vunpack.c.h.b16 %v394
        %v1611 = vunpack.c.l.b16 %v395
        %v1612 = vunpack.c.h.b16 %v395
        %v1613 = vunpack.c.l.b16 %v396
        %v1614 = vunpack.c.h.b16 %v396
        %v1615 = vunpack.c.l.b16 %v397
        %v1616 = vunpack.c.h.b16 %v397
        %v1617 = vunpack.c.l.b16 %v398
        %v1618 = vunpack.c.h.b16 %v398
        %v1619 = vunpack.c.l.b16 %v399
        %v1620 = vunpack.c.h.b16 %v399
        %v1621 = vunpack.c.l.b16 %v400
        %v1622 = vunpack.c.h.b16 %v400
        %v1623 = vunpack.c.l.b16 %v401
        %v1624 = vunpack.c.h.b16 %v401
        %v1625 = vunpack.c.l.b16 %v402
        %v1626 = vunpack.c.h.b16 %v402
        %v1627 = vunpack.c.l.b16 %v403
        %v1628 = vunpack.c.h.b16 %v403
        %v1629 = vunpack.c.l.b16 %v404
        %v1630 = vunpack.c.h.b16 %v404
        %v1631 = vunpack.c.l.b16 %v405
        %v1632 = vunpack.c.h.b16 %v405
        %v1633 = vunpack.c.l.b16 %v406
        %v1634 = vunpack.c.h.b16 %v406
        %v1635 = vunpack.c.l.b16 %v407
        %v1636 = vunpack.c.h.b16 %v407
        %v1637 = vunpack.c.l.b16 %v408
        %v1638 = vunpack.c.h.b16 %v408
        %v1639 = vunpack.c.l.b16 %v409
        %v1640 = vunpack.c.h.b16 %v409
        %v1641 = vunpack.c.l.b16 %v410
        %v1642 = vunpack.c.h.b16 %v410
        %v1643 = vunpack.c.l.b16 %v411
        %v1644 = vunpack.c.h.b16 %v411
        %v1645 = vunpack.c.l.b16 %v412
        %v1646 = vunpack.c.h.b16 %v412
        %v1647 = vunpack.c.l.b16 %v413
        %v1648 = vunpack.c.h.b16 %v413
        %v1649 = vunpack.c.l.b16 %v414
        %v1650 = vunpack.c.h.b16 %v414
        %v1651 = vunpack.c.l.b16 %v415
        %v1652 = vunpack.c.h.b16 %v415
        %v1653 = vunpack.c.l.b16 %v416
        %v1654 = vunpack.c.h.b16 %v416
        %v1655 = vunpack.c.l.b16 %v417
        %v1656 = vunpack.c.h.b16 %v417
        %v1657 = vunpack.c.l.b16 %v418
        %v1658 = vunpack.c.h.b16 %v418
        %v1659 = vunpack.c.l.b16 %v419
        %v1660 = vunpack.c.h.b16 %v419
        %v1661 = vunpack.c.l.b16 %v420
        %v1662 = vunpack.c.h.b16 %v420
        %v1663 = vunpack.c.l.b16 %v421
        %v1664 = vunpack.c.h.b16 %v421
        %v1665 = vunpack.c.l.b16 %v422
        %v1666 = vunpack.c.h.b16 %v422
        %v1667 = vunpack.c.l.b16 %v423
        %v1668 = vunpack.c.h.b16 %v423
        %v1669 = vunpack.c.l.b16 %v424
        %v1670 = vunpack.c.h.b16 %v424
        %v1671 = vunpack.c.l.b16 %v425
        %v1672 = vunpack.c.h.b16 %v425
        %v1673 = vunpack.c.l.b16 %v426
        %v1674 = vunpack.c.h.b16 %v426
        %v1675 = vunpack.c.l.b16 %v427
        %v1676 = vunpack.c.h.b16 %v427
        %v1677 = vunpack.c.l.b16 %v428
        %v1678 = vunpack.c.h.b16 %v428
        %v1679 = vunpack.c.l.b16 %v429
        %v1680 = vunpack.c.h.b16 %v429
        %v1681 = vunpack.c.l.b16 %v430
        %v1682 = vunpack.c.h.b16 %v430
        %v1683 = vunpack.c.l.b16 %v431
        %v1684 = vunpack.c.h.b16 %v431
        %v1685 = vunpack.c.l.b16 %v432
        %v1686 = vunpack.c.h.b16 %v432
        %v1687 = vunpack.c.l.b16 %v433
        %v1688 = vunpack.c.h.b16 %v433
        %v1689 = vunpack.c.l.b16 %v434
        %v1690 = vunpack.c.h.b16 %v434
        %v1691 = vunpack.c.l.b16 %v435
        %v1692 = vunpack.c.h.b16 %v435
        %v1693 = vunpack.c.l.b16 %v436
        %v1694 = vunpack.c.h.b16 %v436
        %v1695 = vunpack.c.l.b16 %v437
        %v1696 = vunpack.c.h.b16 %v437
        %v1697 = vunpack.c.l.b16 %v438
        %v1698 = vunpack.c.h.b16 %v438
        %v1699 = vunpack.c.l.b16 %v439
        %v1700 = vunpack.c.h.b16 %v439
        %v1701 = vunpack.c.l.b16 %v440
        %v1702 = vunpack.c.h.b16 %v440
        %v1703 = vunpack.c.l.b16 %v441
        %v1704 = vunpack.c.h.b16 %v441
        %v1705 = vunpack.c.l.b16 %v442
        %v1706 = vunpack.c.h.b16 %v442
        %v1707 = vunpack.c.l.b16 %v443
        %v1708 = vunpack.c.h.b16 %v443
        %v1709 = vunpack.c.l.b16 %v444
        %v1710 = vunpack.c.h.b16 %v444
        %v1711 = vunpack.c.l.b16 %v445
        %v1712 = vunpack.c.h.b16 %v445
        %v1713 = vunpack.c.l.b16 %v446
        %v1714 = vunpack.c.h.b16 %v446
        %v1715 = vunpack.c.l.b16 %v447
        %v1716 = vunpack.c.h.b16 %v447
        %v1717 = vunpack.c.l.b16 %v448
        %v1718 = vunpack.c.h.b16 %v448
        %v1719 = vunpack.c.l.b16 %v449
        %v1720 = vunpack.c.h.b16 %v449
        %v1721 = vunpack.c.l.b16 %v450
        %v1722 = vunpack.c.h.b16 %v450
        %v1723 = vunpack.c.l.b16 %v451
        %v1724 = vunpack.c.h.b16 %v451
        %v1725 = vunpack.c.l.b16 %v452
        %v1726 = vunpack.c.h.b16 %v452
        %v1727 = vunpack.c.l.b16 %v453
        %v1728 = vunpack.c.h.b16 %v453
        %v1729 = vunpack.c.l.b16 %v454
        %v1730 = vunpack.c.h.b16 %v454
        %v1731 = vunpack.c.l.b16 %v455
        %v1732 = vunpack.c.h.b16 %v455
        %v1733 = vunpack.c.l.b16 %v456
        %v1734 = vunpack.c.h.b16 %v456
        %v1735 = vunpack.c.l.b16 %v457
        %v1736 = vunpack.c.h.b16 %v457
        %v1737 = vunpack.c.l.b16 %v458
        %v1738 = vunpack.c.h.b16 %v458
        %v1739 = vunpack.c.l.b16 %v459
        %v1740 = vunpack.c.h.b16 %v459
        %v1741 = vunpack.c.l.b16 %v460
        %v1742 = vunpack.c.h.b16 %v460
        %v1743 = vunpack.c.l.b16 %v461
        %v1744 = vunpack.c.h.b16 %v461
        %v1745 = vunpack.c.l.b16 %v462
        %v1746 = vunpack.c.h.b16 %v462
        %v1747 = vunpack.c.l.b16 %v463
        %v1748 = vunpack.c.h.b16 %v463
        %v1749 = vunpack.c.l.b16 %v464
        %v1750 = vunpack.c.h.b16 %v464
        %v1751 = vunpack.c.l.b16 %v465
        %v1752 = vunpack.c.h.b16 %v465
        %v1753 = vunpack.c.l.b16 %v466
        %v1754 = vunpack.c.h.b16 %v466
        %v1755 = vunpack.c.l.b16 %v467
        %v1756 = vunpack.c.h.b16 %v467
        %v1757 = vunpack.c.l.b16 %v468
        %v1758 = vunpack.c.h.b16 %v468
        %v1759 = vunpack.c.l.b16 %v469
        %v1760 = vunpack.c.h.b16 %v469
        %v1761 = vunpack.c.l.b16 %v470
        %v1762 = vunpack.c.h.b16 %v470
        %v1763 = vunpack.c.l.b16 %v471
        %v1764 = vunpack.c.h.b16 %v471
        %v1765 = vunpack.c.l.b16 %v472
        %v1766 = vunpack.c.h.b16 %v472
        %v1767 = vunpack.c.l.b16 %v473
        %v1768 = vunpack.c.h.b16 %v473
        %v1769 = vunpack.c.l.b16 %v474
        %v1770 = vunpack.c.h.b16 %v474
        %v1771 = vunpack.c.l.b16 %v475
        %v1772 = vunpack.c.h.b16 %v475
        %v1773 = vunpack.c.l.b16 %v476
        %v1774 = vunpack.c.h.b16 %v476
        %v1775 = vunpack.c.l.b16 %v477
        %v1776 = vunpack.c.h.b16 %v477
        %v1777 = vunpack.c.l.b16 %v478
        %v1778 = vunpack.c.h.b16 %v478
        %v1779 = vunpack.c.l.b16 %v479
        %v1780 = vunpack.c.h.b16 %v479
        %v1781 = vunpack.c.l.b16 %v480
        %v1782 = vunpack.c.h.b16 %v480
        %v1783 = vunpack.c.l.b16 %v481
        %v1784 = vunpack.c.h.b16 %v481
        %v1785 = vunpack.c.l.b16 %v482
        %v1786 = vunpack.c.h.b16 %v482
        %v1787 = vunpack.c.l.b16 %v483
        %v1788 = vunpack.c.h.b16 %v483
        %v1789 = vunpack.c.l.b16 %v484
        %v1790 = vunpack.c.h.b16 %v484
        %v1791 = vunpack.c.l.b16 %v485
        %v1792 = vunpack.c.h.b16 %v485
        %v1793 = vunpack.c.l.b16 %v486
        %v1794 = vunpack.c.h.b16 %v486
        %v1795 = vunpack.c.l.b16 %v487
        %v1796 = vunpack.c.h.b16 %v487
        %v1797 = vunpack.c.l.b16 %v488
        %v1798 = vunpack.c.h.b16 %v488
        %v1799 = vunpack.c.l.b16 %v489
        %v1800 = vunpack.c.h.b16 %v489
        %v1801 = vunpack.c.l.b16 %v490
        %v1802 = vunpack.c.h.b16 %v490
        %v1803 = vunpack.c.l.b16 %v491
        %v1804 = vunpack.c.h.b16 %v491
        %v1805 = vunpack.c.l.b16 %v492
        %v1806 = vunpack.c.h.b16 %v492
        %v1807 = vunpack.c.l.b16 %v493
        %v1808 = vunpack.c.h.b16 %v493
        %v1809 = vunpack.c.l.b16 %v494
        %v1810 = vunpack.c.h.b16 %v494
        %v1811 = vunpack.c.l.b16 %v495
        %v1812 = vunpack.c.h.b16 %v495
        %v1813 = vunpack.c.l.b16 %v496
        %v1814 = vunpack.c.h.b16 %v496
        %v1815 = vunpack.c.l.b16 %v497
        %v1816 = vunpack.c.h.b16 %v497
        %v1817 = vunpack.c.l.b16 %v498
        %v1818 = vunpack.c.h.b16 %v498
        %v1819 = vunpack.c.l.b16 %v499
        %v1820 = vunpack.c.h.b16 %v499
        %v1821 = vunpack.c.l.b16 %v500
        %v1822 = vunpack.c.h.b16 %v500
        %v1823 = vunpack.c.l.b16 %v501
        %v1824 = vunpack.c.h.b16 %v501
        %v1825 = vunpack.c.l.b16 %v502
        %v1826 = vunpack.c.h.b16 %v502
        %v1827 = vunpack.c.l.b16 %v503
        %v1828 = vunpack.c.h.b16 %v503
        %v1829 = vunpack.c.l.b16 %v504
        %v1830 = vunpack.c.h.b16 %v504
        %v1831 = vunpack.c.l.b16 %v505
        %v1832 = vunpack.c.h.b16 %v505
        %v1833 = vunpack.c.l.b16 %v506
        %v1834 = vunpack.c.h.b16 %v506
        %v1835 = vunpack.c.l.b16 %v507
        %v1836 = vunpack.c.h.b16 %v507
        %v1837 = vunpack.c.l.b16 %v508
        %v1838 = vunpack.c.h.b16 %v508
        %v1839 = vunpack.c.l.b16 %v509
        %v1840 = vunpack.c.h.b16 %v509
        %v1841 = vunpack.c.l.b16 %v510
        %v1842 = vunpack.c.h.b16 %v510
        %v1843 = vunpack.c.l.b16 %v511
        %v1844 = vunpack.c.h.b16 %v511
        %v1845 = vunpack.c.l.b16 %v512
        %v1846 = vunpack.c.h.b16 %v512
        %v1847 = vunpack.c.l.b16 %v513
        %v1848 = vunpack.c.h.b16 %v513
        %v1849 = vunpack.c.l.b16 %v514
        %v1850 = vunpack.c.h.b16 %v514
        %v1851 = vunpack.c.l.b16 %v515
        %v1852 = vunpack.c.h.b16 %v515
        %v1853 = vunpack.c.l.b16 %v516
        %v1854 = vunpack.c.h.b16 %v516
        %v1855 = vunpack.c.l.b16 %v517
        %v1856 = vunpack.c.h.b16 %v517
        %v1857 = vunpack.c.l.b16 %v518
        %v1858 = vunpack.c.h.b16 %v518
        %v1859 = vunpack.c.l.b16 %v519
        %v1860 = vunpack.c.h.b16 %v519
        %v1861 = vunpack.c.l.b16 %v520
        %v1862 = vunpack.c.h.b16 %v520
        %v1863 = vunpack.c.l.b16 %v521
        %v1864 = vunpack.c.h.b16 %v521
        %v1865 = vunpack.c.l.b16 %v522
        %v1866 = vunpack.c.h.b16 %v522
        %v1867 = vunpack.c.l.b16 %v523
        %v1868 = vunpack.c.h.b16 %v523
        %v1869 = vunpack.c.l.b16 %v524
        %v1870 = vunpack.c.h.b16 %v524
        %v1871 = vunpack.c.l.b16 %v525
        %v1872 = vunpack.c.h.b16 %v525
        %v1873 = vunpack.c.l.b16 %v526
        %v1874 = vunpack.c.h.b16 %v526
        %v1875 = vunpack.c.l.b16 %v527
        %v1876 = vunpack.c.h.b16 %v527
        %v1877 = vunpack.c.l.b16 %v528
        %v1878 = vunpack.c.h.b16 %v528
        %v1879 = vunpack.c.l.b16 %v529
        %v1880 = vunpack.c.h.b16 %v529
        %v1881 = vunpack.c.l.b16 %v530
        %v1882 = vunpack.c.h.b16 %v530
        %v1883 = vunpack.c.l.b16 %v531
        %v1884 = vunpack.c.h.b16 %v531
        %v1885 = vunpack.c.l.b16 %v532
        %v1886 = vunpack.c.h.b16 %v532
        %v1887 = vunpack.c.l.b16 %v533
        %v1888 = vunpack.c.h.b16 %v533
        %v1889 = vunpack.c.l.b16 %v534
        %v1890 = vunpack.c.h.b16 %v534
        %v1891 = vunpack.c.l.b16 %v535
        %v1892 = vunpack.c.h.b16 %v535
        %v1893 = vunpack.c.l.b16 %v536
        %v1894 = vunpack.c.h.b16 %v536
        %v1895 = vunpack.c.l.b16 %v537
        %v1896 = vunpack.c.h.b16 %v537
        %v1897 = vunpack.c.l.b16 %v538
        %v1898 = vunpack.c.h.b16 %v538
        %v1899 = vunpack.c.l.b16 %v539
        %v1900 = vunpack.c.h.b16 %v539
        %v1901 = vunpack.c.l.b16 %v540
        %v1902 = vunpack.c.h.b16 %v540
        %v1903 = vunpack.c.l.b16 %v541
        %v1904 = vunpack.c.h.b16 %v541
        %v1905 = vunpack.c.l.b16 %v542
        %v1906 = vunpack.c.h.b16 %v542
        %v1907 = vunpack.c.l.b16 %v543
        %v1908 = vunpack.c.h.b16 %v543
        %v1909 = vunpack.c.l.b16 %v544
        %v1910 = vunpack.c.h.b16 %v544
        %v1911 = vunpack.c.l.b16 %v545
        %v1912 = vunpack.c.h.b16 %v545
        %v1913 = vunpack.c.l.b16 %v546
        %v1914 = vunpack.c.h.b16 %v546
        %v1915 = vunpack.c.l.b16 %v547
        %v1916 = vunpack.c.h.b16 %v547
        %v1917 = vunpack.c.l.b16 %v548
        %v1918 = vunpack.c.h.b16 %v548
        %v1919 = vunpack.c.l.b16 %v549
        %v1920 = vunpack.c.h.b16 %v549
        %v1921 = vunpack.c.l.b16 %v550
        %v1922 = vunpack.c.h.b16 %v550
        %v1923 = vunpack.c.l.b16 %v551
        %v1924 = vunpack.c.h.b16 %v551
        %v1925 = vunpack.c.l.b16 %v552
        %v1926 = vunpack.c.h.b16 %v552
        %v1927 = vunpack.c.l.b16 %v553
        %v1928 = vunpack.c.h.b16 %v553
        %v1929 = vunpack.c.l.b16 %v554
        %v1930 = vunpack.c.h.b16 %v554
        %v1931 = vunpack.c.l.b16 %v555
        %v1932 = vunpack.c.h.b16 %v555
        %v1933 = vunpack.c.l.b16 %v556
        %v1934 = vunpack.c.h.b16 %v556
        %v1935 = vunpack.c.l.b16 %v557
        %v1936 = vunpack.c.h.b16 %v557
        %v1937 = vunpack.c.l.b16 %v558
        %v1938 = vunpack.c.h.b16 %v558
        %v1939 = vunpack.c.l.b16 %v559
        %v1940 = vunpack.c.h.b16 %v559
        %v1941 = vunpack.c.l.b16 %v560
        %v1942 = vunpack.c.h.b16 %v560
        %v1943 = vunpack.c.l.b16 %v561
        %v1944 = vunpack.c.h.b16 %v561
        %v1945 = vunpack.c.l.b16 %v562
        %v1946 = vunpack.c.h.b16 %v562
        %v1947 = vunpack.c.l.b16 %v563
        %v1948 = vunpack.c.h.b16 %v563
        %v1949 = vunpack.c.l.b16 %v564
        %v1950 = vunpack.c.h.b16 %v564
        %v1951 = vunpack.c.l.b16 %v565
        %v1952 = vunpack.c.h.b16 %v565
        %v1953 = vunpack.c.l.b16 %v566
        %v1954 = vunpack.c.h.b16 %v566
        %v1955 = vunpack.c.l.b16 %v567
        %v1956 = vunpack.c.h.b16 %v567
        %v1957 = vunpack.c.l.b16 %v568
        %v1958 = vunpack.c.h.b16 %v568
        %v1959 = vunpack.c.l.b16 %v569
        %v1960 = vunpack.c.h.b16 %v569
        %v1961 = vunpack.c.l.b16 %v570
        %v1962 = vunpack.c.h.b16 %v570
        %v1963 = vunpack.c.l.b16 %v571
        %v1964 = vunpack.c.h.b16 %v571
        %v1965 = vunpack.c.l.b16 %v572
        %v1966 = vunpack.c.h.b16 %v572
        %v1967 = vunpack.c.l.b16 %v573
        %v1968 = vunpack.c.h.b16 %v573
        %v1969 = vunpack.c.l.b16 %v574
        %v1970 = vunpack.c.h.b16 %v574
        %v1971 = vunpack.c.l.b16 %v575
        %v1972 = vunpack.c.h.b16 %v575
        %v1973 = vunpack.c.l.b16 %v576
        %v1974 = vunpack.c.h.b16 %v576
        %v1975 = vunpack.c.l.b16 %v577
        %v1976 = vunpack.c.h.b16 %v577
        %v1977 = vunpack.c.l.b16 %v578
        %v1978 = vunpack.c.h.b16 %v578
        %v1979 = vunpack.c.l.b16 %v579
        %v1980 = vunpack.c.h.b16 %v579
        %v1981 = vunpack.c.l.b16 %v580
        %v1982 = vunpack.c.h.b16 %v580
        %v1983 = vunpack.c.l.b16 %v581
        %v1984 = vunpack.c.h.b16 %v581
        %v1985 = vunpack.c.l.b16 %v582
        %v1986 = vunpack.c.h.b16 %v582
        %v1987 = vunpack.c.l.b16 %v583
        %v1988 = vunpack.c.h.b16 %v583
        %v1989 = vunpack.c.l.b16 %v584
        %v1990 = vunpack.c.h.b16 %v584
        %v1991 = vunpack.c.l.b16 %v585
        %v1992 = vunpack.c.h.b16 %v585
        %v1993 = vunpack.c.l.b16 %v586
        %v1994 = vunpack.c.h.b16 %v586
        %v1995 = vunpack.c.l.b16 %v587
        %v1996 = vunpack.c.h.b16 %v587
        %v1997 = vunpack.c.l.b16 %v588
        %v1998 = vunpack.c.h.b16 %v588
        %v1999 = vunpack.c.l.b16 %v589
        %v2000 = vunpack.c.h.b16 %v589
        %v2001 = vunpack.c.l.b16 %v590
        %v2002 = vunpack.c.h.b16 %v590
        %v2003 = vunpack.c.l.b16 %v591
        %v2004 = vunpack.c.h.b16 %v591
        %v2005 = vunpack.c.l.b16 %v592
        %v2006 = vunpack.c.h.b16 %v592
        %v2007 = vunpack.c.l.b16 %v593
        %v2008 = vunpack.c.h.b16 %v593
        %v2009 = vunpack.c.l.b16 %v594
        %v2010 = vunpack.c.h.b16 %v594
        %v2011 = vunpack.c.l.b16 %v595
        %v2012 = vunpack.c.h.b16 %v595
        %v2013 = vunpack.c.l.b16 %v596
        %v2014 = vunpack.c.h.b16 %v596
        %v2015 = vunpack.c.l.b16 %v597
        %v2016 = vunpack.c.h.b16 %v597
        %v2017 = vunpack.c.l.b16 %v598
        %v2018 = vunpack.c.h.b16 %v598
        %v2019 = vunpack.c.l.b16 %v599
        %v2020 = vunpack.c.h.b16 %v599
        %v2021 = vunpack.c.l.b16 %v600
        %v2022 = vunpack.c.h.b16 %v600
        %v2023 = vunpack.c.l.b16 %v601
        %v2024 = vunpack.c.h.b16 %v601
        %v2025 = vunpack.c.l.b16 %v602
        %v2026 = vunpack.c.h.b16 %v602
        %v2027 = vunpack.c.l.b16 %v603
        %v2028 = vunpack.c.h.b16 %v603
        %v2029 = vunpack.c.l.b16 %v604
        %v2030 = vunpack.c.h.b16 %v604
        %v2031 = vunpack.c.l.b16 %v605
        %v2032 = vunpack.c.h.b16 %v605
        %v2033 = vunpack.c.l.b16 %v606
        %v2034 = vunpack.c.h.b16 %v606
        %v2035 = vunpack.c.l.b16 %v607
        %v2036 = vunpack.c.h.b16 %v607
        %v2037 = vunpack.c.l.b16 %v608
        %v2038 = vunpack.c.h.b16 %v608
        %v2039 = vunpack.c.l.b16 %v609
        %v2040 = vunpack.c.h.b16 %v609
        %v2041 = vunpack.c.l.b16 %v610
        %v2042 = vunpack.c.h.b16 %v610
        %v2043 = vunpack.c.l.b16 %v611
        %v2044 = vunpack.c.h.b16 %v611
        %v2045 = vunpack.c.l.b16 %v612
        %v2046 = vunpack.c.h.b16 %v612
        %v2047 = vunpack.c.l.b16 %v613
        %v2048 = vunpack.c.h.b16 %v613
        %v2049 = vunpack.c.l.b16 %v614
        %v2050 = vunpack.c.h.b16 %v614
        %v2051 = vunpack.c.l.b16 %v615
        %v2052 = vunpack.c.h.b16 %v615
        %v2053 = vunpack.c.l.b16 %v616
        %v2054 = vunpack.c.h.b16 %v616
        %v2055 = vunpack.c.l.b16 %v617
        %v2056 = vunpack.c.h.b16 %v617
        %v2057 = vunpack.c.l.b16 %v618
        %v2058 = vunpack.c.h.b16 %v618
        %v2059 = vunpack.c.l.b16 %v619
        %v2060 = vunpack.c.h.b16 %v619
        %v2061 = vunpack.c.l.b16 %v620
        %v2062 = vunpack.c.h.b16 %v620
        %v2063 = vunpack.c.l.b16 %v621
        %v2064 = vunpack.c.h.b16 %v621
        %v2065 = vunpack.c.l.b16 %v622
        %v2066 = vunpack.c.h.b16 %v622
        %v2067 = vunpack.c.l.b16 %v623
        %v2068 = vunpack.c.h.b16 %v623
        %v2069 = vunpack.c.l.b16 %v624
        %v2070 = vunpack.c.h.b16 %v624
        %v2071 = vunpack.c.l.b16 %v625
        %v2072 = vunpack.c.h.b16 %v625
        %v2073 = vunpack.c.l.b16 %v626
        %v2074 = vunpack.c.h.b16 %v626
        %v2075 = vunpack.c.l.b16 %v627
        %v2076 = vunpack.c.h.b16 %v627
        %v2077 = vunpack.c.l.b16 %v628
        %v2078 = vunpack.c.h.b16 %v628
        %v2079 = vunpack.c.l.b16 %v629
        %v2080 = vunpack.c.h.b16 %v629
        %v2081 = vunpack.c.l.b16 %v630
        %v2082 = vunpack.c.h.b16 %v630
        %v2083 = vunpack.c.l.b16 %v631
        %v2084 = vunpack.c.h.b16 %v631
        %v2085 = vunpack.c.l.b16 %v632
        %v2086 = vunpack.c.h.b16 %v632
        %v2087 = vunpack.c.l.b16 %v633
        %v2088 = vunpack.c.h.b16 %v633
        %v2089 = vunpack.c.l.b16 %v634
        %v2090 = vunpack.c.h.b16 %v634
        %v2091 = vunpack.c.l.b16 %v635
        %v2092 = vunpack.c.h.b16 %v635
        %v2093 = vunpack.c.l.b16 %v636
        %v2094 = vunpack.c.h.b16 %v636
        %v2095 = vunpack.c.l.b16 %v637
        %v2096 = vunpack.c.h.b16 %v637
        %v2097 = vunpack.c.l.b16 %v638
        %v2098 = vunpack.c.h.b16 %v638
        %v2099 = vunpack.c.l.b16 %v639
        %v2100 = vunpack.c.h.b16 %v639
        %v2101 = vunpack.c.l.b16 %v640
        %v2102 = vunpack.c.h.b16 %v640
        %v2103 = vunpack.c.l.b16 %v641
        %v2104 = vunpack.c.h.b16 %v641
        %v2105 = vunpack.c.l.b16 %v642
        %v2106 = vunpack.c.h.b16 %v642
        %v2107 = vunpack.c.l.b16 %v643
        %v2108 = vunpack.c.h.b16 %v643
        %v2109 = vunpack.c.l.b16 %v644
        %v2110 = vunpack.c.h.b16 %v644
        %v2111 = vunpack.c.l.b16 %v645
        %v2112 = vunpack.c.h.b16 %v645
        %v2113 = vunpack.c.l.b16 %v646
        %v2114 = vunpack.c.h.b16 %v646
        %v2115 = vunpack.c.l.b16 %v647
        %v2116 = vunpack.c.h.b16 %v647
        %v2117 = vunpack.c.l.b16 %v648
        %v2118 = vunpack.c.h.b16 %v648
        %v2119 = vunpack.c.l.b16 %v649
        %v2120 = vunpack.c.h.b16 %v649
        %v2121 = vunpack.c.l.b16 %v650
        %v2122 = vunpack.c.h.b16 %v650
        %v2123 = vunpack.c.l.b16 %v651
        %v2124 = vunpack.c.h.b16 %v651
        %v2125 = vunpack.c.l.b16 %v652
        %v2126 = vunpack.c.h.b16 %v652
        %v2127 = vunpack.c.l.b16 %v653
        %v2128 = vunpack.c.h.b16 %v653
        %v2129 = vunpack.c.l.b16 %v654
        %v2130 = vunpack.c.h.b16 %v654
        %v2131 = vunpack.c.l.b16 %v655
        %v2132 = vunpack.c.h.b16 %v655
        %v2133 = vunpack.c.l.b16 %v656
        %v2134 = vunpack.c.h.b16 %v656
        %v2135 = vunpack.c.l.b16 %v657
        %v2136 = vunpack.c.h.b16 %v657
        %v2137 = vunpack.c.l.b16 %v658
        %v2138 = vunpack.c.h.b16 %v658
        %v2139 = vunpack.c.l.b16 %v659
        %v2140 = vunpack.c.h.b16 %v659
        %v2141 = vunpack.c.l.b16 %v660
        %v2142 = vunpack.c.h.b16 %v660
        %v2143 = vunpack.c.l.b16 %v661
        %v2144 = vunpack.c.h.b16 %v661
        %v2145 = vunpack.c.l.b16 %v662
        %v2146 = vunpack.c.h.b16 %v662
        %v2147 = vunpack.c.l.b16 %v663
        %v2148 = vunpack.c.h.b16 %v663
        %v2149 = vunpack.c.l.b16 %v664
        %v2150 = vunpack.c.h.b16 %v664
        %v2151 = vunpack.c.l.b16 %v665
        %v2152 = vunpack.c.h.b16 %v665
        %v2153 = vunpack.c.l.b16 %v666
        %v2154 = vunpack.c.h.b16 %v666
        %v2155 = vunpack.c.l.b16 %v667
        %v2156 = vunpack.c.h.b16 %v667
        %v2157 = vunpack.c.l.b16 %v668
        %v2158 = vunpack.c.h.b16 %v668
        %v2159 = vunpack.c.l.b16 %v669
        %v2160 = vunpack.c.h.b16 %v669
        %v2161 = vunpack.c.l.b16 %v670
        %v2162 = vunpack.c.h.b16 %v670
        %v2163 = vunpack.c.l.b16 %v671
        %v2164 = vunpack.c.h.b16 %v671
        %v2165 = vunpack.c.l.b16 %v672
        %v2166 = vunpack.c.h.b16 %v672
        %v2167 = vunpack.c.l.b16 %v673
        %v2168 = vunpack.c.h.b16 %v673
        %v2169 = vunpack.c.l.b16 %v674
        %v2170 = vunpack.c.h.b16 %v674
        %v2171 = vunpack.c.l.b16 %v675
        %v2172 = vunpack.c.h.b16 %v675
        %v2173 = vunpack.c.l.b16 %v676
        %v2174 = vunpack.c.h.b16 %v676
        %v2175 = vunpack.c.l.b16 %v677
        %v2176 = vunpack.c.h.b16 %v677
        %v2177 = vunpack.c.l.b16 %v678
        %v2178 = vunpack.c.h.b16 %v678
        %v2179 = vunpack.c.l.b16 %v679
        %v2180 = vunpack.c.h.b16 %v679
        %v2181 = vunpack.c.l.b16 %v680
        %v2182 = vunpack.c.h.b16 %v680
        %v2183 = vunpack.c.l.b16 %v681
        %v2184 = vunpack.c.h.b16 %v681
        %v2185 = vunpack.c.l.b16 %v682
        %v2186 = vunpack.c.h.b16 %v682
        %v2187 = vunpack.c.l.b16 %v683
        %v2188 = vunpack.c.h.b16 %v683
        %v2189 = vunpack.c.l.b16 %v684
        %v2190 = vunpack.c.h.b16 %v684
        %v2191 = vunpack.c.l.b16 %v685
        %v2192 = vunpack.c.h.b16 %v685
        %v2193 = vunpack.c.l.b16 %v686
        %v2194 = vunpack.c.h.b16 %v686
        %v2195 = vunpack.c.l.b16 %v687
        %v2196 = vunpack.c.h.b16 %v687
        %v2197 = vunpack.c.l.b16 %v688
        %v2198 = vunpack.c.h.b16 %v688
        %v2199 = vunpack.c.l.b16 %v689
        %v2200 = vunpack.c.h.b16 %v689
        %v2201 = vunpack.c.l.b16 %v690
        %v2202 = vunpack.c.h.b16 %v690
        %v2203 = vunpack.c.l.b16 %v691
        %v2204 = vunpack.c.h.b16 %v691
        %v2205 = vunpack.c.l.b16 %v692
        %v2206 = vunpack.c.h.b16 %v692
        %v2207 = vunpack.c.l.b16 %v693
        %v2208 = vunpack.c.h.b16 %v693
        %v2209 = vunpack.c.l.b16 %v694
        %v2210 = vunpack.c.h.b16 %v694
        %v2211 = vunpack.c.l.b16 %v695
        %v2212 = vunpack.c.h.b16 %v695
        %v2213 = vunpack.c.l.b16 %v696
        %v2214 = vunpack.c.h.b16 %v696
        %v2215 = vunpack.c.l.b16 %v697
        %v2216 = vunpack.c.h.b16 %v697
        %v2217 = vunpack.c.l.b16 %v698
        %v2218 = vunpack.c.h.b16 %v698
        %v2219 = vunpack.c.l.b16 %v699
        %v2220 = vunpack.c.h.b16 %v699
        %v2221 = vunpack.c.l.b16 %v700
        %v2222 = vunpack.c.h.b16 %v700
        %v2223 = vunpack.c.l.b16 %v701
        %v2224 = vunpack.c.h.b16 %v701
        %v2225 = vunpack.c.l.b16 %v702
        %v2226 = vunpack.c.h.b16 %v702
        %v2227 = vunpack.c.l.b16 %v703
        %v2228 = vunpack.c.h.b16 %v703
        %v2229 = vunpack.c.l.b16 %v704
        %v2230 = vunpack.c.h.b16 %v704
        %v2231 = vunpack.c.l.b16 %v705
        %v2232 = vunpack.c.h.b16 %v705
        %v2233 = vunpack.c.l.b16 %v706
        %v2234 = vunpack.c.h.b16 %v706
        %v2235 = vunpack.c.l.b16 %v707
        %v2236 = vunpack.c.h.b16 %v707
        %v2237 = vunpack.c.l.b16 %v708
        %v2238 = vunpack.c.h.b16 %v708
        %v2239 = vunpack.c.l.b16 %v709
        %v2240 = vunpack.c.h.b16 %v709
        %v2241 = vunpack.c.l.b16 %v710
        %v2242 = vunpack.c.h.b16 %v710
        %v2243 = vunpack.c.l.b16 %v711
        %v2244 = vunpack.c.h.b16 %v711
        %v2245 = vunpack.c.l.b16 %v712
        %v2246 = vunpack.c.h.b16 %v712
        %v2247 = vunpack.c.l.b16 %v713
        %v2248 = vunpack.c.h.b16 %v713
        %v2249 = vunpack.c.l.b16 %v714
        %v2250 = vunpack.c.h.b16 %v714
        %v2251 = vunpack.c.l.b16 %v715
        %v2252 = vunpack.c.h.b16 %v715
        %v2253 = vunpack.c.l.b16 %v716
        %v2254 = vunpack.c.h.b16 %v716
        %v2255 = vunpack.c.l.b16 %v717
        %v2256 = vunpack.c.h.b16 %v717
        %v2257 = vunpack.c.l.b16 %v718
        %v2258 = vunpack.c.h.b16 %v718
        %v2259 = vunpack.c.l.b16 %v719
        %v2260 = vunpack.c.h.b16 %v719
        %v2261 = vunpack.c.l.b16 %v720
        %v2262 = vunpack.c.h.b16 %v720
        %v2263 = vunpack.c.l.b16 %v721
        %v2264 = vunpack.c.h.b16 %v721
        %v2265 = vunpack.c.l.b16 %v722
        %v2266 = vunpack.c.h.b16 %v722
        %v2267 = vunpack.c.l.b16 %v723
        %v2268 = vunpack.c.h.b16 %v723
        %v2269 = vunpack.c.l.b16 %v724
        %v2270 = vunpack.c.h.b16 %v724
        %v2271 = vunpack.c.l.b16 %v725
        %v2272 = vunpack.c.h.b16 %v725
        %v2273 = vunpack.c.l.b16 %v726
        %v2274 = vunpack.c.h.b16 %v726
        %v2275 = vunpack.c.l.b16 %v727
        %v2276 = vunpack.c.h.b16 %v727
        %v2277 = vunpack.c.l.b16 %v728
        %v2278 = vunpack.c.h.b16 %v728
        %v2279 = vunpack.c.l.b16 %v729
        %v2280 = vunpack.c.h.b16 %v729
        %v2281 = vunpack.c.l.b16 %v730
        %v2282 = vunpack.c.h.b16 %v730
        %v2283 = vunpack.c.l.b16 %v731
        %v2284 = vunpack.c.h.b16 %v731
        %v2285 = vunpack.c.l.b16 %v732
        %v2286 = vunpack.c.h.b16 %v732
        %v2287 = vunpack.c.l.b16 %v733
        %v2288 = vunpack.c.h.b16 %v733
        %v2289 = vunpack.c.l.b16 %v734
        %v2290 = vunpack.c.h.b16 %v734
        %v2291 = vunpack.c.l.b16 %v735
        %v2292 = vunpack.c.h.b16 %v735
        %v2293 = vunpack.c.l.b16 %v736
        %v2294 = vunpack.c.h.b16 %v736
        %v2295 = vunpack.c.l.b16 %v737
        %v2296 = vunpack.c.h.b16 %v737
        %v2297 = vunpack.c.l.b16 %v738
        %v2298 = vunpack.c.h.b16 %v738
        %v2299 = vunpack.c.l.b16 %v739
        %v2300 = vunpack.c.h.b16 %v739
        %v2301 = vunpack.c.l.b16 %v740
        %v2302 = vunpack.c.h.b16 %v740
        %v2303 = vunpack.c.l.b16 %v741
        %v2304 = vunpack.c.h.b16 %v741
        %v2305 = vunpack.c.l.b16 %v742
        %v2306 = vunpack.c.h.b16 %v742
        %v2307 = vunpack.c.l.b16 %v743
        %v2308 = vunpack.c.h.b16 %v743
        %v2309 = vpack.c.b16 %v1313, %v1309
        %v2310 = vpack.c.b16 %v1314, %v1310
        %v2311 = vpack.c.b16 %v1315, %v1311
        %v2312 = vpack.c.b16 %v1316, %v1312
        %v2313 = vpack.c.b16 %v1321, %v1317
        %v2314 = vpack.c.b16 %v1322, %v1318
        %v2315 = vpack.c.b16 %v1323, %v1319
        %v2316 = vpack.c.b16 %v1324, %v1320
        %v2317 = vpack.c.b16 %v1329, %v1325
        %v2318 = vpack.c.b16 %v1330, %v1326
        %v2319 = vpack.c.b16 %v1331, %v1327
        %v2320 = vpack.c.b16 %v1332, %v1328
        %v2321 = vpack.c.b16 %v1337, %v1333
        %v2322 = vpack.c.b16 %v1338, %v1334
        %v2323 = vpack.c.b16 %v1339, %v1335
        %v2324 = vpack.c.b16 %v1340, %v1336
        %v2325 = vpack.c.b16 %v1345, %v1341
        %v2326 = vpack.c.b16 %v1346, %v1342
        %v2327 = vpack.c.b16 %v1347, %v1343
        %v2328 = vpack.c.b16 %v1348, %v1344
        %v2329 = vpack.c.b16 %v1353, %v1349
        %v2330 = vpack.c.b16 %v1354, %v1350
        %v2331 = vpack.c.b16 %v1355, %v1351
        %v2332 = vpack.c.b16 %v1356, %v1352
        %v2333 = vpack.c.b16 %v1361, %v1357
        %v2334 = vpack.c.b16 %v1362, %v1358
        %v2335 = vpack.c.b16 %v1363, %v1359
        %v2336 = vpack.c.b16 %v1364, %v1360
        %v2337 = vpack.c.b16 %v1369, %v1365
        %v2338 = vpack.c.b16 %v1370, %v1366
        %v2339 = vpack.c.b16 %v1371, %v1367
        %v2340 = vpack.c.b16 %v1372, %v1368
        %v2341 = vpack.c.b16 %v1377, %v1373
        %v2342 = vpack.c.b16 %v1378, %v1374
        %v2343 = vpack.c.b16 %v1379, %v1375
        %v2344 = vpack.c.b16 %v1380, %v1376
        %v2345 = vpack.c.b16 %v1385, %v1381
        %v2346 = vpack.c.b16 %v1386, %v1382
        %v2347 = vpack.c.b16 %v1387, %v1383
        %v2348 = vpack.c.b16 %v1388, %v1384
        %v2349 = vpack.c.b16 %v1393, %v1389
        %v2350 = vpack.c.b16 %v1394, %v1390
        %v2351 = vpack.c.b16 %v1395, %v1391
        %v2352 = vpack.c.b16 %v1396, %v1392
        %v2353 = vpack.c.b16 %v1401, %v1397
        %v2354 = vpack.c.b16 %v1402, %v1398
        %v2355 = vpack.c.b16 %v1403, %v1399
        %v2356 = vpack.c.b16 %v1404, %v1400
        %v2357 = vpack.c.b16 %v1409, %v1405
        %v2358 = vpack.c.b16 %v1410, %v1406
        %v2359 = vpack.c.b16 %v1411, %v1407
        %v2360 = vpack.c.b16 %v1412, %v1408
        %v2361 = vpack.c.b16 %v1417, %v1413
        %v2362 = vpack.c.b16 %v1418, %v1414
        %v2363 = vpack.c.b16 %v1419, %v1415
        %v2364 = vpack.c.b16 %v1420, %v1416
        %v2365 = vpack.c.b16 %v1425, %v1421
        %v2366 = vpack.c.b16 %v1426, %v1422
        %v2367 = vpack.c.b16 %v1427, %v1423
        %v2368 = vpack.c.b16 %v1428, %v1424
        %v2369 = vpack.c.b16 %v1433, %v1429
        %v2370 = vpack.c.b16 %v1434, %v1430
        %v2371 = vpack.c.b16 %v1435, %v1431
        %v2372 = vpack.c.b16 %v1436, %v1432
        %v2373 = vpack.c.b16 %v1441, %v1437
        %v2374 = vpack.c.b16 %v1442, %v1438
        %v2375 = vpack.c.b16 %v1443, %v1439
        %v2376 = vpack.c.b16 %v1444, %v1440
        %v2377 = vpack.c.b16 %v1449, %v1445
        %v2378 = vpack.c.b16 %v1450, %v1446
        %v2379 = vpack.c.b16 %v1451, %v1447
        %v2380 = vpack.c.b16 %v1452, %v1448
        %v2381 = vpack.c.b16 %v1457, %v1453
        %v2382 = vpack.c.b16 %v1458, %v1454
        %v2383 = vpack.c.b16 %v1459, %v1455
        %v2384 = vpack.c.b16 %v1460, %v1456
        %v2385 = vpack.c.b16 %v1465, %v1461
        %v2386 = vpack.c.b16 %v1466, %v1462
        %v2387 = vpack.c.b16 %v1467, %v1463
        %v2388 = vpack.c.b16 %v1468, %v1464
        %v2389 = vpack.c.b16 %v1473, %v1469
        %v2390 = vpack.c.b16 %v1474, %v1470
        %v2391 = vpack.c.b16 %v1475, %v1471
        %v2392 = vpack.c.b16 %v1476, %v1472
        %v2393 = vpack.c.b16 %v1481, %v1477
        %v2394 = vpack.c.b16 %v1482, %v1478
        %v2395 = vpack.c.b16 %v1483, %v1479
        %v2396 = vpack.c.b16 %v1484, %v1480
        %v2397 = vpack.c.b16 %v1489, %v1485
        %v2398 = vpack.c.b16 %v1490, %v1486
        %v2399 = vpack.c.b16 %v1491, %v1487
        %v2400 = vpack.c.b16 %v1492, %v1488
        %v2401 = vpack.c.b16 %v1497, %v1493
        %v2402 = vpack.c.b16 %v1498, %v1494
        %v2403 = vpack.c.b16 %v1499, %v1495
        %v2404 = vpack.c.b16 %v1500, %v1496
        %v2405 = vpack.c.b16 %v1505, %v1501
        %v2406 = vpack.c.b16 %v1506, %v1502
        %v2407 = vpack.c.b16 %v1507, %v1503
        %v2408 = vpack.c.b16 %v1508, %v1504
        %v2409 = vpack.c.b16 %v1513, %v1509
        %v2410 = vpack.c.b16 %v1514, %v1510
        %v2411 = vpack.c.b16 %v1515, %v1511
        %v2412 = vpack.c.b16 %v1516, %v1512
        %v2413 = vpack.c.b16 %v1521, %v1517
        %v2414 = vpack.c.b16 %v1522, %v1518
        %v2415 = vpack.c.b16 %v1523, %v1519
        %v2416 = vpack.c.b16 %v1524, %v1520
        %v2417 = vpack.c.b16 %v1529, %v1525
        %v2418 = vpack.c.b16 %v1530, %v1526
        %v2419 = vpack.c.b16 %v1531, %v1527
        %v2420 = vpack.c.b16 %v1532, %v1528
        %v2421 = vpack.c.b16 %v1537, %v1533
        %v2422 = vpack.c.b16 %v1538, %v1534
        %v2423 = vpack.c.b16 %v1539, %v1535
        %v2424 = vpack.c.b16 %v1540, %v1536
        %v2425 = vpack.c.b16 %v1545, %v1541
        %v2426 = vpack.c.b16 %v1546, %v1542
        %v2427 = vpack.c.b16 %v1547, %v1543
        %v2428 = vpack.c.b16 %v1548, %v1544
        %v2429 = vpack.c.b16 %v1553, %v1549
        %v2430 = vpack.c.b16 %v1554, %v1550
        %v2431 = vpack.c.b16 %v1555, %v1551
        %v2432 = vpack.c.b16 %v1556, %v1552
        %v2433 = vpack.c.b16 %v1561, %v1557
        %v2434 = vpack.c.b16 %v1562, %v1558
        %v2435 = vpack.c.b16 %v1563, %v1559
        %v2436 = vpack.c.b16 %v1564, %v1560
        %v2437 = vpack.c.b16 %v1569, %v1565
        %v2438 = vpack.c.b16 %v1570, %v1566
        %v2439 = vpack.c.b16 %v1571, %v1567
        %v2440 = vpack.c.b16 %v1572, %v1568
        %v2441 = vpack.c.b16 %v1577, %v1573
        %v2442 = vpack.c.b16 %v1578, %v1574
        %v2443 = vpack.c.b16 %v1579, %v1575
        %v2444 = vpack.c.b16 %v1580, %v1576
        %v2445 = vpack.c.b16 %v1585, %v1581
        %v2446 = vpack.c.b16 %v1586, %v1582
        %v2447 = vpack.c.b16 %v1587, %v1583
        %v2448 = vpack.c.b16 %v1588, %v1584
        %v2449 = vpack.c.b16 %v1593, %v1589
        %v2450 = vpack.c.b16 %v1594, %v1590
        %v2451 = vpack.c.b16 %v1595, %v1591
        %v2452 = vpack.c.b16 %v1596, %v1592
        %v2453 = vpack.c.b16 %v1601, %v1597
        %v2454 = vpack.c.b16 %v1602, %v1598
        %v2455 = vpack.c.b16 %v1603, %v1599
        %v2456 = vpack.c.b16 %v1604, %v1600
        %v2457 = vpack.c.b16 %v1609, %v1605
        %v2458 = vpack.c.b16 %v1610, %v1606
        %v2459 = vpack.c.b16 %v1611, %v1607
        %v2460 = vpack.c.b16 %v1612, %v1608
        %v2461 = vpack.c.b16 %v1617, %v1613
        %v2462 = vpack.c.b16 %v1618, %v1614
        %v2463 = vpack.c.b16 %v1619, %v1615
        %v2464 = vpack.c.b16 %v1620, %v1616
        %v2465 = vpack.c.b16 %v1625, %v1621
        %v2466 = vpack.c.b16 %v1626, %v1622
        %v2467 = vpack.c.b16 %v1627, %v1623
        %v2468 = vpack.c.b16 %v1628, %v1624
        %v2469 = vpack.c.b16 %v1633, %v1629
        %v2470 = vpack.c.b16 %v1634, %v1630
        %v2471 = vpack.c.b16 %v1635, %v1631
        %v2472 = vpack.c.b16 %v1636, %v1632
        %v2473 = vpack.c.b16 %v1641, %v1637
        %v2474 = vpack.c.b16 %v1642, %v1638
        %v2475 = vpack.c.b16 %v1643, %v1639
        %v2476 = vpack.c.b16 %v1644, %v1640
        %v2477 = vpack.c.b16 %v1649, %v1645
        %v2478 = vpack.c.b16 %v1650, %v1646
        %v2479 = vpack.c.b16 %v1651, %v1647
        %v2480 = vpack.c.b16 %v1652, %v1648
        %v2481 = vpack.c.b16 %v1657, %v1653
        %v2482 = vpack.c.b16 %v1658, %v1654
        %v2483 = vpack.c.b16 %v1659, %v1655
        %v2484 = vpack.c.b16 %v1660, %v1656
        %v2485 = vpack.c.b16 %v1665, %v1661
        %v2486 = vpack.c.b16 %v1666, %v1662
        %v2487 = vpack.c.b16 %v1667, %v1663
        %v2488 = vpack.c.b16 %v1668, %v1664
        %v2489 = vpack.c.b16 %v1673, %v1669
        %v2490 = vpack.c.b16 %v1674, %v1670
        %v2491 = vpack.c.b16 %v1675, %v1671
        %v2492 = vpack.c.b16 %v1676, %v1672
        %v2493 = vpack.c.b16 %v1681, %v1677
        %v2494 = vpack.c.b16 %v1682, %v1678
        %v2495 = vpack.c.b16 %v1683, %v1679
        %v2496 = vpack.c.b16 %v1684, %v1680
        %v2497 = vpack.c.b16 %v1689, %v1685
        %v2498 = vpack.c.b16 %v1690, %v1686
        %v2499 = vpack.c.b16 %v1691, %v1687
        %v2500 = vpack.c.b16 %v1692, %v1688
        %v2501 = vpack.c.b16 %v1697, %v1693
        %v2502 = vpack.c.b16 %v1698, %v1694
        %v2503 = vpack.c.b16 %v1699, %v1695
        %v2504 = vpack.c.b16 %v1700, %v1696
        %v2505 = vpack.c.b16 %v1705, %v1701
        %v2506 = vpack.c.b16 %v1706, %v1702
        %v2507 = vpack.c.b16 %v1707, %v1703
        %v2508 = vpack.c.b16 %v1708, %v1704
        %v2509 = vpack.c.b16 %v1713, %v1709
        %v2510 = vpack.c.b16 %v1714, %v1710
        %v2511 = vpack.c.b16 %v1715, %v1711
        %v2512 = vpack.c.b16 %v1716, %v1712
        %v2513 = vpack.c.b16 %v1721, %v1717
        %v2514 = vpack.c.b16 %v1722, %v1718
        %v2515 = vpack.c.b16 %v1723, %v1719
        %v2516 = vpack.c.b16 %v1724, %v1720
        %v2517 = vpack.c.b16 %v1729, %v1725
        %v2518 = vpack.c.b16 %v1730, %v1726
        %v2519 = vpack.c.b16 %v1731, %v1727
        %v2520 = vpack.c.b16 %v1732, %v1728
        %v2521 = vpack.c.b16 %v1737, %v1733
        %v2522 = vpack.c.b16 %v1738, %v1734
        %v2523 = vpack.c.b16 %v1739, %v1735
        %v2524 = vpack.c.b16 %v1740, %v1736
        %v2525 = vpack.c.b16 %v1745, %v1741
        %v2526 = vpack.c.b16 %v1746, %v1742
        %v2527 = vpack.c.b16 %v1747, %v1743
        %v2528 = vpack.c.b16 %v1748, %v1744
        %v2529 = vpack.c.b16 %v1753, %v1749
        %v2530 = vpack.c.b16 %v1754, %v1750
        %v2531 = vpack.c.b16 %v1755, %v1751
        %v2532 = vpack.c.b16 %v1756, %v1752
        %v2533 = vpack.c.b16 %v1761, %v1757
        %v2534 = vpack.c.b16 %v1762, %v1758
        %v2535 = vpack.c.b16 %v1763, %v1759
        %v2536 = vpack.c.b16 %v1764, %v1760
        %v2537 = vpack.c.b16 %v1769, %v1765
        %v2538 = vpack.c.b16 %v1770, %v1766
        %v2539 = vpack.c.b16 %v1771, %v1767
        %v2540 = vpack.c.b16 %v1772, %v1768
        %v2541 = vpack.c.b16 %v1777, %v1773
        %v2542 = vpack.c.b16 %v1778, %v1774
        %v2543 = vpack.c.b16 %v1779, %v1775
        %v2544 = vpack.c.b16 %v1780, %v1776
        %v2545 = vpack.c.b16 %v1785, %v1781
        %v2546 = vpack.c.b16 %v1786, %v1782
        %v2547 = vpack.c.b16 %v1787, %v1783
        %v2548 = vpack.c.b16 %v1788, %v1784
        %v2549 = vpack.c.b16 %v1793, %v1789
        %v2550 = vpack.c.b16 %v1794, %v1790
        %v2551 = vpack.c.b16 %v1795, %v1791
        %v2552 = vpack.c.b16 %v1796, %v1792
        %v2553 = vpack.c.b16 %v1801, %v1797
        %v2554 = vpack.c.b16 %v1802, %v1798
        %v2555 = vpack.c.b16 %v1803, %v1799
        %v2556 = vpack.c.b16 %v1804, %v1800
        %v2557 = vpack.c.b16 %v1809, %v1805
        %v2558 = vpack.c.b16 %v1810, %v1806
        %v2559 = vpack.c.b16 %v1811, %v1807
        %v2560 = vpack.c.b16 %v1812, %v1808
        %v2561 = vpack.c.b16 %v1817, %v1813
        %v2562 = vpack.c.b16 %v1818, %v1814
        %v2563 = vpack.c.b16 %v1819, %v1815
        %v2564 = vpack.c.b16 %v1820, %v1816
        %v2565 = vpack.c.b16 %v1825, %v1821
        %v2566 = vpack.c.b16 %v1826, %v1822
        %v2567 = vpack.c.b16 %v1827, %v1823
        %v2568 = vpack.c.b16 %v1828, %v1824
        %v2569 = vpack.c.b16 %v1833, %v1829
        %v2570 = vpack.c.b16 %v1834, %v1830
        %v2571 = vpack.c.b16 %v1835, %v1831
        %v2572 = vpack.c.b16 %v1836, %v1832
        %v2573 = vpack.c.b16 %v1841, %v1837
        %v2574 = vpack.c.b16 %v1842, %v1838
        %v2575 = vpack.c.b16 %v1843, %v1839
        %v2576 = vpack.c.b16 %v1844, %v1840
        %v2577 = vpack.c.b16 %v1849, %v1845
        %v2578 = vpack.c.b16 %v1850, %v1846
        %v2579 = vpack.c.b16 %v1851, %v1847
        %v2580 = vpack.c.b16 %v1852, %v1848
        %v2581 = vpack.c.b16 %v1857, %v1853
        %v2582 = vpack.c.b16 %v1858, %v1854
        %v2583 = vpack.c.b16 %v1859, %v1855
        %v2584 = vpack.c.b16 %v1860, %v1856
        %v2585 = vpack.c.b16 %v1865, %v1861
        %v2586 = vpack.c.b16 %v1866, %v1862
        %v2587 = vpack.c.b16 %v1867, %v1863
        %v2588 = vpack.c.b16 %v1868, %v1864
        %v2589 = vpack.c.b16 %v1873, %v1869
        %v2590 = vpack.c.b16 %v1874, %v1870
        %v2591 = vpack.c.b16 %v1875, %v1871
        %v2592 = vpack.c.b16 %v1876, %v1872
        %v2593 = vpack.c.b16 %v1881, %v1877
        %v2594 = vpack.c.b16 %v1882, %v1878
        %v2595 = vpack.c.b16 %v1883, %v1879
        %v2596 = vpack.c.b16 %v1884, %v1880
        %v2597 = vpack.c.b16 %v1889, %v1885
        %v2598 = vpack.c.b16 %v1890, %v1886
        %v2599 = vpack.c.b16 %v1891, %v1887
        %v2600 = vpack.c.b16 %v1892, %v1888
        %v2601 = vpack.c.b16 %v1897, %v1893
        %v2602 = vpack.c.b16 %v1898, %v1894
        %v2603 = vpack.c.b16 %v1899, %v1895
        %v2604 = vpack.c.b16 %v1900, %v1896
        %v2605 = vpack.c.b16 %v1905, %v1901
        %v2606 = vpack.c.b16 %v1906, %v1902
        %v2607 = vpack.c.b16 %v1907, %v1903
        %v2608 = vpack.c.b16 %v1908, %v1904
        %v2609 = vpack.c.b16 %v1913, %v1909
        %v2610 = vpack.c.b16 %v1914, %v1910
        %v2611 = vpack.c.b16 %v1915, %v1911
        %v2612 = vpack.c.b16 %v1916, %v1912
        %v2613 = vpack.c.b16 %v1921, %v1917
        %v2614 = vpack.c.b16 %v1922, %v1918
        %v2615 = vpack.c.b16 %v1923, %v1919
        %v2616 = vpack.c.b16 %v1924, %v1920
        %v2617 = vpack.c.b16 %v1929, %v1925
        %v2618 = vpack.c.b16 %v1930, %v1926
        %v2619 = vpack.c.b16 %v1931, %v1927
        %v2620 = vpack.c.b16 %v1932, %v1928
        %v2621 = vpack.c.b16 %v1937, %v1933
        %v2622 = vpack.c.b16 %v1938, %v1934
        %v2623 = vpack.c.b16 %v1939, %v1935
        %v2624 = vpack.c.b16 %v1940, %v1936
        %v2625 = vpack.c.b16 %v1945, %v1941
        %v2626 = vpack.c.b16 %v1946, %v1942
        %v2627 = vpack.c.b16 %v1947, %v1943
        %v2628 = vpack.c.b16 %v1948, %v1944
        %v2629 = vpack.c.b16 %v1953, %v1949
        %v2630 = vpack.c.b16 %v1954, %v1950
        %v2631 = vpack.c.b16 %v1955, %v1951
        %v2632 = vpack.c.b16 %v1956, %v1952
        %v2633 = vpack.c.b16 %v1961, %v1957
        %v2634 = vpack.c.b16 %v1962, %v1958
        %v2635 = vpack.c.b16 %v1963, %v1959
        %v2636 = vpack.c.b16 %v1964, %v1960
        %v2637 = vpack.c.b16 %v1969, %v1965
        %v2638 = vpack.c.b16 %v1970, %v1966
        %v2639 = vpack.c.b16 %v1971, %v1967
        %v2640 = vpack.c.b16 %v1972, %v1968
        %v2641 = vpack.c.b16 %v1977, %v1973
        %v2642 = vpack.c.b16 %v1978, %v1974
        %v2643 = vpack.c.b16 %v1979, %v1975
        %v2644 = vpack.c.b16 %v1980, %v1976
        %v2645 = vpack.c.b16 %v1985, %v1981
        %v2646 = vpack.c.b16 %v1986, %v1982
        %v2647 = vpack.c.b16 %v1987, %v1983
        %v2648 = vpack.c.b16 %v1988, %v1984
        %v2649 = vpack.c.b16 %v1993, %v1989
        %v2650 = vpack.c.b16 %v1994, %v1990
        %v2651 = vpack.c.b16 %v1995, %v1991
        %v2652 = vpack.c.b16 %v1996, %v1992
        %v2653 = vpack.c.b16 %v2001, %v1997
        %v2654 = vpack.c.b16 %v2002, %v1998
        %v2655 = vpack.c.b16 %v2003, %v1999
        %v2656 = vpack.c.b16 %v2004, %v2000
        %v2657 = vpack.c.b16 %v2009, %v2005
        %v2658 = vpack.c.b16 %v2010, %v2006
        %v2659 = vpack.c.b16 %v2011, %v2007
        %v2660 = vpack.c.b16 %v2012, %v2008
        %v2661 = vpack.c.b16 %v2017, %v2013
        %v2662 = vpack.c.b16 %v2018, %v2014
        %v2663 = vpack.c.b16 %v2019, %v2015
        %v2664 = vpack.c.b16 %v2020, %v2016
        %v2665 = vpack.c.b16 %v2025, %v2021
        %v2666 = vpack.c.b16 %v2026, %v2022
        %v2667 = vpack.c.b16 %v2027, %v2023
        %v2668 = vpack.c.b16 %v2028, %v2024
        %v2669 = vpack.c.b16 %v2033, %v2029
        %v2670 = vpack.c.b16 %v2034, %v2030
        %v2671 = vpack.c.b16 %v2035, %v2031
        %v2672 = vpack.c.b16 %v2036, %v2032
        %v2673 = vpack.c.b16 %v2041, %v2037
        %v2674 = vpack.c.b16 %v2042, %v2038
        %v2675 = vpack.c.b16 %v2043, %v2039
        %v2676 = vpack.c.b16 %v2044, %v2040
        %v2677 = vpack.c.b16 %v2049, %v2045
        %v2678 = vpack.c.b16 %v2050, %v2046
        %v2679 = vpack.c.b16 %v2051, %v2047
        %v2680 = vpack.c.b16 %v2052, %v2048
        %v2681 = vpack.c.b16 %v2057, %v2053
        %v2682 = vpack.c.b16 %v2058, %v2054
        %v2683 = vpack.c.b16 %v2059, %v2055
        %v2684 = vpack.c.b16 %v2060, %v2056
        %v2685 = vpack.c.b16 %v2065, %v2061
        %v2686 = vpack.c.b16 %v2066, %v2062
        %v2687 = vpack.c.b16 %v2067, %v2063
        %v2688 = vpack.c.b16 %v2068, %v2064
        %v2689 = vpack.c.b16 %v2073, %v2069
        %v2690 = vpack.c.b16 %v2074, %v2070
        %v2691 = vpack.c.b16 %v2075, %v2071
        %v2692 = vpack.c.b16 %v2076, %v2072
        %v2693 = vpack.c.b16 %v2081, %v2077
        %v2694 = vpack.c.b16 %v2082, %v2078
        %v2695 = vpack.c.b16 %v2083, %v2079
        %v2696 = vpack.c.b16 %v2084, %v2080
        %v2697 = vpack.c.b16 %v2089, %v2085
        %v2698 = vpack.c.b16 %v2090, %v2086
        %v2699 = vpack.c.b16 %v2091, %v2087
        %v2700 = vpack.c.b16 %v2092, %v2088
        %v2701 = vpack.c.b16 %v2097, %v2093
        %v2702 = vpack.c.b16 %v2098, %v2094
        %v2703 = vpack.c.b16 %v2099, %v2095
        %v2704 = vpack.c.b16 %v2100, %v2096
        %v2705 = vpack.c.b16 %v2105, %v2101
        %v2706 = vpack.c.b16 %v2106, %v2102
        %v2707 = vpack.c.b16 %v2107, %v2103
        %v2708 = vpack.c.b16 %v2108, %v2104
        %v2709 = vpack.c.b16 %v2113, %v2109
        %v2710 = vpack.c.b16 %v2114, %v2110
        %v2711 = vpack.c.b16 %v2115, %v2111
        %v2712 = vpack.c.b16 %v2116, %v2112
        %v2713 = vpack.c.b16 %v2121, %v2117
        %v2714 = vpack.c.b16 %v2122, %v2118
        %v2715 = vpack.c.b16 %v2123, %v2119
        %v2716 = vpack.c.b16 %v2124, %v2120
        %v2717 = vpack.c.b16 %v2129, %v2125
        %v2718 = vpack.c.b16 %v2130, %v2126
        %v2719 = vpack.c.b16 %v2131, %v2127
        %v2720 = vpack.c.b16 %v2132, %v2128
        %v2721 = vpack.c.b16 %v2137, %v2133
        %v2722 = vpack.c.b16 %v2138, %v2134
        %v2723 = vpack.c.b16 %v2139, %v2135
        %v2724 = vpack.c.b16 %v2140, %v2136
        %v2725 = vpack.c.b16 %v2145, %v2141
        %v2726 = vpack.c.b16 %v2146, %v2142
        %v2727 = vpack.c.b16 %v2147, %v2143
        %v2728 = vpack.c.b16 %v2148, %v2144
        %v2729 = vpack.c.b16 %v2153, %v2149
        %v2730 = vpack.c.b16 %v2154, %v2150
        %v2731 = vpack.c.b16 %v2155, %v2151
        %v2732 = vpack.c.b16 %v2156, %v2152
        %v2733 = vpack.c.b16 %v2161, %v2157
        %v2734 = vpack.c.b16 %v2162, %v2158
        %v2735 = vpack.c.b16 %v2163, %v2159
        %v2736 = vpack.c.b16 %v2164, %v2160
        %v2737 = vpack.c.b16 %v2169, %v2165
        %v2738 = vpack.c.b16 %v2170, %v2166
        %v2739 = vpack.c.b16 %v2171, %v2167
        %v2740 = vpack.c.b16 %v2172, %v2168
        %v2741 = vpack.c.b16 %v2177, %v2173
        %v2742 = vpack.c.b16 %v2178, %v2174
        %v2743 = vpack.c.b16 %v2179, %v2175
        %v2744 = vpack.c.b16 %v2180, %v2176
        %v2745 = vpack.c.b16 %v2185, %v2181
        %v2746 = vpack.c.b16 %v2186, %v2182
        %v2747 = vpack.c.b16 %v2187, %v2183
        %v2748 = vpack.c.b16 %v2188, %v2184
        %v2749 = vpack.c.b16 %v2193, %v2189
        %v2750 = vpack.c.b16 %v2194, %v2190
        %v2751 = vpack.c.b16 %v2195, %v2191
        %v2752 = vpack.c.b16 %v2196, %v2192
        %v2753 = vpack.c.b16 %v2201, %v2197
        %v2754 = vpack.c.b16 %v2202, %v2198
        %v2755 = vpack.c.b16 %v2203, %v2199
        %v2756 = vpack.c.b16 %v2204, %v2200
        %v2757 = vpack.c.b16 %v2209, %v2205
        %v2758 = vpack.c.b16 %v2210, %v2206
        %v2759 = vpack.c.b16 %v2211, %v2207
        %v2760 = vpack.c.b16 %v2212, %v2208
        %v2761 = vpack.c.b16 %v2217, %v2213
        %v2762 = vpack.c.b16 %v2218, %v2214
        %v2763 = vpack.c.b16 %v2219, %v2215
        %v2764 = vpack.c.b16 %v2220, %v2216
        %v2765 = vpack.c.b16 %v2225, %v2221
        %v2766 = vpack.c.b16 %v2226, %v2222
        %v2767 = vpack.c.b16 %v2227, %v2223
        %v2768 = vpack.c.b16 %v2228, %v2224
        %v2769 = vpack.c.b16 %v2233, %v2229
        %v2770 = vpack.c.b16 %v2234, %v2230
        %v2771 = vpack.c.b16 %v2235, %v2231
        %v2772 = vpack.c.b16 %v2236, %v2232
        %v2773 = vpack.c.b16 %v2241, %v2237
        %v2774 = vpack.c.b16 %v2242, %v2238
        %v2775 = vpack.c.b16 %v2243, %v2239
        %v2776 = vpack.c.b16 %v2244, %v2240
        %v2777 = vpack.c.b16 %v2249, %v2245
        %v2778 = vpack.c.b16 %v2250, %v2246
        %v2779 = vpack.c.b16 %v2251, %v2247
        %v2780 = vpack.c.b16 %v2252, %v2248
        %v2781 = vpack.c.b16 %v2257, %v2253
        %v2782 = vpack.c.b16 %v2258, %v2254
        %v2783 = vpack.c.b16 %v2259, %v2255
        %v2784 = vpack.c.b16 %v2260, %v2256
        %v2785 = vpack.c.b16 %v2265, %v2261
        %v2786 = vpack.c.b16 %v2266, %v2262
        %v2787 = vpack.c.b16 %v2267, %v2263
        %v2788 = vpack.c.b16 %v2268, %v2264
        %v2789 = vpack.c.b16 %v2273, %v2269
        %v2790 = vpack.c.b16 %v2274, %v2270
        %v2791 = vpack.c.b16 %v2275, %v2271
        %v2792 = vpack.c.b16 %v2276, %v2272
        %v2793 = vpack.c.b16 %v2281, %v2277
        %v2794 = vpack.c.b16 %v2282, %v2278
        %v2795 = vpack.c.b16 %v2283, %v2279
        %v2796 = vpack.c.b16 %v2284, %v2280
        %v2797 = vpack.c.b16 %v2289, %v2285
        %v2798 = vpack.c.b16 %v2290, %v2286
        %v2799 = vpack.c.b16 %v2291, %v2287
        %v2800 = vpack.c.b16 %v2292, %v2288
        %v2801 = vpack.c.b16 %v2297, %v2293
        %v2802 = vpack.c.b16 %v2298, %v2294
        %v2803 = vpack.c.b16 %v2299, %v2295
        %v2804 = vpack.c.b16 %v2300, %v2296
        %v2805 = vpack.c.b16 %v2305, %v2301
        %v2806 = vpack.c.b16 %v2306, %v2302
        %v2807 = vpack.c.b16 %v2307, %v2303
        %v2808 = vpack.c.b16 %v2308, %v2304
        %vm3309 = vcmask 654336
        %v3311 = vsel %vm3309, %v793, 0
        %3313 = vmatpush.bf16.msra.mxu0 %v2337
        %3314 = vmatpush.bf16.msra.mxu0 %v2333
        %3315 = vmatpush.bf16.msra.mxu0 %v2329
        %3316 = vmatpush.bf16.msra.mxu0 %v2325
        %3317 = vmatpush.bf16.msra.mxu0 %v2321
        %3318 = vmatpush.bf16.msra.mxu0 %v2317
        %3319 = vmatpush.bf16.msra.mxu0 %v2313
        %3320 = vmatpush.bf16.msra.mxu0 %v2309
        %3321 = vmatmul.bf16.gmra.mxu0 %v778
        %v3322 = vpop.f32.mrf.mxu0
        %v3323 = vadd.f32 %v746, %v3322
        %v3324 = vpop.f32.mrf.mxu0
        %3325 = vdwg.mxu0
        %3326 = vmatpush.bf16.msra.mxu0 %v2369
        %3327 = vmatpush.bf16.msra.mxu0 %v2365
        %3328 = vmatpush.bf16.msra.mxu0 %v2361
        %3329 = vmatpush.bf16.msra.mxu0 %v2357
        %3330 = vmatpush.bf16.msra.mxu0 %v2353
        %3331 = vmatpush.bf16.msra.mxu0 %v2349
        %3332 = vmatpush.bf16.msra.mxu0 %v2345
        %3333 = vmatpush.bf16.msra.mxu0 %v2341
        %3334 = vmatmul.bf16.gmra.mxu0 %v779
        %v3335 = vpop.f32.mrf.mxu0
        %v3336 = vadd.f32 %v3323, %v3335
        %v3337 = vpop.f32.mrf.mxu0
        %3338 = vdwg.mxu0
        %3339 = vmatpush.bf16.msra.mxu0 %v2401
        %3340 = vmatpush.bf16.msra.mxu0 %v2397
        %3341 = vmatpush.bf16.msra.mxu0 %v2393
        %3342 = vmatpush.bf16.msra.mxu0 %v2389
        %3343 = vmatpush.bf16.msra.mxu0 %v2385
        %3344 = vmatpush.bf16.msra.mxu0 %v2381
        %3345 = vmatpush.bf16.msra.mxu0 %v2377
        %3346 = vmatpush.bf16.msra.mxu0 %v2373
        %3347 = vmatmul.bf16.gmra.mxu0 %v780
        %v3348 = vpop.f32.mrf.mxu0
        %v3349 = vadd.f32 %v3336, %v3348
        %v3350 = vpop.f32.mrf.mxu0
        %3351 = vdwg.mxu0
        %3352 = vmatpush.bf16.msra.mxu0 %v2433
        %3353 = vmatpush.bf16.msra.mxu0 %v2429
        %3354 = vmatpush.bf16.msra.mxu0 %v2425
        %3355 = vmatpush.bf16.msra.mxu0 %v2421
        %3356 = vmatpush.bf16.msra.mxu0 %v2417
        %3357 = vmatpush.bf16.msra.mxu0 %v2413
        %3358 = vmatpush.bf16.msra.mxu0 %v2409
        %3359 = vmatpush.bf16.msra.mxu0 %v2405
        %3360 = vmatmul.bf16.gmra.mxu0 %v781
        %v3361 = vpop.f32.mrf.mxu0
        %v3362 = vadd.f32 %v3349, %v3361
        %v3363 = vpop.f32.mrf.mxu0
        %3364 = vdwg.mxu0
        %3365 = vmatpush.bf16.msra.mxu0 %v2465
        %3366 = vmatpush.bf16.msra.mxu0 %v2461
        %3367 = vmatpush.bf16.msra.mxu0 %v2457
        %3368 = vmatpush.bf16.msra.mxu0 %v2453
        %3369 = vmatpush.bf16.msra.mxu0 %v2449
        %3370 = vmatpush.bf16.msra.mxu0 %v2445
        %3371 = vmatpush.bf16.msra.mxu0 %v2441
        %3372 = vmatpush.bf16.msra.mxu0 %v2437
        %3373 = vmatmul.bf16.gmra.mxu0 %v782
        %v3374 = vpop.f32.mrf.mxu0
        %v3375 = vadd.f32 %v3362, %v3374
        %v3376 = vpop.f32.mrf.mxu0
        %3377 = vdwg.mxu0
        %3378 = vmatpush.bf16.msra.mxu0 %v2497
        %3379 = vmatpush.bf16.msra.mxu0 %v2493
        %3380 = vmatpush.bf16.msra.mxu0 %v2489
        %3381 = vmatpush.bf16.msra.mxu0 %v2485
        %3382 = vmatpush.bf16.msra.mxu0 %v2481
        %3383 = vmatpush.bf16.msra.mxu0 %v2477
        %3384 = vmatpush.bf16.msra.mxu0 %v2473
        %3385 = vmatpush.bf16.msra.mxu0 %v2469
        %3386 = vmatmul.bf16.gmra.mxu0 %v783
        %v3387 = vpop.f32.mrf.mxu0
        %v3388 = vadd.f32 %v3375, %v3387
        %v3389 = vpop.f32.mrf.mxu0
        %3390 = vdwg.mxu0
        %3391 = vmatpush.bf16.msra.mxu0 %v2529
        %3392 = vmatpush.bf16.msra.mxu0 %v2525
        %3393 = vmatpush.bf16.msra.mxu0 %v2521
        %3394 = vmatpush.bf16.msra.mxu0 %v2517
        %3395 = vmatpush.bf16.msra.mxu0 %v2513
        %3396 = vmatpush.bf16.msra.mxu0 %v2509
        %3397 = vmatpush.bf16.msra.mxu0 %v2505
        %3398 = vmatpush.bf16.msra.mxu0 %v2501
        %3399 = vmatmul.bf16.gmra.mxu0 %v784
        %v3400 = vpop.f32.mrf.mxu0
        %v3401 = vadd.f32 %v3388, %v3400
        %v3402 = vpop.f32.mrf.mxu0
        %3403 = vdwg.mxu0
        %3404 = vmatpush.bf16.msra.mxu0 %v2561
        %3405 = vmatpush.bf16.msra.mxu0 %v2557
        %3406 = vmatpush.bf16.msra.mxu0 %v2553
        %3407 = vmatpush.bf16.msra.mxu0 %v2549
        %3408 = vmatpush.bf16.msra.mxu0 %v2545
        %3409 = vmatpush.bf16.msra.mxu0 %v2541
        %3410 = vmatpush.bf16.msra.mxu0 %v2537
        %3411 = vmatpush.bf16.msra.mxu0 %v2533
        %3412 = vmatmul.bf16.gmra.mxu0 %v785
        %v3413 = vpop.f32.mrf.mxu0
        %v3414 = vadd.f32 %v3401, %v3413
        %v3415 = vpop.f32.mrf.mxu0
        %3416 = vdwg.mxu0
        %3417 = vmatpush.bf16.msra.mxu0 %v2593
        %3418 = vmatpush.bf16.msra.mxu0 %v2589
        %3419 = vmatpush.bf16.msra.mxu0 %v2585
        %3420 = vmatpush.bf16.msra.mxu0 %v2581
        %3421 = vmatpush.bf16.msra.mxu0 %v2577
        %3422 = vmatpush.bf16.msra.mxu0 %v2573
        %3423 = vmatpush.bf16.msra.mxu0 %v2569
        %3424 = vmatpush.bf16.msra.mxu0 %v2565
        %3425 = vmatmul.bf16.gmra.mxu0 %v786
        %v3426 = vpop.f32.mrf.mxu0
        %v3427 = vadd.f32 %v3414, %v3426
        %v3428 = vpop.f32.mrf.mxu0
        %3429 = vdwg.mxu0
        %3430 = vmatpush.bf16.msra.mxu0 %v2625
        %3431 = vmatpush.bf16.msra.mxu0 %v2621
        %3432 = vmatpush.bf16.msra.mxu0 %v2617
        %3433 = vmatpush.bf16.msra.mxu0 %v2613
        %3434 = vmatpush.bf16.msra.mxu0 %v2609
        %3435 = vmatpush.bf16.msra.mxu0 %v2605
        %3436 = vmatpush.bf16.msra.mxu0 %v2601
        %3437 = vmatpush.bf16.msra.mxu0 %v2597
        %3438 = vmatmul.bf16.gmra.mxu0 %v787
        %v3439 = vpop.f32.mrf.mxu0
        %v3440 = vadd.f32 %v3427, %v3439
        %v3441 = vpop.f32.mrf.mxu0
        %3442 = vdwg.mxu0
        %3443 = vmatpush.bf16.msra.mxu0 %v2657
        %3444 = vmatpush.bf16.msra.mxu0 %v2653
        %3445 = vmatpush.bf16.msra.mxu0 %v2649
        %3446 = vmatpush.bf16.msra.mxu0 %v2645
        %3447 = vmatpush.bf16.msra.mxu0 %v2641
        %3448 = vmatpush.bf16.msra.mxu0 %v2637
        %3449 = vmatpush.bf16.msra.mxu0 %v2633
        %3450 = vmatpush.bf16.msra.mxu0 %v2629
        %3451 = vmatmul.bf16.gmra.mxu0 %v788
        %v3452 = vpop.f32.mrf.mxu0
        %v3453 = vadd.f32 %v3440, %v3452
        %v3454 = vpop.f32.mrf.mxu0
        %3455 = vdwg.mxu0
        %3456 = vmatpush.bf16.msra.mxu0 %v2689
        %3457 = vmatpush.bf16.msra.mxu0 %v2685
        %3458 = vmatpush.bf16.msra.mxu0 %v2681
        %3459 = vmatpush.bf16.msra.mxu0 %v2677
        %3460 = vmatpush.bf16.msra.mxu0 %v2673
        %3461 = vmatpush.bf16.msra.mxu0 %v2669
        %3462 = vmatpush.bf16.msra.mxu0 %v2665
        %3463 = vmatpush.bf16.msra.mxu0 %v2661
        %3464 = vmatmul.bf16.gmra.mxu0 %v789
        %v3465 = vpop.f32.mrf.mxu0
        %v3466 = vadd.f32 %v3453, %v3465
        %v3467 = vpop.f32.mrf.mxu0
        %3468 = vdwg.mxu0
        %3469 = vmatpush.bf16.msra.mxu0 %v2721
        %3470 = vmatpush.bf16.msra.mxu0 %v2717
        %3471 = vmatpush.bf16.msra.mxu0 %v2713
        %3472 = vmatpush.bf16.msra.mxu0 %v2709
        %3473 = vmatpush.bf16.msra.mxu0 %v2705
        %3474 = vmatpush.bf16.msra.mxu0 %v2701
        %3475 = vmatpush.bf16.msra.mxu0 %v2697
        %3476 = vmatpush.bf16.msra.mxu0 %v2693
        %3477 = vmatmul.bf16.gmra.mxu0 %v790
        %v3478 = vpop.f32.mrf.mxu0
        %v3479 = vadd.f32 %v3466, %v3478
        %v3480 = vpop.f32.mrf.mxu0
        %3481 = vdwg.mxu0
        %3482 = vmatpush.bf16.msra.mxu0 %v2753
        %3483 = vmatpush.bf16.msra.mxu0 %v2749
        %3484 = vmatpush.bf16.msra.mxu0 %v2745
        %3485 = vmatpush.bf16.msra.mxu0 %v2741
        %3486 = vmatpush.bf16.msra.mxu0 %v2737
        %3487 = vmatpush.bf16.msra.mxu0 %v2733
        %3488 = vmatpush.bf16.msra.mxu0 %v2729
        %3489 = vmatpush.bf16.msra.mxu0 %v2725
        %3490 = vmatmul.bf16.gmra.mxu0 %v791
        %v3491 = vpop.f32.mrf.mxu0
        %v3492 = vadd.f32 %v3479, %v3491
        %v3493 = vpop.f32.mrf.mxu0
        %3494 = vdwg.mxu0
        %3495 = vmatpush.bf16.msra.mxu0 %v2785
        %3496 = vmatpush.bf16.msra.mxu0 %v2781
        %3497 = vmatpush.bf16.msra.mxu0 %v2777
        %3498 = vmatpush.bf16.msra.mxu0 %v2773
        %3499 = vmatpush.bf16.msra.mxu0 %v2769
        %3500 = vmatpush.bf16.msra.mxu0 %v2765
        %3501 = vmatpush.bf16.msra.mxu0 %v2761
        %3502 = vmatpush.bf16.msra.mxu0 %v2757
        %3503 = vmatmul.bf16.gmra.mxu0 %v792
        %v3504 = vpop.f32.mrf.mxu0
        %v3505 = vadd.f32 %v3492, %v3504
        %v3506 = vpop.f32.mrf.mxu0
        %3507 = vdwg.mxu0
        %3508 = vmatpush.bf16.msra.mxu0 0
        %3509 = vmatpush.bf16.msra.mxu0 0
        %3510 = vmatpush.bf16.msra.mxu0 0
        %3511 = vmatpush.bf16.msra.mxu0 %v2805
        %3512 = vmatpush.bf16.msra.mxu0 %v2801
        %3513 = vmatpush.bf16.msra.mxu0 %v2797
        %3514 = vmatpush.bf16.msra.mxu0 %v2793
        %3515 = vmatpush.bf16.msra.mxu0 %v2789
        %3516 = vmatmul.bf16.gmra.mxu0 %v3311
        %v3517 = vpop.f32.mrf.mxu0
        %v3518 = vadd.f32 %v3505, %v3517
        %v3519 = vpop.f32.mrf.mxu0
        %3520 = vdwg.mxu0
        %3521 = vmatpush.bf16.msra.mxu0 %v2338
        %3522 = vmatpush.bf16.msra.mxu0 %v2334
        %3523 = vmatpush.bf16.msra.mxu0 %v2330
        %3524 = vmatpush.bf16.msra.mxu0 %v2326
        %3525 = vmatpush.bf16.msra.mxu0 %v2322
        %3526 = vmatpush.bf16.msra.mxu0 %v2318
        %3527 = vmatpush.bf16.msra.mxu0 %v2314
        %3528 = vmatpush.bf16.msra.mxu0 %v2310
        %3529 = vmatmul.bf16.gmra.mxu0 %v778
        %v3530 = vpop.f32.mrf.mxu0
        %v3531 = vadd.f32 %v747, %v3530
        %v3532 = vpop.f32.mrf.mxu0
        %3533 = vdwg.mxu0
        %3534 = vmatpush.bf16.msra.mxu0 %v2370
        %3535 = vmatpush.bf16.msra.mxu0 %v2366
        %3536 = vmatpush.bf16.msra.mxu0 %v2362
        %3537 = vmatpush.bf16.msra.mxu0 %v2358
        %3538 = vmatpush.bf16.msra.mxu0 %v2354
        %3539 = vmatpush.bf16.msra.mxu0 %v2350
        %3540 = vmatpush.bf16.msra.mxu0 %v2346
        %3541 = vmatpush.bf16.msra.mxu0 %v2342
        %3542 = vmatmul.bf16.gmra.mxu0 %v779
        %v3543 = vpop.f32.mrf.mxu0
        %v3544 = vadd.f32 %v3531, %v3543
        %v3545 = vpop.f32.mrf.mxu0
        %3546 = vdwg.mxu0
        %3547 = vmatpush.bf16.msra.mxu0 %v2402
        %3548 = vmatpush.bf16.msra.mxu0 %v2398
        %3549 = vmatpush.bf16.msra.mxu0 %v2394
        %3550 = vmatpush.bf16.msra.mxu0 %v2390
        %3551 = vmatpush.bf16.msra.mxu0 %v2386
        %3552 = vmatpush.bf16.msra.mxu0 %v2382
        %3553 = vmatpush.bf16.msra.mxu0 %v2378
        %3554 = vmatpush.bf16.msra.mxu0 %v2374
        %3555 = vmatmul.bf16.gmra.mxu0 %v780
        %v3556 = vpop.f32.mrf.mxu0
        %v3557 = vadd.f32 %v3544, %v3556
        %v3558 = vpop.f32.mrf.mxu0
        %3559 = vdwg.mxu0
        %3560 = vmatpush.bf16.msra.mxu0 %v2434
        %3561 = vmatpush.bf16.msra.mxu0 %v2430
        %3562 = vmatpush.bf16.msra.mxu0 %v2426
        %3563 = vmatpush.bf16.msra.mxu0 %v2422
        %3564 = vmatpush.bf16.msra.mxu0 %v2418
        %3565 = vmatpush.bf16.msra.mxu0 %v2414
        %3566 = vmatpush.bf16.msra.mxu0 %v2410
        %3567 = vmatpush.bf16.msra.mxu0 %v2406
        %3568 = vmatmul.bf16.gmra.mxu0 %v781
        %v3569 = vpop.f32.mrf.mxu0
        %v3570 = vadd.f32 %v3557, %v3569
        %v3571 = vpop.f32.mrf.mxu0
        %3572 = vdwg.mxu0
        %3573 = vmatpush.bf16.msra.mxu0 %v2466
        %3574 = vmatpush.bf16.msra.mxu0 %v2462
        %3575 = vmatpush.bf16.msra.mxu0 %v2458
        %3576 = vmatpush.bf16.msra.mxu0 %v2454
        %3577 = vmatpush.bf16.msra.mxu0 %v2450
        %3578 = vmatpush.bf16.msra.mxu0 %v2446
        %3579 = vmatpush.bf16.msra.mxu0 %v2442
        %3580 = vmatpush.bf16.msra.mxu0 %v2438
        %3581 = vmatmul.bf16.gmra.mxu0 %v782
        %v3582 = vpop.f32.mrf.mxu0
        %v3583 = vadd.f32 %v3570, %v3582
        %v3584 = vpop.f32.mrf.mxu0
        %3585 = vdwg.mxu0
        %3586 = vmatpush.bf16.msra.mxu0 %v2498
        %3587 = vmatpush.bf16.msra.mxu0 %v2494
        %3588 = vmatpush.bf16.msra.mxu0 %v2490
        %3589 = vmatpush.bf16.msra.mxu0 %v2486
        %3590 = vmatpush.bf16.msra.mxu0 %v2482
        %3591 = vmatpush.bf16.msra.mxu0 %v2478
        %3592 = vmatpush.bf16.msra.mxu0 %v2474
        %3593 = vmatpush.bf16.msra.mxu0 %v2470
        %3594 = vmatmul.bf16.gmra.mxu0 %v783
        %v3595 = vpop.f32.mrf.mxu0
        %v3596 = vadd.f32 %v3583, %v3595
        %v3597 = vpop.f32.mrf.mxu0
        %3598 = vdwg.mxu0
        %3599 = vmatpush.bf16.msra.mxu0 %v2530
        %3600 = vmatpush.bf16.msra.mxu0 %v2526
        %3601 = vmatpush.bf16.msra.mxu0 %v2522
        %3602 = vmatpush.bf16.msra.mxu0 %v2518
        %3603 = vmatpush.bf16.msra.mxu0 %v2514
        %3604 = vmatpush.bf16.msra.mxu0 %v2510
        %3605 = vmatpush.bf16.msra.mxu0 %v2506
        %3606 = vmatpush.bf16.msra.mxu0 %v2502
        %3607 = vmatmul.bf16.gmra.mxu0 %v784
        %v3608 = vpop.f32.mrf.mxu0
        %v3609 = vadd.f32 %v3596, %v3608
        %v3610 = vpop.f32.mrf.mxu0
        %3611 = vdwg.mxu0
        %3612 = vmatpush.bf16.msra.mxu0 %v2562
        %3613 = vmatpush.bf16.msra.mxu0 %v2558
        %3614 = vmatpush.bf16.msra.mxu0 %v2554
        %3615 = vmatpush.bf16.msra.mxu0 %v2550
        %3616 = vmatpush.bf16.msra.mxu0 %v2546
        %3617 = vmatpush.bf16.msra.mxu0 %v2542
        %3618 = vmatpush.bf16.msra.mxu0 %v2538
        %3619 = vmatpush.bf16.msra.mxu0 %v2534
        %3620 = vmatmul.bf16.gmra.mxu0 %v785
        %v3621 = vpop.f32.mrf.mxu0
        %v3622 = vadd.f32 %v3609, %v3621
        %v3623 = vpop.f32.mrf.mxu0
        %3624 = vdwg.mxu0
        %3625 = vmatpush.bf16.msra.mxu0 %v2594
        %3626 = vmatpush.bf16.msra.mxu0 %v2590
        %3627 = vmatpush.bf16.msra.mxu0 %v2586
        %3628 = vmatpush.bf16.msra.mxu0 %v2582
        %3629 = vmatpush.bf16.msra.mxu0 %v2578
        %3630 = vmatpush.bf16.msra.mxu0 %v2574
        %3631 = vmatpush.bf16.msra.mxu0 %v2570
        %3632 = vmatpush.bf16.msra.mxu0 %v2566
        %3633 = vmatmul.bf16.gmra.mxu0 %v786
        %v3634 = vpop.f32.mrf.mxu0
        %v3635 = vadd.f32 %v3622, %v3634
        %v3636 = vpop.f32.mrf.mxu0
        %3637 = vdwg.mxu0
        %3638 = vmatpush.bf16.msra.mxu0 %v2626
        %3639 = vmatpush.bf16.msra.mxu0 %v2622
        %3640 = vmatpush.bf16.msra.mxu0 %v2618
        %3641 = vmatpush.bf16.msra.mxu0 %v2614
        %3642 = vmatpush.bf16.msra.mxu0 %v2610
        %3643 = vmatpush.bf16.msra.mxu0 %v2606
        %3644 = vmatpush.bf16.msra.mxu0 %v2602
        %3645 = vmatpush.bf16.msra.mxu0 %v2598
        %3646 = vmatmul.bf16.gmra.mxu0 %v787
        %v3647 = vpop.f32.mrf.mxu0
        %v3648 = vadd.f32 %v3635, %v3647
        %v3649 = vpop.f32.mrf.mxu0
        %3650 = vdwg.mxu0
        %3651 = vmatpush.bf16.msra.mxu0 %v2658
        %3652 = vmatpush.bf16.msra.mxu0 %v2654
        %3653 = vmatpush.bf16.msra.mxu0 %v2650
        %3654 = vmatpush.bf16.msra.mxu0 %v2646
        %3655 = vmatpush.bf16.msra.mxu0 %v2642
        %3656 = vmatpush.bf16.msra.mxu0 %v2638
        %3657 = vmatpush.bf16.msra.mxu0 %v2634
        %3658 = vmatpush.bf16.msra.mxu0 %v2630
        %3659 = vmatmul.bf16.gmra.mxu0 %v788
        %v3660 = vpop.f32.mrf.mxu0
        %v3661 = vadd.f32 %v3648, %v3660
        %v3662 = vpop.f32.mrf.mxu0
        %3663 = vdwg.mxu0
        %3664 = vmatpush.bf16.msra.mxu0 %v2690
        %3665 = vmatpush.bf16.msra.mxu0 %v2686
        %3666 = vmatpush.bf16.msra.mxu0 %v2682
        %3667 = vmatpush.bf16.msra.mxu0 %v2678
        %3668 = vmatpush.bf16.msra.mxu0 %v2674
        %3669 = vmatpush.bf16.msra.mxu0 %v2670
        %3670 = vmatpush.bf16.msra.mxu0 %v2666
        %3671 = vmatpush.bf16.msra.mxu0 %v2662
        %3672 = vmatmul.bf16.gmra.mxu0 %v789
        %v3673 = vpop.f32.mrf.mxu0
        %v3674 = vadd.f32 %v3661, %v3673
        %v3675 = vpop.f32.mrf.mxu0
        %3676 = vdwg.mxu0
        %3677 = vmatpush.bf16.msra.mxu0 %v2722
        %3678 = vmatpush.bf16.msra.mxu0 %v2718
        %3679 = vmatpush.bf16.msra.mxu0 %v2714
        %3680 = vmatpush.bf16.msra.mxu0 %v2710
        %3681 = vmatpush.bf16.msra.mxu0 %v2706
        %3682 = vmatpush.bf16.msra.mxu0 %v2702
        %3683 = vmatpush.bf16.msra.mxu0 %v2698
        %3684 = vmatpush.bf16.msra.mxu0 %v2694
        %3685 = vmatmul.bf16.gmra.mxu0 %v790
        %v3686 = vpop.f32.mrf.mxu0
        %v3687 = vadd.f32 %v3674, %v3686
        %v3688 = vpop.f32.mrf.mxu0
        %3689 = vdwg.mxu0
        %3690 = vmatpush.bf16.msra.mxu0 %v2754
        %3691 = vmatpush.bf16.msra.mxu0 %v2750
        %3692 = vmatpush.bf16.msra.mxu0 %v2746
        %3693 = vmatpush.bf16.msra.mxu0 %v2742
        %3694 = vmatpush.bf16.msra.mxu0 %v2738
        %3695 = vmatpush.bf16.msra.mxu0 %v2734
        %3696 = vmatpush.bf16.msra.mxu0 %v2730
        %3697 = vmatpush.bf16.msra.mxu0 %v2726
        %3698 = vmatmul.bf16.gmra.mxu0 %v791
        %v3699 = vpop.f32.mrf.mxu0
        %v3700 = vadd.f32 %v3687, %v3699
        %v3701 = vpop.f32.mrf.mxu0
        %3702 = vdwg.mxu0
        %3703 = vmatpush.bf16.msra.mxu0 %v2786
        %3704 = vmatpush.bf16.msra.mxu0 %v2782
        %3705 = vmatpush.bf16.msra.mxu0 %v2778
        %3706 = vmatpush.bf16.msra.mxu0 %v2774
        %3707 = vmatpush.bf16.msra.mxu0 %v2770
        %3708 = vmatpush.bf16.msra.mxu0 %v2766
        %3709 = vmatpush.bf16.msra.mxu0 %v2762
        %3710 = vmatpush.bf16.msra.mxu0 %v2758
        %3711 = vmatmul.bf16.gmra.mxu0 %v792
        %v3712 = vpop.f32.mrf.mxu0
        %v3713 = vadd.f32 %v3700, %v3712
        %v3714 = vpop.f32.mrf.mxu0
        %3715 = vdwg.mxu0
        %3716 = vmatpush.bf16.msra.mxu0 0
        %3717 = vmatpush.bf16.msra.mxu0 0
        %3718 = vmatpush.bf16.msra.mxu0 0
        %3719 = vmatpush.bf16.msra.mxu0 %v2806
        %3720 = vmatpush.bf16.msra.mxu0 %v2802
        %3721 = vmatpush.bf16.msra.mxu0 %v2798
        %3722 = vmatpush.bf16.msra.mxu0 %v2794
        %3723 = vmatpush.bf16.msra.mxu0 %v2790
        %3724 = vmatmul.bf16.gmra.mxu0 %v3311
        %v3725 = vpop.f32.mrf.mxu0
        %v3726 = vadd.f32 %v3713, %v3725
        %v3727 = vpop.f32.mrf.mxu0
        %3728 = vdwg.mxu0
        %3729 = vmatpush.bf16.msra.mxu0 %v2339
        %3730 = vmatpush.bf16.msra.mxu0 %v2335
        %3731 = vmatpush.bf16.msra.mxu0 %v2331
        %3732 = vmatpush.bf16.msra.mxu0 %v2327
        %3733 = vmatpush.bf16.msra.mxu0 %v2323
        %3734 = vmatpush.bf16.msra.mxu0 %v2319
        %3735 = vmatpush.bf16.msra.mxu0 %v2315
        %3736 = vmatpush.bf16.msra.mxu0 %v2311
        %3737 = vmatmul.bf16.gmra.mxu0 %v778
        %v3738 = vpop.f32.mrf.mxu0
        %v3739 = vadd.f32 %v748, %v3738
        %v3740 = vpop.f32.mrf.mxu0
        %3741 = vdwg.mxu0
        %3742 = vmatpush.bf16.msra.mxu0 %v2371
        %3743 = vmatpush.bf16.msra.mxu0 %v2367
        %3744 = vmatpush.bf16.msra.mxu0 %v2363
        %3745 = vmatpush.bf16.msra.mxu0 %v2359
        %3746 = vmatpush.bf16.msra.mxu0 %v2355
        %3747 = vmatpush.bf16.msra.mxu0 %v2351
        %3748 = vmatpush.bf16.msra.mxu0 %v2347
        %3749 = vmatpush.bf16.msra.mxu0 %v2343
        %3750 = vmatmul.bf16.gmra.mxu0 %v779
        %v3751 = vpop.f32.mrf.mxu0
        %v3752 = vadd.f32 %v3739, %v3751
        %v3753 = vpop.f32.mrf.mxu0
        %3754 = vdwg.mxu0
        %3755 = vmatpush.bf16.msra.mxu0 %v2403
        %3756 = vmatpush.bf16.msra.mxu0 %v2399
        %3757 = vmatpush.bf16.msra.mxu0 %v2395
        %3758 = vmatpush.bf16.msra.mxu0 %v2391
        %3759 = vmatpush.bf16.msra.mxu0 %v2387
        %3760 = vmatpush.bf16.msra.mxu0 %v2383
        %3761 = vmatpush.bf16.msra.mxu0 %v2379
        %3762 = vmatpush.bf16.msra.mxu0 %v2375
        %3763 = vmatmul.bf16.gmra.mxu0 %v780
        %v3764 = vpop.f32.mrf.mxu0
        %v3765 = vadd.f32 %v3752, %v3764
        %v3766 = vpop.f32.mrf.mxu0
        %3767 = vdwg.mxu0
        %3768 = vmatpush.bf16.msra.mxu0 %v2435
        %3769 = vmatpush.bf16.msra.mxu0 %v2431
        %3770 = vmatpush.bf16.msra.mxu0 %v2427
        %3771 = vmatpush.bf16.msra.mxu0 %v2423
        %3772 = vmatpush.bf16.msra.mxu0 %v2419
        %3773 = vmatpush.bf16.msra.mxu0 %v2415
        %3774 = vmatpush.bf16.msra.mxu0 %v2411
        %3775 = vmatpush.bf16.msra.mxu0 %v2407
        %3776 = vmatmul.bf16.gmra.mxu0 %v781
        %v3777 = vpop.f32.mrf.mxu0
        %v3778 = vadd.f32 %v3765, %v3777
        %v3779 = vpop.f32.mrf.mxu0
        %3780 = vdwg.mxu0
        %3781 = vmatpush.bf16.msra.mxu0 %v2467
        %3782 = vmatpush.bf16.msra.mxu0 %v2463
        %3783 = vmatpush.bf16.msra.mxu0 %v2459
        %3784 = vmatpush.bf16.msra.mxu0 %v2455
        %3785 = vmatpush.bf16.msra.mxu0 %v2451
        %3786 = vmatpush.bf16.msra.mxu0 %v2447
        %3787 = vmatpush.bf16.msra.mxu0 %v2443
        %3788 = vmatpush.bf16.msra.mxu0 %v2439
        %3789 = vmatmul.bf16.gmra.mxu0 %v782
        %v3790 = vpop.f32.mrf.mxu0
        %v3791 = vadd.f32 %v3778, %v3790
        %v3792 = vpop.f32.mrf.mxu0
        %3793 = vdwg.mxu0
        %3794 = vmatpush.bf16.msra.mxu0 %v2499
        %3795 = vmatpush.bf16.msra.mxu0 %v2495
        %3796 = vmatpush.bf16.msra.mxu0 %v2491
        %3797 = vmatpush.bf16.msra.mxu0 %v2487
        %3798 = vmatpush.bf16.msra.mxu0 %v2483
        %3799 = vmatpush.bf16.msra.mxu0 %v2479
        %3800 = vmatpush.bf16.msra.mxu0 %v2475
        %3801 = vmatpush.bf16.msra.mxu0 %v2471
        %3802 = vmatmul.bf16.gmra.mxu0 %v783
        %v3803 = vpop.f32.mrf.mxu0
        %v3804 = vadd.f32 %v3791, %v3803
        %v3805 = vpop.f32.mrf.mxu0
        %3806 = vdwg.mxu0
        %3807 = vmatpush.bf16.msra.mxu0 %v2531
        %3808 = vmatpush.bf16.msra.mxu0 %v2527
        %3809 = vmatpush.bf16.msra.mxu0 %v2523
        %3810 = vmatpush.bf16.msra.mxu0 %v2519
        %3811 = vmatpush.bf16.msra.mxu0 %v2515
        %3812 = vmatpush.bf16.msra.mxu0 %v2511
        %3813 = vmatpush.bf16.msra.mxu0 %v2507
        %3814 = vmatpush.bf16.msra.mxu0 %v2503
        %3815 = vmatmul.bf16.gmra.mxu0 %v784
        %v3816 = vpop.f32.mrf.mxu0
        %v3817 = vadd.f32 %v3804, %v3816
        %v3818 = vpop.f32.mrf.mxu0
        %3819 = vdwg.mxu0
        %3820 = vmatpush.bf16.msra.mxu0 %v2563
        %3821 = vmatpush.bf16.msra.mxu0 %v2559
        %3822 = vmatpush.bf16.msra.mxu0 %v2555
        %3823 = vmatpush.bf16.msra.mxu0 %v2551
        %3824 = vmatpush.bf16.msra.mxu0 %v2547
        %3825 = vmatpush.bf16.msra.mxu0 %v2543
        %3826 = vmatpush.bf16.msra.mxu0 %v2539
        %3827 = vmatpush.bf16.msra.mxu0 %v2535
        %3828 = vmatmul.bf16.gmra.mxu0 %v785
        %v3829 = vpop.f32.mrf.mxu0
        %v3830 = vadd.f32 %v3817, %v3829
        %v3831 = vpop.f32.mrf.mxu0
        %3832 = vdwg.mxu0
        %3833 = vmatpush.bf16.msra.mxu0 %v2595
        %3834 = vmatpush.bf16.msra.mxu0 %v2591
        %3835 = vmatpush.bf16.msra.mxu0 %v2587
        %3836 = vmatpush.bf16.msra.mxu0 %v2583
        %3837 = vmatpush.bf16.msra.mxu0 %v2579
        %3838 = vmatpush.bf16.msra.mxu0 %v2575
        %3839 = vmatpush.bf16.msra.mxu0 %v2571
        %3840 = vmatpush.bf16.msra.mxu0 %v2567
        %3841 = vmatmul.bf16.gmra.mxu0 %v786
        %v3842 = vpop.f32.mrf.mxu0
        %v3843 = vadd.f32 %v3830, %v3842
        %v3844 = vpop.f32.mrf.mxu0
        %3845 = vdwg.mxu0
        %3846 = vmatpush.bf16.msra.mxu0 %v2627
        %3847 = vmatpush.bf16.msra.mxu0 %v2623
        %3848 = vmatpush.bf16.msra.mxu0 %v2619
        %3849 = vmatpush.bf16.msra.mxu0 %v2615
        %3850 = vmatpush.bf16.msra.mxu0 %v2611
        %3851 = vmatpush.bf16.msra.mxu0 %v2607
        %3852 = vmatpush.bf16.msra.mxu0 %v2603
        %3853 = vmatpush.bf16.msra.mxu0 %v2599
        %3854 = vmatmul.bf16.gmra.mxu0 %v787
        %v3855 = vpop.f32.mrf.mxu0
        %v3856 = vadd.f32 %v3843, %v3855
        %v3857 = vpop.f32.mrf.mxu0
        %3858 = vdwg.mxu0
        %3859 = vmatpush.bf16.msra.mxu0 %v2659
        %3860 = vmatpush.bf16.msra.mxu0 %v2655
        %3861 = vmatpush.bf16.msra.mxu0 %v2651
        %3862 = vmatpush.bf16.msra.mxu0 %v2647
        %3863 = vmatpush.bf16.msra.mxu0 %v2643
        %3864 = vmatpush.bf16.msra.mxu0 %v2639
        %3865 = vmatpush.bf16.msra.mxu0 %v2635
        %3866 = vmatpush.bf16.msra.mxu0 %v2631
        %3867 = vmatmul.bf16.gmra.mxu0 %v788
        %v3868 = vpop.f32.mrf.mxu0
        %v3869 = vadd.f32 %v3856, %v3868
        %v3870 = vpop.f32.mrf.mxu0
        %3871 = vdwg.mxu0
        %3872 = vmatpush.bf16.msra.mxu0 %v2691
        %3873 = vmatpush.bf16.msra.mxu0 %v2687
        %3874 = vmatpush.bf16.msra.mxu0 %v2683
        %3875 = vmatpush.bf16.msra.mxu0 %v2679
        %3876 = vmatpush.bf16.msra.mxu0 %v2675
        %3877 = vmatpush.bf16.msra.mxu0 %v2671
        %3878 = vmatpush.bf16.msra.mxu0 %v2667
        %3879 = vmatpush.bf16.msra.mxu0 %v2663
        %3880 = vmatmul.bf16.gmra.mxu0 %v789
        %v3881 = vpop.f32.mrf.mxu0
        %v3882 = vadd.f32 %v3869, %v3881
        %v3883 = vpop.f32.mrf.mxu0
        %3884 = vdwg.mxu0
        %3885 = vmatpush.bf16.msra.mxu0 %v2723
        %3886 = vmatpush.bf16.msra.mxu0 %v2719
        %3887 = vmatpush.bf16.msra.mxu0 %v2715
        %3888 = vmatpush.bf16.msra.mxu0 %v2711
        %3889 = vmatpush.bf16.msra.mxu0 %v2707
        %3890 = vmatpush.bf16.msra.mxu0 %v2703
        %3891 = vmatpush.bf16.msra.mxu0 %v2699
        %3892 = vmatpush.bf16.msra.mxu0 %v2695
        %3893 = vmatmul.bf16.gmra.mxu0 %v790
        %v3894 = vpop.f32.mrf.mxu0
        %v3895 = vadd.f32 %v3882, %v3894
        %v3896 = vpop.f32.mrf.mxu0
        %3897 = vdwg.mxu0
        %3898 = vmatpush.bf16.msra.mxu0 %v2755
        %3899 = vmatpush.bf16.msra.mxu0 %v2751
        %3900 = vmatpush.bf16.msra.mxu0 %v2747
        %3901 = vmatpush.bf16.msra.mxu0 %v2743
        %3902 = vmatpush.bf16.msra.mxu0 %v2739
        %3903 = vmatpush.bf16.msra.mxu0 %v2735
        %3904 = vmatpush.bf16.msra.mxu0 %v2731
        %3905 = vmatpush.bf16.msra.mxu0 %v2727
        %3906 = vmatmul.bf16.gmra.mxu0 %v791
        %v3907 = vpop.f32.mrf.mxu0
        %v3908 = vadd.f32 %v3895, %v3907
        %v3909 = vpop.f32.mrf.mxu0
        %3910 = vdwg.mxu0
        %3911 = vmatpush.bf16.msra.mxu0 %v2787
        %3912 = vmatpush.bf16.msra.mxu0 %v2783
        %3913 = vmatpush.bf16.msra.mxu0 %v2779
        %3914 = vmatpush.bf16.msra.mxu0 %v2775
        %3915 = vmatpush.bf16.msra.mxu0 %v2771
        %3916 = vmatpush.bf16.msra.mxu0 %v2767
        %3917 = vmatpush.bf16.msra.mxu0 %v2763
        %3918 = vmatpush.bf16.msra.mxu0 %v2759
        %3919 = vmatmul.bf16.gmra.mxu0 %v792
        %v3920 = vpop.f32.mrf.mxu0
        %v3921 = vadd.f32 %v3908, %v3920
        %v3922 = vpop.f32.mrf.mxu0
        %3923 = vdwg.mxu0
        %3924 = vmatpush.bf16.msra.mxu0 0
        %3925 = vmatpush.bf16.msra.mxu0 0
        %3926 = vmatpush.bf16.msra.mxu0 0
        %3927 = vmatpush.bf16.msra.mxu0 %v2807
        %3928 = vmatpush.bf16.msra.mxu0 %v2803
        %3929 = vmatpush.bf16.msra.mxu0 %v2799
        %3930 = vmatpush.bf16.msra.mxu0 %v2795
        %3931 = vmatpush.bf16.msra.mxu0 %v2791
        %3932 = vmatmul.bf16.gmra.mxu0 %v3311
        %v3933 = vpop.f32.mrf.mxu0
        %v3934 = vadd.f32 %v3921, %v3933
        %v3935 = vpop.f32.mrf.mxu0
        %3936 = vdwg.mxu0
        %3937 = vmatpush.bf16.msra.mxu0 %v2340
        %3938 = vmatpush.bf16.msra.mxu0 %v2336
        %3939 = vmatpush.bf16.msra.mxu0 %v2332
        %3940 = vmatpush.bf16.msra.mxu0 %v2328
        %3941 = vmatpush.bf16.msra.mxu0 %v2324
        %3942 = vmatpush.bf16.msra.mxu0 %v2320
        %3943 = vmatpush.bf16.msra.mxu0 %v2316
        %3944 = vmatpush.bf16.msra.mxu0 %v2312
        %3945 = vmatmul.bf16.gmra.mxu0 %v778
        %v3946 = vpop.f32.mrf.mxu0
        %v3947 = vadd.f32 %v749, %v3946
        %v3948 = vpop.f32.mrf.mxu0
        %3949 = vdwg.mxu0
        %3950 = vmatpush.bf16.msra.mxu0 %v2372
        %3951 = vmatpush.bf16.msra.mxu0 %v2368
        %3952 = vmatpush.bf16.msra.mxu0 %v2364
        %3953 = vmatpush.bf16.msra.mxu0 %v2360
        %3954 = vmatpush.bf16.msra.mxu0 %v2356
        %3955 = vmatpush.bf16.msra.mxu0 %v2352
        %3956 = vmatpush.bf16.msra.mxu0 %v2348
        %3957 = vmatpush.bf16.msra.mxu0 %v2344
        %3958 = vmatmul.bf16.gmra.mxu0 %v779
        %v3959 = vpop.f32.mrf.mxu0
        %v3960 = vadd.f32 %v3947, %v3959
        %v3961 = vpop.f32.mrf.mxu0
        %3962 = vdwg.mxu0
        %3963 = vmatpush.bf16.msra.mxu0 %v2404
        %3964 = vmatpush.bf16.msra.mxu0 %v2400
        %3965 = vmatpush.bf16.msra.mxu0 %v2396
        %3966 = vmatpush.bf16.msra.mxu0 %v2392
        %3967 = vmatpush.bf16.msra.mxu0 %v2388
        %3968 = vmatpush.bf16.msra.mxu0 %v2384
        %3969 = vmatpush.bf16.msra.mxu0 %v2380
        %3970 = vmatpush.bf16.msra.mxu0 %v2376
        %3971 = vmatmul.bf16.gmra.mxu0 %v780
        %v3972 = vpop.f32.mrf.mxu0
        %v3973 = vadd.f32 %v3960, %v3972
        %v3974 = vpop.f32.mrf.mxu0
        %3975 = vdwg.mxu0
        %3976 = vmatpush.bf16.msra.mxu0 %v2436
        %3977 = vmatpush.bf16.msra.mxu0 %v2432
        %3978 = vmatpush.bf16.msra.mxu0 %v2428
        %3979 = vmatpush.bf16.msra.mxu0 %v2424
        %3980 = vmatpush.bf16.msra.mxu0 %v2420
        %3981 = vmatpush.bf16.msra.mxu0 %v2416
        %3982 = vmatpush.bf16.msra.mxu0 %v2412
        %3983 = vmatpush.bf16.msra.mxu0 %v2408
        %3984 = vmatmul.bf16.gmra.mxu0 %v781
        %v3985 = vpop.f32.mrf.mxu0
        %v3986 = vadd.f32 %v3973, %v3985
        %v3987 = vpop.f32.mrf.mxu0
        %3988 = vdwg.mxu0
        %3989 = vmatpush.bf16.msra.mxu0 %v2468
        %3990 = vmatpush.bf16.msra.mxu0 %v2464
        %3991 = vmatpush.bf16.msra.mxu0 %v2460
        %3992 = vmatpush.bf16.msra.mxu0 %v2456
        %3993 = vmatpush.bf16.msra.mxu0 %v2452
        %3994 = vmatpush.bf16.msra.mxu0 %v2448
        %3995 = vmatpush.bf16.msra.mxu0 %v2444
        %3996 = vmatpush.bf16.msra.mxu0 %v2440
        %3997 = vmatmul.bf16.gmra.mxu0 %v782
        %v3998 = vpop.f32.mrf.mxu0
        %v3999 = vadd.f32 %v3986, %v3998
        %v4000 = vpop.f32.mrf.mxu0
        %4001 = vdwg.mxu0
        %4002 = vmatpush.bf16.msra.mxu0 %v2500
        %4003 = vmatpush.bf16.msra.mxu0 %v2496
        %4004 = vmatpush.bf16.msra.mxu0 %v2492
        %4005 = vmatpush.bf16.msra.mxu0 %v2488
        %4006 = vmatpush.bf16.msra.mxu0 %v2484
        %4007 = vmatpush.bf16.msra.mxu0 %v2480
        %4008 = vmatpush.bf16.msra.mxu0 %v2476
        %4009 = vmatpush.bf16.msra.mxu0 %v2472
        %4010 = vmatmul.bf16.gmra.mxu0 %v783
        %v4011 = vpop.f32.mrf.mxu0
        %v4012 = vadd.f32 %v3999, %v4011
        %v4013 = vpop.f32.mrf.mxu0
        %4014 = vdwg.mxu0
        %4015 = vmatpush.bf16.msra.mxu0 %v2532
        %4016 = vmatpush.bf16.msra.mxu0 %v2528
        %4017 = vmatpush.bf16.msra.mxu0 %v2524
        %4018 = vmatpush.bf16.msra.mxu0 %v2520
        %4019 = vmatpush.bf16.msra.mxu0 %v2516
        %4020 = vmatpush.bf16.msra.mxu0 %v2512
        %4021 = vmatpush.bf16.msra.mxu0 %v2508
        %4022 = vmatpush.bf16.msra.mxu0 %v2504
        %4023 = vmatmul.bf16.gmra.mxu0 %v784
        %v4024 = vpop.f32.mrf.mxu0
        %v4025 = vadd.f32 %v4012, %v4024
        %v4026 = vpop.f32.mrf.mxu0
        %4027 = vdwg.mxu0
        %4028 = vmatpush.bf16.msra.mxu0 %v2564
        %4029 = vmatpush.bf16.msra.mxu0 %v2560
        %4030 = vmatpush.bf16.msra.mxu0 %v2556
        %4031 = vmatpush.bf16.msra.mxu0 %v2552
        %4032 = vmatpush.bf16.msra.mxu0 %v2548
        %4033 = vmatpush.bf16.msra.mxu0 %v2544
        %4034 = vmatpush.bf16.msra.mxu0 %v2540
        %4035 = vmatpush.bf16.msra.mxu0 %v2536
        %4036 = vmatmul.bf16.gmra.mxu0 %v785
        %v4037 = vpop.f32.mrf.mxu0
        %v4038 = vadd.f32 %v4025, %v4037
        %v4039 = vpop.f32.mrf.mxu0
        %4040 = vdwg.mxu0
        %4041 = vmatpush.bf16.msra.mxu0 %v2596
        %4042 = vmatpush.bf16.msra.mxu0 %v2592
        %4043 = vmatpush.bf16.msra.mxu0 %v2588
        %4044 = vmatpush.bf16.msra.mxu0 %v2584
        %4045 = vmatpush.bf16.msra.mxu0 %v2580
        %4046 = vmatpush.bf16.msra.mxu0 %v2576
        %4047 = vmatpush.bf16.msra.mxu0 %v2572
        %4048 = vmatpush.bf16.msra.mxu0 %v2568
        %4049 = vmatmul.bf16.gmra.mxu0 %v786
        %v4050 = vpop.f32.mrf.mxu0
        %v4051 = vadd.f32 %v4038, %v4050
        %v4052 = vpop.f32.mrf.mxu0
        %4053 = vdwg.mxu0
        %4054 = vmatpush.bf16.msra.mxu0 %v2628
        %4055 = vmatpush.bf16.msra.mxu0 %v2624
        %4056 = vmatpush.bf16.msra.mxu0 %v2620
        %4057 = vmatpush.bf16.msra.mxu0 %v2616
        %4058 = vmatpush.bf16.msra.mxu0 %v2612
        %4059 = vmatpush.bf16.msra.mxu0 %v2608
        %4060 = vmatpush.bf16.msra.mxu0 %v2604
        %4061 = vmatpush.bf16.msra.mxu0 %v2600
        %4062 = vmatmul.bf16.gmra.mxu0 %v787
        %v4063 = vpop.f32.mrf.mxu0
        %v4064 = vadd.f32 %v4051, %v4063
        %v4065 = vpop.f32.mrf.mxu0
        %4066 = vdwg.mxu0
        %4067 = vmatpush.bf16.msra.mxu0 %v2660
        %4068 = vmatpush.bf16.msra.mxu0 %v2656
        %4069 = vmatpush.bf16.msra.mxu0 %v2652
        %4070 = vmatpush.bf16.msra.mxu0 %v2648
        %4071 = vmatpush.bf16.msra.mxu0 %v2644
        %4072 = vmatpush.bf16.msra.mxu0 %v2640
        %4073 = vmatpush.bf16.msra.mxu0 %v2636
        %4074 = vmatpush.bf16.msra.mxu0 %v2632
        %4075 = vmatmul.bf16.gmra.mxu0 %v788
        %v4076 = vpop.f32.mrf.mxu0
        %v4077 = vadd.f32 %v4064, %v4076
        %v4078 = vpop.f32.mrf.mxu0
        %4079 = vdwg.mxu0
        %4080 = vmatpush.bf16.msra.mxu0 %v2692
        %4081 = vmatpush.bf16.msra.mxu0 %v2688
        %4082 = vmatpush.bf16.msra.mxu0 %v2684
        %4083 = vmatpush.bf16.msra.mxu0 %v2680
        %4084 = vmatpush.bf16.msra.mxu0 %v2676
        %4085 = vmatpush.bf16.msra.mxu0 %v2672
        %4086 = vmatpush.bf16.msra.mxu0 %v2668
        %4087 = vmatpush.bf16.msra.mxu0 %v2664
        %4088 = vmatmul.bf16.gmra.mxu0 %v789
        %v4089 = vpop.f32.mrf.mxu0
        %v4090 = vadd.f32 %v4077, %v4089
        %v4091 = vpop.f32.mrf.mxu0
        %4092 = vdwg.mxu0
        %4093 = vmatpush.bf16.msra.mxu0 %v2724
        %4094 = vmatpush.bf16.msra.mxu0 %v2720
        %4095 = vmatpush.bf16.msra.mxu0 %v2716
        %4096 = vmatpush.bf16.msra.mxu0 %v2712
        %4097 = vmatpush.bf16.msra.mxu0 %v2708
        %4098 = vmatpush.bf16.msra.mxu0 %v2704
        %4099 = vmatpush.bf16.msra.mxu0 %v2700
        %4100 = vmatpush.bf16.msra.mxu0 %v2696
        %4101 = vmatmul.bf16.gmra.mxu0 %v790
        %v4102 = vpop.f32.mrf.mxu0
        %v4103 = vadd.f32 %v4090, %v4102
        %v4104 = vpop.f32.mrf.mxu0
        %4105 = vdwg.mxu0
        %4106 = vmatpush.bf16.msra.mxu0 %v2756
        %4107 = vmatpush.bf16.msra.mxu0 %v2752
        %4108 = vmatpush.bf16.msra.mxu0 %v2748
        %4109 = vmatpush.bf16.msra.mxu0 %v2744
        %4110 = vmatpush.bf16.msra.mxu0 %v2740
        %4111 = vmatpush.bf16.msra.mxu0 %v2736
        %4112 = vmatpush.bf16.msra.mxu0 %v2732
        %4113 = vmatpush.bf16.msra.mxu0 %v2728
        %4114 = vmatmul.bf16.gmra.mxu0 %v791
        %v4115 = vpop.f32.mrf.mxu0
        %v4116 = vadd.f32 %v4103, %v4115
        %v4117 = vpop.f32.mrf.mxu0
        %4118 = vdwg.mxu0
        %4119 = vmatpush.bf16.msra.mxu0 %v2788
        %4120 = vmatpush.bf16.msra.mxu0 %v2784
        %4121 = vmatpush.bf16.msra.mxu0 %v2780
        %4122 = vmatpush.bf16.msra.mxu0 %v2776
        %4123 = vmatpush.bf16.msra.mxu0 %v2772
        %4124 = vmatpush.bf16.msra.mxu0 %v2768
        %4125 = vmatpush.bf16.msra.mxu0 %v2764
        %4126 = vmatpush.bf16.msra.mxu0 %v2760
        %4127 = vmatmul.bf16.gmra.mxu0 %v792
        %v4128 = vpop.f32.mrf.mxu0
        %v4129 = vadd.f32 %v4116, %v4128
        %v4130 = vpop.f32.mrf.mxu0
        %4131 = vdwg.mxu0
        %4132 = vmatpush.bf16.msra.mxu0 0
        %4133 = vmatpush.bf16.msra.mxu0 0
        %4134 = vmatpush.bf16.msra.mxu0 0
        %4135 = vmatpush.bf16.msra.mxu0 %v2808
        %4136 = vmatpush.bf16.msra.mxu0 %v2804
        %4137 = vmatpush.bf16.msra.mxu0 %v2800
        %4138 = vmatpush.bf16.msra.mxu0 %v2796
        %4139 = vmatpush.bf16.msra.mxu0 %v2792
        %4140 = vmatmul.bf16.gmra.mxu0 %v3311
        %v4141 = vpop.f32.mrf.mxu0
        %v4142 = vadd.f32 %v4129, %v4141
        %v4143 = vpop.f32.mrf.mxu0
        %4144 = vdwg.mxu0
        %v4145 = vmax.f32 %v3518, 0.0
        %v4146 = vmax.f32 %v3726, 0.0
        %v4147 = vmax.f32 %v3934, 0.0
        %v4148 = vmax.f32 %v4142, 0.0
        %v4149 = vpack.c.bf16 %v4146, %v4145
        %v4150 = vpack.c.bf16 %v4148, %v4147
        %4151 = vst [vmem:[%s233] sm:$0xff] %v4149
        %4152 = vst [vmem:[%s233 + $0x8] sm:$0xff] %v4150
        %s4153 = smul.u32 4, %s20
        %p4154 = scmp.lt.s32.totalorder %s4153, 31
        %s4155 = scalar_select %p4154, %s4153, 31
        %s4156 = smul.addr %s4155, 4
        %s4157 = scalar_lea.vmem %s3, %s4156
        // Predicated region
        $region41: #{forward.4} parent=31 // pred_check
          %p4158 = pneg %p111
        $region42: #{forward.4} parent=31 // pred_check_branch
          %4160 = sbr.rel (%p4158) target = $region44
        $region43: #{forward.4} parent=31 // pred_region
          %s4161 = smul.u32 4, %s20
        $region44: #{forward.4} parent=31 // pred_fallthru
          _
      $region32: #{forward.4} parent=5 // pred_fallthru
        _
      %p4162 = scmp.le.s32.totalorder 2, %s15
      // Predicated region
      $region45: #{forward.4} parent=5 // pred_check
        %p4163 = pneg %p4162
      $region46: #{forward.4} parent=5 // pred_check_branch
        %4165 = sbr.rel (%p4163) target = $region48
      $region47: #{forward.4} parent=5 // pred_region
        %s4166 = ssub.s32 %s15, 2
        // Predicated region
        $region49: #{forward.4} parent=47 // pred_check
          %p4167 = pneg %p117
        $region50: #{forward.4} parent=47 // pred_check_branch
          %4169 = sbr.rel (%p4167) target = $region52
        $region51: #{forward.4} parent=47 // pred_region
          %s4170 = smul.u32 4, %s21
          %p4171 = scmp.lt.s32.totalorder %s4170, 31
          %s4172 = scalar_select %p4171, %s4170, 31
          %s4173 = smul.addr %s4172, 4
          %s4174 = scalar_lea.vmem %s3, %s4173
        $region52: #{forward.4} parent=47 // pred_fallthru
          _
      $region48: #{forward.4} parent=5 // pred_fallthru
        _
    $region6: #{forward.4} parent=1 // loop_footer
      %s19 = sadd.s32 1, %s15
    $region7: #{forward.4} parent=1 // loop_footer_branch
      %14 = sbr.rel target = $region3
    $region8: #{forward.4} parent=1 // loop_exit
      _
    %4175 = vsyncpa [#allocation3], 1
    %s4176 = scalar_lea.sflag [#allocation3], 1
    %4177 = vsyncpa %s4176, 1
    %4178 = vsyncpa [#allocation5], 1
    %s4179 = scalar_lea.sflag [#allocation5], 1
    %4180 = vsyncpa %s4179, 1

// kernel: forward.5
$region0: #{forward.5}
  #allocation0 [shape = 'u32[]', space=smem, size = 0x4, offset = 0x4, fixed_abs, tag = 'smem constant byte address 0x4 - core index']
  #allocation1 [shape = 'u32[72,128]{1,0:T(1,128)}', space=vmem, size = 0x9000, scoped, tag = 'internal scratch']
  %s0 = inlined_call_operand.vmem [shape: bf16[8,4096], index: 0, kind: input, shape index: {}]
  %s1 = inlined_call_operand.hbm [shape: bf16[4096,2048], index: 1, kind: input, shape index: {}]
  %s2 = inlined_call_operand.hbm [shape: f32[1,2048], index: 2, kind: input, shape index: {}]
  %s3 = inlined_call_operand.vmem [shape: bf16[8,2048], index: 3, kind: output, shape index: {}]
  %s4 = sld [smem:[#allocation0]]
  $region53: #{forward.5} parent=0
    _
  %s6 = ssub.s32 1, %s4
  %s7 = scalar_select 0, %s6, %s4
  $region1: #{forward.5} parent=0
    #allocation2 [shape = 'u8[4194304]{0}', space=vmem, size = 0x400000, scoped, tag = 'input window, operand 1']
    #allocation3 [shape = 's32[2]{0}', space=sflag, size = 0x8, scoped, tag = 'scoped memory for forward.5']
    #allocation4 [shape = 'u8[2048]{0}', space=vmem, size = 0x800, scoped, tag = 'input window, operand 2']
    #allocation5 [shape = 's32[2]{0}', space=sflag, size = 0x8, scoped, tag = 'scoped memory for forward.5']
    %8 = vsyncpa [#allocation3], 0
    %s9 = scalar_lea.sflag [#allocation3], 1
    %10 = vsyncpa %s9, 0
    %11 = vsyncpa [#allocation5], 0
    %s12 = scalar_lea.sflag [#allocation5], 1
    %13 = vsyncpa %s12, 0
    loop: start=0, step=1, limit=10
    $region2: #{forward.5} parent=1 // loop_pre_header
      _
    $region3: #{forward.5} parent=1 // loop_header
      %s15 = sphi 0, %s19
      %p16 = scmp.ge.s32.totalorder %s15, 10
      %s23 = sphi 0, %s23
      %s25 = sphi 0, %s23
      %s26 = sphi 0, %s25
      %s40 = sphi 0, %s26
      %s46 = sphi 0, %s48
      %s49 = sphi 0, %s46
      %s50 = sphi 0, %s49
      %s66 = sphi 0, %s50
      %s72 = sphi 0, %s74
      %s75 = sphi 0, %s72
      %s76 = sphi 0, %s75
      %s92 = sphi 0, %s76
      %s98 = sphi 0, %s100
      %s101 = sphi 0, %s98
      %s102 = sphi 0, %s101
      %s118 = sphi 0, %s102
    $region4: #{forward.5} parent=1 // loop_header_branch
      %18 = sbr.rel (%p16) target = $region8
    $region5: #{forward.5} parent=1 // loop_body
      %s20 = ssub.s32 %s15, 1
      %s21 = ssub.s32 %s15, 2
      %s22 = sadd.s32 %s15, 1
      %s24 = sadd.s32 %s23, 1
      %p27 = scmp.eq.s32.totalorder %s15, 7
      %p28 = scmp.ne.s32.totalorder %s23, %s25
      %p29 = scmp.eq.s32.totalorder %s15, 0
      %p30 = por %p28, %p29
      %p31 = scmp.ne.s32.totalorder %s23, %s25
      %p32 = scmp.eq.s32.totalorder %s20, 7
      %p33 = por %p31, %p32
      %p34 = scmp.ne.s32.totalorder %s25, %s26
      %p35 = scmp.eq.s32.totalorder %s20, 0
      %p36 = por %p34, %p35
      %p37 = scmp.ne.s32.totalorder %s25, %s26
      %p38 = scmp.eq.s32.totalorder %s21, 7
      %p39 = por %p37, %p38
      %p41 = scmp.ne.s32.totalorder %s26, %s40
      %p42 = scmp.eq.s32.totalorder %s21, 0
      %p43 = por %p41, %p42
      %s44 = ssub.s32 %s15, %s22
      %p45 = scmp.eq.s32.totalorder %s44, 0
      %s47 = sadd.s32 %s46, 1
      %s48 = scalar_select %p45, %s46, %s47
      %p51 = pneg %p45
      %p52 = scmp.eq.s32.totalorder %s15, 7
      %p53 = por %p51, %p52
      %p54 = scmp.ne.s32.totalorder %s46, %s49
      %p55 = scmp.eq.s32.totalorder %s15, 0
      %p56 = por %p54, %p55
      %p57 = scmp.ne.s32.totalorder %s46, %s49
      %p58 = scmp.eq.s32.totalorder %s20, 7
      %p59 = por %p57, %p58
      %p60 = scmp.ne.s32.totalorder %s49, %s50
      %p61 = scmp.eq.s32.totalorder %s20, 0
      %p62 = por %p60, %p61
      %p63 = scmp.ne.s32.totalorder %s49, %s50
      %p64 = scmp.eq.s32.totalorder %s21, 7
      %p65 = por %p63, %p64
      %p67 = scmp.ne.s32.totalorder %s50, %s66
      %p68 = scmp.eq.s32.totalorder %s21, 0
      %p69 = por %p67, %p68
      %s70 = ssub.s32 %s15, %s22
      %p71 = scmp.eq.s32.totalorder %s70, 0
      %s73 = sadd.s32 %s72, 1
      %s74 = scalar_select %p71, %s72, %s73
      %p77 = pneg %p71
      %p78 = scmp.eq.s32.totalorder %s15, 7
      %p79 = por %p77, %p78
      %p80 = scmp.ne.s32.totalorder %s72, %s75
      %p81 = scmp.eq.s32.totalorder %s15, 0
      %p82 = por %p80, %p81
      %p83 = scmp.ne.s32.totalorder %s72, %s75
      %p84 = scmp.eq.s32.totalorder %s20, 7
      %p85 = por %p83, %p84
      %p86 = scmp.ne.s32.totalorder %s75, %s76
      %p87 = scmp.eq.s32.totalorder %s20, 0
      %p88 = por %p86, %p87
      %p89 = scmp.ne.s32.totalorder %s75, %s76
      %p90 = scmp.eq.s32.totalorder %s21, 7
      %p91 = por %p89, %p90
      %p93 = scmp.ne.s32.totalorder %s76, %s92
      %p94 = scmp.eq.s32.totalorder %s21, 0
      %p95 = por %p93, %p94
      %s96 = ssub.s32 %s15, %s22
      %p97 = scmp.eq.s32.totalorder %s96, 0
      %s99 = sadd.s32 %s98, 1
      %s100 = scalar_select %p97, %s98, %s99
      %p103 = pneg %p97
      %p104 = scmp.eq.s32.totalorder %s15, 7
      %p105 = por %p103, %p104
      %p106 = scmp.ne.s32.totalorder %s98, %s101
      %p107 = scmp.eq.s32.totalorder %s15, 0
      %p108 = por %p106, %p107
      %p109 = scmp.ne.s32.totalorder %s98, %s101
      %p110 = scmp.eq.s32.totalorder %s20, 7
      %p111 = por %p109, %p110
      %p112 = scmp.ne.s32.totalorder %s101, %s102
      %p113 = scmp.eq.s32.totalorder %s20, 0
      %p114 = por %p112, %p113
      %p115 = scmp.ne.s32.totalorder %s101, %s102
      %p116 = scmp.eq.s32.totalorder %s21, 7
      %p117 = por %p115, %p116
      %p119 = scmp.ne.s32.totalorder %s102, %s118
      %p120 = scmp.eq.s32.totalorder %s21, 0
      %p121 = por %p119, %p120
      %p122 = scmp.le.s32.totalorder 1, %s15
      %p123 = scmp.lt.s32.totalorder %s15, 9
      %p124 = pnand %p122, %p123
      %p125 = pneg %p124
      // Predicated region
      $region9: #{forward.5} parent=5 // pred_check
        _
      $region10: #{forward.5} parent=5 // pred_check_branch
        %127 = sbr.rel (%p124) target = $region12
      $region11: #{forward.5} parent=5 // pred_region
        %s128 = ssub.s32 %s15, 1
        // Predicated region
        $region13: #{forward.5} parent=11 // pred_check
          %p129 = pneg %p36
        $region14: #{forward.5} parent=11 // pred_check_branch
          %131 = sbr.rel (%p129) target = $region16
        $region15: #{forward.5} parent=11 // pred_region
          _
        $region16: #{forward.5} parent=11 // pred_fallthru
          _
      $region12: #{forward.5} parent=5 // pred_fallthru
        _
      %p132 = scmp.lt.s32.totalorder %s15, 8
      // Predicated region
      $region17: #{forward.5} parent=5 // pred_check
        %p133 = pneg %p132
      $region18: #{forward.5} parent=5 // pred_check_branch
        %135 = sbr.rel (%p133) target = $region20
      $region19: #{forward.5} parent=5 // pred_region
        // Predicated region
        $region21: #{forward.5} parent=19 // pred_check
          %p136 = pneg %p56
        $region22: #{forward.5} parent=19 // pred_check_branch
          %138 = sbr.rel (%p136) target = $region24
        $region23: #{forward.5} parent=19 // pred_region
          %s139 = sand.u32 %s46, 1
          %s140 = scalar_lea.sflag [#allocation3], %s139
          %s141 = sand.u32 %s46, 1
          %s142 = smul.addr %s141, 4096
          %s143 = scalar_lea.vmem [#allocation2], %s142
          %s144 = smul.u32 2, %s15
          %146 = vsyncadd %s140, 0
          %s147 = smul.addr %s144, 4
          %s148 = scalar_lea.hbm %s1, %s147
          %s149 = sshll.u32 %s148, 4
          %s150 = int_to_ptr.hbm [resolvable:$true] %s149
          %s151 = sshll.u32 %s143, 4
          %s152 = int_to_ptr.vmem [resolvable:$true] %s151
          %157 = dma.hbm_to_vmem [thread:$0]  %s150, 65536, %s152, %s140, 1024, 128, 8
        $region24: #{forward.5} parent=19 // pred_fallthru
          _
        // Predicated region
        $region25: #{forward.5} parent=19 // pred_check
          %p158 = pneg %p82
        $region26: #{forward.5} parent=19 // pred_check_branch
          %160 = sbr.rel (%p158) target = $region28
        $region27: #{forward.5} parent=19 // pred_region
          %s161 = sand.u32 %s72, 1
          %s162 = scalar_lea.sflag [#allocation5], %s161
          %s163 = sand.u32 %s72, 1
          %s164 = smul.addr %s163, 2
          %s165 = scalar_lea.vmem [#allocation4], %s164
          %s166 = smul.u32 2, %s15
          %168 = vsyncadd %s162, 0
          %s169 = scalar_lea.hbm %s2, %s166
          %s171 = sshll.u32 %s169, 4
          %s172 = int_to_ptr.hbm [resolvable:$true] %s171
          %s173 = sshll.u32 %s165, 4
          %s174 = int_to_ptr.vmem [resolvable:$true] %s173
          %176 = dma.hbm_to_vmem [thread:$0]  %s172, 32, %s174, %s162
        $region28: #{forward.5} parent=19 // pred_fallthru
          _
      $region20: #{forward.5} parent=5 // pred_fallthru
        _
      %p177 = scmp.le.s32.totalorder 1, %s15
      %p178 = scmp.lt.s32.totalorder %s15, 9
      %p179 = pnand %p177, %p178
      %p180 = pneg %p179
      // Predicated region
      $region29: #{forward.5} parent=5 // pred_check
        _
      $region30: #{forward.5} parent=5 // pred_check_branch
        %182 = sbr.rel (%p179) target = $region32
      $region31: #{forward.5} parent=5 // pred_region
        %s183 = ssub.s32 %s15, 1
        %s184 = sand.u32 %s49, 1
        %s185 = scalar_lea.sflag [#allocation3], %s184
        %s186 = sand.u32 %s49, 1
        %s187 = smul.addr %s186, 4096
        %s188 = scalar_lea.vmem [#allocation2], %s187
        // Predicated region
        $region33: #{forward.5} parent=31 // pred_check
          %p189 = pneg %p62
        $region34: #{forward.5} parent=31 // pred_check_branch
          %191 = sbr.rel (%p189) target = $region36
        $region35: #{forward.5} parent=31 // pred_region
          %193 = dma.done %s185, 65536
        $region36: #{forward.5} parent=31 // pred_fallthru
          _
        %s194 = sand.u32 %s75, 1
        %s195 = scalar_lea.sflag [#allocation5], %s194
        %s196 = sand.u32 %s75, 1
        %s197 = smul.addr %s196, 2
        %s198 = scalar_lea.vmem [#allocation4], %s197
        // Predicated region
        $region37: #{forward.5} parent=31 // pred_check
          %p199 = pneg %p88
        $region38: #{forward.5} parent=31 // pred_check_branch
          %201 = sbr.rel (%p199) target = $region40
        $region39: #{forward.5} parent=31 // pred_region
          %203 = dma.done %s195, 32
        $region40: #{forward.5} parent=31 // pred_fallthru
          _
        %p204 = pneg %p36
        %p205 = pneg %p33
        %s206 = sand.u32 %s49, 1
        %s207 = scalar_lea.sflag [#allocation3], %s206
        %s208 = sand.u32 %s49, 1
        %s209 = smul.addr %s208, 4096
        %s210 = scalar_lea.vmem [#allocation2], %s209
        %p211 = pneg %p62
        %p212 = pneg %p59
        %s213 = sand.u32 %s75, 1
        %s214 = scalar_lea.sflag [#allocation5], %s213
        %s215 = sand.u32 %s75, 1
        %s216 = smul.addr %s215, 2
        %s217 = scalar_lea.vmem [#allocation4], %s216
        %p218 = pneg %p88
        %p219 = pneg %p85
        %p220 = pneg %p114
        %p221 = pneg %p111
        %s222 = smul.u32 2, %s20
        %p223 = scmp.lt.s32.totalorder %s222, 15
        %s224 = scalar_select %p223, %s222, 15
        %s225 = smul.addr %s224, 4
        %s226 = scalar_lea.vmem %s3, %s225
        %s227 = smul.u32 2, %s20
        %s228 = smul.u32 2, %s20
        %s229 = smul.u32 2, %s20
        %p230 = scmp.lt.s32.totalorder %s229, 15
        %s231 = scalar_select %p230, %s229, 15
        %s232 = smul.addr %s231, 4
        %s233 = scalar_lea.vmem %s3, %s232
        %s234 = smul.u32 2, %s20
        %v235 = vld [vmem:[%s0] sm:$0xff]
        %v236 = vld [vmem:[%s0 + $0x8] sm:$0xff]
        %v237 = vld [vmem:[%s0 + $0x10] sm:$0xff]
        %v238 = vld [vmem:[%s0 + $0x18] sm:$0xff]
        %v239 = vld [vmem:[%s0 + $0x20] sm:$0xff]
        %v240 = vld [vmem:[%s0 + $0x28] sm:$0xff]
        %v241 = vld [vmem:[%s0 + $0x30] sm:$0xff]
        %v242 = vld [vmem:[%s0 + $0x38] sm:$0xff]
        %v243 = vld [vmem:[%s0 + $0x40] sm:$0xff]
        %v244 = vld [vmem:[%s0 + $0x48] sm:$0xff]
        %v245 = vld [vmem:[%s0 + $0x50] sm:$0xff]
        %v246 = vld [vmem:[%s0 + $0x58] sm:$0xff]
        %v247 = vld [vmem:[%s0 + $0x60] sm:$0xff]
        %v248 = vld [vmem:[%s0 + $0x68] sm:$0xff]
        %v249 = vld [vmem:[%s0 + $0x70] sm:$0xff]
        %v250 = vld [vmem:[%s0 + $0x78] sm:$0xff]
        %v251 = vld [vmem:[%s188] sm:$0xff]
        %v252 = vld [vmem:[%s188 + $0x8] sm:$0xff]
        %v253 = vld [vmem:[%s188 + $0x10] sm:$0xff]
        %v254 = vld [vmem:[%s188 + $0x18] sm:$0xff]
        %v255 = vld [vmem:[%s188 + $0x20] sm:$0xff]
        %v256 = vld [vmem:[%s188 + $0x28] sm:$0xff]
        %v257 = vld [vmem:[%s188 + $0x30] sm:$0xff]
        %v258 = vld [vmem:[%s188 + $0x38] sm:$0xff]
        %v259 = vld [vmem:[%s188 + $0x40] sm:$0xff]
        %v260 = vld [vmem:[%s188 + $0x48] sm:$0xff]
        %v261 = vld [vmem:[%s188 + $0x50] sm:$0xff]
        %v262 = vld [vmem:[%s188 + $0x58] sm:$0xff]
        %v263 = vld [vmem:[%s188 + $0x60] sm:$0xff]
        %v264 = vld [vmem:[%s188 + $0x68] sm:$0xff]
        %v265 = vld [vmem:[%s188 + $0x70] sm:$0xff]
        %v266 = vld [vmem:[%s188 + $0x78] sm:$0xff]
        %v267 = vld [vmem:[%s188 + $0x80] sm:$0xff]
        %v268 = vld [vmem:[%s188 + $0x88] sm:$0xff]
        %v269 = vld [vmem:[%s188 + $0x90] sm:$0xff]
        %v270 = vld [vmem:[%s188 + $0x98] sm:$0xff]
        %v271 = vld [vmem:[%s188 + $0xa0] sm:$0xff]
        %v272 = vld [vmem:[%s188 + $0xa8] sm:$0xff]
        %v273 = vld [vmem:[%s188 + $0xb0] sm:$0xff]
        %v274 = vld [vmem:[%s188 + $0xb8] sm:$0xff]
        %v275 = vld [vmem:[%s188 + $0xc0] sm:$0xff]
        %v276 = vld [vmem:[%s188 + $0xc8] sm:$0xff]
        %v277 = vld [vmem:[%s188 + $0xd0] sm:$0xff]
        %v278 = vld [vmem:[%s188 + $0xd8] sm:$0xff]
        %v279 = vld [vmem:[%s188 + $0xe0] sm:$0xff]
        %v280 = vld [vmem:[%s188 + $0xe8] sm:$0xff]
        %v281 = vld [vmem:[%s188 + $0xf0] sm:$0xff]
        %v282 = vld [vmem:[%s188 + $0xf8] sm:$0xff]
        %v283 = vld [vmem:[%s188 + $0x100] sm:$0xff]
        %v284 = vld [vmem:[%s188 + $0x108] sm:$0xff]
        %v285 = vld [vmem:[%s188 + $0x110] sm:$0xff]
        %v286 = vld [vmem:[%s188 + $0x118] sm:$0xff]
        %v287 = vld [vmem:[%s188 + $0x120] sm:$0xff]
        %v288 = vld [vmem:[%s188 + $0x128] sm:$0xff]
        %v289 = vld [vmem:[%s188 + $0x130] sm:$0xff]
        %v290 = vld [vmem:[%s188 + $0x138] sm:$0xff]
        %v291 = vld [vmem:[%s188 + $0x140] sm:$0xff]
        %v292 = vld [vmem:[%s188 + $0x148] sm:$0xff]
        %v293 = vld [vmem:[%s188 + $0x150] sm:$0xff]
        %v294 = vld [vmem:[%s188 + $0x158] sm:$0xff]
        %v295 = vld [vmem:[%s188 + $0x160] sm:$0xff]
        %v296 = vld [vmem:[%s188 + $0x168] sm:$0xff]
        %v297 = vld [vmem:[%s188 + $0x170] sm:$0xff]
        %v298 = vld [vmem:[%s188 + $0x178] sm:$0xff]
        %v299 = vld [vmem:[%s188 + $0x180] sm:$0xff]
        %v300 = vld [vmem:[%s188 + $0x188] sm:$0xff]
        %v301 = vld [vmem:[%s188 + $0x190] sm:$0xff]
        %v302 = vld [vmem:[%s188 + $0x198] sm:$0xff]
        %v303 = vld [vmem:[%s188 + $0x1a0] sm:$0xff]
        %v304 = vld [vmem:[%s188 + $0x1a8] sm:$0xff]
        %v305 = vld [vmem:[%s188 + $0x1b0] sm:$0xff]
        %v306 = vld [vmem:[%s188 + $0x1b8] sm:$0xff]
        %v307 = vld [vmem:[%s188 + $0x1c0] sm:$0xff]
        %v308 = vld [vmem:[%s188 + $0x1c8] sm:$0xff]
        %v309 = vld [vmem:[%s188 + $0x1d0] sm:$0xff]
        %v310 = vld [vmem:[%s188 + $0x1d8] sm:$0xff]
        %v311 = vld [vmem:[%s188 + $0x1e0] sm:$0xff]
        %v312 = vld [vmem:[%s188 + $0x1e8] sm:$0xff]
        %v313 = vld [vmem:[%s188 + $0x1f0] sm:$0xff]
        %v314 = vld [vmem:[%s188 + $0x1f8] sm:$0xff]
        %v315 = vld [vmem:[%s188 + $0x200] sm:$0xff]
        %v316 = vld [vmem:[%s188 + $0x208] sm:$0xff]
        %v317 = vld [vmem:[%s188 + $0x210] sm:$0xff]
        %v318 = vld [vmem:[%s188 + $0x218] sm:$0xff]
        %v319 = vld [vmem:[%s188 + $0x220] sm:$0xff]
        %v320 = vld [vmem:[%s188 + $0x228] sm:$0xff]
        %v321 = vld [vmem:[%s188 + $0x230] sm:$0xff]
        %v322 = vld [vmem:[%s188 + $0x238] sm:$0xff]
        %v323 = vld [vmem:[%s188 + $0x240] sm:$0xff]
        %v324 = vld [vmem:[%s188 + $0x248] sm:$0xff]
        %v325 = vld [vmem:[%s188 + $0x250] sm:$0xff]
        %v326 = vld [vmem:[%s188 + $0x258] sm:$0xff]
        %v327 = vld [vmem:[%s188 + $0x260] sm:$0xff]
        %v328 = vld [vmem:[%s188 + $0x268] sm:$0xff]
        %v329 = vld [vmem:[%s188 + $0x270] sm:$0xff]
        %v330 = vld [vmem:[%s188 + $0x278] sm:$0xff]
        %v331 = vld [vmem:[%s188 + $0x280] sm:$0xff]
        %v332 = vld [vmem:[%s188 + $0x288] sm:$0xff]
        %v333 = vld [vmem:[%s188 + $0x290] sm:$0xff]
        %v334 = vld [vmem:[%s188 + $0x298] sm:$0xff]
        %v335 = vld [vmem:[%s188 + $0x2a0] sm:$0xff]
        %v336 = vld [vmem:[%s188 + $0x2a8] sm:$0xff]
        %v337 = vld [vmem:[%s188 + $0x2b0] sm:$0xff]
        %v338 = vld [vmem:[%s188 + $0x2b8] sm:$0xff]
        %v339 = vld [vmem:[%s188 + $0x2c0] sm:$0xff]
        %v340 = vld [vmem:[%s188 + $0x2c8] sm:$0xff]
        %v341 = vld [vmem:[%s188 + $0x2d0] sm:$0xff]
        %v342 = vld [vmem:[%s188 + $0x2d8] sm:$0xff]
        %v343 = vld [vmem:[%s188 + $0x2e0] sm:$0xff]
        %v344 = vld [vmem:[%s188 + $0x2e8] sm:$0xff]
        %v345 = vld [vmem:[%s188 + $0x2f0] sm:$0xff]
        %v346 = vld [vmem:[%s188 + $0x2f8] sm:$0xff]
        %v347 = vld [vmem:[%s188 + $0x300] sm:$0xff]
        %v348 = vld [vmem:[%s188 + $0x308] sm:$0xff]
        %v349 = vld [vmem:[%s188 + $0x310] sm:$0xff]
        %v350 = vld [vmem:[%s188 + $0x318] sm:$0xff]
        %v351 = vld [vmem:[%s188 + $0x320] sm:$0xff]
        %v352 = vld [vmem:[%s188 + $0x328] sm:$0xff]
        %v353 = vld [vmem:[%s188 + $0x330] sm:$0xff]
        %v354 = vld [vmem:[%s188 + $0x338] sm:$0xff]
        %v355 = vld [vmem:[%s188 + $0x340] sm:$0xff]
        %v356 = vld [vmem:[%s188 + $0x348] sm:$0xff]
        %v357 = vld [vmem:[%s188 + $0x350] sm:$0xff]
        %v358 = vld [vmem:[%s188 + $0x358] sm:$0xff]
        %v359 = vld [vmem:[%s188 + $0x360] sm:$0xff]
        %v360 = vld [vmem:[%s188 + $0x368] sm:$0xff]
        %v361 = vld [vmem:[%s188 + $0x370] sm:$0xff]
        %v362 = vld [vmem:[%s188 + $0x378] sm:$0xff]
        %v363 = vld [vmem:[%s188 + $0x380] sm:$0xff]
        %v364 = vld [vmem:[%s188 + $0x388] sm:$0xff]
        %v365 = vld [vmem:[%s188 + $0x390] sm:$0xff]
        %v366 = vld [vmem:[%s188 + $0x398] sm:$0xff]
        %v367 = vld [vmem:[%s188 + $0x3a0] sm:$0xff]
        %v368 = vld [vmem:[%s188 + $0x3a8] sm:$0xff]
        %v369 = vld [vmem:[%s188 + $0x3b0] sm:$0xff]
        %v370 = vld [vmem:[%s188 + $0x3b8] sm:$0xff]
        %v371 = vld [vmem:[%s188 + $0x3c0] sm:$0xff]
        %v372 = vld [vmem:[%s188 + $0x3c8] sm:$0xff]
        %v373 = vld [vmem:[%s188 + $0x3d0] sm:$0xff]
        %v374 = vld [vmem:[%s188 + $0x3d8] sm:$0xff]
        %v375 = vld [vmem:[%s188 + $0x3e0] sm:$0xff]
        %v376 = vld [vmem:[%s188 + $0x3e8] sm:$0xff]
        %v377 = vld [vmem:[%s188 + $0x3f0] sm:$0xff]
        %v378 = vld [vmem:[%s188 + $0x3f8] sm:$0xff]
        %v379 = vld [vmem:[%s188 + $0x400] sm:$0xff]
        %v380 = vld [vmem:[%s188 + $0x408] sm:$0xff]
        %v381 = vld [vmem:[%s188 + $0x410] sm:$0xff]
        %v382 = vld [vmem:[%s188 + $0x418] sm:$0xff]
        %v383 = vld [vmem:[%s188 + $0x420] sm:$0xff]
        %v384 = vld [vmem:[%s188 + $0x428] sm:$0xff]
        %v385 = vld [vmem:[%s188 + $0x430] sm:$0xff]
        %v386 = vld [vmem:[%s188 + $0x438] sm:$0xff]
        %v387 = vld [vmem:[%s188 + $0x440] sm:$0xff]
        %v388 = vld [vmem:[%s188 + $0x448] sm:$0xff]
        %v389 = vld [vmem:[%s188 + $0x450] sm:$0xff]
        %v390 = vld [vmem:[%s188 + $0x458] sm:$0xff]
        %v391 = vld [vmem:[%s188 + $0x460] sm:$0xff]
        %v392 = vld [vmem:[%s188 + $0x468] sm:$0xff]
        %v393 = vld [vmem:[%s188 + $0x470] sm:$0xff]
        %v394 = vld [vmem:[%s188 + $0x478] sm:$0xff]
        %v395 = vld [vmem:[%s188 + $0x480] sm:$0xff]
        %v396 = vld [vmem:[%s188 + $0x488] sm:$0xff]
        %v397 = vld [vmem:[%s188 + $0x490] sm:$0xff]
        %v398 = vld [vmem:[%s188 + $0x498] sm:$0xff]
        %v399 = vld [vmem:[%s188 + $0x4a0] sm:$0xff]
        %v400 = vld [vmem:[%s188 + $0x4a8] sm:$0xff]
        %v401 = vld [vmem:[%s188 + $0x4b0] sm:$0xff]
        %v402 = vld [vmem:[%s188 + $0x4b8] sm:$0xff]
        %v403 = vld [vmem:[%s188 + $0x4c0] sm:$0xff]
        %v404 = vld [vmem:[%s188 + $0x4c8] sm:$0xff]
        %v405 = vld [vmem:[%s188 + $0x4d0] sm:$0xff]
        %v406 = vld [vmem:[%s188 + $0x4d8] sm:$0xff]
        %v407 = vld [vmem:[%s188 + $0x4e0] sm:$0xff]
        %v408 = vld [vmem:[%s188 + $0x4e8] sm:$0xff]
        %v409 = vld [vmem:[%s188 + $0x4f0] sm:$0xff]
        %v410 = vld [vmem:[%s188 + $0x4f8] sm:$0xff]
        %v411 = vld [vmem:[%s188 + $0x500] sm:$0xff]
        %v412 = vld [vmem:[%s188 + $0x508] sm:$0xff]
        %v413 = vld [vmem:[%s188 + $0x510] sm:$0xff]
        %v414 = vld [vmem:[%s188 + $0x518] sm:$0xff]
        %v415 = vld [vmem:[%s188 + $0x520] sm:$0xff]
        %v416 = vld [vmem:[%s188 + $0x528] sm:$0xff]
        %v417 = vld [vmem:[%s188 + $0x530] sm:$0xff]
        %v418 = vld [vmem:[%s188 + $0x538] sm:$0xff]
        %v419 = vld [vmem:[%s188 + $0x540] sm:$0xff]
        %v420 = vld [vmem:[%s188 + $0x548] sm:$0xff]
        %v421 = vld [vmem:[%s188 + $0x550] sm:$0xff]
        %v422 = vld [vmem:[%s188 + $0x558] sm:$0xff]
        %v423 = vld [vmem:[%s188 + $0x560] sm:$0xff]
        %v424 = vld [vmem:[%s188 + $0x568] sm:$0xff]
        %v425 = vld [vmem:[%s188 + $0x570] sm:$0xff]
        %v426 = vld [vmem:[%s188 + $0x578] sm:$0xff]
        %v427 = vld [vmem:[%s188 + $0x580] sm:$0xff]
        %v428 = vld [vmem:[%s188 + $0x588] sm:$0xff]
        %v429 = vld [vmem:[%s188 + $0x590] sm:$0xff]
        %v430 = vld [vmem:[%s188 + $0x598] sm:$0xff]
        %v431 = vld [vmem:[%s188 + $0x5a0] sm:$0xff]
        %v432 = vld [vmem:[%s188 + $0x5a8] sm:$0xff]
        %v433 = vld [vmem:[%s188 + $0x5b0] sm:$0xff]
        %v434 = vld [vmem:[%s188 + $0x5b8] sm:$0xff]
        %v435 = vld [vmem:[%s188 + $0x5c0] sm:$0xff]
        %v436 = vld [vmem:[%s188 + $0x5c8] sm:$0xff]
        %v437 = vld [vmem:[%s188 + $0x5d0] sm:$0xff]
        %v438 = vld [vmem:[%s188 + $0x5d8] sm:$0xff]
        %v439 = vld [vmem:[%s188 + $0x5e0] sm:$0xff]
        %v440 = vld [vmem:[%s188 + $0x5e8] sm:$0xff]
        %v441 = vld [vmem:[%s188 + $0x5f0] sm:$0xff]
        %v442 = vld [vmem:[%s188 + $0x5f8] sm:$0xff]
        %v443 = vld [vmem:[%s188 + $0x600] sm:$0xff]
        %v444 = vld [vmem:[%s188 + $0x608] sm:$0xff]
        %v445 = vld [vmem:[%s188 + $0x610] sm:$0xff]
        %v446 = vld [vmem:[%s188 + $0x618] sm:$0xff]
        %v447 = vld [vmem:[%s188 + $0x620] sm:$0xff]
        %v448 = vld [vmem:[%s188 + $0x628] sm:$0xff]
        %v449 = vld [vmem:[%s188 + $0x630] sm:$0xff]
        %v450 = vld [vmem:[%s188 + $0x638] sm:$0xff]
        %v451 = vld [vmem:[%s188 + $0x640] sm:$0xff]
        %v452 = vld [vmem:[%s188 + $0x648] sm:$0xff]
        %v453 = vld [vmem:[%s188 + $0x650] sm:$0xff]
        %v454 = vld [vmem:[%s188 + $0x658] sm:$0xff]
        %v455 = vld [vmem:[%s188 + $0x660] sm:$0xff]
        %v456 = vld [vmem:[%s188 + $0x668] sm:$0xff]
        %v457 = vld [vmem:[%s188 + $0x670] sm:$0xff]
        %v458 = vld [vmem:[%s188 + $0x678] sm:$0xff]
        %v459 = vld [vmem:[%s188 + $0x680] sm:$0xff]
        %v460 = vld [vmem:[%s188 + $0x688] sm:$0xff]
        %v461 = vld [vmem:[%s188 + $0x690] sm:$0xff]
        %v462 = vld [vmem:[%s188 + $0x698] sm:$0xff]
        %v463 = vld [vmem:[%s188 + $0x6a0] sm:$0xff]
        %v464 = vld [vmem:[%s188 + $0x6a8] sm:$0xff]
        %v465 = vld [vmem:[%s188 + $0x6b0] sm:$0xff]
        %v466 = vld [vmem:[%s188 + $0x6b8] sm:$0xff]
        %v467 = vld [vmem:[%s188 + $0x6c0] sm:$0xff]
        %v468 = vld [vmem:[%s188 + $0x6c8] sm:$0xff]
        %v469 = vld [vmem:[%s188 + $0x6d0] sm:$0xff]
        %v470 = vld [vmem:[%s188 + $0x6d8] sm:$0xff]
        %v471 = vld [vmem:[%s188 + $0x6e0] sm:$0xff]
        %v472 = vld [vmem:[%s188 + $0x6e8] sm:$0xff]
        %v473 = vld [vmem:[%s188 + $0x6f0] sm:$0xff]
        %v474 = vld [vmem:[%s188 + $0x6f8] sm:$0xff]
        %v475 = vld [vmem:[%s188 + $0x700] sm:$0xff]
        %v476 = vld [vmem:[%s188 + $0x708] sm:$0xff]
        %v477 = vld [vmem:[%s188 + $0x710] sm:$0xff]
        %v478 = vld [vmem:[%s188 + $0x718] sm:$0xff]
        %v479 = vld [vmem:[%s188 + $0x720] sm:$0xff]
        %v480 = vld [vmem:[%s188 + $0x728] sm:$0xff]
        %v481 = vld [vmem:[%s188 + $0x730] sm:$0xff]
        %v482 = vld [vmem:[%s188 + $0x738] sm:$0xff]
        %v483 = vld [vmem:[%s188 + $0x740] sm:$0xff]
        %v484 = vld [vmem:[%s188 + $0x748] sm:$0xff]
        %v485 = vld [vmem:[%s188 + $0x750] sm:$0xff]
        %v486 = vld [vmem:[%s188 + $0x758] sm:$0xff]
        %v487 = vld [vmem:[%s188 + $0x760] sm:$0xff]
        %v488 = vld [vmem:[%s188 + $0x768] sm:$0xff]
        %v489 = vld [vmem:[%s188 + $0x770] sm:$0xff]
        %v490 = vld [vmem:[%s188 + $0x778] sm:$0xff]
        %v491 = vld [vmem:[%s188 + $0x780] sm:$0xff]
        %v492 = vld [vmem:[%s188 + $0x788] sm:$0xff]
        %v493 = vld [vmem:[%s188 + $0x790] sm:$0xff]
        %v494 = vld [vmem:[%s188 + $0x798] sm:$0xff]
        %v495 = vld [vmem:[%s188 + $0x7a0] sm:$0xff]
        %v496 = vld [vmem:[%s188 + $0x7a8] sm:$0xff]
        %v497 = vld [vmem:[%s188 + $0x7b0] sm:$0xff]
        %v498 = vld [vmem:[%s188 + $0x7b8] sm:$0xff]
        %v499 = vld [vmem:[%s188 + $0x7c0] sm:$0xff]
        %v500 = vld [vmem:[%s188 + $0x7c8] sm:$0xff]
        %v501 = vld [vmem:[%s188 + $0x7d0] sm:$0xff]
        %v502 = vld [vmem:[%s188 + $0x7d8] sm:$0xff]
        %v503 = vld [vmem:[%s188 + $0x7e0] sm:$0xff]
        %v504 = vld [vmem:[%s188 + $0x7e8] sm:$0xff]
        %v505 = vld [vmem:[%s188 + $0x7f0] sm:$0xff]
        %v506 = vld [vmem:[%s188 + $0x7f8] sm:$0xff]
        %v507 = vld [vmem:[%s188 + $0x800] sm:$0xff]
        %v508 = vld [vmem:[%s188 + $0x808] sm:$0xff]
        %v509 = vld [vmem:[%s188 + $0x810] sm:$0xff]
        %v510 = vld [vmem:[%s188 + $0x818] sm:$0xff]
        %v511 = vld [vmem:[%s188 + $0x820] sm:$0xff]
        %v512 = vld [vmem:[%s188 + $0x828] sm:$0xff]
        %v513 = vld [vmem:[%s188 + $0x830] sm:$0xff]
        %v514 = vld [vmem:[%s188 + $0x838] sm:$0xff]
        %v515 = vld [vmem:[%s188 + $0x840] sm:$0xff]
        %v516 = vld [vmem:[%s188 + $0x848] sm:$0xff]
        %v517 = vld [vmem:[%s188 + $0x850] sm:$0xff]
        %v518 = vld [vmem:[%s188 + $0x858] sm:$0xff]
        %v519 = vld [vmem:[%s188 + $0x860] sm:$0xff]
        %v520 = vld [vmem:[%s188 + $0x868] sm:$0xff]
        %v521 = vld [vmem:[%s188 + $0x870] sm:$0xff]
        %v522 = vld [vmem:[%s188 + $0x878] sm:$0xff]
        %v523 = vld [vmem:[%s188 + $0x880] sm:$0xff]
        %v524 = vld [vmem:[%s188 + $0x888] sm:$0xff]
        %v525 = vld [vmem:[%s188 + $0x890] sm:$0xff]
        %v526 = vld [vmem:[%s188 + $0x898] sm:$0xff]
        %v527 = vld [vmem:[%s188 + $0x8a0] sm:$0xff]
        %v528 = vld [vmem:[%s188 + $0x8a8] sm:$0xff]
        %v529 = vld [vmem:[%s188 + $0x8b0] sm:$0xff]
        %v530 = vld [vmem:[%s188 + $0x8b8] sm:$0xff]
        %v531 = vld [vmem:[%s188 + $0x8c0] sm:$0xff]
        %v532 = vld [vmem:[%s188 + $0x8c8] sm:$0xff]
        %v533 = vld [vmem:[%s188 + $0x8d0] sm:$0xff]
        %v534 = vld [vmem:[%s188 + $0x8d8] sm:$0xff]
        %v535 = vld [vmem:[%s188 + $0x8e0] sm:$0xff]
        %v536 = vld [vmem:[%s188 + $0x8e8] sm:$0xff]
        %v537 = vld [vmem:[%s188 + $0x8f0] sm:$0xff]
        %v538 = vld [vmem:[%s188 + $0x8f8] sm:$0xff]
        %v539 = vld [vmem:[%s188 + $0x900] sm:$0xff]
        %v540 = vld [vmem:[%s188 + $0x908] sm:$0xff]
        %v541 = vld [vmem:[%s188 + $0x910] sm:$0xff]
        %v542 = vld [vmem:[%s188 + $0x918] sm:$0xff]
        %v543 = vld [vmem:[%s188 + $0x920] sm:$0xff]
        %v544 = vld [vmem:[%s188 + $0x928] sm:$0xff]
        %v545 = vld [vmem:[%s188 + $0x930] sm:$0xff]
        %v546 = vld [vmem:[%s188 + $0x938] sm:$0xff]
        %v547 = vld [vmem:[%s188 + $0x940] sm:$0xff]
        %v548 = vld [vmem:[%s188 + $0x948] sm:$0xff]
        %v549 = vld [vmem:[%s188 + $0x950] sm:$0xff]
        %v550 = vld [vmem:[%s188 + $0x958] sm:$0xff]
        %v551 = vld [vmem:[%s188 + $0x960] sm:$0xff]
        %v552 = vld [vmem:[%s188 + $0x968] sm:$0xff]
        %v553 = vld [vmem:[%s188 + $0x970] sm:$0xff]
        %v554 = vld [vmem:[%s188 + $0x978] sm:$0xff]
        %v555 = vld [vmem:[%s188 + $0x980] sm:$0xff]
        %v556 = vld [vmem:[%s188 + $0x988] sm:$0xff]
        %v557 = vld [vmem:[%s188 + $0x990] sm:$0xff]
        %v558 = vld [vmem:[%s188 + $0x998] sm:$0xff]
        %v559 = vld [vmem:[%s188 + $0x9a0] sm:$0xff]
        %v560 = vld [vmem:[%s188 + $0x9a8] sm:$0xff]
        %v561 = vld [vmem:[%s188 + $0x9b0] sm:$0xff]
        %v562 = vld [vmem:[%s188 + $0x9b8] sm:$0xff]
        %v563 = vld [vmem:[%s188 + $0x9c0] sm:$0xff]
        %v564 = vld [vmem:[%s188 + $0x9c8] sm:$0xff]
        %v565 = vld [vmem:[%s188 + $0x9d0] sm:$0xff]
        %v566 = vld [vmem:[%s188 + $0x9d8] sm:$0xff]
        %v567 = vld [vmem:[%s188 + $0x9e0] sm:$0xff]
        %v568 = vld [vmem:[%s188 + $0x9e8] sm:$0xff]
        %v569 = vld [vmem:[%s188 + $0x9f0] sm:$0xff]
        %v570 = vld [vmem:[%s188 + $0x9f8] sm:$0xff]
        %v571 = vld [vmem:[%s188 + $0xa00] sm:$0xff]
        %v572 = vld [vmem:[%s188 + $0xa08] sm:$0xff]
        %v573 = vld [vmem:[%s188 + $0xa10] sm:$0xff]
        %v574 = vld [vmem:[%s188 + $0xa18] sm:$0xff]
        %v575 = vld [vmem:[%s188 + $0xa20] sm:$0xff]
        %v576 = vld [vmem:[%s188 + $0xa28] sm:$0xff]
        %v577 = vld [vmem:[%s188 + $0xa30] sm:$0xff]
        %v578 = vld [vmem:[%s188 + $0xa38] sm:$0xff]
        %v579 = vld [vmem:[%s188 + $0xa40] sm:$0xff]
        %v580 = vld [vmem:[%s188 + $0xa48] sm:$0xff]
        %v581 = vld [vmem:[%s188 + $0xa50] sm:$0xff]
        %v582 = vld [vmem:[%s188 + $0xa58] sm:$0xff]
        %v583 = vld [vmem:[%s188 + $0xa60] sm:$0xff]
        %v584 = vld [vmem:[%s188 + $0xa68] sm:$0xff]
        %v585 = vld [vmem:[%s188 + $0xa70] sm:$0xff]
        %v586 = vld [vmem:[%s188 + $0xa78] sm:$0xff]
        %v587 = vld [vmem:[%s188 + $0xa80] sm:$0xff]
        %v588 = vld [vmem:[%s188 + $0xa88] sm:$0xff]
        %v589 = vld [vmem:[%s188 + $0xa90] sm:$0xff]
        %v590 = vld [vmem:[%s188 + $0xa98] sm:$0xff]
        %v591 = vld [vmem:[%s188 + $0xaa0] sm:$0xff]
        %v592 = vld [vmem:[%s188 + $0xaa8] sm:$0xff]
        %v593 = vld [vmem:[%s188 + $0xab0] sm:$0xff]
        %v594 = vld [vmem:[%s188 + $0xab8] sm:$0xff]
        %v595 = vld [vmem:[%s188 + $0xac0] sm:$0xff]
        %v596 = vld [vmem:[%s188 + $0xac8] sm:$0xff]
        %v597 = vld [vmem:[%s188 + $0xad0] sm:$0xff]
        %v598 = vld [vmem:[%s188 + $0xad8] sm:$0xff]
        %v599 = vld [vmem:[%s188 + $0xae0] sm:$0xff]
        %v600 = vld [vmem:[%s188 + $0xae8] sm:$0xff]
        %v601 = vld [vmem:[%s188 + $0xaf0] sm:$0xff]
        %v602 = vld [vmem:[%s188 + $0xaf8] sm:$0xff]
        %v603 = vld [vmem:[%s188 + $0xb00] sm:$0xff]
        %v604 = vld [vmem:[%s188 + $0xb08] sm:$0xff]
        %v605 = vld [vmem:[%s188 + $0xb10] sm:$0xff]
        %v606 = vld [vmem:[%s188 + $0xb18] sm:$0xff]
        %v607 = vld [vmem:[%s188 + $0xb20] sm:$0xff]
        %v608 = vld [vmem:[%s188 + $0xb28] sm:$0xff]
        %v609 = vld [vmem:[%s188 + $0xb30] sm:$0xff]
        %v610 = vld [vmem:[%s188 + $0xb38] sm:$0xff]
        %v611 = vld [vmem:[%s188 + $0xb40] sm:$0xff]
        %v612 = vld [vmem:[%s188 + $0xb48] sm:$0xff]
        %v613 = vld [vmem:[%s188 + $0xb50] sm:$0xff]
        %v614 = vld [vmem:[%s188 + $0xb58] sm:$0xff]
        %v615 = vld [vmem:[%s188 + $0xb60] sm:$0xff]
        %v616 = vld [vmem:[%s188 + $0xb68] sm:$0xff]
        %v617 = vld [vmem:[%s188 + $0xb70] sm:$0xff]
        %v618 = vld [vmem:[%s188 + $0xb78] sm:$0xff]
        %v619 = vld [vmem:[%s188 + $0xb80] sm:$0xff]
        %v620 = vld [vmem:[%s188 + $0xb88] sm:$0xff]
        %v621 = vld [vmem:[%s188 + $0xb90] sm:$0xff]
        %v622 = vld [vmem:[%s188 + $0xb98] sm:$0xff]
        %v623 = vld [vmem:[%s188 + $0xba0] sm:$0xff]
        %v624 = vld [vmem:[%s188 + $0xba8] sm:$0xff]
        %v625 = vld [vmem:[%s188 + $0xbb0] sm:$0xff]
        %v626 = vld [vmem:[%s188 + $0xbb8] sm:$0xff]
        %v627 = vld [vmem:[%s188 + $0xbc0] sm:$0xff]
        %v628 = vld [vmem:[%s188 + $0xbc8] sm:$0xff]
        %v629 = vld [vmem:[%s188 + $0xbd0] sm:$0xff]
        %v630 = vld [vmem:[%s188 + $0xbd8] sm:$0xff]
        %v631 = vld [vmem:[%s188 + $0xbe0] sm:$0xff]
        %v632 = vld [vmem:[%s188 + $0xbe8] sm:$0xff]
        %v633 = vld [vmem:[%s188 + $0xbf0] sm:$0xff]
        %v634 = vld [vmem:[%s188 + $0xbf8] sm:$0xff]
        %v635 = vld [vmem:[%s188 + $0xc00] sm:$0xff]
        %v636 = vld [vmem:[%s188 + $0xc08] sm:$0xff]
        %v637 = vld [vmem:[%s188 + $0xc10] sm:$0xff]
        %v638 = vld [vmem:[%s188 + $0xc18] sm:$0xff]
        %v639 = vld [vmem:[%s188 + $0xc20] sm:$0xff]
        %v640 = vld [vmem:[%s188 + $0xc28] sm:$0xff]
        %v641 = vld [vmem:[%s188 + $0xc30] sm:$0xff]
        %v642 = vld [vmem:[%s188 + $0xc38] sm:$0xff]
        %v643 = vld [vmem:[%s188 + $0xc40] sm:$0xff]
        %v644 = vld [vmem:[%s188 + $0xc48] sm:$0xff]
        %v645 = vld [vmem:[%s188 + $0xc50] sm:$0xff]
        %v646 = vld [vmem:[%s188 + $0xc58] sm:$0xff]
        %v647 = vld [vmem:[%s188 + $0xc60] sm:$0xff]
        %v648 = vld [vmem:[%s188 + $0xc68] sm:$0xff]
        %v649 = vld [vmem:[%s188 + $0xc70] sm:$0xff]
        %v650 = vld [vmem:[%s188 + $0xc78] sm:$0xff]
        %v651 = vld [vmem:[%s188 + $0xc80] sm:$0xff]
        %v652 = vld [vmem:[%s188 + $0xc88] sm:$0xff]
        %v653 = vld [vmem:[%s188 + $0xc90] sm:$0xff]
        %v654 = vld [vmem:[%s188 + $0xc98] sm:$0xff]
        %v655 = vld [vmem:[%s188 + $0xca0] sm:$0xff]
        %v656 = vld [vmem:[%s188 + $0xca8] sm:$0xff]
        %v657 = vld [vmem:[%s188 + $0xcb0] sm:$0xff]
        %v658 = vld [vmem:[%s188 + $0xcb8] sm:$0xff]
        %v659 = vld [vmem:[%s188 + $0xcc0] sm:$0xff]
        %v660 = vld [vmem:[%s188 + $0xcc8] sm:$0xff]
        %v661 = vld [vmem:[%s188 + $0xcd0] sm:$0xff]
        %v662 = vld [vmem:[%s188 + $0xcd8] sm:$0xff]
        %v663 = vld [vmem:[%s188 + $0xce0] sm:$0xff]
        %v664 = vld [vmem:[%s188 + $0xce8] sm:$0xff]
        %v665 = vld [vmem:[%s188 + $0xcf0] sm:$0xff]
        %v666 = vld [vmem:[%s188 + $0xcf8] sm:$0xff]
        %v667 = vld [vmem:[%s188 + $0xd00] sm:$0xff]
        %v668 = vld [vmem:[%s188 + $0xd08] sm:$0xff]
        %v669 = vld [vmem:[%s188 + $0xd10] sm:$0xff]
        %v670 = vld [vmem:[%s188 + $0xd18] sm:$0xff]
        %v671 = vld [vmem:[%s188 + $0xd20] sm:$0xff]
        %v672 = vld [vmem:[%s188 + $0xd28] sm:$0xff]
        %v673 = vld [vmem:[%s188 + $0xd30] sm:$0xff]
        %v674 = vld [vmem:[%s188 + $0xd38] sm:$0xff]
        %v675 = vld [vmem:[%s188 + $0xd40] sm:$0xff]
        %v676 = vld [vmem:[%s188 + $0xd48] sm:$0xff]
        %v677 = vld [vmem:[%s188 + $0xd50] sm:$0xff]
        %v678 = vld [vmem:[%s188 + $0xd58] sm:$0xff]
        %v679 = vld [vmem:[%s188 + $0xd60] sm:$0xff]
        %v680 = vld [vmem:[%s188 + $0xd68] sm:$0xff]
        %v681 = vld [vmem:[%s188 + $0xd70] sm:$0xff]
        %v682 = vld [vmem:[%s188 + $0xd78] sm:$0xff]
        %v683 = vld [vmem:[%s188 + $0xd80] sm:$0xff]
        %v684 = vld [vmem:[%s188 + $0xd88] sm:$0xff]
        %v685 = vld [vmem:[%s188 + $0xd90] sm:$0xff]
        %v686 = vld [vmem:[%s188 + $0xd98] sm:$0xff]
        %v687 = vld [vmem:[%s188 + $0xda0] sm:$0xff]
        %v688 = vld [vmem:[%s188 + $0xda8] sm:$0xff]
        %v689 = vld [vmem:[%s188 + $0xdb0] sm:$0xff]
        %v690 = vld [vmem:[%s188 + $0xdb8] sm:$0xff]
        %v691 = vld [vmem:[%s188 + $0xdc0] sm:$0xff]
        %v692 = vld [vmem:[%s188 + $0xdc8] sm:$0xff]
        %v693 = vld [vmem:[%s188 + $0xdd0] sm:$0xff]
        %v694 = vld [vmem:[%s188 + $0xdd8] sm:$0xff]
        %v695 = vld [vmem:[%s188 + $0xde0] sm:$0xff]
        %v696 = vld [vmem:[%s188 + $0xde8] sm:$0xff]
        %v697 = vld [vmem:[%s188 + $0xdf0] sm:$0xff]
        %v698 = vld [vmem:[%s188 + $0xdf8] sm:$0xff]
        %v699 = vld [vmem:[%s188 + $0xe00] sm:$0xff]
        %v700 = vld [vmem:[%s188 + $0xe08] sm:$0xff]
        %v701 = vld [vmem:[%s188 + $0xe10] sm:$0xff]
        %v702 = vld [vmem:[%s188 + $0xe18] sm:$0xff]
        %v703 = vld [vmem:[%s188 + $0xe20] sm:$0xff]
        %v704 = vld [vmem:[%s188 + $0xe28] sm:$0xff]
        %v705 = vld [vmem:[%s188 + $0xe30] sm:$0xff]
        %v706 = vld [vmem:[%s188 + $0xe38] sm:$0xff]
        %v707 = vld [vmem:[%s188 + $0xe40] sm:$0xff]
        %v708 = vld [vmem:[%s188 + $0xe48] sm:$0xff]
        %v709 = vld [vmem:[%s188 + $0xe50] sm:$0xff]
        %v710 = vld [vmem:[%s188 + $0xe58] sm:$0xff]
        %v711 = vld [vmem:[%s188 + $0xe60] sm:$0xff]
        %v712 = vld [vmem:[%s188 + $0xe68] sm:$0xff]
        %v713 = vld [vmem:[%s188 + $0xe70] sm:$0xff]
        %v714 = vld [vmem:[%s188 + $0xe78] sm:$0xff]
        %v715 = vld [vmem:[%s188 + $0xe80] sm:$0xff]
        %v716 = vld [vmem:[%s188 + $0xe88] sm:$0xff]
        %v717 = vld [vmem:[%s188 + $0xe90] sm:$0xff]
        %v718 = vld [vmem:[%s188 + $0xe98] sm:$0xff]
        %v719 = vld [vmem:[%s188 + $0xea0] sm:$0xff]
        %v720 = vld [vmem:[%s188 + $0xea8] sm:$0xff]
        %v721 = vld [vmem:[%s188 + $0xeb0] sm:$0xff]
        %v722 = vld [vmem:[%s188 + $0xeb8] sm:$0xff]
        %v723 = vld [vmem:[%s188 + $0xec0] sm:$0xff]
        %v724 = vld [vmem:[%s188 + $0xec8] sm:$0xff]
        %v725 = vld [vmem:[%s188 + $0xed0] sm:$0xff]
        %v726 = vld [vmem:[%s188 + $0xed8] sm:$0xff]
        %v727 = vld [vmem:[%s188 + $0xee0] sm:$0xff]
        %v728 = vld [vmem:[%s188 + $0xee8] sm:$0xff]
        %v729 = vld [vmem:[%s188 + $0xef0] sm:$0xff]
        %v730 = vld [vmem:[%s188 + $0xef8] sm:$0xff]
        %v731 = vld [vmem:[%s188 + $0xf00] sm:$0xff]
        %v732 = vld [vmem:[%s188 + $0xf08] sm:$0xff]
        %v733 = vld [vmem:[%s188 + $0xf10] sm:$0xff]
        %v734 = vld [vmem:[%s188 + $0xf18] sm:$0xff]
        %v735 = vld [vmem:[%s188 + $0xf20] sm:$0xff]
        %v736 = vld [vmem:[%s188 + $0xf28] sm:$0xff]
        %v737 = vld [vmem:[%s188 + $0xf30] sm:$0xff]
        %v738 = vld [vmem:[%s188 + $0xf38] sm:$0xff]
        %v739 = vld [vmem:[%s188 + $0xf40] sm:$0xff]
        %v740 = vld [vmem:[%s188 + $0xf48] sm:$0xff]
        %v741 = vld [vmem:[%s188 + $0xf50] sm:$0xff]
        %v742 = vld [vmem:[%s188 + $0xf58] sm:$0xff]
        %v743 = vld [vmem:[%s188 + $0xf60] sm:$0xff]
        %v744 = vld [vmem:[%s188 + $0xf68] sm:$0xff]
        %v745 = vld [vmem:[%s188 + $0xf70] sm:$0xff]
        %v746 = vld [vmem:[%s188 + $0xf78] sm:$0xff]
        %v747 = vld [vmem:[%s188 + $0xf80] sm:$0xff]
        %v748 = vld [vmem:[%s188 + $0xf88] sm:$0xff]
        %v749 = vld [vmem:[%s188 + $0xf90] sm:$0xff]
        %v750 = vld [vmem:[%s188 + $0xf98] sm:$0xff]
        %v751 = vld [vmem:[%s188 + $0xfa0] sm:$0xff]
        %v752 = vld [vmem:[%s188 + $0xfa8] sm:$0xff]
        %v753 = vld [vmem:[%s188 + $0xfb0] sm:$0xff]
        %v754 = vld [vmem:[%s188 + $0xfb8] sm:$0xff]
        %v755 = vld [vmem:[%s188 + $0xfc0] sm:$0xff]
        %v756 = vld [vmem:[%s188 + $0xfc8] sm:$0xff]
        %v757 = vld [vmem:[%s188 + $0xfd0] sm:$0xff]
        %v758 = vld [vmem:[%s188 + $0xfd8] sm:$0xff]
        %v759 = vld [vmem:[%s188 + $0xfe0] sm:$0xff]
        %v760 = vld [vmem:[%s188 + $0xfe8] sm:$0xff]
        %v761 = vld [vmem:[%s188 + $0xff0] sm:$0xff]
        %v762 = vld [vmem:[%s188 + $0xff8] sm:$0xff]
        %v763 = vld [vmem:[%s198] sm:$0x3]
        %v765 = vperm.slane %v763, 0
        %v766 = vperm.slane %v763, 1
        %v785 = vunpack.c.l.b16 %v235
        %v786 = vunpack.c.h.b16 %v235
        %v787 = vunpack.c.l.b16 %v236
        %v788 = vunpack.c.h.b16 %v236
        %v789 = vunpack.c.l.b16 %v237
        %v790 = vunpack.c.h.b16 %v237
        %v791 = vunpack.c.l.b16 %v238
        %v792 = vunpack.c.h.b16 %v238
        %v793 = vunpack.c.l.b16 %v239
        %v794 = vunpack.c.h.b16 %v239
        %v795 = vunpack.c.l.b16 %v240
        %v796 = vunpack.c.h.b16 %v240
        %v797 = vunpack.c.l.b16 %v241
        %v798 = vunpack.c.h.b16 %v241
        %v799 = vunpack.c.l.b16 %v242
        %v800 = vunpack.c.h.b16 %v242
        %v801 = vunpack.c.l.b16 %v243
        %v802 = vunpack.c.h.b16 %v243
        %v803 = vunpack.c.l.b16 %v244
        %v804 = vunpack.c.h.b16 %v244
        %v805 = vunpack.c.l.b16 %v245
        %v806 = vunpack.c.h.b16 %v245
        %v807 = vunpack.c.l.b16 %v246
        %v808 = vunpack.c.h.b16 %v246
        %v809 = vunpack.c.l.b16 %v247
        %v810 = vunpack.c.h.b16 %v247
        %v811 = vunpack.c.l.b16 %v248
        %v812 = vunpack.c.h.b16 %v248
        %v813 = vunpack.c.l.b16 %v249
        %v814 = vunpack.c.h.b16 %v249
        %v815 = vunpack.c.l.b16 %v250
        %v816 = vunpack.c.h.b16 %v250
        %v817 = vpack.c.b16 %v785, %v785
        %v818 = vpack.c.b16 %v786, %v786
        %v819 = vpack.c.b16 %v787, %v787
        %v820 = vpack.c.b16 %v788, %v788
        %v821 = vpack.c.b16 %v789, %v789
        %v822 = vpack.c.b16 %v790, %v790
        %v823 = vpack.c.b16 %v791, %v791
        %v824 = vpack.c.b16 %v792, %v792
        %v825 = vpack.c.b16 %v793, %v793
        %v826 = vpack.c.b16 %v794, %v794
        %v827 = vpack.c.b16 %v795, %v795
        %v828 = vpack.c.b16 %v796, %v796
        %v829 = vpack.c.b16 %v797, %v797
        %v830 = vpack.c.b16 %v798, %v798
        %v831 = vpack.c.b16 %v799, %v799
        %v832 = vpack.c.b16 %v800, %v800
        %v833 = vpack.c.b16 %v801, %v801
        %v834 = vpack.c.b16 %v802, %v802
        %v835 = vpack.c.b16 %v803, %v803
        %v836 = vpack.c.b16 %v804, %v804
        %v837 = vpack.c.b16 %v805, %v805
        %v838 = vpack.c.b16 %v806, %v806
        %v839 = vpack.c.b16 %v807, %v807
        %v840 = vpack.c.b16 %v808, %v808
        %v841 = vpack.c.b16 %v809, %v809
        %v842 = vpack.c.b16 %v810, %v810
        %v843 = vpack.c.b16 %v811, %v811
        %v844 = vpack.c.b16 %v812, %v812
        %v845 = vpack.c.b16 %v813, %v813
        %v846 = vpack.c.b16 %v814, %v814
        %v847 = vpack.c.b16 %v815, %v815
        %v848 = vpack.c.b16 %v816, %v816
        %v1393 = vunpack.c.l.b16 %v251
        %v1394 = vunpack.c.h.b16 %v251
        %v1395 = vunpack.c.l.b16 %v252
        %v1396 = vunpack.c.h.b16 %v252
        %v1397 = vunpack.c.l.b16 %v253
        %v1398 = vunpack.c.h.b16 %v253
        %v1399 = vunpack.c.l.b16 %v254
        %v1400 = vunpack.c.h.b16 %v254
        %v1401 = vunpack.c.l.b16 %v255
        %v1402 = vunpack.c.h.b16 %v255
        %v1403 = vunpack.c.l.b16 %v256
        %v1404 = vunpack.c.h.b16 %v256
        %v1405 = vunpack.c.l.b16 %v257
        %v1406 = vunpack.c.h.b16 %v257
        %v1407 = vunpack.c.l.b16 %v258
        %v1408 = vunpack.c.h.b16 %v258
        %v1409 = vunpack.c.l.b16 %v259
        %v1410 = vunpack.c.h.b16 %v259
        %v1411 = vunpack.c.l.b16 %v260
        %v1412 = vunpack.c.h.b16 %v260
        %v1413 = vunpack.c.l.b16 %v261
        %v1414 = vunpack.c.h.b16 %v261
        %v1415 = vunpack.c.l.b16 %v262
        %v1416 = vunpack.c.h.b16 %v262
        %v1417 = vunpack.c.l.b16 %v263
        %v1418 = vunpack.c.h.b16 %v263
        %v1419 = vunpack.c.l.b16 %v264
        %v1420 = vunpack.c.h.b16 %v264
        %v1421 = vunpack.c.l.b16 %v265
        %v1422 = vunpack.c.h.b16 %v265
        %v1423 = vunpack.c.l.b16 %v266
        %v1424 = vunpack.c.h.b16 %v266
        %v1425 = vunpack.c.l.b16 %v267
        %v1426 = vunpack.c.h.b16 %v267
        %v1427 = vunpack.c.l.b16 %v268
        %v1428 = vunpack.c.h.b16 %v268
        %v1429 = vunpack.c.l.b16 %v269
        %v1430 = vunpack.c.h.b16 %v269
        %v1431 = vunpack.c.l.b16 %v270
        %v1432 = vunpack.c.h.b16 %v270
        %v1433 = vunpack.c.l.b16 %v271
        %v1434 = vunpack.c.h.b16 %v271
        %v1435 = vunpack.c.l.b16 %v272
        %v1436 = vunpack.c.h.b16 %v272
        %v1437 = vunpack.c.l.b16 %v273
        %v1438 = vunpack.c.h.b16 %v273
        %v1439 = vunpack.c.l.b16 %v274
        %v1440 = vunpack.c.h.b16 %v274
        %v1441 = vunpack.c.l.b16 %v275
        %v1442 = vunpack.c.h.b16 %v275
        %v1443 = vunpack.c.l.b16 %v276
        %v1444 = vunpack.c.h.b16 %v276
        %v1445 = vunpack.c.l.b16 %v277
        %v1446 = vunpack.c.h.b16 %v277
        %v1447 = vunpack.c.l.b16 %v278
        %v1448 = vunpack.c.h.b16 %v278
        %v1449 = vunpack.c.l.b16 %v279
        %v1450 = vunpack.c.h.b16 %v279
        %v1451 = vunpack.c.l.b16 %v280
        %v1452 = vunpack.c.h.b16 %v280
        %v1453 = vunpack.c.l.b16 %v281
        %v1454 = vunpack.c.h.b16 %v281
        %v1455 = vunpack.c.l.b16 %v282
        %v1456 = vunpack.c.h.b16 %v282
        %v1457 = vunpack.c.l.b16 %v283
        %v1458 = vunpack.c.h.b16 %v283
        %v1459 = vunpack.c.l.b16 %v284
        %v1460 = vunpack.c.h.b16 %v284
        %v1461 = vunpack.c.l.b16 %v285
        %v1462 = vunpack.c.h.b16 %v285
        %v1463 = vunpack.c.l.b16 %v286
        %v1464 = vunpack.c.h.b16 %v286
        %v1465 = vunpack.c.l.b16 %v287
        %v1466 = vunpack.c.h.b16 %v287
        %v1467 = vunpack.c.l.b16 %v288
        %v1468 = vunpack.c.h.b16 %v288
        %v1469 = vunpack.c.l.b16 %v289
        %v1470 = vunpack.c.h.b16 %v289
        %v1471 = vunpack.c.l.b16 %v290
        %v1472 = vunpack.c.h.b16 %v290
        %v1473 = vunpack.c.l.b16 %v291
        %v1474 = vunpack.c.h.b16 %v291
        %v1475 = vunpack.c.l.b16 %v292
        %v1476 = vunpack.c.h.b16 %v292
        %v1477 = vunpack.c.l.b16 %v293
        %v1478 = vunpack.c.h.b16 %v293
        %v1479 = vunpack.c.l.b16 %v294
        %v1480 = vunpack.c.h.b16 %v294
        %v1481 = vunpack.c.l.b16 %v295
        %v1482 = vunpack.c.h.b16 %v295
        %v1483 = vunpack.c.l.b16 %v296
        %v1484 = vunpack.c.h.b16 %v296
        %v1485 = vunpack.c.l.b16 %v297
        %v1486 = vunpack.c.h.b16 %v297
        %v1487 = vunpack.c.l.b16 %v298
        %v1488 = vunpack.c.h.b16 %v298
        %v1489 = vunpack.c.l.b16 %v299
        %v1490 = vunpack.c.h.b16 %v299
        %v1491 = vunpack.c.l.b16 %v300
        %v1492 = vunpack.c.h.b16 %v300
        %v1493 = vunpack.c.l.b16 %v301
        %v1494 = vunpack.c.h.b16 %v301
        %v1495 = vunpack.c.l.b16 %v302
        %v1496 = vunpack.c.h.b16 %v302
        %v1497 = vunpack.c.l.b16 %v303
        %v1498 = vunpack.c.h.b16 %v303
        %v1499 = vunpack.c.l.b16 %v304
        %v1500 = vunpack.c.h.b16 %v304
        %v1501 = vunpack.c.l.b16 %v305
        %v1502 = vunpack.c.h.b16 %v305
        %v1503 = vunpack.c.l.b16 %v306
        %v1504 = vunpack.c.h.b16 %v306
        %v1505 = vunpack.c.l.b16 %v307
        %v1506 = vunpack.c.h.b16 %v307
        %v1507 = vunpack.c.l.b16 %v308
        %v1508 = vunpack.c.h.b16 %v308
        %v1509 = vunpack.c.l.b16 %v309
        %v1510 = vunpack.c.h.b16 %v309
        %v1511 = vunpack.c.l.b16 %v310
        %v1512 = vunpack.c.h.b16 %v310
        %v1513 = vunpack.c.l.b16 %v311
        %v1514 = vunpack.c.h.b16 %v311
        %v1515 = vunpack.c.l.b16 %v312
        %v1516 = vunpack.c.h.b16 %v312
        %v1517 = vunpack.c.l.b16 %v313
        %v1518 = vunpack.c.h.b16 %v313
        %v1519 = vunpack.c.l.b16 %v314
        %v1520 = vunpack.c.h.b16 %v314
        %v1521 = vunpack.c.l.b16 %v315
        %v1522 = vunpack.c.h.b16 %v315
        %v1523 = vunpack.c.l.b16 %v316
        %v1524 = vunpack.c.h.b16 %v316
        %v1525 = vunpack.c.l.b16 %v317
        %v1526 = vunpack.c.h.b16 %v317
        %v1527 = vunpack.c.l.b16 %v318
        %v1528 = vunpack.c.h.b16 %v318
        %v1529 = vunpack.c.l.b16 %v319
        %v1530 = vunpack.c.h.b16 %v319
        %v1531 = vunpack.c.l.b16 %v320
        %v1532 = vunpack.c.h.b16 %v320
        %v1533 = vunpack.c.l.b16 %v321
        %v1534 = vunpack.c.h.b16 %v321
        %v1535 = vunpack.c.l.b16 %v322
        %v1536 = vunpack.c.h.b16 %v322
        %v1537 = vunpack.c.l.b16 %v323
        %v1538 = vunpack.c.h.b16 %v323
        %v1539 = vunpack.c.l.b16 %v324
        %v1540 = vunpack.c.h.b16 %v324
        %v1541 = vunpack.c.l.b16 %v325
        %v1542 = vunpack.c.h.b16 %v325
        %v1543 = vunpack.c.l.b16 %v326
        %v1544 = vunpack.c.h.b16 %v326
        %v1545 = vunpack.c.l.b16 %v327
        %v1546 = vunpack.c.h.b16 %v327
        %v1547 = vunpack.c.l.b16 %v328
        %v1548 = vunpack.c.h.b16 %v328
        %v1549 = vunpack.c.l.b16 %v329
        %v1550 = vunpack.c.h.b16 %v329
        %v1551 = vunpack.c.l.b16 %v330
        %v1552 = vunpack.c.h.b16 %v330
        %v1553 = vunpack.c.l.b16 %v331
        %v1554 = vunpack.c.h.b16 %v331
        %v1555 = vunpack.c.l.b16 %v332
        %v1556 = vunpack.c.h.b16 %v332
        %v1557 = vunpack.c.l.b16 %v333
        %v1558 = vunpack.c.h.b16 %v333
        %v1559 = vunpack.c.l.b16 %v334
        %v1560 = vunpack.c.h.b16 %v334
        %v1561 = vunpack.c.l.b16 %v335
        %v1562 = vunpack.c.h.b16 %v335
        %v1563 = vunpack.c.l.b16 %v336
        %v1564 = vunpack.c.h.b16 %v336
        %v1565 = vunpack.c.l.b16 %v337
        %v1566 = vunpack.c.h.b16 %v337
        %v1567 = vunpack.c.l.b16 %v338
        %v1568 = vunpack.c.h.b16 %v338
        %v1569 = vunpack.c.l.b16 %v339
        %v1570 = vunpack.c.h.b16 %v339
        %v1571 = vunpack.c.l.b16 %v340
        %v1572 = vunpack.c.h.b16 %v340
        %v1573 = vunpack.c.l.b16 %v341
        %v1574 = vunpack.c.h.b16 %v341
        %v1575 = vunpack.c.l.b16 %v342
        %v1576 = vunpack.c.h.b16 %v342
        %v1577 = vunpack.c.l.b16 %v343
        %v1578 = vunpack.c.h.b16 %v343
        %v1579 = vunpack.c.l.b16 %v344
        %v1580 = vunpack.c.h.b16 %v344
        %v1581 = vunpack.c.l.b16 %v345
        %v1582 = vunpack.c.h.b16 %v345
        %v1583 = vunpack.c.l.b16 %v346
        %v1584 = vunpack.c.h.b16 %v346
        %v1585 = vunpack.c.l.b16 %v347
        %v1586 = vunpack.c.h.b16 %v347
        %v1587 = vunpack.c.l.b16 %v348
        %v1588 = vunpack.c.h.b16 %v348
        %v1589 = vunpack.c.l.b16 %v349
        %v1590 = vunpack.c.h.b16 %v349
        %v1591 = vunpack.c.l.b16 %v350
        %v1592 = vunpack.c.h.b16 %v350
        %v1593 = vunpack.c.l.b16 %v351
        %v1594 = vunpack.c.h.b16 %v351
        %v1595 = vunpack.c.l.b16 %v352
        %v1596 = vunpack.c.h.b16 %v352
        %v1597 = vunpack.c.l.b16 %v353
        %v1598 = vunpack.c.h.b16 %v353
        %v1599 = vunpack.c.l.b16 %v354
        %v1600 = vunpack.c.h.b16 %v354
        %v1601 = vunpack.c.l.b16 %v355
        %v1602 = vunpack.c.h.b16 %v355
        %v1603 = vunpack.c.l.b16 %v356
        %v1604 = vunpack.c.h.b16 %v356
        %v1605 = vunpack.c.l.b16 %v357
        %v1606 = vunpack.c.h.b16 %v357
        %v1607 = vunpack.c.l.b16 %v358
        %v1608 = vunpack.c.h.b16 %v358
        %v1609 = vunpack.c.l.b16 %v359
        %v1610 = vunpack.c.h.b16 %v359
        %v1611 = vunpack.c.l.b16 %v360
        %v1612 = vunpack.c.h.b16 %v360
        %v1613 = vunpack.c.l.b16 %v361
        %v1614 = vunpack.c.h.b16 %v361
        %v1615 = vunpack.c.l.b16 %v362
        %v1616 = vunpack.c.h.b16 %v362
        %v1617 = vunpack.c.l.b16 %v363
        %v1618 = vunpack.c.h.b16 %v363
        %v1619 = vunpack.c.l.b16 %v364
        %v1620 = vunpack.c.h.b16 %v364
        %v1621 = vunpack.c.l.b16 %v365
        %v1622 = vunpack.c.h.b16 %v365
        %v1623 = vunpack.c.l.b16 %v366
        %v1624 = vunpack.c.h.b16 %v366
        %v1625 = vunpack.c.l.b16 %v367
        %v1626 = vunpack.c.h.b16 %v367
        %v1627 = vunpack.c.l.b16 %v368
        %v1628 = vunpack.c.h.b16 %v368
        %v1629 = vunpack.c.l.b16 %v369
        %v1630 = vunpack.c.h.b16 %v369
        %v1631 = vunpack.c.l.b16 %v370
        %v1632 = vunpack.c.h.b16 %v370
        %v1633 = vunpack.c.l.b16 %v371
        %v1634 = vunpack.c.h.b16 %v371
        %v1635 = vunpack.c.l.b16 %v372
        %v1636 = vunpack.c.h.b16 %v372
        %v1637 = vunpack.c.l.b16 %v373
        %v1638 = vunpack.c.h.b16 %v373
        %v1639 = vunpack.c.l.b16 %v374
        %v1640 = vunpack.c.h.b16 %v374
        %v1641 = vunpack.c.l.b16 %v375
        %v1642 = vunpack.c.h.b16 %v375
        %v1643 = vunpack.c.l.b16 %v376
        %v1644 = vunpack.c.h.b16 %v376
        %v1645 = vunpack.c.l.b16 %v377
        %v1646 = vunpack.c.h.b16 %v377
        %v1647 = vunpack.c.l.b16 %v378
        %v1648 = vunpack.c.h.b16 %v378
        %v1649 = vunpack.c.l.b16 %v379
        %v1650 = vunpack.c.h.b16 %v379
        %v1651 = vunpack.c.l.b16 %v380
        %v1652 = vunpack.c.h.b16 %v380
        %v1653 = vunpack.c.l.b16 %v381
        %v1654 = vunpack.c.h.b16 %v381
        %v1655 = vunpack.c.l.b16 %v382
        %v1656 = vunpack.c.h.b16 %v382
        %v1657 = vunpack.c.l.b16 %v383
        %v1658 = vunpack.c.h.b16 %v383
        %v1659 = vunpack.c.l.b16 %v384
        %v1660 = vunpack.c.h.b16 %v384
        %v1661 = vunpack.c.l.b16 %v385
        %v1662 = vunpack.c.h.b16 %v385
        %v1663 = vunpack.c.l.b16 %v386
        %v1664 = vunpack.c.h.b16 %v386
        %v1665 = vunpack.c.l.b16 %v387
        %v1666 = vunpack.c.h.b16 %v387
        %v1667 = vunpack.c.l.b16 %v388
        %v1668 = vunpack.c.h.b16 %v388
        %v1669 = vunpack.c.l.b16 %v389
        %v1670 = vunpack.c.h.b16 %v389
        %v1671 = vunpack.c.l.b16 %v390
        %v1672 = vunpack.c.h.b16 %v390
        %v1673 = vunpack.c.l.b16 %v391
        %v1674 = vunpack.c.h.b16 %v391
        %v1675 = vunpack.c.l.b16 %v392
        %v1676 = vunpack.c.h.b16 %v392
        %v1677 = vunpack.c.l.b16 %v393
        %v1678 = vunpack.c.h.b16 %v393
        %v1679 = vunpack.c.l.b16 %v394
        %v1680 = vunpack.c.h.b16 %v394
        %v1681 = vunpack.c.l.b16 %v395
        %v1682 = vunpack.c.h.b16 %v395
        %v1683 = vunpack.c.l.b16 %v396
        %v1684 = vunpack.c.h.b16 %v396
        %v1685 = vunpack.c.l.b16 %v397
        %v1686 = vunpack.c.h.b16 %v397
        %v1687 = vunpack.c.l.b16 %v398
        %v1688 = vunpack.c.h.b16 %v398
        %v1689 = vunpack.c.l.b16 %v399
        %v1690 = vunpack.c.h.b16 %v399
        %v1691 = vunpack.c.l.b16 %v400
        %v1692 = vunpack.c.h.b16 %v400
        %v1693 = vunpack.c.l.b16 %v401
        %v1694 = vunpack.c.h.b16 %v401
        %v1695 = vunpack.c.l.b16 %v402
        %v1696 = vunpack.c.h.b16 %v402
        %v1697 = vunpack.c.l.b16 %v403
        %v1698 = vunpack.c.h.b16 %v403
        %v1699 = vunpack.c.l.b16 %v404
        %v1700 = vunpack.c.h.b16 %v404
        %v1701 = vunpack.c.l.b16 %v405
        %v1702 = vunpack.c.h.b16 %v405
        %v1703 = vunpack.c.l.b16 %v406
        %v1704 = vunpack.c.h.b16 %v406
        %v1705 = vunpack.c.l.b16 %v407
        %v1706 = vunpack.c.h.b16 %v407
        %v1707 = vunpack.c.l.b16 %v408
        %v1708 = vunpack.c.h.b16 %v408
        %v1709 = vunpack.c.l.b16 %v409
        %v1710 = vunpack.c.h.b16 %v409
        %v1711 = vunpack.c.l.b16 %v410
        %v1712 = vunpack.c.h.b16 %v410
        %v1713 = vunpack.c.l.b16 %v411
        %v1714 = vunpack.c.h.b16 %v411
        %v1715 = vunpack.c.l.b16 %v412
        %v1716 = vunpack.c.h.b16 %v412
        %v1717 = vunpack.c.l.b16 %v413
        %v1718 = vunpack.c.h.b16 %v413
        %v1719 = vunpack.c.l.b16 %v414
        %v1720 = vunpack.c.h.b16 %v414
        %v1721 = vunpack.c.l.b16 %v415
        %v1722 = vunpack.c.h.b16 %v415
        %v1723 = vunpack.c.l.b16 %v416
        %v1724 = vunpack.c.h.b16 %v416
        %v1725 = vunpack.c.l.b16 %v417
        %v1726 = vunpack.c.h.b16 %v417
        %v1727 = vunpack.c.l.b16 %v418
        %v1728 = vunpack.c.h.b16 %v418
        %v1729 = vunpack.c.l.b16 %v419
        %v1730 = vunpack.c.h.b16 %v419
        %v1731 = vunpack.c.l.b16 %v420
        %v1732 = vunpack.c.h.b16 %v420
        %v1733 = vunpack.c.l.b16 %v421
        %v1734 = vunpack.c.h.b16 %v421
        %v1735 = vunpack.c.l.b16 %v422
        %v1736 = vunpack.c.h.b16 %v422
        %v1737 = vunpack.c.l.b16 %v423
        %v1738 = vunpack.c.h.b16 %v423
        %v1739 = vunpack.c.l.b16 %v424
        %v1740 = vunpack.c.h.b16 %v424
        %v1741 = vunpack.c.l.b16 %v425
        %v1742 = vunpack.c.h.b16 %v425
        %v1743 = vunpack.c.l.b16 %v426
        %v1744 = vunpack.c.h.b16 %v426
        %v1745 = vunpack.c.l.b16 %v427
        %v1746 = vunpack.c.h.b16 %v427
        %v1747 = vunpack.c.l.b16 %v428
        %v1748 = vunpack.c.h.b16 %v428
        %v1749 = vunpack.c.l.b16 %v429
        %v1750 = vunpack.c.h.b16 %v429
        %v1751 = vunpack.c.l.b16 %v430
        %v1752 = vunpack.c.h.b16 %v430
        %v1753 = vunpack.c.l.b16 %v431
        %v1754 = vunpack.c.h.b16 %v431
        %v1755 = vunpack.c.l.b16 %v432
        %v1756 = vunpack.c.h.b16 %v432
        %v1757 = vunpack.c.l.b16 %v433
        %v1758 = vunpack.c.h.b16 %v433
        %v1759 = vunpack.c.l.b16 %v434
        %v1760 = vunpack.c.h.b16 %v434
        %v1761 = vunpack.c.l.b16 %v435
        %v1762 = vunpack.c.h.b16 %v435
        %v1763 = vunpack.c.l.b16 %v436
        %v1764 = vunpack.c.h.b16 %v436
        %v1765 = vunpack.c.l.b16 %v437
        %v1766 = vunpack.c.h.b16 %v437
        %v1767 = vunpack.c.l.b16 %v438
        %v1768 = vunpack.c.h.b16 %v438
        %v1769 = vunpack.c.l.b16 %v439
        %v1770 = vunpack.c.h.b16 %v439
        %v1771 = vunpack.c.l.b16 %v440
        %v1772 = vunpack.c.h.b16 %v440
        %v1773 = vunpack.c.l.b16 %v441
        %v1774 = vunpack.c.h.b16 %v441
        %v1775 = vunpack.c.l.b16 %v442
        %v1776 = vunpack.c.h.b16 %v442
        %v1777 = vunpack.c.l.b16 %v443
        %v1778 = vunpack.c.h.b16 %v443
        %v1779 = vunpack.c.l.b16 %v444
        %v1780 = vunpack.c.h.b16 %v444
        %v1781 = vunpack.c.l.b16 %v445
        %v1782 = vunpack.c.h.b16 %v445
        %v1783 = vunpack.c.l.b16 %v446
        %v1784 = vunpack.c.h.b16 %v446
        %v1785 = vunpack.c.l.b16 %v447
        %v1786 = vunpack.c.h.b16 %v447
        %v1787 = vunpack.c.l.b16 %v448
        %v1788 = vunpack.c.h.b16 %v448
        %v1789 = vunpack.c.l.b16 %v449
        %v1790 = vunpack.c.h.b16 %v449
        %v1791 = vunpack.c.l.b16 %v450
        %v1792 = vunpack.c.h.b16 %v450
        %v1793 = vunpack.c.l.b16 %v451
        %v1794 = vunpack.c.h.b16 %v451
        %v1795 = vunpack.c.l.b16 %v452
        %v1796 = vunpack.c.h.b16 %v452
        %v1797 = vunpack.c.l.b16 %v453
        %v1798 = vunpack.c.h.b16 %v453
        %v1799 = vunpack.c.l.b16 %v454
        %v1800 = vunpack.c.h.b16 %v454
        %v1801 = vunpack.c.l.b16 %v455
        %v1802 = vunpack.c.h.b16 %v455
        %v1803 = vunpack.c.l.b16 %v456
        %v1804 = vunpack.c.h.b16 %v456
        %v1805 = vunpack.c.l.b16 %v457
        %v1806 = vunpack.c.h.b16 %v457
        %v1807 = vunpack.c.l.b16 %v458
        %v1808 = vunpack.c.h.b16 %v458
        %v1809 = vunpack.c.l.b16 %v459
        %v1810 = vunpack.c.h.b16 %v459
        %v1811 = vunpack.c.l.b16 %v460
        %v1812 = vunpack.c.h.b16 %v460
        %v1813 = vunpack.c.l.b16 %v461
        %v1814 = vunpack.c.h.b16 %v461
        %v1815 = vunpack.c.l.b16 %v462
        %v1816 = vunpack.c.h.b16 %v462
        %v1817 = vunpack.c.l.b16 %v463
        %v1818 = vunpack.c.h.b16 %v463
        %v1819 = vunpack.c.l.b16 %v464
        %v1820 = vunpack.c.h.b16 %v464
        %v1821 = vunpack.c.l.b16 %v465
        %v1822 = vunpack.c.h.b16 %v465
        %v1823 = vunpack.c.l.b16 %v466
        %v1824 = vunpack.c.h.b16 %v466
        %v1825 = vunpack.c.l.b16 %v467
        %v1826 = vunpack.c.h.b16 %v467
        %v1827 = vunpack.c.l.b16 %v468
        %v1828 = vunpack.c.h.b16 %v468
        %v1829 = vunpack.c.l.b16 %v469
        %v1830 = vunpack.c.h.b16 %v469
        %v1831 = vunpack.c.l.b16 %v470
        %v1832 = vunpack.c.h.b16 %v470
        %v1833 = vunpack.c.l.b16 %v471
        %v1834 = vunpack.c.h.b16 %v471
        %v1835 = vunpack.c.l.b16 %v472
        %v1836 = vunpack.c.h.b16 %v472
        %v1837 = vunpack.c.l.b16 %v473
        %v1838 = vunpack.c.h.b16 %v473
        %v1839 = vunpack.c.l.b16 %v474
        %v1840 = vunpack.c.h.b16 %v474
        %v1841 = vunpack.c.l.b16 %v475
        %v1842 = vunpack.c.h.b16 %v475
        %v1843 = vunpack.c.l.b16 %v476
        %v1844 = vunpack.c.h.b16 %v476
        %v1845 = vunpack.c.l.b16 %v477
        %v1846 = vunpack.c.h.b16 %v477
        %v1847 = vunpack.c.l.b16 %v478
        %v1848 = vunpack.c.h.b16 %v478
        %v1849 = vunpack.c.l.b16 %v479
        %v1850 = vunpack.c.h.b16 %v479
        %v1851 = vunpack.c.l.b16 %v480
        %v1852 = vunpack.c.h.b16 %v480
        %v1853 = vunpack.c.l.b16 %v481
        %v1854 = vunpack.c.h.b16 %v481
        %v1855 = vunpack.c.l.b16 %v482
        %v1856 = vunpack.c.h.b16 %v482
        %v1857 = vunpack.c.l.b16 %v483
        %v1858 = vunpack.c.h.b16 %v483
        %v1859 = vunpack.c.l.b16 %v484
        %v1860 = vunpack.c.h.b16 %v484
        %v1861 = vunpack.c.l.b16 %v485
        %v1862 = vunpack.c.h.b16 %v485
        %v1863 = vunpack.c.l.b16 %v486
        %v1864 = vunpack.c.h.b16 %v486
        %v1865 = vunpack.c.l.b16 %v487
        %v1866 = vunpack.c.h.b16 %v487
        %v1867 = vunpack.c.l.b16 %v488
        %v1868 = vunpack.c.h.b16 %v488
        %v1869 = vunpack.c.l.b16 %v489
        %v1870 = vunpack.c.h.b16 %v489
        %v1871 = vunpack.c.l.b16 %v490
        %v1872 = vunpack.c.h.b16 %v490
        %v1873 = vunpack.c.l.b16 %v491
        %v1874 = vunpack.c.h.b16 %v491
        %v1875 = vunpack.c.l.b16 %v492
        %v1876 = vunpack.c.h.b16 %v492
        %v1877 = vunpack.c.l.b16 %v493
        %v1878 = vunpack.c.h.b16 %v493
        %v1879 = vunpack.c.l.b16 %v494
        %v1880 = vunpack.c.h.b16 %v494
        %v1881 = vunpack.c.l.b16 %v495
        %v1882 = vunpack.c.h.b16 %v495
        %v1883 = vunpack.c.l.b16 %v496
        %v1884 = vunpack.c.h.b16 %v496
        %v1885 = vunpack.c.l.b16 %v497
        %v1886 = vunpack.c.h.b16 %v497
        %v1887 = vunpack.c.l.b16 %v498
        %v1888 = vunpack.c.h.b16 %v498
        %v1889 = vunpack.c.l.b16 %v499
        %v1890 = vunpack.c.h.b16 %v499
        %v1891 = vunpack.c.l.b16 %v500
        %v1892 = vunpack.c.h.b16 %v500
        %v1893 = vunpack.c.l.b16 %v501
        %v1894 = vunpack.c.h.b16 %v501
        %v1895 = vunpack.c.l.b16 %v502
        %v1896 = vunpack.c.h.b16 %v502
        %v1897 = vunpack.c.l.b16 %v503
        %v1898 = vunpack.c.h.b16 %v503
        %v1899 = vunpack.c.l.b16 %v504
        %v1900 = vunpack.c.h.b16 %v504
        %v1901 = vunpack.c.l.b16 %v505
        %v1902 = vunpack.c.h.b16 %v505
        %v1903 = vunpack.c.l.b16 %v506
        %v1904 = vunpack.c.h.b16 %v506
        %v1905 = vunpack.c.l.b16 %v507
        %v1906 = vunpack.c.h.b16 %v507
        %v1907 = vunpack.c.l.b16 %v508
        %v1908 = vunpack.c.h.b16 %v508
        %v1909 = vunpack.c.l.b16 %v509
        %v1910 = vunpack.c.h.b16 %v509
        %v1911 = vunpack.c.l.b16 %v510
        %v1912 = vunpack.c.h.b16 %v510
        %v1913 = vunpack.c.l.b16 %v511
        %v1914 = vunpack.c.h.b16 %v511
        %v1915 = vunpack.c.l.b16 %v512
        %v1916 = vunpack.c.h.b16 %v512
        %v1917 = vunpack.c.l.b16 %v513
        %v1918 = vunpack.c.h.b16 %v513
        %v1919 = vunpack.c.l.b16 %v514
        %v1920 = vunpack.c.h.b16 %v514
        %v1921 = vunpack.c.l.b16 %v515
        %v1922 = vunpack.c.h.b16 %v515
        %v1923 = vunpack.c.l.b16 %v516
        %v1924 = vunpack.c.h.b16 %v516
        %v1925 = vunpack.c.l.b16 %v517
        %v1926 = vunpack.c.h.b16 %v517
        %v1927 = vunpack.c.l.b16 %v518
        %v1928 = vunpack.c.h.b16 %v518
        %v1929 = vunpack.c.l.b16 %v519
        %v1930 = vunpack.c.h.b16 %v519
        %v1931 = vunpack.c.l.b16 %v520
        %v1932 = vunpack.c.h.b16 %v520
        %v1933 = vunpack.c.l.b16 %v521
        %v1934 = vunpack.c.h.b16 %v521
        %v1935 = vunpack.c.l.b16 %v522
        %v1936 = vunpack.c.h.b16 %v522
        %v1937 = vunpack.c.l.b16 %v523
        %v1938 = vunpack.c.h.b16 %v523
        %v1939 = vunpack.c.l.b16 %v524
        %v1940 = vunpack.c.h.b16 %v524
        %v1941 = vunpack.c.l.b16 %v525
        %v1942 = vunpack.c.h.b16 %v525
        %v1943 = vunpack.c.l.b16 %v526
        %v1944 = vunpack.c.h.b16 %v526
        %v1945 = vunpack.c.l.b16 %v527
        %v1946 = vunpack.c.h.b16 %v527
        %v1947 = vunpack.c.l.b16 %v528
        %v1948 = vunpack.c.h.b16 %v528
        %v1949 = vunpack.c.l.b16 %v529
        %v1950 = vunpack.c.h.b16 %v529
        %v1951 = vunpack.c.l.b16 %v530
        %v1952 = vunpack.c.h.b16 %v530
        %v1953 = vunpack.c.l.b16 %v531
        %v1954 = vunpack.c.h.b16 %v531
        %v1955 = vunpack.c.l.b16 %v532
        %v1956 = vunpack.c.h.b16 %v532
        %v1957 = vunpack.c.l.b16 %v533
        %v1958 = vunpack.c.h.b16 %v533
        %v1959 = vunpack.c.l.b16 %v534
        %v1960 = vunpack.c.h.b16 %v534
        %v1961 = vunpack.c.l.b16 %v535
        %v1962 = vunpack.c.h.b16 %v535
        %v1963 = vunpack.c.l.b16 %v536
        %v1964 = vunpack.c.h.b16 %v536
        %v1965 = vunpack.c.l.b16 %v537
        %v1966 = vunpack.c.h.b16 %v537
        %v1967 = vunpack.c.l.b16 %v538
        %v1968 = vunpack.c.h.b16 %v538
        %v1969 = vunpack.c.l.b16 %v539
        %v1970 = vunpack.c.h.b16 %v539
        %v1971 = vunpack.c.l.b16 %v540
        %v1972 = vunpack.c.h.b16 %v540
        %v1973 = vunpack.c.l.b16 %v541
        %v1974 = vunpack.c.h.b16 %v541
        %v1975 = vunpack.c.l.b16 %v542
        %v1976 = vunpack.c.h.b16 %v542
        %v1977 = vunpack.c.l.b16 %v543
        %v1978 = vunpack.c.h.b16 %v543
        %v1979 = vunpack.c.l.b16 %v544
        %v1980 = vunpack.c.h.b16 %v544
        %v1981 = vunpack.c.l.b16 %v545
        %v1982 = vunpack.c.h.b16 %v545
        %v1983 = vunpack.c.l.b16 %v546
        %v1984 = vunpack.c.h.b16 %v546
        %v1985 = vunpack.c.l.b16 %v547
        %v1986 = vunpack.c.h.b16 %v547
        %v1987 = vunpack.c.l.b16 %v548
        %v1988 = vunpack.c.h.b16 %v548
        %v1989 = vunpack.c.l.b16 %v549
        %v1990 = vunpack.c.h.b16 %v549
        %v1991 = vunpack.c.l.b16 %v550
        %v1992 = vunpack.c.h.b16 %v550
        %v1993 = vunpack.c.l.b16 %v551
        %v1994 = vunpack.c.h.b16 %v551
        %v1995 = vunpack.c.l.b16 %v552
        %v1996 = vunpack.c.h.b16 %v552
        %v1997 = vunpack.c.l.b16 %v553
        %v1998 = vunpack.c.h.b16 %v553
        %v1999 = vunpack.c.l.b16 %v554
        %v2000 = vunpack.c.h.b16 %v554
        %v2001 = vunpack.c.l.b16 %v555
        %v2002 = vunpack.c.h.b16 %v555
        %v2003 = vunpack.c.l.b16 %v556
        %v2004 = vunpack.c.h.b16 %v556
        %v2005 = vunpack.c.l.b16 %v557
        %v2006 = vunpack.c.h.b16 %v557
        %v2007 = vunpack.c.l.b16 %v558
        %v2008 = vunpack.c.h.b16 %v558
        %v2009 = vunpack.c.l.b16 %v559
        %v2010 = vunpack.c.h.b16 %v559
        %v2011 = vunpack.c.l.b16 %v560
        %v2012 = vunpack.c.h.b16 %v560
        %v2013 = vunpack.c.l.b16 %v561
        %v2014 = vunpack.c.h.b16 %v561
        %v2015 = vunpack.c.l.b16 %v562
        %v2016 = vunpack.c.h.b16 %v562
        %v2017 = vunpack.c.l.b16 %v563
        %v2018 = vunpack.c.h.b16 %v563
        %v2019 = vunpack.c.l.b16 %v564
        %v2020 = vunpack.c.h.b16 %v564
        %v2021 = vunpack.c.l.b16 %v565
        %v2022 = vunpack.c.h.b16 %v565
        %v2023 = vunpack.c.l.b16 %v566
        %v2024 = vunpack.c.h.b16 %v566
        %v2025 = vunpack.c.l.b16 %v567
        %v2026 = vunpack.c.h.b16 %v567
        %v2027 = vunpack.c.l.b16 %v568
        %v2028 = vunpack.c.h.b16 %v568
        %v2029 = vunpack.c.l.b16 %v569
        %v2030 = vunpack.c.h.b16 %v569
        %v2031 = vunpack.c.l.b16 %v570
        %v2032 = vunpack.c.h.b16 %v570
        %v2033 = vunpack.c.l.b16 %v571
        %v2034 = vunpack.c.h.b16 %v571
        %v2035 = vunpack.c.l.b16 %v572
        %v2036 = vunpack.c.h.b16 %v572
        %v2037 = vunpack.c.l.b16 %v573
        %v2038 = vunpack.c.h.b16 %v573
        %v2039 = vunpack.c.l.b16 %v574
        %v2040 = vunpack.c.h.b16 %v574
        %v2041 = vunpack.c.l.b16 %v575
        %v2042 = vunpack.c.h.b16 %v575
        %v2043 = vunpack.c.l.b16 %v576
        %v2044 = vunpack.c.h.b16 %v576
        %v2045 = vunpack.c.l.b16 %v577
        %v2046 = vunpack.c.h.b16 %v577
        %v2047 = vunpack.c.l.b16 %v578
        %v2048 = vunpack.c.h.b16 %v578
        %v2049 = vunpack.c.l.b16 %v579
        %v2050 = vunpack.c.h.b16 %v579
        %v2051 = vunpack.c.l.b16 %v580
        %v2052 = vunpack.c.h.b16 %v580
        %v2053 = vunpack.c.l.b16 %v581
        %v2054 = vunpack.c.h.b16 %v581
        %v2055 = vunpack.c.l.b16 %v582
        %v2056 = vunpack.c.h.b16 %v582
        %v2057 = vunpack.c.l.b16 %v583
        %v2058 = vunpack.c.h.b16 %v583
        %v2059 = vunpack.c.l.b16 %v584
        %v2060 = vunpack.c.h.b16 %v584
        %v2061 = vunpack.c.l.b16 %v585
        %v2062 = vunpack.c.h.b16 %v585
        %v2063 = vunpack.c.l.b16 %v586
        %v2064 = vunpack.c.h.b16 %v586
        %v2065 = vunpack.c.l.b16 %v587
        %v2066 = vunpack.c.h.b16 %v587
        %v2067 = vunpack.c.l.b16 %v588
        %v2068 = vunpack.c.h.b16 %v588
        %v2069 = vunpack.c.l.b16 %v589
        %v2070 = vunpack.c.h.b16 %v589
        %v2071 = vunpack.c.l.b16 %v590
        %v2072 = vunpack.c.h.b16 %v590
        %v2073 = vunpack.c.l.b16 %v591
        %v2074 = vunpack.c.h.b16 %v591
        %v2075 = vunpack.c.l.b16 %v592
        %v2076 = vunpack.c.h.b16 %v592
        %v2077 = vunpack.c.l.b16 %v593
        %v2078 = vunpack.c.h.b16 %v593
        %v2079 = vunpack.c.l.b16 %v594
        %v2080 = vunpack.c.h.b16 %v594
        %v2081 = vunpack.c.l.b16 %v595
        %v2082 = vunpack.c.h.b16 %v595
        %v2083 = vunpack.c.l.b16 %v596
        %v2084 = vunpack.c.h.b16 %v596
        %v2085 = vunpack.c.l.b16 %v597
        %v2086 = vunpack.c.h.b16 %v597
        %v2087 = vunpack.c.l.b16 %v598
        %v2088 = vunpack.c.h.b16 %v598
        %v2089 = vunpack.c.l.b16 %v599
        %v2090 = vunpack.c.h.b16 %v599
        %v2091 = vunpack.c.l.b16 %v600
        %v2092 = vunpack.c.h.b16 %v600
        %v2093 = vunpack.c.l.b16 %v601
        %v2094 = vunpack.c.h.b16 %v601
        %v2095 = vunpack.c.l.b16 %v602
        %v2096 = vunpack.c.h.b16 %v602
        %v2097 = vunpack.c.l.b16 %v603
        %v2098 = vunpack.c.h.b16 %v603
        %v2099 = vunpack.c.l.b16 %v604
        %v2100 = vunpack.c.h.b16 %v604
        %v2101 = vunpack.c.l.b16 %v605
        %v2102 = vunpack.c.h.b16 %v605
        %v2103 = vunpack.c.l.b16 %v606
        %v2104 = vunpack.c.h.b16 %v606
        %v2105 = vunpack.c.l.b16 %v607
        %v2106 = vunpack.c.h.b16 %v607
        %v2107 = vunpack.c.l.b16 %v608
        %v2108 = vunpack.c.h.b16 %v608
        %v2109 = vunpack.c.l.b16 %v609
        %v2110 = vunpack.c.h.b16 %v609
        %v2111 = vunpack.c.l.b16 %v610
        %v2112 = vunpack.c.h.b16 %v610
        %v2113 = vunpack.c.l.b16 %v611
        %v2114 = vunpack.c.h.b16 %v611
        %v2115 = vunpack.c.l.b16 %v612
        %v2116 = vunpack.c.h.b16 %v612
        %v2117 = vunpack.c.l.b16 %v613
        %v2118 = vunpack.c.h.b16 %v613
        %v2119 = vunpack.c.l.b16 %v614
        %v2120 = vunpack.c.h.b16 %v614
        %v2121 = vunpack.c.l.b16 %v615
        %v2122 = vunpack.c.h.b16 %v615
        %v2123 = vunpack.c.l.b16 %v616
        %v2124 = vunpack.c.h.b16 %v616
        %v2125 = vunpack.c.l.b16 %v617
        %v2126 = vunpack.c.h.b16 %v617
        %v2127 = vunpack.c.l.b16 %v618
        %v2128 = vunpack.c.h.b16 %v618
        %v2129 = vunpack.c.l.b16 %v619
        %v2130 = vunpack.c.h.b16 %v619
        %v2131 = vunpack.c.l.b16 %v620
        %v2132 = vunpack.c.h.b16 %v620
        %v2133 = vunpack.c.l.b16 %v621
        %v2134 = vunpack.c.h.b16 %v621
        %v2135 = vunpack.c.l.b16 %v622
        %v2136 = vunpack.c.h.b16 %v622
        %v2137 = vunpack.c.l.b16 %v623
        %v2138 = vunpack.c.h.b16 %v623
        %v2139 = vunpack.c.l.b16 %v624
        %v2140 = vunpack.c.h.b16 %v624
        %v2141 = vunpack.c.l.b16 %v625
        %v2142 = vunpack.c.h.b16 %v625
        %v2143 = vunpack.c.l.b16 %v626
        %v2144 = vunpack.c.h.b16 %v626
        %v2145 = vunpack.c.l.b16 %v627
        %v2146 = vunpack.c.h.b16 %v627
        %v2147 = vunpack.c.l.b16 %v628
        %v2148 = vunpack.c.h.b16 %v628
        %v2149 = vunpack.c.l.b16 %v629
        %v2150 = vunpack.c.h.b16 %v629
        %v2151 = vunpack.c.l.b16 %v630
        %v2152 = vunpack.c.h.b16 %v630
        %v2153 = vunpack.c.l.b16 %v631
        %v2154 = vunpack.c.h.b16 %v631
        %v2155 = vunpack.c.l.b16 %v632
        %v2156 = vunpack.c.h.b16 %v632
        %v2157 = vunpack.c.l.b16 %v633
        %v2158 = vunpack.c.h.b16 %v633
        %v2159 = vunpack.c.l.b16 %v634
        %v2160 = vunpack.c.h.b16 %v634
        %v2161 = vunpack.c.l.b16 %v635
        %v2162 = vunpack.c.h.b16 %v635
        %v2163 = vunpack.c.l.b16 %v636
        %v2164 = vunpack.c.h.b16 %v636
        %v2165 = vunpack.c.l.b16 %v637
        %v2166 = vunpack.c.h.b16 %v637
        %v2167 = vunpack.c.l.b16 %v638
        %v2168 = vunpack.c.h.b16 %v638
        %v2169 = vunpack.c.l.b16 %v639
        %v2170 = vunpack.c.h.b16 %v639
        %v2171 = vunpack.c.l.b16 %v640
        %v2172 = vunpack.c.h.b16 %v640
        %v2173 = vunpack.c.l.b16 %v641
        %v2174 = vunpack.c.h.b16 %v641
        %v2175 = vunpack.c.l.b16 %v642
        %v2176 = vunpack.c.h.b16 %v642
        %v2177 = vunpack.c.l.b16 %v643
        %v2178 = vunpack.c.h.b16 %v643
        %v2179 = vunpack.c.l.b16 %v644
        %v2180 = vunpack.c.h.b16 %v644
        %v2181 = vunpack.c.l.b16 %v645
        %v2182 = vunpack.c.h.b16 %v645
        %v2183 = vunpack.c.l.b16 %v646
        %v2184 = vunpack.c.h.b16 %v646
        %v2185 = vunpack.c.l.b16 %v647
        %v2186 = vunpack.c.h.b16 %v647
        %v2187 = vunpack.c.l.b16 %v648
        %v2188 = vunpack.c.h.b16 %v648
        %v2189 = vunpack.c.l.b16 %v649
        %v2190 = vunpack.c.h.b16 %v649
        %v2191 = vunpack.c.l.b16 %v650
        %v2192 = vunpack.c.h.b16 %v650
        %v2193 = vunpack.c.l.b16 %v651
        %v2194 = vunpack.c.h.b16 %v651
        %v2195 = vunpack.c.l.b16 %v652
        %v2196 = vunpack.c.h.b16 %v652
        %v2197 = vunpack.c.l.b16 %v653
        %v2198 = vunpack.c.h.b16 %v653
        %v2199 = vunpack.c.l.b16 %v654
        %v2200 = vunpack.c.h.b16 %v654
        %v2201 = vunpack.c.l.b16 %v655
        %v2202 = vunpack.c.h.b16 %v655
        %v2203 = vunpack.c.l.b16 %v656
        %v2204 = vunpack.c.h.b16 %v656
        %v2205 = vunpack.c.l.b16 %v657
        %v2206 = vunpack.c.h.b16 %v657
        %v2207 = vunpack.c.l.b16 %v658
        %v2208 = vunpack.c.h.b16 %v658
        %v2209 = vunpack.c.l.b16 %v659
        %v2210 = vunpack.c.h.b16 %v659
        %v2211 = vunpack.c.l.b16 %v660
        %v2212 = vunpack.c.h.b16 %v660
        %v2213 = vunpack.c.l.b16 %v661
        %v2214 = vunpack.c.h.b16 %v661
        %v2215 = vunpack.c.l.b16 %v662
        %v2216 = vunpack.c.h.b16 %v662
        %v2217 = vunpack.c.l.b16 %v663
        %v2218 = vunpack.c.h.b16 %v663
        %v2219 = vunpack.c.l.b16 %v664
        %v2220 = vunpack.c.h.b16 %v664
        %v2221 = vunpack.c.l.b16 %v665
        %v2222 = vunpack.c.h.b16 %v665
        %v2223 = vunpack.c.l.b16 %v666
        %v2224 = vunpack.c.h.b16 %v666
        %v2225 = vunpack.c.l.b16 %v667
        %v2226 = vunpack.c.h.b16 %v667
        %v2227 = vunpack.c.l.b16 %v668
        %v2228 = vunpack.c.h.b16 %v668
        %v2229 = vunpack.c.l.b16 %v669
        %v2230 = vunpack.c.h.b16 %v669
        %v2231 = vunpack.c.l.b16 %v670
        %v2232 = vunpack.c.h.b16 %v670
        %v2233 = vunpack.c.l.b16 %v671
        %v2234 = vunpack.c.h.b16 %v671
        %v2235 = vunpack.c.l.b16 %v672
        %v2236 = vunpack.c.h.b16 %v672
        %v2237 = vunpack.c.l.b16 %v673
        %v2238 = vunpack.c.h.b16 %v673
        %v2239 = vunpack.c.l.b16 %v674
        %v2240 = vunpack.c.h.b16 %v674
        %v2241 = vunpack.c.l.b16 %v675
        %v2242 = vunpack.c.h.b16 %v675
        %v2243 = vunpack.c.l.b16 %v676
        %v2244 = vunpack.c.h.b16 %v676
        %v2245 = vunpack.c.l.b16 %v677
        %v2246 = vunpack.c.h.b16 %v677
        %v2247 = vunpack.c.l.b16 %v678
        %v2248 = vunpack.c.h.b16 %v678
        %v2249 = vunpack.c.l.b16 %v679
        %v2250 = vunpack.c.h.b16 %v679
        %v2251 = vunpack.c.l.b16 %v680
        %v2252 = vunpack.c.h.b16 %v680
        %v2253 = vunpack.c.l.b16 %v681
        %v2254 = vunpack.c.h.b16 %v681
        %v2255 = vunpack.c.l.b16 %v682
        %v2256 = vunpack.c.h.b16 %v682
        %v2257 = vunpack.c.l.b16 %v683
        %v2258 = vunpack.c.h.b16 %v683
        %v2259 = vunpack.c.l.b16 %v684
        %v2260 = vunpack.c.h.b16 %v684
        %v2261 = vunpack.c.l.b16 %v685
        %v2262 = vunpack.c.h.b16 %v685
        %v2263 = vunpack.c.l.b16 %v686
        %v2264 = vunpack.c.h.b16 %v686
        %v2265 = vunpack.c.l.b16 %v687
        %v2266 = vunpack.c.h.b16 %v687
        %v2267 = vunpack.c.l.b16 %v688
        %v2268 = vunpack.c.h.b16 %v688
        %v2269 = vunpack.c.l.b16 %v689
        %v2270 = vunpack.c.h.b16 %v689
        %v2271 = vunpack.c.l.b16 %v690
        %v2272 = vunpack.c.h.b16 %v690
        %v2273 = vunpack.c.l.b16 %v691
        %v2274 = vunpack.c.h.b16 %v691
        %v2275 = vunpack.c.l.b16 %v692
        %v2276 = vunpack.c.h.b16 %v692
        %v2277 = vunpack.c.l.b16 %v693
        %v2278 = vunpack.c.h.b16 %v693
        %v2279 = vunpack.c.l.b16 %v694
        %v2280 = vunpack.c.h.b16 %v694
        %v2281 = vunpack.c.l.b16 %v695
        %v2282 = vunpack.c.h.b16 %v695
        %v2283 = vunpack.c.l.b16 %v696
        %v2284 = vunpack.c.h.b16 %v696
        %v2285 = vunpack.c.l.b16 %v697
        %v2286 = vunpack.c.h.b16 %v697
        %v2287 = vunpack.c.l.b16 %v698
        %v2288 = vunpack.c.h.b16 %v698
        %v2289 = vunpack.c.l.b16 %v699
        %v2290 = vunpack.c.h.b16 %v699
        %v2291 = vunpack.c.l.b16 %v700
        %v2292 = vunpack.c.h.b16 %v700
        %v2293 = vunpack.c.l.b16 %v701
        %v2294 = vunpack.c.h.b16 %v701
        %v2295 = vunpack.c.l.b16 %v702
        %v2296 = vunpack.c.h.b16 %v702
        %v2297 = vunpack.c.l.b16 %v703
        %v2298 = vunpack.c.h.b16 %v703
        %v2299 = vunpack.c.l.b16 %v704
        %v2300 = vunpack.c.h.b16 %v704
        %v2301 = vunpack.c.l.b16 %v705
        %v2302 = vunpack.c.h.b16 %v705
        %v2303 = vunpack.c.l.b16 %v706
        %v2304 = vunpack.c.h.b16 %v706
        %v2305 = vunpack.c.l.b16 %v707
        %v2306 = vunpack.c.h.b16 %v707
        %v2307 = vunpack.c.l.b16 %v708
        %v2308 = vunpack.c.h.b16 %v708
        %v2309 = vunpack.c.l.b16 %v709
        %v2310 = vunpack.c.h.b16 %v709
        %v2311 = vunpack.c.l.b16 %v710
        %v2312 = vunpack.c.h.b16 %v710
        %v2313 = vunpack.c.l.b16 %v711
        %v2314 = vunpack.c.h.b16 %v711
        %v2315 = vunpack.c.l.b16 %v712
        %v2316 = vunpack.c.h.b16 %v712
        %v2317 = vunpack.c.l.b16 %v713
        %v2318 = vunpack.c.h.b16 %v713
        %v2319 = vunpack.c.l.b16 %v714
        %v2320 = vunpack.c.h.b16 %v714
        %v2321 = vunpack.c.l.b16 %v715
        %v2322 = vunpack.c.h.b16 %v715
        %v2323 = vunpack.c.l.b16 %v716
        %v2324 = vunpack.c.h.b16 %v716
        %v2325 = vunpack.c.l.b16 %v717
        %v2326 = vunpack.c.h.b16 %v717
        %v2327 = vunpack.c.l.b16 %v718
        %v2328 = vunpack.c.h.b16 %v718
        %v2329 = vunpack.c.l.b16 %v719
        %v2330 = vunpack.c.h.b16 %v719
        %v2331 = vunpack.c.l.b16 %v720
        %v2332 = vunpack.c.h.b16 %v720
        %v2333 = vunpack.c.l.b16 %v721
        %v2334 = vunpack.c.h.b16 %v721
        %v2335 = vunpack.c.l.b16 %v722
        %v2336 = vunpack.c.h.b16 %v722
        %v2337 = vunpack.c.l.b16 %v723
        %v2338 = vunpack.c.h.b16 %v723
        %v2339 = vunpack.c.l.b16 %v724
        %v2340 = vunpack.c.h.b16 %v724
        %v2341 = vunpack.c.l.b16 %v725
        %v2342 = vunpack.c.h.b16 %v725
        %v2343 = vunpack.c.l.b16 %v726
        %v2344 = vunpack.c.h.b16 %v726
        %v2345 = vunpack.c.l.b16 %v727
        %v2346 = vunpack.c.h.b16 %v727
        %v2347 = vunpack.c.l.b16 %v728
        %v2348 = vunpack.c.h.b16 %v728
        %v2349 = vunpack.c.l.b16 %v729
        %v2350 = vunpack.c.h.b16 %v729
        %v2351 = vunpack.c.l.b16 %v730
        %v2352 = vunpack.c.h.b16 %v730
        %v2353 = vunpack.c.l.b16 %v731
        %v2354 = vunpack.c.h.b16 %v731
        %v2355 = vunpack.c.l.b16 %v732
        %v2356 = vunpack.c.h.b16 %v732
        %v2357 = vunpack.c.l.b16 %v733
        %v2358 = vunpack.c.h.b16 %v733
        %v2359 = vunpack.c.l.b16 %v734
        %v2360 = vunpack.c.h.b16 %v734
        %v2361 = vunpack.c.l.b16 %v735
        %v2362 = vunpack.c.h.b16 %v735
        %v2363 = vunpack.c.l.b16 %v736
        %v2364 = vunpack.c.h.b16 %v736
        %v2365 = vunpack.c.l.b16 %v737
        %v2366 = vunpack.c.h.b16 %v737
        %v2367 = vunpack.c.l.b16 %v738
        %v2368 = vunpack.c.h.b16 %v738
        %v2369 = vunpack.c.l.b16 %v739
        %v2370 = vunpack.c.h.b16 %v739
        %v2371 = vunpack.c.l.b16 %v740
        %v2372 = vunpack.c.h.b16 %v740
        %v2373 = vunpack.c.l.b16 %v741
        %v2374 = vunpack.c.h.b16 %v741
        %v2375 = vunpack.c.l.b16 %v742
        %v2376 = vunpack.c.h.b16 %v742
        %v2377 = vunpack.c.l.b16 %v743
        %v2378 = vunpack.c.h.b16 %v743
        %v2379 = vunpack.c.l.b16 %v744
        %v2380 = vunpack.c.h.b16 %v744
        %v2381 = vunpack.c.l.b16 %v745
        %v2382 = vunpack.c.h.b16 %v745
        %v2383 = vunpack.c.l.b16 %v746
        %v2384 = vunpack.c.h.b16 %v746
        %v2385 = vunpack.c.l.b16 %v747
        %v2386 = vunpack.c.h.b16 %v747
        %v2387 = vunpack.c.l.b16 %v748
        %v2388 = vunpack.c.h.b16 %v748
        %v2389 = vunpack.c.l.b16 %v749
        %v2390 = vunpack.c.h.b16 %v749
        %v2391 = vunpack.c.l.b16 %v750
        %v2392 = vunpack.c.h.b16 %v750
        %v2393 = vunpack.c.l.b16 %v751
        %v2394 = vunpack.c.h.b16 %v751
        %v2395 = vunpack.c.l.b16 %v752
        %v2396 = vunpack.c.h.b16 %v752
        %v2397 = vunpack.c.l.b16 %v753
        %v2398 = vunpack.c.h.b16 %v753
        %v2399 = vunpack.c.l.b16 %v754
        %v2400 = vunpack.c.h.b16 %v754
        %v2401 = vunpack.c.l.b16 %v755
        %v2402 = vunpack.c.h.b16 %v755
        %v2403 = vunpack.c.l.b16 %v756
        %v2404 = vunpack.c.h.b16 %v756
        %v2405 = vunpack.c.l.b16 %v757
        %v2406 = vunpack.c.h.b16 %v757
        %v2407 = vunpack.c.l.b16 %v758
        %v2408 = vunpack.c.h.b16 %v758
        %v2409 = vunpack.c.l.b16 %v759
        %v2410 = vunpack.c.h.b16 %v759
        %v2411 = vunpack.c.l.b16 %v760
        %v2412 = vunpack.c.h.b16 %v760
        %v2413 = vunpack.c.l.b16 %v761
        %v2414 = vunpack.c.h.b16 %v761
        %v2415 = vunpack.c.l.b16 %v762
        %v2416 = vunpack.c.h.b16 %v762
        %v2417 = vpack.c.b16 %v1395, %v1393
        %v2418 = vpack.c.b16 %v1396, %v1394
        %v2419 = vpack.c.b16 %v1399, %v1397
        %v2420 = vpack.c.b16 %v1400, %v1398
        %v2421 = vpack.c.b16 %v1403, %v1401
        %v2422 = vpack.c.b16 %v1404, %v1402
        %v2423 = vpack.c.b16 %v1407, %v1405
        %v2424 = vpack.c.b16 %v1408, %v1406
        %v2425 = vpack.c.b16 %v1411, %v1409
        %v2426 = vpack.c.b16 %v1412, %v1410
        %v2427 = vpack.c.b16 %v1415, %v1413
        %v2428 = vpack.c.b16 %v1416, %v1414
        %v2429 = vpack.c.b16 %v1419, %v1417
        %v2430 = vpack.c.b16 %v1420, %v1418
        %v2431 = vpack.c.b16 %v1423, %v1421
        %v2432 = vpack.c.b16 %v1424, %v1422
        %v2433 = vpack.c.b16 %v1427, %v1425
        %v2434 = vpack.c.b16 %v1428, %v1426
        %v2435 = vpack.c.b16 %v1431, %v1429
        %v2436 = vpack.c.b16 %v1432, %v1430
        %v2437 = vpack.c.b16 %v1435, %v1433
        %v2438 = vpack.c.b16 %v1436, %v1434
        %v2439 = vpack.c.b16 %v1439, %v1437
        %v2440 = vpack.c.b16 %v1440, %v1438
        %v2441 = vpack.c.b16 %v1443, %v1441
        %v2442 = vpack.c.b16 %v1444, %v1442
        %v2443 = vpack.c.b16 %v1447, %v1445
        %v2444 = vpack.c.b16 %v1448, %v1446
        %v2445 = vpack.c.b16 %v1451, %v1449
        %v2446 = vpack.c.b16 %v1452, %v1450
        %v2447 = vpack.c.b16 %v1455, %v1453
        %v2448 = vpack.c.b16 %v1456, %v1454
        %v2449 = vpack.c.b16 %v1459, %v1457
        %v2450 = vpack.c.b16 %v1460, %v1458
        %v2451 = vpack.c.b16 %v1463, %v1461
        %v2452 = vpack.c.b16 %v1464, %v1462
        %v2453 = vpack.c.b16 %v1467, %v1465
        %v2454 = vpack.c.b16 %v1468, %v1466
        %v2455 = vpack.c.b16 %v1471, %v1469
        %v2456 = vpack.c.b16 %v1472, %v1470
        %v2457 = vpack.c.b16 %v1475, %v1473
        %v2458 = vpack.c.b16 %v1476, %v1474
        %v2459 = vpack.c.b16 %v1479, %v1477
        %v2460 = vpack.c.b16 %v1480, %v1478
        %v2461 = vpack.c.b16 %v1483, %v1481
        %v2462 = vpack.c.b16 %v1484, %v1482
        %v2463 = vpack.c.b16 %v1487, %v1485
        %v2464 = vpack.c.b16 %v1488, %v1486
        %v2465 = vpack.c.b16 %v1491, %v1489
        %v2466 = vpack.c.b16 %v1492, %v1490
        %v2467 = vpack.c.b16 %v1495, %v1493
        %v2468 = vpack.c.b16 %v1496, %v1494
        %v2469 = vpack.c.b16 %v1499, %v1497
        %v2470 = vpack.c.b16 %v1500, %v1498
        %v2471 = vpack.c.b16 %v1503, %v1501
        %v2472 = vpack.c.b16 %v1504, %v1502
        %v2473 = vpack.c.b16 %v1507, %v1505
        %v2474 = vpack.c.b16 %v1508, %v1506
        %v2475 = vpack.c.b16 %v1511, %v1509
        %v2476 = vpack.c.b16 %v1512, %v1510
        %v2477 = vpack.c.b16 %v1515, %v1513
        %v2478 = vpack.c.b16 %v1516, %v1514
        %v2479 = vpack.c.b16 %v1519, %v1517
        %v2480 = vpack.c.b16 %v1520, %v1518
        %v2481 = vpack.c.b16 %v1523, %v1521
        %v2482 = vpack.c.b16 %v1524, %v1522
        %v2483 = vpack.c.b16 %v1527, %v1525
        %v2484 = vpack.c.b16 %v1528, %v1526
        %v2485 = vpack.c.b16 %v1531, %v1529
        %v2486 = vpack.c.b16 %v1532, %v1530
        %v2487 = vpack.c.b16 %v1535, %v1533
        %v2488 = vpack.c.b16 %v1536, %v1534
        %v2489 = vpack.c.b16 %v1539, %v1537
        %v2490 = vpack.c.b16 %v1540, %v1538
        %v2491 = vpack.c.b16 %v1543, %v1541
        %v2492 = vpack.c.b16 %v1544, %v1542
        %v2493 = vpack.c.b16 %v1547, %v1545
        %v2494 = vpack.c.b16 %v1548, %v1546
        %v2495 = vpack.c.b16 %v1551, %v1549
        %v2496 = vpack.c.b16 %v1552, %v1550
        %v2497 = vpack.c.b16 %v1555, %v1553
        %v2498 = vpack.c.b16 %v1556, %v1554
        %v2499 = vpack.c.b16 %v1559, %v1557
        %v2500 = vpack.c.b16 %v1560, %v1558
        %v2501 = vpack.c.b16 %v1563, %v1561
        %v2502 = vpack.c.b16 %v1564, %v1562
        %v2503 = vpack.c.b16 %v1567, %v1565
        %v2504 = vpack.c.b16 %v1568, %v1566
        %v2505 = vpack.c.b16 %v1571, %v1569
        %v2506 = vpack.c.b16 %v1572, %v1570
        %v2507 = vpack.c.b16 %v1575, %v1573
        %v2508 = vpack.c.b16 %v1576, %v1574
        %v2509 = vpack.c.b16 %v1579, %v1577
        %v2510 = vpack.c.b16 %v1580, %v1578
        %v2511 = vpack.c.b16 %v1583, %v1581
        %v2512 = vpack.c.b16 %v1584, %v1582
        %v2513 = vpack.c.b16 %v1587, %v1585
        %v2514 = vpack.c.b16 %v1588, %v1586
        %v2515 = vpack.c.b16 %v1591, %v1589
        %v2516 = vpack.c.b16 %v1592, %v1590
        %v2517 = vpack.c.b16 %v1595, %v1593
        %v2518 = vpack.c.b16 %v1596, %v1594
        %v2519 = vpack.c.b16 %v1599, %v1597
        %v2520 = vpack.c.b16 %v1600, %v1598
        %v2521 = vpack.c.b16 %v1603, %v1601
        %v2522 = vpack.c.b16 %v1604, %v1602
        %v2523 = vpack.c.b16 %v1607, %v1605
        %v2524 = vpack.c.b16 %v1608, %v1606
        %v2525 = vpack.c.b16 %v1611, %v1609
        %v2526 = vpack.c.b16 %v1612, %v1610
        %v2527 = vpack.c.b16 %v1615, %v1613
        %v2528 = vpack.c.b16 %v1616, %v1614
        %v2529 = vpack.c.b16 %v1619, %v1617
        %v2530 = vpack.c.b16 %v1620, %v1618
        %v2531 = vpack.c.b16 %v1623, %v1621
        %v2532 = vpack.c.b16 %v1624, %v1622
        %v2533 = vpack.c.b16 %v1627, %v1625
        %v2534 = vpack.c.b16 %v1628, %v1626
        %v2535 = vpack.c.b16 %v1631, %v1629
        %v2536 = vpack.c.b16 %v1632, %v1630
        %v2537 = vpack.c.b16 %v1635, %v1633
        %v2538 = vpack.c.b16 %v1636, %v1634
        %v2539 = vpack.c.b16 %v1639, %v1637
        %v2540 = vpack.c.b16 %v1640, %v1638
        %v2541 = vpack.c.b16 %v1643, %v1641
        %v2542 = vpack.c.b16 %v1644, %v1642
        %v2543 = vpack.c.b16 %v1647, %v1645
        %v2544 = vpack.c.b16 %v1648, %v1646
        %v2545 = vpack.c.b16 %v1651, %v1649
        %v2546 = vpack.c.b16 %v1652, %v1650
        %v2547 = vpack.c.b16 %v1655, %v1653
        %v2548 = vpack.c.b16 %v1656, %v1654
        %v2549 = vpack.c.b16 %v1659, %v1657
        %v2550 = vpack.c.b16 %v1660, %v1658
        %v2551 = vpack.c.b16 %v1663, %v1661
        %v2552 = vpack.c.b16 %v1664, %v1662
        %v2553 = vpack.c.b16 %v1667, %v1665
        %v2554 = vpack.c.b16 %v1668, %v1666
        %v2555 = vpack.c.b16 %v1671, %v1669
        %v2556 = vpack.c.b16 %v1672, %v1670
        %v2557 = vpack.c.b16 %v1675, %v1673
        %v2558 = vpack.c.b16 %v1676, %v1674
        %v2559 = vpack.c.b16 %v1679, %v1677
        %v2560 = vpack.c.b16 %v1680, %v1678
        %v2561 = vpack.c.b16 %v1683, %v1681
        %v2562 = vpack.c.b16 %v1684, %v1682
        %v2563 = vpack.c.b16 %v1687, %v1685
        %v2564 = vpack.c.b16 %v1688, %v1686
        %v2565 = vpack.c.b16 %v1691, %v1689
        %v2566 = vpack.c.b16 %v1692, %v1690
        %v2567 = vpack.c.b16 %v1695, %v1693
        %v2568 = vpack.c.b16 %v1696, %v1694
        %v2569 = vpack.c.b16 %v1699, %v1697
        %v2570 = vpack.c.b16 %v1700, %v1698
        %v2571 = vpack.c.b16 %v1703, %v1701
        %v2572 = vpack.c.b16 %v1704, %v1702
        %v2573 = vpack.c.b16 %v1707, %v1705
        %v2574 = vpack.c.b16 %v1708, %v1706
        %v2575 = vpack.c.b16 %v1711, %v1709
        %v2576 = vpack.c.b16 %v1712, %v1710
        %v2577 = vpack.c.b16 %v1715, %v1713
        %v2578 = vpack.c.b16 %v1716, %v1714
        %v2579 = vpack.c.b16 %v1719, %v1717
        %v2580 = vpack.c.b16 %v1720, %v1718
        %v2581 = vpack.c.b16 %v1723, %v1721
        %v2582 = vpack.c.b16 %v1724, %v1722
        %v2583 = vpack.c.b16 %v1727, %v1725
        %v2584 = vpack.c.b16 %v1728, %v1726
        %v2585 = vpack.c.b16 %v1731, %v1729
        %v2586 = vpack.c.b16 %v1732, %v1730
        %v2587 = vpack.c.b16 %v1735, %v1733
        %v2588 = vpack.c.b16 %v1736, %v1734
        %v2589 = vpack.c.b16 %v1739, %v1737
        %v2590 = vpack.c.b16 %v1740, %v1738
        %v2591 = vpack.c.b16 %v1743, %v1741
        %v2592 = vpack.c.b16 %v1744, %v1742
        %v2593 = vpack.c.b16 %v1747, %v1745
        %v2594 = vpack.c.b16 %v1748, %v1746
        %v2595 = vpack.c.b16 %v1751, %v1749
        %v2596 = vpack.c.b16 %v1752, %v1750
        %v2597 = vpack.c.b16 %v1755, %v1753
        %v2598 = vpack.c.b16 %v1756, %v1754
        %v2599 = vpack.c.b16 %v1759, %v1757
        %v2600 = vpack.c.b16 %v1760, %v1758
        %v2601 = vpack.c.b16 %v1763, %v1761
        %v2602 = vpack.c.b16 %v1764, %v1762
        %v2603 = vpack.c.b16 %v1767, %v1765
        %v2604 = vpack.c.b16 %v1768, %v1766
        %v2605 = vpack.c.b16 %v1771, %v1769
        %v2606 = vpack.c.b16 %v1772, %v1770
        %v2607 = vpack.c.b16 %v1775, %v1773
        %v2608 = vpack.c.b16 %v1776, %v1774
        %v2609 = vpack.c.b16 %v1779, %v1777
        %v2610 = vpack.c.b16 %v1780, %v1778
        %v2611 = vpack.c.b16 %v1783, %v1781
        %v2612 = vpack.c.b16 %v1784, %v1782
        %v2613 = vpack.c.b16 %v1787, %v1785
        %v2614 = vpack.c.b16 %v1788, %v1786
        %v2615 = vpack.c.b16 %v1791, %v1789
        %v2616 = vpack.c.b16 %v1792, %v1790
        %v2617 = vpack.c.b16 %v1795, %v1793
        %v2618 = vpack.c.b16 %v1796, %v1794
        %v2619 = vpack.c.b16 %v1799, %v1797
        %v2620 = vpack.c.b16 %v1800, %v1798
        %v2621 = vpack.c.b16 %v1803, %v1801
        %v2622 = vpack.c.b16 %v1804, %v1802
        %v2623 = vpack.c.b16 %v1807, %v1805
        %v2624 = vpack.c.b16 %v1808, %v1806
        %v2625 = vpack.c.b16 %v1811, %v1809
        %v2626 = vpack.c.b16 %v1812, %v1810
        %v2627 = vpack.c.b16 %v1815, %v1813
        %v2628 = vpack.c.b16 %v1816, %v1814
        %v2629 = vpack.c.b16 %v1819, %v1817
        %v2630 = vpack.c.b16 %v1820, %v1818
        %v2631 = vpack.c.b16 %v1823, %v1821
        %v2632 = vpack.c.b16 %v1824, %v1822
        %v2633 = vpack.c.b16 %v1827, %v1825
        %v2634 = vpack.c.b16 %v1828, %v1826
        %v2635 = vpack.c.b16 %v1831, %v1829
        %v2636 = vpack.c.b16 %v1832, %v1830
        %v2637 = vpack.c.b16 %v1835, %v1833
        %v2638 = vpack.c.b16 %v1836, %v1834
        %v2639 = vpack.c.b16 %v1839, %v1837
        %v2640 = vpack.c.b16 %v1840, %v1838
        %v2641 = vpack.c.b16 %v1843, %v1841
        %v2642 = vpack.c.b16 %v1844, %v1842
        %v2643 = vpack.c.b16 %v1847, %v1845
        %v2644 = vpack.c.b16 %v1848, %v1846
        %v2645 = vpack.c.b16 %v1851, %v1849
        %v2646 = vpack.c.b16 %v1852, %v1850
        %v2647 = vpack.c.b16 %v1855, %v1853
        %v2648 = vpack.c.b16 %v1856, %v1854
        %v2649 = vpack.c.b16 %v1859, %v1857
        %v2650 = vpack.c.b16 %v1860, %v1858
        %v2651 = vpack.c.b16 %v1863, %v1861
        %v2652 = vpack.c.b16 %v1864, %v1862
        %v2653 = vpack.c.b16 %v1867, %v1865
        %v2654 = vpack.c.b16 %v1868, %v1866
        %v2655 = vpack.c.b16 %v1871, %v1869
        %v2656 = vpack.c.b16 %v1872, %v1870
        %v2657 = vpack.c.b16 %v1875, %v1873
        %v2658 = vpack.c.b16 %v1876, %v1874
        %v2659 = vpack.c.b16 %v1879, %v1877
        %v2660 = vpack.c.b16 %v1880, %v1878
        %v2661 = vpack.c.b16 %v1883, %v1881
        %v2662 = vpack.c.b16 %v1884, %v1882
        %v2663 = vpack.c.b16 %v1887, %v1885
        %v2664 = vpack.c.b16 %v1888, %v1886
        %v2665 = vpack.c.b16 %v1891, %v1889
        %v2666 = vpack.c.b16 %v1892, %v1890
        %v2667 = vpack.c.b16 %v1895, %v1893
        %v2668 = vpack.c.b16 %v1896, %v1894
        %v2669 = vpack.c.b16 %v1899, %v1897
        %v2670 = vpack.c.b16 %v1900, %v1898
        %v2671 = vpack.c.b16 %v1903, %v1901
        %v2672 = vpack.c.b16 %v1904, %v1902
        %v2673 = vpack.c.b16 %v1907, %v1905
        %v2674 = vpack.c.b16 %v1908, %v1906
        %v2675 = vpack.c.b16 %v1911, %v1909
        %v2676 = vpack.c.b16 %v1912, %v1910
        %v2677 = vpack.c.b16 %v1915, %v1913
        %v2678 = vpack.c.b16 %v1916, %v1914
        %v2679 = vpack.c.b16 %v1919, %v1917
        %v2680 = vpack.c.b16 %v1920, %v1918
        %v2681 = vpack.c.b16 %v1923, %v1921
        %v2682 = vpack.c.b16 %v1924, %v1922
        %v2683 = vpack.c.b16 %v1927, %v1925
        %v2684 = vpack.c.b16 %v1928, %v1926
        %v2685 = vpack.c.b16 %v1931, %v1929
        %v2686 = vpack.c.b16 %v1932, %v1930
        %v2687 = vpack.c.b16 %v1935, %v1933
        %v2688 = vpack.c.b16 %v1936, %v1934
        %v2689 = vpack.c.b16 %v1939, %v1937
        %v2690 = vpack.c.b16 %v1940, %v1938
        %v2691 = vpack.c.b16 %v1943, %v1941
        %v2692 = vpack.c.b16 %v1944, %v1942
        %v2693 = vpack.c.b16 %v1947, %v1945
        %v2694 = vpack.c.b16 %v1948, %v1946
        %v2695 = vpack.c.b16 %v1951, %v1949
        %v2696 = vpack.c.b16 %v1952, %v1950
        %v2697 = vpack.c.b16 %v1955, %v1953
        %v2698 = vpack.c.b16 %v1956, %v1954
        %v2699 = vpack.c.b16 %v1959, %v1957
        %v2700 = vpack.c.b16 %v1960, %v1958
        %v2701 = vpack.c.b16 %v1963, %v1961
        %v2702 = vpack.c.b16 %v1964, %v1962
        %v2703 = vpack.c.b16 %v1967, %v1965
        %v2704 = vpack.c.b16 %v1968, %v1966
        %v2705 = vpack.c.b16 %v1971, %v1969
        %v2706 = vpack.c.b16 %v1972, %v1970
        %v2707 = vpack.c.b16 %v1975, %v1973
        %v2708 = vpack.c.b16 %v1976, %v1974
        %v2709 = vpack.c.b16 %v1979, %v1977
        %v2710 = vpack.c.b16 %v1980, %v1978
        %v2711 = vpack.c.b16 %v1983, %v1981
        %v2712 = vpack.c.b16 %v1984, %v1982
        %v2713 = vpack.c.b16 %v1987, %v1985
        %v2714 = vpack.c.b16 %v1988, %v1986
        %v2715 = vpack.c.b16 %v1991, %v1989
        %v2716 = vpack.c.b16 %v1992, %v1990
        %v2717 = vpack.c.b16 %v1995, %v1993
        %v2718 = vpack.c.b16 %v1996, %v1994
        %v2719 = vpack.c.b16 %v1999, %v1997
        %v2720 = vpack.c.b16 %v2000, %v1998
        %v2721 = vpack.c.b16 %v2003, %v2001
        %v2722 = vpack.c.b16 %v2004, %v2002
        %v2723 = vpack.c.b16 %v2007, %v2005
        %v2724 = vpack.c.b16 %v2008, %v2006
        %v2725 = vpack.c.b16 %v2011, %v2009
        %v2726 = vpack.c.b16 %v2012, %v2010
        %v2727 = vpack.c.b16 %v2015, %v2013
        %v2728 = vpack.c.b16 %v2016, %v2014
        %v2729 = vpack.c.b16 %v2019, %v2017
        %v2730 = vpack.c.b16 %v2020, %v2018
        %v2731 = vpack.c.b16 %v2023, %v2021
        %v2732 = vpack.c.b16 %v2024, %v2022
        %v2733 = vpack.c.b16 %v2027, %v2025
        %v2734 = vpack.c.b16 %v2028, %v2026
        %v2735 = vpack.c.b16 %v2031, %v2029
        %v2736 = vpack.c.b16 %v2032, %v2030
        %v2737 = vpack.c.b16 %v2035, %v2033
        %v2738 = vpack.c.b16 %v2036, %v2034
        %v2739 = vpack.c.b16 %v2039, %v2037
        %v2740 = vpack.c.b16 %v2040, %v2038
        %v2741 = vpack.c.b16 %v2043, %v2041
        %v2742 = vpack.c.b16 %v2044, %v2042
        %v2743 = vpack.c.b16 %v2047, %v2045
        %v2744 = vpack.c.b16 %v2048, %v2046
        %v2745 = vpack.c.b16 %v2051, %v2049
        %v2746 = vpack.c.b16 %v2052, %v2050
        %v2747 = vpack.c.b16 %v2055, %v2053
        %v2748 = vpack.c.b16 %v2056, %v2054
        %v2749 = vpack.c.b16 %v2059, %v2057
        %v2750 = vpack.c.b16 %v2060, %v2058
        %v2751 = vpack.c.b16 %v2063, %v2061
        %v2752 = vpack.c.b16 %v2064, %v2062
        %v2753 = vpack.c.b16 %v2067, %v2065
        %v2754 = vpack.c.b16 %v2068, %v2066
        %v2755 = vpack.c.b16 %v2071, %v2069
        %v2756 = vpack.c.b16 %v2072, %v2070
        %v2757 = vpack.c.b16 %v2075, %v2073
        %v2758 = vpack.c.b16 %v2076, %v2074
        %v2759 = vpack.c.b16 %v2079, %v2077
        %v2760 = vpack.c.b16 %v2080, %v2078
        %v2761 = vpack.c.b16 %v2083, %v2081
        %v2762 = vpack.c.b16 %v2084, %v2082
        %v2763 = vpack.c.b16 %v2087, %v2085
        %v2764 = vpack.c.b16 %v2088, %v2086
        %v2765 = vpack.c.b16 %v2091, %v2089
        %v2766 = vpack.c.b16 %v2092, %v2090
        %v2767 = vpack.c.b16 %v2095, %v2093
        %v2768 = vpack.c.b16 %v2096, %v2094
        %v2769 = vpack.c.b16 %v2099, %v2097
        %v2770 = vpack.c.b16 %v2100, %v2098
        %v2771 = vpack.c.b16 %v2103, %v2101
        %v2772 = vpack.c.b16 %v2104, %v2102
        %v2773 = vpack.c.b16 %v2107, %v2105
        %v2774 = vpack.c.b16 %v2108, %v2106
        %v2775 = vpack.c.b16 %v2111, %v2109
        %v2776 = vpack.c.b16 %v2112, %v2110
        %v2777 = vpack.c.b16 %v2115, %v2113
        %v2778 = vpack.c.b16 %v2116, %v2114
        %v2779 = vpack.c.b16 %v2119, %v2117
        %v2780 = vpack.c.b16 %v2120, %v2118
        %v2781 = vpack.c.b16 %v2123, %v2121
        %v2782 = vpack.c.b16 %v2124, %v2122
        %v2783 = vpack.c.b16 %v2127, %v2125
        %v2784 = vpack.c.b16 %v2128, %v2126
        %v2785 = vpack.c.b16 %v2131, %v2129
        %v2786 = vpack.c.b16 %v2132, %v2130
        %v2787 = vpack.c.b16 %v2135, %v2133
        %v2788 = vpack.c.b16 %v2136, %v2134
        %v2789 = vpack.c.b16 %v2139, %v2137
        %v2790 = vpack.c.b16 %v2140, %v2138
        %v2791 = vpack.c.b16 %v2143, %v2141
        %v2792 = vpack.c.b16 %v2144, %v2142
        %v2793 = vpack.c.b16 %v2147, %v2145
        %v2794 = vpack.c.b16 %v2148, %v2146
        %v2795 = vpack.c.b16 %v2151, %v2149
        %v2796 = vpack.c.b16 %v2152, %v2150
        %v2797 = vpack.c.b16 %v2155, %v2153
        %v2798 = vpack.c.b16 %v2156, %v2154
        %v2799 = vpack.c.b16 %v2159, %v2157
        %v2800 = vpack.c.b16 %v2160, %v2158
        %v2801 = vpack.c.b16 %v2163, %v2161
        %v2802 = vpack.c.b16 %v2164, %v2162
        %v2803 = vpack.c.b16 %v2167, %v2165
        %v2804 = vpack.c.b16 %v2168, %v2166
        %v2805 = vpack.c.b16 %v2171, %v2169
        %v2806 = vpack.c.b16 %v2172, %v2170
        %v2807 = vpack.c.b16 %v2175, %v2173
        %v2808 = vpack.c.b16 %v2176, %v2174
        %v2809 = vpack.c.b16 %v2179, %v2177
        %v2810 = vpack.c.b16 %v2180, %v2178
        %v2811 = vpack.c.b16 %v2183, %v2181
        %v2812 = vpack.c.b16 %v2184, %v2182
        %v2813 = vpack.c.b16 %v2187, %v2185
        %v2814 = vpack.c.b16 %v2188, %v2186
        %v2815 = vpack.c.b16 %v2191, %v2189
        %v2816 = vpack.c.b16 %v2192, %v2190
        %v2817 = vpack.c.b16 %v2195, %v2193
        %v2818 = vpack.c.b16 %v2196, %v2194
        %v2819 = vpack.c.b16 %v2199, %v2197
        %v2820 = vpack.c.b16 %v2200, %v2198
        %v2821 = vpack.c.b16 %v2203, %v2201
        %v2822 = vpack.c.b16 %v2204, %v2202
        %v2823 = vpack.c.b16 %v2207, %v2205
        %v2824 = vpack.c.b16 %v2208, %v2206
        %v2825 = vpack.c.b16 %v2211, %v2209
        %v2826 = vpack.c.b16 %v2212, %v2210
        %v2827 = vpack.c.b16 %v2215, %v2213
        %v2828 = vpack.c.b16 %v2216, %v2214
        %v2829 = vpack.c.b16 %v2219, %v2217
        %v2830 = vpack.c.b16 %v2220, %v2218
        %v2831 = vpack.c.b16 %v2223, %v2221
        %v2832 = vpack.c.b16 %v2224, %v2222
        %v2833 = vpack.c.b16 %v2227, %v2225
        %v2834 = vpack.c.b16 %v2228, %v2226
        %v2835 = vpack.c.b16 %v2231, %v2229
        %v2836 = vpack.c.b16 %v2232, %v2230
        %v2837 = vpack.c.b16 %v2235, %v2233
        %v2838 = vpack.c.b16 %v2236, %v2234
        %v2839 = vpack.c.b16 %v2239, %v2237
        %v2840 = vpack.c.b16 %v2240, %v2238
        %v2841 = vpack.c.b16 %v2243, %v2241
        %v2842 = vpack.c.b16 %v2244, %v2242
        %v2843 = vpack.c.b16 %v2247, %v2245
        %v2844 = vpack.c.b16 %v2248, %v2246
        %v2845 = vpack.c.b16 %v2251, %v2249
        %v2846 = vpack.c.b16 %v2252, %v2250
        %v2847 = vpack.c.b16 %v2255, %v2253
        %v2848 = vpack.c.b16 %v2256, %v2254
        %v2849 = vpack.c.b16 %v2259, %v2257
        %v2850 = vpack.c.b16 %v2260, %v2258
        %v2851 = vpack.c.b16 %v2263, %v2261
        %v2852 = vpack.c.b16 %v2264, %v2262
        %v2853 = vpack.c.b16 %v2267, %v2265
        %v2854 = vpack.c.b16 %v2268, %v2266
        %v2855 = vpack.c.b16 %v2271, %v2269
        %v2856 = vpack.c.b16 %v2272, %v2270
        %v2857 = vpack.c.b16 %v2275, %v2273
        %v2858 = vpack.c.b16 %v2276, %v2274
        %v2859 = vpack.c.b16 %v2279, %v2277
        %v2860 = vpack.c.b16 %v2280, %v2278
        %v2861 = vpack.c.b16 %v2283, %v2281
        %v2862 = vpack.c.b16 %v2284, %v2282
        %v2863 = vpack.c.b16 %v2287, %v2285
        %v2864 = vpack.c.b16 %v2288, %v2286
        %v2865 = vpack.c.b16 %v2291, %v2289
        %v2866 = vpack.c.b16 %v2292, %v2290
        %v2867 = vpack.c.b16 %v2295, %v2293
        %v2868 = vpack.c.b16 %v2296, %v2294
        %v2869 = vpack.c.b16 %v2299, %v2297
        %v2870 = vpack.c.b16 %v2300, %v2298
        %v2871 = vpack.c.b16 %v2303, %v2301
        %v2872 = vpack.c.b16 %v2304, %v2302
        %v2873 = vpack.c.b16 %v2307, %v2305
        %v2874 = vpack.c.b16 %v2308, %v2306
        %v2875 = vpack.c.b16 %v2311, %v2309
        %v2876 = vpack.c.b16 %v2312, %v2310
        %v2877 = vpack.c.b16 %v2315, %v2313
        %v2878 = vpack.c.b16 %v2316, %v2314
        %v2879 = vpack.c.b16 %v2319, %v2317
        %v2880 = vpack.c.b16 %v2320, %v2318
        %v2881 = vpack.c.b16 %v2323, %v2321
        %v2882 = vpack.c.b16 %v2324, %v2322
        %v2883 = vpack.c.b16 %v2327, %v2325
        %v2884 = vpack.c.b16 %v2328, %v2326
        %v2885 = vpack.c.b16 %v2331, %v2329
        %v2886 = vpack.c.b16 %v2332, %v2330
        %v2887 = vpack.c.b16 %v2335, %v2333
        %v2888 = vpack.c.b16 %v2336, %v2334
        %v2889 = vpack.c.b16 %v2339, %v2337
        %v2890 = vpack.c.b16 %v2340, %v2338
        %v2891 = vpack.c.b16 %v2343, %v2341
        %v2892 = vpack.c.b16 %v2344, %v2342
        %v2893 = vpack.c.b16 %v2347, %v2345
        %v2894 = vpack.c.b16 %v2348, %v2346
        %v2895 = vpack.c.b16 %v2351, %v2349
        %v2896 = vpack.c.b16 %v2352, %v2350
        %v2897 = vpack.c.b16 %v2355, %v2353
        %v2898 = vpack.c.b16 %v2356, %v2354
        %v2899 = vpack.c.b16 %v2359, %v2357
        %v2900 = vpack.c.b16 %v2360, %v2358
        %v2901 = vpack.c.b16 %v2363, %v2361
        %v2902 = vpack.c.b16 %v2364, %v2362
        %v2903 = vpack.c.b16 %v2367, %v2365
        %v2904 = vpack.c.b16 %v2368, %v2366
        %v2905 = vpack.c.b16 %v2371, %v2369
        %v2906 = vpack.c.b16 %v2372, %v2370
        %v2907 = vpack.c.b16 %v2375, %v2373
        %v2908 = vpack.c.b16 %v2376, %v2374
        %v2909 = vpack.c.b16 %v2379, %v2377
        %v2910 = vpack.c.b16 %v2380, %v2378
        %v2911 = vpack.c.b16 %v2383, %v2381
        %v2912 = vpack.c.b16 %v2384, %v2382
        %v2913 = vpack.c.b16 %v2387, %v2385
        %v2914 = vpack.c.b16 %v2388, %v2386
        %v2915 = vpack.c.b16 %v2391, %v2389
        %v2916 = vpack.c.b16 %v2392, %v2390
        %v2917 = vpack.c.b16 %v2395, %v2393
        %v2918 = vpack.c.b16 %v2396, %v2394
        %v2919 = vpack.c.b16 %v2399, %v2397
        %v2920 = vpack.c.b16 %v2400, %v2398
        %v2921 = vpack.c.b16 %v2403, %v2401
        %v2922 = vpack.c.b16 %v2404, %v2402
        %v2923 = vpack.c.b16 %v2407, %v2405
        %v2924 = vpack.c.b16 %v2408, %v2406
        %v2925 = vpack.c.b16 %v2411, %v2409
        %v2926 = vpack.c.b16 %v2412, %v2410
        %v2927 = vpack.c.b16 %v2415, %v2413
        %v2928 = vpack.c.b16 %v2416, %v2414
        %3441 = vmatpush.bf16.msra.mxu0 %v2431
        %3442 = vmatpush.bf16.msra.mxu0 %v2429
        %3443 = vmatpush.bf16.msra.mxu0 %v2427
        %3444 = vmatpush.bf16.msra.mxu0 %v2425
        %3445 = vmatpush.bf16.msra.mxu0 %v2423
        %3446 = vmatpush.bf16.msra.mxu0 %v2421
        %3447 = vmatpush.bf16.msra.mxu0 %v2419
        %3448 = vmatpush.bf16.msra.mxu0 %v2417
        %3449 = vmatmul.bf16.gmra.mxu0 %v817
        %v3450 = vpop.f32.mrf.mxu0
        %v3451 = vadd.f32 %v765, %v3450
        %v3452 = vpop.f32.mrf.mxu0
        %3453 = vdwg.mxu0
        %3454 = vmatpush.bf16.msra.mxu0 %v2447
        %3455 = vmatpush.bf16.msra.mxu0 %v2445
        %3456 = vmatpush.bf16.msra.mxu0 %v2443
        %3457 = vmatpush.bf16.msra.mxu0 %v2441
        %3458 = vmatpush.bf16.msra.mxu0 %v2439
        %3459 = vmatpush.bf16.msra.mxu0 %v2437
        %3460 = vmatpush.bf16.msra.mxu0 %v2435
        %3461 = vmatpush.bf16.msra.mxu0 %v2433
        %3462 = vmatmul.bf16.gmra.mxu0 %v818
        %v3463 = vpop.f32.mrf.mxu0
        %v3464 = vadd.f32 %v3451, %v3463
        %v3465 = vpop.f32.mrf.mxu0
        %3466 = vdwg.mxu0
        %3467 = vmatpush.bf16.msra.mxu0 %v2463
        %3468 = vmatpush.bf16.msra.mxu0 %v2461
        %3469 = vmatpush.bf16.msra.mxu0 %v2459
        %3470 = vmatpush.bf16.msra.mxu0 %v2457
        %3471 = vmatpush.bf16.msra.mxu0 %v2455
        %3472 = vmatpush.bf16.msra.mxu0 %v2453
        %3473 = vmatpush.bf16.msra.mxu0 %v2451
        %3474 = vmatpush.bf16.msra.mxu0 %v2449
        %3475 = vmatmul.bf16.gmra.mxu0 %v819
        %v3476 = vpop.f32.mrf.mxu0
        %v3477 = vadd.f32 %v3464, %v3476
        %v3478 = vpop.f32.mrf.mxu0
        %3479 = vdwg.mxu0
        %3480 = vmatpush.bf16.msra.mxu0 %v2479
        %3481 = vmatpush.bf16.msra.mxu0 %v2477
        %3482 = vmatpush.bf16.msra.mxu0 %v2475
        %3483 = vmatpush.bf16.msra.mxu0 %v2473
        %3484 = vmatpush.bf16.msra.mxu0 %v2471
        %3485 = vmatpush.bf16.msra.mxu0 %v2469
        %3486 = vmatpush.bf16.msra.mxu0 %v2467
        %3487 = vmatpush.bf16.msra.mxu0 %v2465
        %3488 = vmatmul.bf16.gmra.mxu0 %v820
        %v3489 = vpop.f32.mrf.mxu0
        %v3490 = vadd.f32 %v3477, %v3489
        %v3491 = vpop.f32.mrf.mxu0
        %3492 = vdwg.mxu0
        %3493 = vmatpush.bf16.msra.mxu0 %v2495
        %3494 = vmatpush.bf16.msra.mxu0 %v2493
        %3495 = vmatpush.bf16.msra.mxu0 %v2491
        %3496 = vmatpush.bf16.msra.mxu0 %v2489
        %3497 = vmatpush.bf16.msra.mxu0 %v2487
        %3498 = vmatpush.bf16.msra.mxu0 %v2485
        %3499 = vmatpush.bf16.msra.mxu0 %v2483
        %3500 = vmatpush.bf16.msra.mxu0 %v2481
        %3501 = vmatmul.bf16.gmra.mxu0 %v821
        %v3502 = vpop.f32.mrf.mxu0
        %v3503 = vadd.f32 %v3490, %v3502
        %v3504 = vpop.f32.mrf.mxu0
        %3505 = vdwg.mxu0
        %3506 = vmatpush.bf16.msra.mxu0 %v2511
        %3507 = vmatpush.bf16.msra.mxu0 %v2509
        %3508 = vmatpush.bf16.msra.mxu0 %v2507
        %3509 = vmatpush.bf16.msra.mxu0 %v2505
        %3510 = vmatpush.bf16.msra.mxu0 %v2503
        %3511 = vmatpush.bf16.msra.mxu0 %v2501
        %3512 = vmatpush.bf16.msra.mxu0 %v2499
        %3513 = vmatpush.bf16.msra.mxu0 %v2497
        %3514 = vmatmul.bf16.gmra.mxu0 %v822
        %v3515 = vpop.f32.mrf.mxu0
        %v3516 = vadd.f32 %v3503, %v3515
        %v3517 = vpop.f32.mrf.mxu0
        %3518 = vdwg.mxu0
        %3519 = vmatpush.bf16.msra.mxu0 %v2527
        %3520 = vmatpush.bf16.msra.mxu0 %v2525
        %3521 = vmatpush.bf16.msra.mxu0 %v2523
        %3522 = vmatpush.bf16.msra.mxu0 %v2521
        %3523 = vmatpush.bf16.msra.mxu0 %v2519
        %3524 = vmatpush.bf16.msra.mxu0 %v2517
        %3525 = vmatpush.bf16.msra.mxu0 %v2515
        %3526 = vmatpush.bf16.msra.mxu0 %v2513
        %3527 = vmatmul.bf16.gmra.mxu0 %v823
        %v3528 = vpop.f32.mrf.mxu0
        %v3529 = vadd.f32 %v3516, %v3528
        %v3530 = vpop.f32.mrf.mxu0
        %3531 = vdwg.mxu0
        %3532 = vmatpush.bf16.msra.mxu0 %v2543
        %3533 = vmatpush.bf16.msra.mxu0 %v2541
        %3534 = vmatpush.bf16.msra.mxu0 %v2539
        %3535 = vmatpush.bf16.msra.mxu0 %v2537
        %3536 = vmatpush.bf16.msra.mxu0 %v2535
        %3537 = vmatpush.bf16.msra.mxu0 %v2533
        %3538 = vmatpush.bf16.msra.mxu0 %v2531
        %3539 = vmatpush.bf16.msra.mxu0 %v2529
        %3540 = vmatmul.bf16.gmra.mxu0 %v824
        %v3541 = vpop.f32.mrf.mxu0
        %v3542 = vadd.f32 %v3529, %v3541
        %v3543 = vpop.f32.mrf.mxu0
        %3544 = vdwg.mxu0
        %3545 = vmatpush.bf16.msra.mxu0 %v2559
        %3546 = vmatpush.bf16.msra.mxu0 %v2557
        %3547 = vmatpush.bf16.msra.mxu0 %v2555
        %3548 = vmatpush.bf16.msra.mxu0 %v2553
        %3549 = vmatpush.bf16.msra.mxu0 %v2551
        %3550 = vmatpush.bf16.msra.mxu0 %v2549
        %3551 = vmatpush.bf16.msra.mxu0 %v2547
        %3552 = vmatpush.bf16.msra.mxu0 %v2545
        %3553 = vmatmul.bf16.gmra.mxu0 %v825
        %v3554 = vpop.f32.mrf.mxu0
        %v3555 = vadd.f32 %v3542, %v3554
        %v3556 = vpop.f32.mrf.mxu0
        %3557 = vdwg.mxu0
        %3558 = vmatpush.bf16.msra.mxu0 %v2575
        %3559 = vmatpush.bf16.msra.mxu0 %v2573
        %3560 = vmatpush.bf16.msra.mxu0 %v2571
        %3561 = vmatpush.bf16.msra.mxu0 %v2569
        %3562 = vmatpush.bf16.msra.mxu0 %v2567
        %3563 = vmatpush.bf16.msra.mxu0 %v2565
        %3564 = vmatpush.bf16.msra.mxu0 %v2563
        %3565 = vmatpush.bf16.msra.mxu0 %v2561
        %3566 = vmatmul.bf16.gmra.mxu0 %v826
        %v3567 = vpop.f32.mrf.mxu0
        %v3568 = vadd.f32 %v3555, %v3567
        %v3569 = vpop.f32.mrf.mxu0
        %3570 = vdwg.mxu0
        %3571 = vmatpush.bf16.msra.mxu0 %v2591
        %3572 = vmatpush.bf16.msra.mxu0 %v2589
        %3573 = vmatpush.bf16.msra.mxu0 %v2587
        %3574 = vmatpush.bf16.msra.mxu0 %v2585
        %3575 = vmatpush.bf16.msra.mxu0 %v2583
        %3576 = vmatpush.bf16.msra.mxu0 %v2581
        %3577 = vmatpush.bf16.msra.mxu0 %v2579
        %3578 = vmatpush.bf16.msra.mxu0 %v2577
        %3579 = vmatmul.bf16.gmra.mxu0 %v827
        %v3580 = vpop.f32.mrf.mxu0
        %v3581 = vadd.f32 %v3568, %v3580
        %v3582 = vpop.f32.mrf.mxu0
        %3583 = vdwg.mxu0
        %3584 = vmatpush.bf16.msra.mxu0 %v2607
        %3585 = vmatpush.bf16.msra.mxu0 %v2605
        %3586 = vmatpush.bf16.msra.mxu0 %v2603
        %3587 = vmatpush.bf16.msra.mxu0 %v2601
        %3588 = vmatpush.bf16.msra.mxu0 %v2599
        %3589 = vmatpush.bf16.msra.mxu0 %v2597
        %3590 = vmatpush.bf16.msra.mxu0 %v2595
        %3591 = vmatpush.bf16.msra.mxu0 %v2593
        %3592 = vmatmul.bf16.gmra.mxu0 %v828
        %v3593 = vpop.f32.mrf.mxu0
        %v3594 = vadd.f32 %v3581, %v3593
        %v3595 = vpop.f32.mrf.mxu0
        %3596 = vdwg.mxu0
        %3597 = vmatpush.bf16.msra.mxu0 %v2623
        %3598 = vmatpush.bf16.msra.mxu0 %v2621
        %3599 = vmatpush.bf16.msra.mxu0 %v2619
        %3600 = vmatpush.bf16.msra.mxu0 %v2617
        %3601 = vmatpush.bf16.msra.mxu0 %v2615
        %3602 = vmatpush.bf16.msra.mxu0 %v2613
        %3603 = vmatpush.bf16.msra.mxu0 %v2611
        %3604 = vmatpush.bf16.msra.mxu0 %v2609
        %3605 = vmatmul.bf16.gmra.mxu0 %v829
        %v3606 = vpop.f32.mrf.mxu0
        %v3607 = vadd.f32 %v3594, %v3606
        %v3608 = vpop.f32.mrf.mxu0
        %3609 = vdwg.mxu0
        %3610 = vmatpush.bf16.msra.mxu0 %v2639
        %3611 = vmatpush.bf16.msra.mxu0 %v2637
        %3612 = vmatpush.bf16.msra.mxu0 %v2635
        %3613 = vmatpush.bf16.msra.mxu0 %v2633
        %3614 = vmatpush.bf16.msra.mxu0 %v2631
        %3615 = vmatpush.bf16.msra.mxu0 %v2629
        %3616 = vmatpush.bf16.msra.mxu0 %v2627
        %3617 = vmatpush.bf16.msra.mxu0 %v2625
        %3618 = vmatmul.bf16.gmra.mxu0 %v830
        %v3619 = vpop.f32.mrf.mxu0
        %v3620 = vadd.f32 %v3607, %v3619
        %v3621 = vpop.f32.mrf.mxu0
        %3622 = vdwg.mxu0
        %3623 = vmatpush.bf16.msra.mxu0 %v2655
        %3624 = vmatpush.bf16.msra.mxu0 %v2653
        %3625 = vmatpush.bf16.msra.mxu0 %v2651
        %3626 = vmatpush.bf16.msra.mxu0 %v2649
        %3627 = vmatpush.bf16.msra.mxu0 %v2647
        %3628 = vmatpush.bf16.msra.mxu0 %v2645
        %3629 = vmatpush.bf16.msra.mxu0 %v2643
        %3630 = vmatpush.bf16.msra.mxu0 %v2641
        %3631 = vmatmul.bf16.gmra.mxu0 %v831
        %v3632 = vpop.f32.mrf.mxu0
        %v3633 = vadd.f32 %v3620, %v3632
        %v3634 = vpop.f32.mrf.mxu0
        %3635 = vdwg.mxu0
        %3636 = vmatpush.bf16.msra.mxu0 %v2671
        %3637 = vmatpush.bf16.msra.mxu0 %v2669
        %3638 = vmatpush.bf16.msra.mxu0 %v2667
        %3639 = vmatpush.bf16.msra.mxu0 %v2665
        %3640 = vmatpush.bf16.msra.mxu0 %v2663
        %3641 = vmatpush.bf16.msra.mxu0 %v2661
        %3642 = vmatpush.bf16.msra.mxu0 %v2659
        %3643 = vmatpush.bf16.msra.mxu0 %v2657
        %3644 = vmatmul.bf16.gmra.mxu0 %v832
        %v3645 = vpop.f32.mrf.mxu0
        %v3646 = vadd.f32 %v3633, %v3645
        %v3647 = vpop.f32.mrf.mxu0
        %3648 = vdwg.mxu0
        %3649 = vmatpush.bf16.msra.mxu0 %v2687
        %3650 = vmatpush.bf16.msra.mxu0 %v2685
        %3651 = vmatpush.bf16.msra.mxu0 %v2683
        %3652 = vmatpush.bf16.msra.mxu0 %v2681
        %3653 = vmatpush.bf16.msra.mxu0 %v2679
        %3654 = vmatpush.bf16.msra.mxu0 %v2677
        %3655 = vmatpush.bf16.msra.mxu0 %v2675
        %3656 = vmatpush.bf16.msra.mxu0 %v2673
        %3657 = vmatmul.bf16.gmra.mxu0 %v833
        %v3658 = vpop.f32.mrf.mxu0
        %v3659 = vadd.f32 %v3646, %v3658
        %v3660 = vpop.f32.mrf.mxu0
        %3661 = vdwg.mxu0
        %3662 = vmatpush.bf16.msra.mxu0 %v2703
        %3663 = vmatpush.bf16.msra.mxu0 %v2701
        %3664 = vmatpush.bf16.msra.mxu0 %v2699
        %3665 = vmatpush.bf16.msra.mxu0 %v2697
        %3666 = vmatpush.bf16.msra.mxu0 %v2695
        %3667 = vmatpush.bf16.msra.mxu0 %v2693
        %3668 = vmatpush.bf16.msra.mxu0 %v2691
        %3669 = vmatpush.bf16.msra.mxu0 %v2689
        %3670 = vmatmul.bf16.gmra.mxu0 %v834
        %v3671 = vpop.f32.mrf.mxu0
        %v3672 = vadd.f32 %v3659, %v3671
        %v3673 = vpop.f32.mrf.mxu0
        %3674 = vdwg.mxu0
        %3675 = vmatpush.bf16.msra.mxu0 %v2719
        %3676 = vmatpush.bf16.msra.mxu0 %v2717
        %3677 = vmatpush.bf16.msra.mxu0 %v2715
        %3678 = vmatpush.bf16.msra.mxu0 %v2713
        %3679 = vmatpush.bf16.msra.mxu0 %v2711
        %3680 = vmatpush.bf16.msra.mxu0 %v2709
        %3681 = vmatpush.bf16.msra.mxu0 %v2707
        %3682 = vmatpush.bf16.msra.mxu0 %v2705
        %3683 = vmatmul.bf16.gmra.mxu0 %v835
        %v3684 = vpop.f32.mrf.mxu0
        %v3685 = vadd.f32 %v3672, %v3684
        %v3686 = vpop.f32.mrf.mxu0
        %3687 = vdwg.mxu0
        %3688 = vmatpush.bf16.msra.mxu0 %v2735
        %3689 = vmatpush.bf16.msra.mxu0 %v2733
        %3690 = vmatpush.bf16.msra.mxu0 %v2731
        %3691 = vmatpush.bf16.msra.mxu0 %v2729
        %3692 = vmatpush.bf16.msra.mxu0 %v2727
        %3693 = vmatpush.bf16.msra.mxu0 %v2725
        %3694 = vmatpush.bf16.msra.mxu0 %v2723
        %3695 = vmatpush.bf16.msra.mxu0 %v2721
        %3696 = vmatmul.bf16.gmra.mxu0 %v836
        %v3697 = vpop.f32.mrf.mxu0
        %v3698 = vadd.f32 %v3685, %v3697
        %v3699 = vpop.f32.mrf.mxu0
        %3700 = vdwg.mxu0
        %3701 = vmatpush.bf16.msra.mxu0 %v2751
        %3702 = vmatpush.bf16.msra.mxu0 %v2749
        %3703 = vmatpush.bf16.msra.mxu0 %v2747
        %3704 = vmatpush.bf16.msra.mxu0 %v2745
        %3705 = vmatpush.bf16.msra.mxu0 %v2743
        %3706 = vmatpush.bf16.msra.mxu0 %v2741
        %3707 = vmatpush.bf16.msra.mxu0 %v2739
        %3708 = vmatpush.bf16.msra.mxu0 %v2737
        %3709 = vmatmul.bf16.gmra.mxu0 %v837
        %v3710 = vpop.f32.mrf.mxu0
        %v3711 = vadd.f32 %v3698, %v3710
        %v3712 = vpop.f32.mrf.mxu0
        %3713 = vdwg.mxu0
        %3714 = vmatpush.bf16.msra.mxu0 %v2767
        %3715 = vmatpush.bf16.msra.mxu0 %v2765
        %3716 = vmatpush.bf16.msra.mxu0 %v2763
        %3717 = vmatpush.bf16.msra.mxu0 %v2761
        %3718 = vmatpush.bf16.msra.mxu0 %v2759
        %3719 = vmatpush.bf16.msra.mxu0 %v2757
        %3720 = vmatpush.bf16.msra.mxu0 %v2755
        %3721 = vmatpush.bf16.msra.mxu0 %v2753
        %3722 = vmatmul.bf16.gmra.mxu0 %v838
        %v3723 = vpop.f32.mrf.mxu0
        %v3724 = vadd.f32 %v3711, %v3723
        %v3725 = vpop.f32.mrf.mxu0
        %3726 = vdwg.mxu0
        %3727 = vmatpush.bf16.msra.mxu0 %v2783
        %3728 = vmatpush.bf16.msra.mxu0 %v2781
        %3729 = vmatpush.bf16.msra.mxu0 %v2779
        %3730 = vmatpush.bf16.msra.mxu0 %v2777
        %3731 = vmatpush.bf16.msra.mxu0 %v2775
        %3732 = vmatpush.bf16.msra.mxu0 %v2773
        %3733 = vmatpush.bf16.msra.mxu0 %v2771
        %3734 = vmatpush.bf16.msra.mxu0 %v2769
        %3735 = vmatmul.bf16.gmra.mxu0 %v839
        %v3736 = vpop.f32.mrf.mxu0
        %v3737 = vadd.f32 %v3724, %v3736
        %v3738 = vpop.f32.mrf.mxu0
        %3739 = vdwg.mxu0
        %3740 = vmatpush.bf16.msra.mxu0 %v2799
        %3741 = vmatpush.bf16.msra.mxu0 %v2797
        %3742 = vmatpush.bf16.msra.mxu0 %v2795
        %3743 = vmatpush.bf16.msra.mxu0 %v2793
        %3744 = vmatpush.bf16.msra.mxu0 %v2791
        %3745 = vmatpush.bf16.msra.mxu0 %v2789
        %3746 = vmatpush.bf16.msra.mxu0 %v2787
        %3747 = vmatpush.bf16.msra.mxu0 %v2785
        %3748 = vmatmul.bf16.gmra.mxu0 %v840
        %v3749 = vpop.f32.mrf.mxu0
        %v3750 = vadd.f32 %v3737, %v3749
        %v3751 = vpop.f32.mrf.mxu0
        %3752 = vdwg.mxu0
        %3753 = vmatpush.bf16.msra.mxu0 %v2815
        %3754 = vmatpush.bf16.msra.mxu0 %v2813
        %3755 = vmatpush.bf16.msra.mxu0 %v2811
        %3756 = vmatpush.bf16.msra.mxu0 %v2809
        %3757 = vmatpush.bf16.msra.mxu0 %v2807
        %3758 = vmatpush.bf16.msra.mxu0 %v2805
        %3759 = vmatpush.bf16.msra.mxu0 %v2803
        %3760 = vmatpush.bf16.msra.mxu0 %v2801
        %3761 = vmatmul.bf16.gmra.mxu0 %v841
        %v3762 = vpop.f32.mrf.mxu0
        %v3763 = vadd.f32 %v3750, %v3762
        %v3764 = vpop.f32.mrf.mxu0
        %3765 = vdwg.mxu0
        %3766 = vmatpush.bf16.msra.mxu0 %v2831
        %3767 = vmatpush.bf16.msra.mxu0 %v2829
        %3768 = vmatpush.bf16.msra.mxu0 %v2827
        %3769 = vmatpush.bf16.msra.mxu0 %v2825
        %3770 = vmatpush.bf16.msra.mxu0 %v2823
        %3771 = vmatpush.bf16.msra.mxu0 %v2821
        %3772 = vmatpush.bf16.msra.mxu0 %v2819
        %3773 = vmatpush.bf16.msra.mxu0 %v2817
        %3774 = vmatmul.bf16.gmra.mxu0 %v842
        %v3775 = vpop.f32.mrf.mxu0
        %v3776 = vadd.f32 %v3763, %v3775
        %v3777 = vpop.f32.mrf.mxu0
        %3778 = vdwg.mxu0
        %3779 = vmatpush.bf16.msra.mxu0 %v2847
        %3780 = vmatpush.bf16.msra.mxu0 %v2845
        %3781 = vmatpush.bf16.msra.mxu0 %v2843
        %3782 = vmatpush.bf16.msra.mxu0 %v2841
        %3783 = vmatpush.bf16.msra.mxu0 %v2839
        %3784 = vmatpush.bf16.msra.mxu0 %v2837
        %3785 = vmatpush.bf16.msra.mxu0 %v2835
        %3786 = vmatpush.bf16.msra.mxu0 %v2833
        %3787 = vmatmul.bf16.gmra.mxu0 %v843
        %v3788 = vpop.f32.mrf.mxu0
        %v3789 = vadd.f32 %v3776, %v3788
        %v3790 = vpop.f32.mrf.mxu0
        %3791 = vdwg.mxu0
        %3792 = vmatpush.bf16.msra.mxu0 %v2863
        %3793 = vmatpush.bf16.msra.mxu0 %v2861
        %3794 = vmatpush.bf16.msra.mxu0 %v2859
        %3795 = vmatpush.bf16.msra.mxu0 %v2857
        %3796 = vmatpush.bf16.msra.mxu0 %v2855
        %3797 = vmatpush.bf16.msra.mxu0 %v2853
        %3798 = vmatpush.bf16.msra.mxu0 %v2851
        %3799 = vmatpush.bf16.msra.mxu0 %v2849
        %3800 = vmatmul.bf16.gmra.mxu0 %v844
        %v3801 = vpop.f32.mrf.mxu0
        %v3802 = vadd.f32 %v3789, %v3801
        %v3803 = vpop.f32.mrf.mxu0
        %3804 = vdwg.mxu0
        %3805 = vmatpush.bf16.msra.mxu0 %v2879
        %3806 = vmatpush.bf16.msra.mxu0 %v2877
        %3807 = vmatpush.bf16.msra.mxu0 %v2875
        %3808 = vmatpush.bf16.msra.mxu0 %v2873
        %3809 = vmatpush.bf16.msra.mxu0 %v2871
        %3810 = vmatpush.bf16.msra.mxu0 %v2869
        %3811 = vmatpush.bf16.msra.mxu0 %v2867
        %3812 = vmatpush.bf16.msra.mxu0 %v2865
        %3813 = vmatmul.bf16.gmra.mxu0 %v845
        %v3814 = vpop.f32.mrf.mxu0
        %v3815 = vadd.f32 %v3802, %v3814
        %v3816 = vpop.f32.mrf.mxu0
        %3817 = vdwg.mxu0
        %3818 = vmatpush.bf16.msra.mxu0 %v2895
        %3819 = vmatpush.bf16.msra.mxu0 %v2893
        %3820 = vmatpush.bf16.msra.mxu0 %v2891
        %3821 = vmatpush.bf16.msra.mxu0 %v2889
        %3822 = vmatpush.bf16.msra.mxu0 %v2887
        %3823 = vmatpush.bf16.msra.mxu0 %v2885
        %3824 = vmatpush.bf16.msra.mxu0 %v2883
        %3825 = vmatpush.bf16.msra.mxu0 %v2881
        %3826 = vmatmul.bf16.gmra.mxu0 %v846
        %v3827 = vpop.f32.mrf.mxu0
        %v3828 = vadd.f32 %v3815, %v3827
        %v3829 = vpop.f32.mrf.mxu0
        %3830 = vdwg.mxu0
        %3831 = vmatpush.bf16.msra.mxu0 %v2911
        %3832 = vmatpush.bf16.msra.mxu0 %v2909
        %3833 = vmatpush.bf16.msra.mxu0 %v2907
        %3834 = vmatpush.bf16.msra.mxu0 %v2905
        %3835 = vmatpush.bf16.msra.mxu0 %v2903
        %3836 = vmatpush.bf16.msra.mxu0 %v2901
        %3837 = vmatpush.bf16.msra.mxu0 %v2899
        %3838 = vmatpush.bf16.msra.mxu0 %v2897
        %3839 = vmatmul.bf16.gmra.mxu0 %v847
        %v3840 = vpop.f32.mrf.mxu0
        %v3841 = vadd.f32 %v3828, %v3840
        %v3842 = vpop.f32.mrf.mxu0
        %3843 = vdwg.mxu0
        %3844 = vmatpush.bf16.msra.mxu0 %v2927
        %3845 = vmatpush.bf16.msra.mxu0 %v2925
        %3846 = vmatpush.bf16.msra.mxu0 %v2923
        %3847 = vmatpush.bf16.msra.mxu0 %v2921
        %3848 = vmatpush.bf16.msra.mxu0 %v2919
        %3849 = vmatpush.bf16.msra.mxu0 %v2917
        %3850 = vmatpush.bf16.msra.mxu0 %v2915
        %3851 = vmatpush.bf16.msra.mxu0 %v2913
        %3852 = vmatmul.bf16.gmra.mxu0 %v848
        %v3853 = vpop.f32.mrf.mxu0
        %v3854 = vadd.f32 %v3841, %v3853
        %v3855 = vpop.f32.mrf.mxu0
        %3856 = vdwg.mxu0
        %3857 = vmatpush.bf16.msra.mxu0 %v2432
        %3858 = vmatpush.bf16.msra.mxu0 %v2430
        %3859 = vmatpush.bf16.msra.mxu0 %v2428
        %3860 = vmatpush.bf16.msra.mxu0 %v2426
        %3861 = vmatpush.bf16.msra.mxu0 %v2424
        %3862 = vmatpush.bf16.msra.mxu0 %v2422
        %3863 = vmatpush.bf16.msra.mxu0 %v2420
        %3864 = vmatpush.bf16.msra.mxu0 %v2418
        %3865 = vmatmul.bf16.gmra.mxu0 %v817
        %v3866 = vpop.f32.mrf.mxu0
        %v3867 = vadd.f32 %v766, %v3866
        %v3868 = vpop.f32.mrf.mxu0
        %3869 = vdwg.mxu0
        %3870 = vmatpush.bf16.msra.mxu0 %v2448
        %3871 = vmatpush.bf16.msra.mxu0 %v2446
        %3872 = vmatpush.bf16.msra.mxu0 %v2444
        %3873 = vmatpush.bf16.msra.mxu0 %v2442
        %3874 = vmatpush.bf16.msra.mxu0 %v2440
        %3875 = vmatpush.bf16.msra.mxu0 %v2438
        %3876 = vmatpush.bf16.msra.mxu0 %v2436
        %3877 = vmatpush.bf16.msra.mxu0 %v2434
        %3878 = vmatmul.bf16.gmra.mxu0 %v818
        %v3879 = vpop.f32.mrf.mxu0
        %v3880 = vadd.f32 %v3867, %v3879
        %v3881 = vpop.f32.mrf.mxu0
        %3882 = vdwg.mxu0
        %3883 = vmatpush.bf16.msra.mxu0 %v2464
        %3884 = vmatpush.bf16.msra.mxu0 %v2462
        %3885 = vmatpush.bf16.msra.mxu0 %v2460
        %3886 = vmatpush.bf16.msra.mxu0 %v2458
        %3887 = vmatpush.bf16.msra.mxu0 %v2456
        %3888 = vmatpush.bf16.msra.mxu0 %v2454
        %3889 = vmatpush.bf16.msra.mxu0 %v2452
        %3890 = vmatpush.bf16.msra.mxu0 %v2450
        %3891 = vmatmul.bf16.gmra.mxu0 %v819
        %v3892 = vpop.f32.mrf.mxu0
        %v3893 = vadd.f32 %v3880, %v3892
        %v3894 = vpop.f32.mrf.mxu0
        %3895 = vdwg.mxu0
        %3896 = vmatpush.bf16.msra.mxu0 %v2480
        %3897 = vmatpush.bf16.msra.mxu0 %v2478
        %3898 = vmatpush.bf16.msra.mxu0 %v2476
        %3899 = vmatpush.bf16.msra.mxu0 %v2474
        %3900 = vmatpush.bf16.msra.mxu0 %v2472
        %3901 = vmatpush.bf16.msra.mxu0 %v2470
        %3902 = vmatpush.bf16.msra.mxu0 %v2468
        %3903 = vmatpush.bf16.msra.mxu0 %v2466
        %3904 = vmatmul.bf16.gmra.mxu0 %v820
        %v3905 = vpop.f32.mrf.mxu0
        %v3906 = vadd.f32 %v3893, %v3905
        %v3907 = vpop.f32.mrf.mxu0
        %3908 = vdwg.mxu0
        %3909 = vmatpush.bf16.msra.mxu0 %v2496
        %3910 = vmatpush.bf16.msra.mxu0 %v2494
        %3911 = vmatpush.bf16.msra.mxu0 %v2492
        %3912 = vmatpush.bf16.msra.mxu0 %v2490
        %3913 = vmatpush.bf16.msra.mxu0 %v2488
        %3914 = vmatpush.bf16.msra.mxu0 %v2486
        %3915 = vmatpush.bf16.msra.mxu0 %v2484
        %3916 = vmatpush.bf16.msra.mxu0 %v2482
        %3917 = vmatmul.bf16.gmra.mxu0 %v821
        %v3918 = vpop.f32.mrf.mxu0
        %v3919 = vadd.f32 %v3906, %v3918
        %v3920 = vpop.f32.mrf.mxu0
        %3921 = vdwg.mxu0
        %3922 = vmatpush.bf16.msra.mxu0 %v2512
        %3923 = vmatpush.bf16.msra.mxu0 %v2510
        %3924 = vmatpush.bf16.msra.mxu0 %v2508
        %3925 = vmatpush.bf16.msra.mxu0 %v2506
        %3926 = vmatpush.bf16.msra.mxu0 %v2504
        %3927 = vmatpush.bf16.msra.mxu0 %v2502
        %3928 = vmatpush.bf16.msra.mxu0 %v2500
        %3929 = vmatpush.bf16.msra.mxu0 %v2498
        %3930 = vmatmul.bf16.gmra.mxu0 %v822
        %v3931 = vpop.f32.mrf.mxu0
        %v3932 = vadd.f32 %v3919, %v3931
        %v3933 = vpop.f32.mrf.mxu0
        %3934 = vdwg.mxu0
        %3935 = vmatpush.bf16.msra.mxu0 %v2528
        %3936 = vmatpush.bf16.msra.mxu0 %v2526
        %3937 = vmatpush.bf16.msra.mxu0 %v2524
        %3938 = vmatpush.bf16.msra.mxu0 %v2522
        %3939 = vmatpush.bf16.msra.mxu0 %v2520
        %3940 = vmatpush.bf16.msra.mxu0 %v2518
        %3941 = vmatpush.bf16.msra.mxu0 %v2516
        %3942 = vmatpush.bf16.msra.mxu0 %v2514
        %3943 = vmatmul.bf16.gmra.mxu0 %v823
        %v3944 = vpop.f32.mrf.mxu0
        %v3945 = vadd.f32 %v3932, %v3944
        %v3946 = vpop.f32.mrf.mxu0
        %3947 = vdwg.mxu0
        %3948 = vmatpush.bf16.msra.mxu0 %v2544
        %3949 = vmatpush.bf16.msra.mxu0 %v2542
        %3950 = vmatpush.bf16.msra.mxu0 %v2540
        %3951 = vmatpush.bf16.msra.mxu0 %v2538
        %3952 = vmatpush.bf16.msra.mxu0 %v2536
        %3953 = vmatpush.bf16.msra.mxu0 %v2534
        %3954 = vmatpush.bf16.msra.mxu0 %v2532
        %3955 = vmatpush.bf16.msra.mxu0 %v2530
        %3956 = vmatmul.bf16.gmra.mxu0 %v824
        %v3957 = vpop.f32.mrf.mxu0
        %v3958 = vadd.f32 %v3945, %v3957
        %v3959 = vpop.f32.mrf.mxu0
        %3960 = vdwg.mxu0
        %3961 = vmatpush.bf16.msra.mxu0 %v2560
        %3962 = vmatpush.bf16.msra.mxu0 %v2558
        %3963 = vmatpush.bf16.msra.mxu0 %v2556
        %3964 = vmatpush.bf16.msra.mxu0 %v2554
        %3965 = vmatpush.bf16.msra.mxu0 %v2552
        %3966 = vmatpush.bf16.msra.mxu0 %v2550
        %3967 = vmatpush.bf16.msra.mxu0 %v2548
        %3968 = vmatpush.bf16.msra.mxu0 %v2546
        %3969 = vmatmul.bf16.gmra.mxu0 %v825
        %v3970 = vpop.f32.mrf.mxu0
        %v3971 = vadd.f32 %v3958, %v3970
        %v3972 = vpop.f32.mrf.mxu0
        %3973 = vdwg.mxu0
        %3974 = vmatpush.bf16.msra.mxu0 %v2576
        %3975 = vmatpush.bf16.msra.mxu0 %v2574
        %3976 = vmatpush.bf16.msra.mxu0 %v2572
        %3977 = vmatpush.bf16.msra.mxu0 %v2570
        %3978 = vmatpush.bf16.msra.mxu0 %v2568
        %3979 = vmatpush.bf16.msra.mxu0 %v2566
        %3980 = vmatpush.bf16.msra.mxu0 %v2564
        %3981 = vmatpush.bf16.msra.mxu0 %v2562
        %3982 = vmatmul.bf16.gmra.mxu0 %v826
        %v3983 = vpop.f32.mrf.mxu0
        %v3984 = vadd.f32 %v3971, %v3983
        %v3985 = vpop.f32.mrf.mxu0
        %3986 = vdwg.mxu0
        %3987 = vmatpush.bf16.msra.mxu0 %v2592
        %3988 = vmatpush.bf16.msra.mxu0 %v2590
        %3989 = vmatpush.bf16.msra.mxu0 %v2588
        %3990 = vmatpush.bf16.msra.mxu0 %v2586
        %3991 = vmatpush.bf16.msra.mxu0 %v2584
        %3992 = vmatpush.bf16.msra.mxu0 %v2582
        %3993 = vmatpush.bf16.msra.mxu0 %v2580
        %3994 = vmatpush.bf16.msra.mxu0 %v2578
        %3995 = vmatmul.bf16.gmra.mxu0 %v827
        %v3996 = vpop.f32.mrf.mxu0
        %v3997 = vadd.f32 %v3984, %v3996
        %v3998 = vpop.f32.mrf.mxu0
        %3999 = vdwg.mxu0
        %4000 = vmatpush.bf16.msra.mxu0 %v2608
        %4001 = vmatpush.bf16.msra.mxu0 %v2606
        %4002 = vmatpush.bf16.msra.mxu0 %v2604
        %4003 = vmatpush.bf16.msra.mxu0 %v2602
        %4004 = vmatpush.bf16.msra.mxu0 %v2600
        %4005 = vmatpush.bf16.msra.mxu0 %v2598
        %4006 = vmatpush.bf16.msra.mxu0 %v2596
        %4007 = vmatpush.bf16.msra.mxu0 %v2594
        %4008 = vmatmul.bf16.gmra.mxu0 %v828
        %v4009 = vpop.f32.mrf.mxu0
        %v4010 = vadd.f32 %v3997, %v4009
        %v4011 = vpop.f32.mrf.mxu0
        %4012 = vdwg.mxu0
        %4013 = vmatpush.bf16.msra.mxu0 %v2624
        %4014 = vmatpush.bf16.msra.mxu0 %v2622
        %4015 = vmatpush.bf16.msra.mxu0 %v2620
        %4016 = vmatpush.bf16.msra.mxu0 %v2618
        %4017 = vmatpush.bf16.msra.mxu0 %v2616
        %4018 = vmatpush.bf16.msra.mxu0 %v2614
        %4019 = vmatpush.bf16.msra.mxu0 %v2612
        %4020 = vmatpush.bf16.msra.mxu0 %v2610
        %4021 = vmatmul.bf16.gmra.mxu0 %v829
        %v4022 = vpop.f32.mrf.mxu0
        %v4023 = vadd.f32 %v4010, %v4022
        %v4024 = vpop.f32.mrf.mxu0
        %4025 = vdwg.mxu0
        %4026 = vmatpush.bf16.msra.mxu0 %v2640
        %4027 = vmatpush.bf16.msra.mxu0 %v2638
        %4028 = vmatpush.bf16.msra.mxu0 %v2636
        %4029 = vmatpush.bf16.msra.mxu0 %v2634
        %4030 = vmatpush.bf16.msra.mxu0 %v2632
        %4031 = vmatpush.bf16.msra.mxu0 %v2630
        %4032 = vmatpush.bf16.msra.mxu0 %v2628
        %4033 = vmatpush.bf16.msra.mxu0 %v2626
        %4034 = vmatmul.bf16.gmra.mxu0 %v830
        %v4035 = vpop.f32.mrf.mxu0
        %v4036 = vadd.f32 %v4023, %v4035
        %v4037 = vpop.f32.mrf.mxu0
        %4038 = vdwg.mxu0
        %4039 = vmatpush.bf16.msra.mxu0 %v2656
        %4040 = vmatpush.bf16.msra.mxu0 %v2654
        %4041 = vmatpush.bf16.msra.mxu0 %v2652
        %4042 = vmatpush.bf16.msra.mxu0 %v2650
        %4043 = vmatpush.bf16.msra.mxu0 %v2648
        %4044 = vmatpush.bf16.msra.mxu0 %v2646
        %4045 = vmatpush.bf16.msra.mxu0 %v2644
        %4046 = vmatpush.bf16.msra.mxu0 %v2642
        %4047 = vmatmul.bf16.gmra.mxu0 %v831
        %v4048 = vpop.f32.mrf.mxu0
        %v4049 = vadd.f32 %v4036, %v4048
        %v4050 = vpop.f32.mrf.mxu0
        %4051 = vdwg.mxu0
        %4052 = vmatpush.bf16.msra.mxu0 %v2672
        %4053 = vmatpush.bf16.msra.mxu0 %v2670
        %4054 = vmatpush.bf16.msra.mxu0 %v2668
        %4055 = vmatpush.bf16.msra.mxu0 %v2666
        %4056 = vmatpush.bf16.msra.mxu0 %v2664
        %4057 = vmatpush.bf16.msra.mxu0 %v2662
        %4058 = vmatpush.bf16.msra.mxu0 %v2660
        %4059 = vmatpush.bf16.msra.mxu0 %v2658
        %4060 = vmatmul.bf16.gmra.mxu0 %v832
        %v4061 = vpop.f32.mrf.mxu0
        %v4062 = vadd.f32 %v4049, %v4061
        %v4063 = vpop.f32.mrf.mxu0
        %4064 = vdwg.mxu0
        %4065 = vmatpush.bf16.msra.mxu0 %v2688
        %4066 = vmatpush.bf16.msra.mxu0 %v2686
        %4067 = vmatpush.bf16.msra.mxu0 %v2684
        %4068 = vmatpush.bf16.msra.mxu0 %v2682
        %4069 = vmatpush.bf16.msra.mxu0 %v2680
        %4070 = vmatpush.bf16.msra.mxu0 %v2678
        %4071 = vmatpush.bf16.msra.mxu0 %v2676
        %4072 = vmatpush.bf16.msra.mxu0 %v2674
        %4073 = vmatmul.bf16.gmra.mxu0 %v833
        %v4074 = vpop.f32.mrf.mxu0
        %v4075 = vadd.f32 %v4062, %v4074
        %v4076 = vpop.f32.mrf.mxu0
        %4077 = vdwg.mxu0
        %4078 = vmatpush.bf16.msra.mxu0 %v2704
        %4079 = vmatpush.bf16.msra.mxu0 %v2702
        %4080 = vmatpush.bf16.msra.mxu0 %v2700
        %4081 = vmatpush.bf16.msra.mxu0 %v2698
        %4082 = vmatpush.bf16.msra.mxu0 %v2696
        %4083 = vmatpush.bf16.msra.mxu0 %v2694
        %4084 = vmatpush.bf16.msra.mxu0 %v2692
        %4085 = vmatpush.bf16.msra.mxu0 %v2690
        %4086 = vmatmul.bf16.gmra.mxu0 %v834
        %v4087 = vpop.f32.mrf.mxu0
        %v4088 = vadd.f32 %v4075, %v4087
        %v4089 = vpop.f32.mrf.mxu0
        %4090 = vdwg.mxu0
        %4091 = vmatpush.bf16.msra.mxu0 %v2720
        %4092 = vmatpush.bf16.msra.mxu0 %v2718
        %4093 = vmatpush.bf16.msra.mxu0 %v2716
        %4094 = vmatpush.bf16.msra.mxu0 %v2714
        %4095 = vmatpush.bf16.msra.mxu0 %v2712
        %4096 = vmatpush.bf16.msra.mxu0 %v2710
        %4097 = vmatpush.bf16.msra.mxu0 %v2708
        %4098 = vmatpush.bf16.msra.mxu0 %v2706
        %4099 = vmatmul.bf16.gmra.mxu0 %v835
        %v4100 = vpop.f32.mrf.mxu0
        %v4101 = vadd.f32 %v4088, %v4100
        %v4102 = vpop.f32.mrf.mxu0
        %4103 = vdwg.mxu0
        %4104 = vmatpush.bf16.msra.mxu0 %v2736
        %4105 = vmatpush.bf16.msra.mxu0 %v2734
        %4106 = vmatpush.bf16.msra.mxu0 %v2732
        %4107 = vmatpush.bf16.msra.mxu0 %v2730
        %4108 = vmatpush.bf16.msra.mxu0 %v2728
        %4109 = vmatpush.bf16.msra.mxu0 %v2726
        %4110 = vmatpush.bf16.msra.mxu0 %v2724
        %4111 = vmatpush.bf16.msra.mxu0 %v2722
        %4112 = vmatmul.bf16.gmra.mxu0 %v836
        %v4113 = vpop.f32.mrf.mxu0
        %v4114 = vadd.f32 %v4101, %v4113
        %v4115 = vpop.f32.mrf.mxu0
        %4116 = vdwg.mxu0
        %4117 = vmatpush.bf16.msra.mxu0 %v2752
        %4118 = vmatpush.bf16.msra.mxu0 %v2750
        %4119 = vmatpush.bf16.msra.mxu0 %v2748
        %4120 = vmatpush.bf16.msra.mxu0 %v2746
        %4121 = vmatpush.bf16.msra.mxu0 %v2744
        %4122 = vmatpush.bf16.msra.mxu0 %v2742
        %4123 = vmatpush.bf16.msra.mxu0 %v2740
        %4124 = vmatpush.bf16.msra.mxu0 %v2738
        %4125 = vmatmul.bf16.gmra.mxu0 %v837
        %v4126 = vpop.f32.mrf.mxu0
        %v4127 = vadd.f32 %v4114, %v4126
        %v4128 = vpop.f32.mrf.mxu0
        %4129 = vdwg.mxu0
        %4130 = vmatpush.bf16.msra.mxu0 %v2768
        %4131 = vmatpush.bf16.msra.mxu0 %v2766
        %4132 = vmatpush.bf16.msra.mxu0 %v2764
        %4133 = vmatpush.bf16.msra.mxu0 %v2762
        %4134 = vmatpush.bf16.msra.mxu0 %v2760
        %4135 = vmatpush.bf16.msra.mxu0 %v2758
        %4136 = vmatpush.bf16.msra.mxu0 %v2756
        %4137 = vmatpush.bf16.msra.mxu0 %v2754
        %4138 = vmatmul.bf16.gmra.mxu0 %v838
        %v4139 = vpop.f32.mrf.mxu0
        %v4140 = vadd.f32 %v4127, %v4139
        %v4141 = vpop.f32.mrf.mxu0
        %4142 = vdwg.mxu0
        %4143 = vmatpush.bf16.msra.mxu0 %v2784
        %4144 = vmatpush.bf16.msra.mxu0 %v2782
        %4145 = vmatpush.bf16.msra.mxu0 %v2780
        %4146 = vmatpush.bf16.msra.mxu0 %v2778
        %4147 = vmatpush.bf16.msra.mxu0 %v2776
        %4148 = vmatpush.bf16.msra.mxu0 %v2774
        %4149 = vmatpush.bf16.msra.mxu0 %v2772
        %4150 = vmatpush.bf16.msra.mxu0 %v2770
        %4151 = vmatmul.bf16.gmra.mxu0 %v839
        %v4152 = vpop.f32.mrf.mxu0
        %v4153 = vadd.f32 %v4140, %v4152
        %v4154 = vpop.f32.mrf.mxu0
        %4155 = vdwg.mxu0
        %4156 = vmatpush.bf16.msra.mxu0 %v2800
        %4157 = vmatpush.bf16.msra.mxu0 %v2798
        %4158 = vmatpush.bf16.msra.mxu0 %v2796
        %4159 = vmatpush.bf16.msra.mxu0 %v2794
        %4160 = vmatpush.bf16.msra.mxu0 %v2792
        %4161 = vmatpush.bf16.msra.mxu0 %v2790
        %4162 = vmatpush.bf16.msra.mxu0 %v2788
        %4163 = vmatpush.bf16.msra.mxu0 %v2786
        %4164 = vmatmul.bf16.gmra.mxu0 %v840
        %v4165 = vpop.f32.mrf.mxu0
        %v4166 = vadd.f32 %v4153, %v4165
        %v4167 = vpop.f32.mrf.mxu0
        %4168 = vdwg.mxu0
        %4169 = vmatpush.bf16.msra.mxu0 %v2816
        %4170 = vmatpush.bf16.msra.mxu0 %v2814
        %4171 = vmatpush.bf16.msra.mxu0 %v2812
        %4172 = vmatpush.bf16.msra.mxu0 %v2810
        %4173 = vmatpush.bf16.msra.mxu0 %v2808
        %4174 = vmatpush.bf16.msra.mxu0 %v2806
        %4175 = vmatpush.bf16.msra.mxu0 %v2804
        %4176 = vmatpush.bf16.msra.mxu0 %v2802
        %4177 = vmatmul.bf16.gmra.mxu0 %v841
        %v4178 = vpop.f32.mrf.mxu0
        %v4179 = vadd.f32 %v4166, %v4178
        %v4180 = vpop.f32.mrf.mxu0
        %4181 = vdwg.mxu0
        %4182 = vmatpush.bf16.msra.mxu0 %v2832
        %4183 = vmatpush.bf16.msra.mxu0 %v2830
        %4184 = vmatpush.bf16.msra.mxu0 %v2828
        %4185 = vmatpush.bf16.msra.mxu0 %v2826
        %4186 = vmatpush.bf16.msra.mxu0 %v2824
        %4187 = vmatpush.bf16.msra.mxu0 %v2822
        %4188 = vmatpush.bf16.msra.mxu0 %v2820
        %4189 = vmatpush.bf16.msra.mxu0 %v2818
        %4190 = vmatmul.bf16.gmra.mxu0 %v842
        %v4191 = vpop.f32.mrf.mxu0
        %v4192 = vadd.f32 %v4179, %v4191
        %v4193 = vpop.f32.mrf.mxu0
        %4194 = vdwg.mxu0
        %4195 = vmatpush.bf16.msra.mxu0 %v2848
        %4196 = vmatpush.bf16.msra.mxu0 %v2846
        %4197 = vmatpush.bf16.msra.mxu0 %v2844
        %4198 = vmatpush.bf16.msra.mxu0 %v2842
        %4199 = vmatpush.bf16.msra.mxu0 %v2840
        %4200 = vmatpush.bf16.msra.mxu0 %v2838
        %4201 = vmatpush.bf16.msra.mxu0 %v2836
        %4202 = vmatpush.bf16.msra.mxu0 %v2834
        %4203 = vmatmul.bf16.gmra.mxu0 %v843
        %v4204 = vpop.f32.mrf.mxu0
        %v4205 = vadd.f32 %v4192, %v4204
        %v4206 = vpop.f32.mrf.mxu0
        %4207 = vdwg.mxu0
        %4208 = vmatpush.bf16.msra.mxu0 %v2864
        %4209 = vmatpush.bf16.msra.mxu0 %v2862
        %4210 = vmatpush.bf16.msra.mxu0 %v2860
        %4211 = vmatpush.bf16.msra.mxu0 %v2858
        %4212 = vmatpush.bf16.msra.mxu0 %v2856
        %4213 = vmatpush.bf16.msra.mxu0 %v2854
        %4214 = vmatpush.bf16.msra.mxu0 %v2852
        %4215 = vmatpush.bf16.msra.mxu0 %v2850
        %4216 = vmatmul.bf16.gmra.mxu0 %v844
        %v4217 = vpop.f32.mrf.mxu0
        %v4218 = vadd.f32 %v4205, %v4217
        %v4219 = vpop.f32.mrf.mxu0
        %4220 = vdwg.mxu0
        %4221 = vmatpush.bf16.msra.mxu0 %v2880
        %4222 = vmatpush.bf16.msra.mxu0 %v2878
        %4223 = vmatpush.bf16.msra.mxu0 %v2876
        %4224 = vmatpush.bf16.msra.mxu0 %v2874
        %4225 = vmatpush.bf16.msra.mxu0 %v2872
        %4226 = vmatpush.bf16.msra.mxu0 %v2870
        %4227 = vmatpush.bf16.msra.mxu0 %v2868
        %4228 = vmatpush.bf16.msra.mxu0 %v2866
        %4229 = vmatmul.bf16.gmra.mxu0 %v845
        %v4230 = vpop.f32.mrf.mxu0
        %v4231 = vadd.f32 %v4218, %v4230
        %v4232 = vpop.f32.mrf.mxu0
        %4233 = vdwg.mxu0
        %4234 = vmatpush.bf16.msra.mxu0 %v2896
        %4235 = vmatpush.bf16.msra.mxu0 %v2894
        %4236 = vmatpush.bf16.msra.mxu0 %v2892
        %4237 = vmatpush.bf16.msra.mxu0 %v2890
        %4238 = vmatpush.bf16.msra.mxu0 %v2888
        %4239 = vmatpush.bf16.msra.mxu0 %v2886
        %4240 = vmatpush.bf16.msra.mxu0 %v2884
        %4241 = vmatpush.bf16.msra.mxu0 %v2882
        %4242 = vmatmul.bf16.gmra.mxu0 %v846
        %v4243 = vpop.f32.mrf.mxu0
        %v4244 = vadd.f32 %v4231, %v4243
        %v4245 = vpop.f32.mrf.mxu0
        %4246 = vdwg.mxu0
        %4247 = vmatpush.bf16.msra.mxu0 %v2912
        %4248 = vmatpush.bf16.msra.mxu0 %v2910
        %4249 = vmatpush.bf16.msra.mxu0 %v2908
        %4250 = vmatpush.bf16.msra.mxu0 %v2906
        %4251 = vmatpush.bf16.msra.mxu0 %v2904
        %4252 = vmatpush.bf16.msra.mxu0 %v2902
        %4253 = vmatpush.bf16.msra.mxu0 %v2900
        %4254 = vmatpush.bf16.msra.mxu0 %v2898
        %4255 = vmatmul.bf16.gmra.mxu0 %v847
        %v4256 = vpop.f32.mrf.mxu0
        %v4257 = vadd.f32 %v4244, %v4256
        %v4258 = vpop.f32.mrf.mxu0
        %4259 = vdwg.mxu0
        %4260 = vmatpush.bf16.msra.mxu0 %v2928
        %4261 = vmatpush.bf16.msra.mxu0 %v2926
        %4262 = vmatpush.bf16.msra.mxu0 %v2924
        %4263 = vmatpush.bf16.msra.mxu0 %v2922
        %4264 = vmatpush.bf16.msra.mxu0 %v2920
        %4265 = vmatpush.bf16.msra.mxu0 %v2918
        %4266 = vmatpush.bf16.msra.mxu0 %v2916
        %4267 = vmatpush.bf16.msra.mxu0 %v2914
        %4268 = vmatmul.bf16.gmra.mxu0 %v848
        %v4269 = vpop.f32.mrf.mxu0
        %v4270 = vadd.f32 %v4257, %v4269
        %v4271 = vpop.f32.mrf.mxu0
        %4272 = vdwg.mxu0
        %v4273 = vmax.f32 %v3854, 0.0
        %v4274 = vmax.f32 %v4270, 0.0
        %v4275 = vpack.c.bf16 %v4274, %v4273
        %4276 = vst [vmem:[%s233] sm:$0xff] %v4275
        %s4277 = smul.u32 2, %s20
        %p4278 = scmp.lt.s32.totalorder %s4277, 15
        %s4279 = scalar_select %p4278, %s4277, 15
        %s4280 = smul.addr %s4279, 4
        %s4281 = scalar_lea.vmem %s3, %s4280
        // Predicated region
        $region41: #{forward.5} parent=31 // pred_check
          %p4282 = pneg %p111
        $region42: #{forward.5} parent=31 // pred_check_branch
          %4284 = sbr.rel (%p4282) target = $region44
        $region43: #{forward.5} parent=31 // pred_region
          %s4285 = smul.u32 2, %s20
        $region44: #{forward.5} parent=31 // pred_fallthru
          _
      $region32: #{forward.5} parent=5 // pred_fallthru
        _
      %p4286 = scmp.le.s32.totalorder 2, %s15
      // Predicated region
      $region45: #{forward.5} parent=5 // pred_check
        %p4287 = pneg %p4286
      $region46: #{forward.5} parent=5 // pred_check_branch
        %4289 = sbr.rel (%p4287) target = $region48
      $region47: #{forward.5} parent=5 // pred_region
        %s4290 = ssub.s32 %s15, 2
        // Predicated region
        $region49: #{forward.5} parent=47 // pred_check
          %p4291 = pneg %p117
        $region50: #{forward.5} parent=47 // pred_check_branch
          %4293 = sbr.rel (%p4291) target = $region52
        $region51: #{forward.5} parent=47 // pred_region
          %s4294 = smul.u32 2, %s21
          %p4295 = scmp.lt.s32.totalorder %s4294, 15
          %s4296 = scalar_select %p4295, %s4294, 15
          %s4297 = smul.addr %s4296, 4
          %s4298 = scalar_lea.vmem %s3, %s4297
        $region52: #{forward.5} parent=47 // pred_fallthru
          _
      $region48: #{forward.5} parent=5 // pred_fallthru
        _
    $region6: #{forward.5} parent=1 // loop_footer
      %s19 = sadd.s32 1, %s15
    $region7: #{forward.5} parent=1 // loop_footer_branch
      %14 = sbr.rel target = $region3
    $region8: #{forward.5} parent=1 // loop_exit
      _
    %4299 = vsyncpa [#allocation3], 1
    %s4300 = scalar_lea.sflag [#allocation3], 1
    %4301 = vsyncpa %s4300, 1
    %4302 = vsyncpa [#allocation5], 1
    %s4303 = scalar_lea.sflag [#allocation5], 1
    %4304 = vsyncpa %s4303, 1

// kernel: forward.7
$region0: #{forward.7}
  #allocation0 [shape = 'u32[]', space=smem, size = 0x4, offset = 0x4, fixed_abs, tag = 'smem constant byte address 0x4 - core index']
  #allocation1 [shape = 'u32[72,128]{1,0:T(1,128)}', space=vmem, size = 0x9000, scoped, tag = 'internal scratch']
  %s0 = inlined_call_operand.vmem [shape: bf16[8,1024], index: 0, kind: input, shape index: {}]
  %s1 = inlined_call_operand.hbm [shape: bf16[1024,512], index: 1, kind: input, shape index: {}]
  %s2 = inlined_call_operand.hbm [shape: f32[1,512], index: 2, kind: input, shape index: {}]
  %s3 = inlined_call_operand.vmem [shape: bf16[512,5], index: 3, kind: input, shape index: {}]
  %s4 = inlined_call_operand.hbm [shape: f32[1,5], index: 4, kind: input, shape index: {}]
  %s5 = inlined_call_operand.hbm [shape: f32[8,5], index: 5, kind: output, shape index: {}]
  %s6 = sld [smem:[#allocation0]]
  $region42: #{forward.7} parent=0
    _
  %s8 = ssub.s32 1, %s6
  %s9 = scalar_select 0, %s8, %s6
  $region1: #{forward.7} parent=0
    #allocation2 [shape = 'u8[1048576]{0}', space=vmem, size = 0x100000, scoped, tag = 'input window, operand 1, single buffered']
    #allocation3 [shape = 's32[1]{0}', space=sflag, size = 0x4, scoped, tag = 'scoped memory for forward.7']
    #allocation4 [shape = 's32[1]{0}', space=sflag, size = 0x4, scoped, tag = 'scoped memory for forward.7']
    #allocation5 [shape = 'u8[2048]{0}', space=vmem, size = 0x800, scoped, tag = 'input window, operand 2, single buffered']
    #allocation6 [shape = 's32[1]{0}', space=sflag, size = 0x4, scoped, tag = 'scoped memory for forward.7']
    #allocation7 [shape = 'u8[512]{0}', space=vmem, size = 0x400, scoped, tag = 'input window, operand 4, single buffered']
    #allocation8 [shape = 'u8[4096]{0}', space=vmem, size = 0x1000, scoped, tag = 'output window, operand 0, single buffered']
    %10 = vsyncpa [#allocation3], 0
    %11 = vsyncpa [#allocation6], 0
    %12 = vsyncpa [#allocation4], 0
    // Predicated region
    $region2: #{forward.7} parent=1 // pred_check
      _
    $region3: #{forward.7} parent=1 // pred_check_branch
      %14 = sbr.rel (0) target = $region5
    $region4: #{forward.7} parent=1 // pred_region
      _
    $region5: #{forward.7} parent=1 // pred_fallthru
      _
    // Predicated region
    $region6: #{forward.7} parent=1 // pred_check
      _
    $region7: #{forward.7} parent=1 // pred_check_branch
      %16 = sbr.rel (0) target = $region9
    $region8: #{forward.7} parent=1 // pred_region
      %18 = vsyncadd [#allocation3], 0
      %s19 = sshll.u32 %s1, 4
      %s20 = int_to_ptr.hbm [resolvable:$true] %s19
      %s21 = sshll.u32 [#allocation2], 4
      %s22 = int_to_ptr.vmem [resolvable:$true] %s21
      %27 = dma.hbm_to_vmem [thread:$0]  %s20, 32768, %s22, [#allocation3], 256, 256, 16
    $region9: #{forward.7} parent=1 // pred_fallthru
      _
    // Predicated region
    $region10: #{forward.7} parent=1 // pred_check
      _
    $region11: #{forward.7} parent=1 // pred_check_branch
      %29 = sbr.rel (0) target = $region13
    $region12: #{forward.7} parent=1 // pred_region
      %31 = vsyncadd [#allocation6], 0
      %s33 = sshll.u32 %s2, 4
      %s34 = int_to_ptr.hbm [resolvable:$true] %s33
      %s35 = sshll.u32 [#allocation5], 4
      %s36 = int_to_ptr.vmem [resolvable:$true] %s35
      %38 = dma.hbm_to_vmem [thread:$0]  %s34, 64, %s36, [#allocation6]
    $region13: #{forward.7} parent=1 // pred_fallthru
      _
    // Predicated region
    $region14: #{forward.7} parent=1 // pred_check
      _
    $region15: #{forward.7} parent=1 // pred_check_branch
      %40 = sbr.rel (0) target = $region17
    $region16: #{forward.7} parent=1 // pred_region
      _
    $region17: #{forward.7} parent=1 // pred_fallthru
      _
    // Predicated region
    $region18: #{forward.7} parent=1 // pred_check
      _
    $region19: #{forward.7} parent=1 // pred_check_branch
      %42 = sbr.rel (0) target = $region21
    $region20: #{forward.7} parent=1 // pred_region
      %44 = vsyncadd [#allocation6], 0
      %s46 = sshll.u32 %s4, 4
      %s47 = int_to_ptr.hbm [resolvable:$true] %s46
      %s48 = sshll.u32 [#allocation7], 4
      %s49 = int_to_ptr.vmem [resolvable:$true] %s48
      %51 = dma.hbm_to_vmem [thread:$0]  %s47, 16, %s49, [#allocation6]
    $region21: #{forward.7} parent=1 // pred_fallthru
      _
    // Predicated region
    $region22: #{forward.7} parent=1 // pred_check
      _
    $region23: #{forward.7} parent=1 // pred_check_branch
      %53 = sbr.rel (0) target = $region25
    $region24: #{forward.7} parent=1 // pred_region
      %55 = dma.done [#allocation3], 32768
    $region25: #{forward.7} parent=1 // pred_fallthru
      _
    // Predicated region
    $region26: #{forward.7} parent=1 // pred_check
      _
    $region27: #{forward.7} parent=1 // pred_check_branch
      %57 = sbr.rel (0) target = $region29
    $region28: #{forward.7} parent=1 // pred_region
      %59 = dma.done [#allocation6], 64
    $region29: #{forward.7} parent=1 // pred_fallthru
      _
    // Predicated region
    $region30: #{forward.7} parent=1 // pred_check
      _
    $region31: #{forward.7} parent=1 // pred_check_branch
      %61 = sbr.rel (0) target = $region33
    $region32: #{forward.7} parent=1 // pred_region
      %63 = dma.done [#allocation6], 16
    $region33: #{forward.7} parent=1 // pred_fallthru
      _
    %v64 = vld [vmem:[%s0] sm:$0xff]
    %v65 = vld [vmem:[%s0 + $0x8] sm:$0xff]
    %v66 = vld [vmem:[%s0 + $0x10] sm:$0xff]
    %v67 = vld [vmem:[%s0 + $0x18] sm:$0xff]
    %v68 = vld [vmem:[#allocation2] sm:$0xff]
    %v69 = vld [vmem:[#allocation2 + $0x8] sm:$0xff]
    %v70 = vld [vmem:[#allocation2 + $0x10] sm:$0xff]
    %v71 = vld [vmem:[#allocation2 + $0x18] sm:$0xff]
    %v72 = vld [vmem:[#allocation2 + $0x20] sm:$0xff]
    %v73 = vld [vmem:[#allocation2 + $0x28] sm:$0xff]
    %v74 = vld [vmem:[#allocation2 + $0x30] sm:$0xff]
    %v75 = vld [vmem:[#allocation2 + $0x38] sm:$0xff]
    %v76 = vld [vmem:[#allocation2 + $0x40] sm:$0xff]
    %v77 = vld [vmem:[#allocation2 + $0x48] sm:$0xff]
    %v78 = vld [vmem:[#allocation2 + $0x50] sm:$0xff]
    %v79 = vld [vmem:[#allocation2 + $0x58] sm:$0xff]
    %v80 = vld [vmem:[#allocation2 + $0x60] sm:$0xff]
    %v81 = vld [vmem:[#allocation2 + $0x68] sm:$0xff]
    %v82 = vld [vmem:[#allocation2 + $0x70] sm:$0xff]
    %v83 = vld [vmem:[#allocation2 + $0x78] sm:$0xff]
    %v84 = vld [vmem:[#allocation2 + $0x80] sm:$0xff]
    %v85 = vld [vmem:[#allocation2 + $0x88] sm:$0xff]
    %v86 = vld [vmem:[#allocation2 + $0x90] sm:$0xff]
    %v87 = vld [vmem:[#allocation2 + $0x98] sm:$0xff]
    %v88 = vld [vmem:[#allocation2 + $0xa0] sm:$0xff]
    %v89 = vld [vmem:[#allocation2 + $0xa8] sm:$0xff]
    %v90 = vld [vmem:[#allocation2 + $0xb0] sm:$0xff]
    %v91 = vld [vmem:[#allocation2 + $0xb8] sm:$0xff]
    %v92 = vld [vmem:[#allocation2 + $0xc0] sm:$0xff]
    %v93 = vld [vmem:[#allocation2 + $0xc8] sm:$0xff]
    %v94 = vld [vmem:[#allocation2 + $0xd0] sm:$0xff]
    %v95 = vld [vmem:[#allocation2 + $0xd8] sm:$0xff]
    %v96 = vld [vmem:[#allocation2 + $0xe0] sm:$0xff]
    %v97 = vld [vmem:[#allocation2 + $0xe8] sm:$0xff]
    %v98 = vld [vmem:[#allocation2 + $0xf0] sm:$0xff]
    %v99 = vld [vmem:[#allocation2 + $0xf8] sm:$0xff]
    %v100 = vld [vmem:[#allocation2 + $0x100] sm:$0xff]
    %v101 = vld [vmem:[#allocation2 + $0x108] sm:$0xff]
    %v102 = vld [vmem:[#allocation2 + $0x110] sm:$0xff]
    %v103 = vld [vmem:[#allocation2 + $0x118] sm:$0xff]
    %v104 = vld [vmem:[#allocation2 + $0x120] sm:$0xff]
    %v105 = vld [vmem:[#allocation2 + $0x128] sm:$0xff]
    %v106 = vld [vmem:[#allocation2 + $0x130] sm:$0xff]
    %v107 = vld [vmem:[#allocation2 + $0x138] sm:$0xff]
    %v108 = vld [vmem:[#allocation2 + $0x140] sm:$0xff]
    %v109 = vld [vmem:[#allocation2 + $0x148] sm:$0xff]
    %v110 = vld [vmem:[#allocation2 + $0x150] sm:$0xff]
    %v111 = vld [vmem:[#allocation2 + $0x158] sm:$0xff]
    %v112 = vld [vmem:[#allocation2 + $0x160] sm:$0xff]
    %v113 = vld [vmem:[#allocation2 + $0x168] sm:$0xff]
    %v114 = vld [vmem:[#allocation2 + $0x170] sm:$0xff]
    %v115 = vld [vmem:[#allocation2 + $0x178] sm:$0xff]
    %v116 = vld [vmem:[#allocation2 + $0x180] sm:$0xff]
    %v117 = vld [vmem:[#allocation2 + $0x188] sm:$0xff]
    %v118 = vld [vmem:[#allocation2 + $0x190] sm:$0xff]
    %v119 = vld [vmem:[#allocation2 + $0x198] sm:$0xff]
    %v120 = vld [vmem:[#allocation2 + $0x1a0] sm:$0xff]
    %v121 = vld [vmem:[#allocation2 + $0x1a8] sm:$0xff]
    %v122 = vld [vmem:[#allocation2 + $0x1b0] sm:$0xff]
    %v123 = vld [vmem:[#allocation2 + $0x1b8] sm:$0xff]
    %v124 = vld [vmem:[#allocation2 + $0x1c0] sm:$0xff]
    %v125 = vld [vmem:[#allocation2 + $0x1c8] sm:$0xff]
    %v126 = vld [vmem:[#allocation2 + $0x1d0] sm:$0xff]
    %v127 = vld [vmem:[#allocation2 + $0x1d8] sm:$0xff]
    %v128 = vld [vmem:[#allocation2 + $0x1e0] sm:$0xff]
    %v129 = vld [vmem:[#allocation2 + $0x1e8] sm:$0xff]
    %v130 = vld [vmem:[#allocation2 + $0x1f0] sm:$0xff]
    %v131 = vld [vmem:[#allocation2 + $0x1f8] sm:$0xff]
    %v132 = vld [vmem:[#allocation2 + $0x200] sm:$0xff]
    %v133 = vld [vmem:[#allocation2 + $0x208] sm:$0xff]
    %v134 = vld [vmem:[#allocation2 + $0x210] sm:$0xff]
    %v135 = vld [vmem:[#allocation2 + $0x218] sm:$0xff]
    %v136 = vld [vmem:[#allocation2 + $0x220] sm:$0xff]
    %v137 = vld [vmem:[#allocation2 + $0x228] sm:$0xff]
    %v138 = vld [vmem:[#allocation2 + $0x230] sm:$0xff]
    %v139 = vld [vmem:[#allocation2 + $0x238] sm:$0xff]
    %v140 = vld [vmem:[#allocation2 + $0x240] sm:$0xff]
    %v141 = vld [vmem:[#allocation2 + $0x248] sm:$0xff]
    %v142 = vld [vmem:[#allocation2 + $0x250] sm:$0xff]
    %v143 = vld [vmem:[#allocation2 + $0x258] sm:$0xff]
    %v144 = vld [vmem:[#allocation2 + $0x260] sm:$0xff]
    %v145 = vld [vmem:[#allocation2 + $0x268] sm:$0xff]
    %v146 = vld [vmem:[#allocation2 + $0x270] sm:$0xff]
    %v147 = vld [vmem:[#allocation2 + $0x278] sm:$0xff]
    %v148 = vld [vmem:[#allocation2 + $0x280] sm:$0xff]
    %v149 = vld [vmem:[#allocation2 + $0x288] sm:$0xff]
    %v150 = vld [vmem:[#allocation2 + $0x290] sm:$0xff]
    %v151 = vld [vmem:[#allocation2 + $0x298] sm:$0xff]
    %v152 = vld [vmem:[#allocation2 + $0x2a0] sm:$0xff]
    %v153 = vld [vmem:[#allocation2 + $0x2a8] sm:$0xff]
    %v154 = vld [vmem:[#allocation2 + $0x2b0] sm:$0xff]
    %v155 = vld [vmem:[#allocation2 + $0x2b8] sm:$0xff]
    %v156 = vld [vmem:[#allocation2 + $0x2c0] sm:$0xff]
    %v157 = vld [vmem:[#allocation2 + $0x2c8] sm:$0xff]
    %v158 = vld [vmem:[#allocation2 + $0x2d0] sm:$0xff]
    %v159 = vld [vmem:[#allocation2 + $0x2d8] sm:$0xff]
    %v160 = vld [vmem:[#allocation2 + $0x2e0] sm:$0xff]
    %v161 = vld [vmem:[#allocation2 + $0x2e8] sm:$0xff]
    %v162 = vld [vmem:[#allocation2 + $0x2f0] sm:$0xff]
    %v163 = vld [vmem:[#allocation2 + $0x2f8] sm:$0xff]
    %v164 = vld [vmem:[#allocation2 + $0x300] sm:$0xff]
    %v165 = vld [vmem:[#allocation2 + $0x308] sm:$0xff]
    %v166 = vld [vmem:[#allocation2 + $0x310] sm:$0xff]
    %v167 = vld [vmem:[#allocation2 + $0x318] sm:$0xff]
    %v168 = vld [vmem:[#allocation2 + $0x320] sm:$0xff]
    %v169 = vld [vmem:[#allocation2 + $0x328] sm:$0xff]
    %v170 = vld [vmem:[#allocation2 + $0x330] sm:$0xff]
    %v171 = vld [vmem:[#allocation2 + $0x338] sm:$0xff]
    %v172 = vld [vmem:[#allocation2 + $0x340] sm:$0xff]
    %v173 = vld [vmem:[#allocation2 + $0x348] sm:$0xff]
    %v174 = vld [vmem:[#allocation2 + $0x350] sm:$0xff]
    %v175 = vld [vmem:[#allocation2 + $0x358] sm:$0xff]
    %v176 = vld [vmem:[#allocation2 + $0x360] sm:$0xff]
    %v177 = vld [vmem:[#allocation2 + $0x368] sm:$0xff]
    %v178 = vld [vmem:[#allocation2 + $0x370] sm:$0xff]
    %v179 = vld [vmem:[#allocation2 + $0x378] sm:$0xff]
    %v180 = vld [vmem:[#allocation2 + $0x380] sm:$0xff]
    %v181 = vld [vmem:[#allocation2 + $0x388] sm:$0xff]
    %v182 = vld [vmem:[#allocation2 + $0x390] sm:$0xff]
    %v183 = vld [vmem:[#allocation2 + $0x398] sm:$0xff]
    %v184 = vld [vmem:[#allocation2 + $0x3a0] sm:$0xff]
    %v185 = vld [vmem:[#allocation2 + $0x3a8] sm:$0xff]
    %v186 = vld [vmem:[#allocation2 + $0x3b0] sm:$0xff]
    %v187 = vld [vmem:[#allocation2 + $0x3b8] sm:$0xff]
    %v188 = vld [vmem:[#allocation2 + $0x3c0] sm:$0xff]
    %v189 = vld [vmem:[#allocation2 + $0x3c8] sm:$0xff]
    %v190 = vld [vmem:[#allocation2 + $0x3d0] sm:$0xff]
    %v191 = vld [vmem:[#allocation2 + $0x3d8] sm:$0xff]
    %v192 = vld [vmem:[#allocation2 + $0x3e0] sm:$0xff]
    %v193 = vld [vmem:[#allocation2 + $0x3e8] sm:$0xff]
    %v194 = vld [vmem:[#allocation2 + $0x3f0] sm:$0xff]
    %v195 = vld [vmem:[#allocation2 + $0x3f8] sm:$0xff]
    %v196 = vld [vmem:[#allocation2 + $0x400] sm:$0xff]
    %v197 = vld [vmem:[#allocation2 + $0x408] sm:$0xff]
    %v198 = vld [vmem:[#allocation2 + $0x410] sm:$0xff]
    %v199 = vld [vmem:[#allocation2 + $0x418] sm:$0xff]
    %v200 = vld [vmem:[#allocation2 + $0x420] sm:$0xff]
    %v201 = vld [vmem:[#allocation2 + $0x428] sm:$0xff]
    %v202 = vld [vmem:[#allocation2 + $0x430] sm:$0xff]
    %v203 = vld [vmem:[#allocation2 + $0x438] sm:$0xff]
    %v204 = vld [vmem:[#allocation2 + $0x440] sm:$0xff]
    %v205 = vld [vmem:[#allocation2 + $0x448] sm:$0xff]
    %v206 = vld [vmem:[#allocation2 + $0x450] sm:$0xff]
    %v207 = vld [vmem:[#allocation2 + $0x458] sm:$0xff]
    %v208 = vld [vmem:[#allocation2 + $0x460] sm:$0xff]
    %v209 = vld [vmem:[#allocation2 + $0x468] sm:$0xff]
    %v210 = vld [vmem:[#allocation2 + $0x470] sm:$0xff]
    %v211 = vld [vmem:[#allocation2 + $0x478] sm:$0xff]
    %v212 = vld [vmem:[#allocation2 + $0x480] sm:$0xff]
    %v213 = vld [vmem:[#allocation2 + $0x488] sm:$0xff]
    %v214 = vld [vmem:[#allocation2 + $0x490] sm:$0xff]
    %v215 = vld [vmem:[#allocation2 + $0x498] sm:$0xff]
    %v216 = vld [vmem:[#allocation2 + $0x4a0] sm:$0xff]
    %v217 = vld [vmem:[#allocation2 + $0x4a8] sm:$0xff]
    %v218 = vld [vmem:[#allocation2 + $0x4b0] sm:$0xff]
    %v219 = vld [vmem:[#allocation2 + $0x4b8] sm:$0xff]
    %v220 = vld [vmem:[#allocation2 + $0x4c0] sm:$0xff]
    %v221 = vld [vmem:[#allocation2 + $0x4c8] sm:$0xff]
    %v222 = vld [vmem:[#allocation2 + $0x4d0] sm:$0xff]
    %v223 = vld [vmem:[#allocation2 + $0x4d8] sm:$0xff]
    %v224 = vld [vmem:[#allocation2 + $0x4e0] sm:$0xff]
    %v225 = vld [vmem:[#allocation2 + $0x4e8] sm:$0xff]
    %v226 = vld [vmem:[#allocation2 + $0x4f0] sm:$0xff]
    %v227 = vld [vmem:[#allocation2 + $0x4f8] sm:$0xff]
    %v228 = vld [vmem:[#allocation2 + $0x500] sm:$0xff]
    %v229 = vld [vmem:[#allocation2 + $0x508] sm:$0xff]
    %v230 = vld [vmem:[#allocation2 + $0x510] sm:$0xff]
    %v231 = vld [vmem:[#allocation2 + $0x518] sm:$0xff]
    %v232 = vld [vmem:[#allocation2 + $0x520] sm:$0xff]
    %v233 = vld [vmem:[#allocation2 + $0x528] sm:$0xff]
    %v234 = vld [vmem:[#allocation2 + $0x530] sm:$0xff]
    %v235 = vld [vmem:[#allocation2 + $0x538] sm:$0xff]
    %v236 = vld [vmem:[#allocation2 + $0x540] sm:$0xff]
    %v237 = vld [vmem:[#allocation2 + $0x548] sm:$0xff]
    %v238 = vld [vmem:[#allocation2 + $0x550] sm:$0xff]
    %v239 = vld [vmem:[#allocation2 + $0x558] sm:$0xff]
    %v240 = vld [vmem:[#allocation2 + $0x560] sm:$0xff]
    %v241 = vld [vmem:[#allocation2 + $0x568] sm:$0xff]
    %v242 = vld [vmem:[#allocation2 + $0x570] sm:$0xff]
    %v243 = vld [vmem:[#allocation2 + $0x578] sm:$0xff]
    %v244 = vld [vmem:[#allocation2 + $0x580] sm:$0xff]
    %v245 = vld [vmem:[#allocation2 + $0x588] sm:$0xff]
    %v246 = vld [vmem:[#allocation2 + $0x590] sm:$0xff]
    %v247 = vld [vmem:[#allocation2 + $0x598] sm:$0xff]
    %v248 = vld [vmem:[#allocation2 + $0x5a0] sm:$0xff]
    %v249 = vld [vmem:[#allocation2 + $0x5a8] sm:$0xff]
    %v250 = vld [vmem:[#allocation2 + $0x5b0] sm:$0xff]
    %v251 = vld [vmem:[#allocation2 + $0x5b8] sm:$0xff]
    %v252 = vld [vmem:[#allocation2 + $0x5c0] sm:$0xff]
    %v253 = vld [vmem:[#allocation2 + $0x5c8] sm:$0xff]
    %v254 = vld [vmem:[#allocation2 + $0x5d0] sm:$0xff]
    %v255 = vld [vmem:[#allocation2 + $0x5d8] sm:$0xff]
    %v256 = vld [vmem:[#allocation2 + $0x5e0] sm:$0xff]
    %v257 = vld [vmem:[#allocation2 + $0x5e8] sm:$0xff]
    %v258 = vld [vmem:[#allocation2 + $0x5f0] sm:$0xff]
    %v259 = vld [vmem:[#allocation2 + $0x5f8] sm:$0xff]
    %v260 = vld [vmem:[#allocation2 + $0x600] sm:$0xff]
    %v261 = vld [vmem:[#allocation2 + $0x608] sm:$0xff]
    %v262 = vld [vmem:[#allocation2 + $0x610] sm:$0xff]
    %v263 = vld [vmem:[#allocation2 + $0x618] sm:$0xff]
    %v264 = vld [vmem:[#allocation2 + $0x620] sm:$0xff]
    %v265 = vld [vmem:[#allocation2 + $0x628] sm:$0xff]
    %v266 = vld [vmem:[#allocation2 + $0x630] sm:$0xff]
    %v267 = vld [vmem:[#allocation2 + $0x638] sm:$0xff]
    %v268 = vld [vmem:[#allocation2 + $0x640] sm:$0xff]
    %v269 = vld [vmem:[#allocation2 + $0x648] sm:$0xff]
    %v270 = vld [vmem:[#allocation2 + $0x650] sm:$0xff]
    %v271 = vld [vmem:[#allocation2 + $0x658] sm:$0xff]
    %v272 = vld [vmem:[#allocation2 + $0x660] sm:$0xff]
    %v273 = vld [vmem:[#allocation2 + $0x668] sm:$0xff]
    %v274 = vld [vmem:[#allocation2 + $0x670] sm:$0xff]
    %v275 = vld [vmem:[#allocation2 + $0x678] sm:$0xff]
    %v276 = vld [vmem:[#allocation2 + $0x680] sm:$0xff]
    %v277 = vld [vmem:[#allocation2 + $0x688] sm:$0xff]
    %v278 = vld [vmem:[#allocation2 + $0x690] sm:$0xff]
    %v279 = vld [vmem:[#allocation2 + $0x698] sm:$0xff]
    %v280 = vld [vmem:[#allocation2 + $0x6a0] sm:$0xff]
    %v281 = vld [vmem:[#allocation2 + $0x6a8] sm:$0xff]
    %v282 = vld [vmem:[#allocation2 + $0x6b0] sm:$0xff]
    %v283 = vld [vmem:[#allocation2 + $0x6b8] sm:$0xff]
    %v284 = vld [vmem:[#allocation2 + $0x6c0] sm:$0xff]
    %v285 = vld [vmem:[#allocation2 + $0x6c8] sm:$0xff]
    %v286 = vld [vmem:[#allocation2 + $0x6d0] sm:$0xff]
    %v287 = vld [vmem:[#allocation2 + $0x6d8] sm:$0xff]
    %v288 = vld [vmem:[#allocation2 + $0x6e0] sm:$0xff]
    %v289 = vld [vmem:[#allocation2 + $0x6e8] sm:$0xff]
    %v290 = vld [vmem:[#allocation2 + $0x6f0] sm:$0xff]
    %v291 = vld [vmem:[#allocation2 + $0x6f8] sm:$0xff]
    %v292 = vld [vmem:[#allocation2 + $0x700] sm:$0xff]
    %v293 = vld [vmem:[#allocation2 + $0x708] sm:$0xff]
    %v294 = vld [vmem:[#allocation2 + $0x710] sm:$0xff]
    %v295 = vld [vmem:[#allocation2 + $0x718] sm:$0xff]
    %v296 = vld [vmem:[#allocation2 + $0x720] sm:$0xff]
    %v297 = vld [vmem:[#allocation2 + $0x728] sm:$0xff]
    %v298 = vld [vmem:[#allocation2 + $0x730] sm:$0xff]
    %v299 = vld [vmem:[#allocation2 + $0x738] sm:$0xff]
    %v300 = vld [vmem:[#allocation2 + $0x740] sm:$0xff]
    %v301 = vld [vmem:[#allocation2 + $0x748] sm:$0xff]
    %v302 = vld [vmem:[#allocation2 + $0x750] sm:$0xff]
    %v303 = vld [vmem:[#allocation2 + $0x758] sm:$0xff]
    %v304 = vld [vmem:[#allocation2 + $0x760] sm:$0xff]
    %v305 = vld [vmem:[#allocation2 + $0x768] sm:$0xff]
    %v306 = vld [vmem:[#allocation2 + $0x770] sm:$0xff]
    %v307 = vld [vmem:[#allocation2 + $0x778] sm:$0xff]
    %v308 = vld [vmem:[#allocation2 + $0x780] sm:$0xff]
    %v309 = vld [vmem:[#allocation2 + $0x788] sm:$0xff]
    %v310 = vld [vmem:[#allocation2 + $0x790] sm:$0xff]
    %v311 = vld [vmem:[#allocation2 + $0x798] sm:$0xff]
    %v312 = vld [vmem:[#allocation2 + $0x7a0] sm:$0xff]
    %v313 = vld [vmem:[#allocation2 + $0x7a8] sm:$0xff]
    %v314 = vld [vmem:[#allocation2 + $0x7b0] sm:$0xff]
    %v315 = vld [vmem:[#allocation2 + $0x7b8] sm:$0xff]
    %v316 = vld [vmem:[#allocation2 + $0x7c0] sm:$0xff]
    %v317 = vld [vmem:[#allocation2 + $0x7c8] sm:$0xff]
    %v318 = vld [vmem:[#allocation2 + $0x7d0] sm:$0xff]
    %v319 = vld [vmem:[#allocation2 + $0x7d8] sm:$0xff]
    %v320 = vld [vmem:[#allocation2 + $0x7e0] sm:$0xff]
    %v321 = vld [vmem:[#allocation2 + $0x7e8] sm:$0xff]
    %v322 = vld [vmem:[#allocation2 + $0x7f0] sm:$0xff]
    %v323 = vld [vmem:[#allocation2 + $0x7f8] sm:$0xff]
    %v324 = vld [vmem:[#allocation5] sm:$0xf]
    %v326 = vperm.slane %v324, 0
    %v327 = vperm.slane %v324, 1
    %v328 = vperm.slane %v324, 2
    %v329 = vperm.slane %v324, 3
    %v338 = vunpack.c.l.b16 %v64
    %v339 = vunpack.c.h.b16 %v64
    %v340 = vunpack.c.l.b16 %v65
    %v341 = vunpack.c.h.b16 %v65
    %v342 = vunpack.c.l.b16 %v66
    %v343 = vunpack.c.h.b16 %v66
    %v344 = vunpack.c.l.b16 %v67
    %v345 = vunpack.c.h.b16 %v67
    %v346 = vpack.c.b16 %v338, %v338
    %v347 = vpack.c.b16 %v339, %v339
    %v348 = vpack.c.b16 %v340, %v340
    %v349 = vpack.c.b16 %v341, %v341
    %v350 = vpack.c.b16 %v342, %v342
    %v351 = vpack.c.b16 %v343, %v343
    %v352 = vpack.c.b16 %v344, %v344
    %v353 = vpack.c.b16 %v345, %v345
    %v618 = vunpack.c.l.b16 %v68
    %v619 = vunpack.c.h.b16 %v68
    %v620 = vunpack.c.l.b16 %v69
    %v621 = vunpack.c.h.b16 %v69
    %v622 = vunpack.c.l.b16 %v70
    %v623 = vunpack.c.h.b16 %v70
    %v624 = vunpack.c.l.b16 %v71
    %v625 = vunpack.c.h.b16 %v71
    %v626 = vunpack.c.l.b16 %v72
    %v627 = vunpack.c.h.b16 %v72
    %v628 = vunpack.c.l.b16 %v73
    %v629 = vunpack.c.h.b16 %v73
    %v630 = vunpack.c.l.b16 %v74
    %v631 = vunpack.c.h.b16 %v74
    %v632 = vunpack.c.l.b16 %v75
    %v633 = vunpack.c.h.b16 %v75
    %v634 = vunpack.c.l.b16 %v76
    %v635 = vunpack.c.h.b16 %v76
    %v636 = vunpack.c.l.b16 %v77
    %v637 = vunpack.c.h.b16 %v77
    %v638 = vunpack.c.l.b16 %v78
    %v639 = vunpack.c.h.b16 %v78
    %v640 = vunpack.c.l.b16 %v79
    %v641 = vunpack.c.h.b16 %v79
    %v642 = vunpack.c.l.b16 %v80
    %v643 = vunpack.c.h.b16 %v80
    %v644 = vunpack.c.l.b16 %v81
    %v645 = vunpack.c.h.b16 %v81
    %v646 = vunpack.c.l.b16 %v82
    %v647 = vunpack.c.h.b16 %v82
    %v648 = vunpack.c.l.b16 %v83
    %v649 = vunpack.c.h.b16 %v83
    %v650 = vunpack.c.l.b16 %v84
    %v651 = vunpack.c.h.b16 %v84
    %v652 = vunpack.c.l.b16 %v85
    %v653 = vunpack.c.h.b16 %v85
    %v654 = vunpack.c.l.b16 %v86
    %v655 = vunpack.c.h.b16 %v86
    %v656 = vunpack.c.l.b16 %v87
    %v657 = vunpack.c.h.b16 %v87
    %v658 = vunpack.c.l.b16 %v88
    %v659 = vunpack.c.h.b16 %v88
    %v660 = vunpack.c.l.b16 %v89
    %v661 = vunpack.c.h.b16 %v89
    %v662 = vunpack.c.l.b16 %v90
    %v663 = vunpack.c.h.b16 %v90
    %v664 = vunpack.c.l.b16 %v91
    %v665 = vunpack.c.h.b16 %v91
    %v666 = vunpack.c.l.b16 %v92
    %v667 = vunpack.c.h.b16 %v92
    %v668 = vunpack.c.l.b16 %v93
    %v669 = vunpack.c.h.b16 %v93
    %v670 = vunpack.c.l.b16 %v94
    %v671 = vunpack.c.h.b16 %v94
    %v672 = vunpack.c.l.b16 %v95
    %v673 = vunpack.c.h.b16 %v95
    %v674 = vunpack.c.l.b16 %v96
    %v675 = vunpack.c.h.b16 %v96
    %v676 = vunpack.c.l.b16 %v97
    %v677 = vunpack.c.h.b16 %v97
    %v678 = vunpack.c.l.b16 %v98
    %v679 = vunpack.c.h.b16 %v98
    %v680 = vunpack.c.l.b16 %v99
    %v681 = vunpack.c.h.b16 %v99
    %v682 = vunpack.c.l.b16 %v100
    %v683 = vunpack.c.h.b16 %v100
    %v684 = vunpack.c.l.b16 %v101
    %v685 = vunpack.c.h.b16 %v101
    %v686 = vunpack.c.l.b16 %v102
    %v687 = vunpack.c.h.b16 %v102
    %v688 = vunpack.c.l.b16 %v103
    %v689 = vunpack.c.h.b16 %v103
    %v690 = vunpack.c.l.b16 %v104
    %v691 = vunpack.c.h.b16 %v104
    %v692 = vunpack.c.l.b16 %v105
    %v693 = vunpack.c.h.b16 %v105
    %v694 = vunpack.c.l.b16 %v106
    %v695 = vunpack.c.h.b16 %v106
    %v696 = vunpack.c.l.b16 %v107
    %v697 = vunpack.c.h.b16 %v107
    %v698 = vunpack.c.l.b16 %v108
    %v699 = vunpack.c.h.b16 %v108
    %v700 = vunpack.c.l.b16 %v109
    %v701 = vunpack.c.h.b16 %v109
    %v702 = vunpack.c.l.b16 %v110
    %v703 = vunpack.c.h.b16 %v110
    %v704 = vunpack.c.l.b16 %v111
    %v705 = vunpack.c.h.b16 %v111
    %v706 = vunpack.c.l.b16 %v112
    %v707 = vunpack.c.h.b16 %v112
    %v708 = vunpack.c.l.b16 %v113
    %v709 = vunpack.c.h.b16 %v113
    %v710 = vunpack.c.l.b16 %v114
    %v711 = vunpack.c.h.b16 %v114
    %v712 = vunpack.c.l.b16 %v115
    %v713 = vunpack.c.h.b16 %v115
    %v714 = vunpack.c.l.b16 %v116
    %v715 = vunpack.c.h.b16 %v116
    %v716 = vunpack.c.l.b16 %v117
    %v717 = vunpack.c.h.b16 %v117
    %v718 = vunpack.c.l.b16 %v118
    %v719 = vunpack.c.h.b16 %v118
    %v720 = vunpack.c.l.b16 %v119
    %v721 = vunpack.c.h.b16 %v119
    %v722 = vunpack.c.l.b16 %v120
    %v723 = vunpack.c.h.b16 %v120
    %v724 = vunpack.c.l.b16 %v121
    %v725 = vunpack.c.h.b16 %v121
    %v726 = vunpack.c.l.b16 %v122
    %v727 = vunpack.c.h.b16 %v122
    %v728 = vunpack.c.l.b16 %v123
    %v729 = vunpack.c.h.b16 %v123
    %v730 = vunpack.c.l.b16 %v124
    %v731 = vunpack.c.h.b16 %v124
    %v732 = vunpack.c.l.b16 %v125
    %v733 = vunpack.c.h.b16 %v125
    %v734 = vunpack.c.l.b16 %v126
    %v735 = vunpack.c.h.b16 %v126
    %v736 = vunpack.c.l.b16 %v127
    %v737 = vunpack.c.h.b16 %v127
    %v738 = vunpack.c.l.b16 %v128
    %v739 = vunpack.c.h.b16 %v128
    %v740 = vunpack.c.l.b16 %v129
    %v741 = vunpack.c.h.b16 %v129
    %v742 = vunpack.c.l.b16 %v130
    %v743 = vunpack.c.h.b16 %v130
    %v744 = vunpack.c.l.b16 %v131
    %v745 = vunpack.c.h.b16 %v131
    %v746 = vunpack.c.l.b16 %v132
    %v747 = vunpack.c.h.b16 %v132
    %v748 = vunpack.c.l.b16 %v133
    %v749 = vunpack.c.h.b16 %v133
    %v750 = vunpack.c.l.b16 %v134
    %v751 = vunpack.c.h.b16 %v134
    %v752 = vunpack.c.l.b16 %v135
    %v753 = vunpack.c.h.b16 %v135
    %v754 = vunpack.c.l.b16 %v136
    %v755 = vunpack.c.h.b16 %v136
    %v756 = vunpack.c.l.b16 %v137
    %v757 = vunpack.c.h.b16 %v137
    %v758 = vunpack.c.l.b16 %v138
    %v759 = vunpack.c.h.b16 %v138
    %v760 = vunpack.c.l.b16 %v139
    %v761 = vunpack.c.h.b16 %v139
    %v762 = vunpack.c.l.b16 %v140
    %v763 = vunpack.c.h.b16 %v140
    %v764 = vunpack.c.l.b16 %v141
    %v765 = vunpack.c.h.b16 %v141
    %v766 = vunpack.c.l.b16 %v142
    %v767 = vunpack.c.h.b16 %v142
    %v768 = vunpack.c.l.b16 %v143
    %v769 = vunpack.c.h.b16 %v143
    %v770 = vunpack.c.l.b16 %v144
    %v771 = vunpack.c.h.b16 %v144
    %v772 = vunpack.c.l.b16 %v145
    %v773 = vunpack.c.h.b16 %v145
    %v774 = vunpack.c.l.b16 %v146
    %v775 = vunpack.c.h.b16 %v146
    %v776 = vunpack.c.l.b16 %v147
    %v777 = vunpack.c.h.b16 %v147
    %v778 = vunpack.c.l.b16 %v148
    %v779 = vunpack.c.h.b16 %v148
    %v780 = vunpack.c.l.b16 %v149
    %v781 = vunpack.c.h.b16 %v149
    %v782 = vunpack.c.l.b16 %v150
    %v783 = vunpack.c.h.b16 %v150
    %v784 = vunpack.c.l.b16 %v151
    %v785 = vunpack.c.h.b16 %v151
    %v786 = vunpack.c.l.b16 %v152
    %v787 = vunpack.c.h.b16 %v152
    %v788 = vunpack.c.l.b16 %v153
    %v789 = vunpack.c.h.b16 %v153
    %v790 = vunpack.c.l.b16 %v154
    %v791 = vunpack.c.h.b16 %v154
    %v792 = vunpack.c.l.b16 %v155
    %v793 = vunpack.c.h.b16 %v155
    %v794 = vunpack.c.l.b16 %v156
    %v795 = vunpack.c.h.b16 %v156
    %v796 = vunpack.c.l.b16 %v157
    %v797 = vunpack.c.h.b16 %v157
    %v798 = vunpack.c.l.b16 %v158
    %v799 = vunpack.c.h.b16 %v158
    %v800 = vunpack.c.l.b16 %v159
    %v801 = vunpack.c.h.b16 %v159
    %v802 = vunpack.c.l.b16 %v160
    %v803 = vunpack.c.h.b16 %v160
    %v804 = vunpack.c.l.b16 %v161
    %v805 = vunpack.c.h.b16 %v161
    %v806 = vunpack.c.l.b16 %v162
    %v807 = vunpack.c.h.b16 %v162
    %v808 = vunpack.c.l.b16 %v163
    %v809 = vunpack.c.h.b16 %v163
    %v810 = vunpack.c.l.b16 %v164
    %v811 = vunpack.c.h.b16 %v164
    %v812 = vunpack.c.l.b16 %v165
    %v813 = vunpack.c.h.b16 %v165
    %v814 = vunpack.c.l.b16 %v166
    %v815 = vunpack.c.h.b16 %v166
    %v816 = vunpack.c.l.b16 %v167
    %v817 = vunpack.c.h.b16 %v167
    %v818 = vunpack.c.l.b16 %v168
    %v819 = vunpack.c.h.b16 %v168
    %v820 = vunpack.c.l.b16 %v169
    %v821 = vunpack.c.h.b16 %v169
    %v822 = vunpack.c.l.b16 %v170
    %v823 = vunpack.c.h.b16 %v170
    %v824 = vunpack.c.l.b16 %v171
    %v825 = vunpack.c.h.b16 %v171
    %v826 = vunpack.c.l.b16 %v172
    %v827 = vunpack.c.h.b16 %v172
    %v828 = vunpack.c.l.b16 %v173
    %v829 = vunpack.c.h.b16 %v173
    %v830 = vunpack.c.l.b16 %v174
    %v831 = vunpack.c.h.b16 %v174
    %v832 = vunpack.c.l.b16 %v175
    %v833 = vunpack.c.h.b16 %v175
    %v834 = vunpack.c.l.b16 %v176
    %v835 = vunpack.c.h.b16 %v176
    %v836 = vunpack.c.l.b16 %v177
    %v837 = vunpack.c.h.b16 %v177
    %v838 = vunpack.c.l.b16 %v178
    %v839 = vunpack.c.h.b16 %v178
    %v840 = vunpack.c.l.b16 %v179
    %v841 = vunpack.c.h.b16 %v179
    %v842 = vunpack.c.l.b16 %v180
    %v843 = vunpack.c.h.b16 %v180
    %v844 = vunpack.c.l.b16 %v181
    %v845 = vunpack.c.h.b16 %v181
    %v846 = vunpack.c.l.b16 %v182
    %v847 = vunpack.c.h.b16 %v182
    %v848 = vunpack.c.l.b16 %v183
    %v849 = vunpack.c.h.b16 %v183
    %v850 = vunpack.c.l.b16 %v184
    %v851 = vunpack.c.h.b16 %v184
    %v852 = vunpack.c.l.b16 %v185
    %v853 = vunpack.c.h.b16 %v185
    %v854 = vunpack.c.l.b16 %v186
    %v855 = vunpack.c.h.b16 %v186
    %v856 = vunpack.c.l.b16 %v187
    %v857 = vunpack.c.h.b16 %v187
    %v858 = vunpack.c.l.b16 %v188
    %v859 = vunpack.c.h.b16 %v188
    %v860 = vunpack.c.l.b16 %v189
    %v861 = vunpack.c.h.b16 %v189
    %v862 = vunpack.c.l.b16 %v190
    %v863 = vunpack.c.h.b16 %v190
    %v864 = vunpack.c.l.b16 %v191
    %v865 = vunpack.c.h.b16 %v191
    %v866 = vunpack.c.l.b16 %v192
    %v867 = vunpack.c.h.b16 %v192
    %v868 = vunpack.c.l.b16 %v193
    %v869 = vunpack.c.h.b16 %v193
    %v870 = vunpack.c.l.b16 %v194
    %v871 = vunpack.c.h.b16 %v194
    %v872 = vunpack.c.l.b16 %v195
    %v873 = vunpack.c.h.b16 %v195
    %v874 = vunpack.c.l.b16 %v196
    %v875 = vunpack.c.h.b16 %v196
    %v876 = vunpack.c.l.b16 %v197
    %v877 = vunpack.c.h.b16 %v197
    %v878 = vunpack.c.l.b16 %v198
    %v879 = vunpack.c.h.b16 %v198
    %v880 = vunpack.c.l.b16 %v199
    %v881 = vunpack.c.h.b16 %v199
    %v882 = vunpack.c.l.b16 %v200
    %v883 = vunpack.c.h.b16 %v200
    %v884 = vunpack.c.l.b16 %v201
    %v885 = vunpack.c.h.b16 %v201
    %v886 = vunpack.c.l.b16 %v202
    %v887 = vunpack.c.h.b16 %v202
    %v888 = vunpack.c.l.b16 %v203
    %v889 = vunpack.c.h.b16 %v203
    %v890 = vunpack.c.l.b16 %v204
    %v891 = vunpack.c.h.b16 %v204
    %v892 = vunpack.c.l.b16 %v205
    %v893 = vunpack.c.h.b16 %v205
    %v894 = vunpack.c.l.b16 %v206
    %v895 = vunpack.c.h.b16 %v206
    %v896 = vunpack.c.l.b16 %v207
    %v897 = vunpack.c.h.b16 %v207
    %v898 = vunpack.c.l.b16 %v208
    %v899 = vunpack.c.h.b16 %v208
    %v900 = vunpack.c.l.b16 %v209
    %v901 = vunpack.c.h.b16 %v209
    %v902 = vunpack.c.l.b16 %v210
    %v903 = vunpack.c.h.b16 %v210
    %v904 = vunpack.c.l.b16 %v211
    %v905 = vunpack.c.h.b16 %v211
    %v906 = vunpack.c.l.b16 %v212
    %v907 = vunpack.c.h.b16 %v212
    %v908 = vunpack.c.l.b16 %v213
    %v909 = vunpack.c.h.b16 %v213
    %v910 = vunpack.c.l.b16 %v214
    %v911 = vunpack.c.h.b16 %v214
    %v912 = vunpack.c.l.b16 %v215
    %v913 = vunpack.c.h.b16 %v215
    %v914 = vunpack.c.l.b16 %v216
    %v915 = vunpack.c.h.b16 %v216
    %v916 = vunpack.c.l.b16 %v217
    %v917 = vunpack.c.h.b16 %v217
    %v918 = vunpack.c.l.b16 %v218
    %v919 = vunpack.c.h.b16 %v218
    %v920 = vunpack.c.l.b16 %v219
    %v921 = vunpack.c.h.b16 %v219
    %v922 = vunpack.c.l.b16 %v220
    %v923 = vunpack.c.h.b16 %v220
    %v924 = vunpack.c.l.b16 %v221
    %v925 = vunpack.c.h.b16 %v221
    %v926 = vunpack.c.l.b16 %v222
    %v927 = vunpack.c.h.b16 %v222
    %v928 = vunpack.c.l.b16 %v223
    %v929 = vunpack.c.h.b16 %v223
    %v930 = vunpack.c.l.b16 %v224
    %v931 = vunpack.c.h.b16 %v224
    %v932 = vunpack.c.l.b16 %v225
    %v933 = vunpack.c.h.b16 %v225
    %v934 = vunpack.c.l.b16 %v226
    %v935 = vunpack.c.h.b16 %v226
    %v936 = vunpack.c.l.b16 %v227
    %v937 = vunpack.c.h.b16 %v227
    %v938 = vunpack.c.l.b16 %v228
    %v939 = vunpack.c.h.b16 %v228
    %v940 = vunpack.c.l.b16 %v229
    %v941 = vunpack.c.h.b16 %v229
    %v942 = vunpack.c.l.b16 %v230
    %v943 = vunpack.c.h.b16 %v230
    %v944 = vunpack.c.l.b16 %v231
    %v945 = vunpack.c.h.b16 %v231
    %v946 = vunpack.c.l.b16 %v232
    %v947 = vunpack.c.h.b16 %v232
    %v948 = vunpack.c.l.b16 %v233
    %v949 = vunpack.c.h.b16 %v233
    %v950 = vunpack.c.l.b16 %v234
    %v951 = vunpack.c.h.b16 %v234
    %v952 = vunpack.c.l.b16 %v235
    %v953 = vunpack.c.h.b16 %v235
    %v954 = vunpack.c.l.b16 %v236
    %v955 = vunpack.c.h.b16 %v236
    %v956 = vunpack.c.l.b16 %v237
    %v957 = vunpack.c.h.b16 %v237
    %v958 = vunpack.c.l.b16 %v238
    %v959 = vunpack.c.h.b16 %v238
    %v960 = vunpack.c.l.b16 %v239
    %v961 = vunpack.c.h.b16 %v239
    %v962 = vunpack.c.l.b16 %v240
    %v963 = vunpack.c.h.b16 %v240
    %v964 = vunpack.c.l.b16 %v241
    %v965 = vunpack.c.h.b16 %v241
    %v966 = vunpack.c.l.b16 %v242
    %v967 = vunpack.c.h.b16 %v242
    %v968 = vunpack.c.l.b16 %v243
    %v969 = vunpack.c.h.b16 %v243
    %v970 = vunpack.c.l.b16 %v244
    %v971 = vunpack.c.h.b16 %v244
    %v972 = vunpack.c.l.b16 %v245
    %v973 = vunpack.c.h.b16 %v245
    %v974 = vunpack.c.l.b16 %v246
    %v975 = vunpack.c.h.b16 %v246
    %v976 = vunpack.c.l.b16 %v247
    %v977 = vunpack.c.h.b16 %v247
    %v978 = vunpack.c.l.b16 %v248
    %v979 = vunpack.c.h.b16 %v248
    %v980 = vunpack.c.l.b16 %v249
    %v981 = vunpack.c.h.b16 %v249
    %v982 = vunpack.c.l.b16 %v250
    %v983 = vunpack.c.h.b16 %v250
    %v984 = vunpack.c.l.b16 %v251
    %v985 = vunpack.c.h.b16 %v251
    %v986 = vunpack.c.l.b16 %v252
    %v987 = vunpack.c.h.b16 %v252
    %v988 = vunpack.c.l.b16 %v253
    %v989 = vunpack.c.h.b16 %v253
    %v990 = vunpack.c.l.b16 %v254
    %v991 = vunpack.c.h.b16 %v254
    %v992 = vunpack.c.l.b16 %v255
    %v993 = vunpack.c.h.b16 %v255
    %v994 = vunpack.c.l.b16 %v256
    %v995 = vunpack.c.h.b16 %v256
    %v996 = vunpack.c.l.b16 %v257
    %v997 = vunpack.c.h.b16 %v257
    %v998 = vunpack.c.l.b16 %v258
    %v999 = vunpack.c.h.b16 %v258
    %v1000 = vunpack.c.l.b16 %v259
    %v1001 = vunpack.c.h.b16 %v259
    %v1002 = vunpack.c.l.b16 %v260
    %v1003 = vunpack.c.h.b16 %v260
    %v1004 = vunpack.c.l.b16 %v261
    %v1005 = vunpack.c.h.b16 %v261
    %v1006 = vunpack.c.l.b16 %v262
    %v1007 = vunpack.c.h.b16 %v262
    %v1008 = vunpack.c.l.b16 %v263
    %v1009 = vunpack.c.h.b16 %v263
    %v1010 = vunpack.c.l.b16 %v264
    %v1011 = vunpack.c.h.b16 %v264
    %v1012 = vunpack.c.l.b16 %v265
    %v1013 = vunpack.c.h.b16 %v265
    %v1014 = vunpack.c.l.b16 %v266
    %v1015 = vunpack.c.h.b16 %v266
    %v1016 = vunpack.c.l.b16 %v267
    %v1017 = vunpack.c.h.b16 %v267
    %v1018 = vunpack.c.l.b16 %v268
    %v1019 = vunpack.c.h.b16 %v268
    %v1020 = vunpack.c.l.b16 %v269
    %v1021 = vunpack.c.h.b16 %v269
    %v1022 = vunpack.c.l.b16 %v270
    %v1023 = vunpack.c.h.b16 %v270
    %v1024 = vunpack.c.l.b16 %v271
    %v1025 = vunpack.c.h.b16 %v271
    %v1026 = vunpack.c.l.b16 %v272
    %v1027 = vunpack.c.h.b16 %v272
    %v1028 = vunpack.c.l.b16 %v273
    %v1029 = vunpack.c.h.b16 %v273
    %v1030 = vunpack.c.l.b16 %v274
    %v1031 = vunpack.c.h.b16 %v274
    %v1032 = vunpack.c.l.b16 %v275
    %v1033 = vunpack.c.h.b16 %v275
    %v1034 = vunpack.c.l.b16 %v276
    %v1035 = vunpack.c.h.b16 %v276
    %v1036 = vunpack.c.l.b16 %v277
    %v1037 = vunpack.c.h.b16 %v277
    %v1038 = vunpack.c.l.b16 %v278
    %v1039 = vunpack.c.h.b16 %v278
    %v1040 = vunpack.c.l.b16 %v279
    %v1041 = vunpack.c.h.b16 %v279
    %v1042 = vunpack.c.l.b16 %v280
    %v1043 = vunpack.c.h.b16 %v280
    %v1044 = vunpack.c.l.b16 %v281
    %v1045 = vunpack.c.h.b16 %v281
    %v1046 = vunpack.c.l.b16 %v282
    %v1047 = vunpack.c.h.b16 %v282
    %v1048 = vunpack.c.l.b16 %v283
    %v1049 = vunpack.c.h.b16 %v283
    %v1050 = vunpack.c.l.b16 %v284
    %v1051 = vunpack.c.h.b16 %v284
    %v1052 = vunpack.c.l.b16 %v285
    %v1053 = vunpack.c.h.b16 %v285
    %v1054 = vunpack.c.l.b16 %v286
    %v1055 = vunpack.c.h.b16 %v286
    %v1056 = vunpack.c.l.b16 %v287
    %v1057 = vunpack.c.h.b16 %v287
    %v1058 = vunpack.c.l.b16 %v288
    %v1059 = vunpack.c.h.b16 %v288
    %v1060 = vunpack.c.l.b16 %v289
    %v1061 = vunpack.c.h.b16 %v289
    %v1062 = vunpack.c.l.b16 %v290
    %v1063 = vunpack.c.h.b16 %v290
    %v1064 = vunpack.c.l.b16 %v291
    %v1065 = vunpack.c.h.b16 %v291
    %v1066 = vunpack.c.l.b16 %v292
    %v1067 = vunpack.c.h.b16 %v292
    %v1068 = vunpack.c.l.b16 %v293
    %v1069 = vunpack.c.h.b16 %v293
    %v1070 = vunpack.c.l.b16 %v294
    %v1071 = vunpack.c.h.b16 %v294
    %v1072 = vunpack.c.l.b16 %v295
    %v1073 = vunpack.c.h.b16 %v295
    %v1074 = vunpack.c.l.b16 %v296
    %v1075 = vunpack.c.h.b16 %v296
    %v1076 = vunpack.c.l.b16 %v297
    %v1077 = vunpack.c.h.b16 %v297
    %v1078 = vunpack.c.l.b16 %v298
    %v1079 = vunpack.c.h.b16 %v298
    %v1080 = vunpack.c.l.b16 %v299
    %v1081 = vunpack.c.h.b16 %v299
    %v1082 = vunpack.c.l.b16 %v300
    %v1083 = vunpack.c.h.b16 %v300
    %v1084 = vunpack.c.l.b16 %v301
    %v1085 = vunpack.c.h.b16 %v301
    %v1086 = vunpack.c.l.b16 %v302
    %v1087 = vunpack.c.h.b16 %v302
    %v1088 = vunpack.c.l.b16 %v303
    %v1089 = vunpack.c.h.b16 %v303
    %v1090 = vunpack.c.l.b16 %v304
    %v1091 = vunpack.c.h.b16 %v304
    %v1092 = vunpack.c.l.b16 %v305
    %v1093 = vunpack.c.h.b16 %v305
    %v1094 = vunpack.c.l.b16 %v306
    %v1095 = vunpack.c.h.b16 %v306
    %v1096 = vunpack.c.l.b16 %v307
    %v1097 = vunpack.c.h.b16 %v307
    %v1098 = vunpack.c.l.b16 %v308
    %v1099 = vunpack.c.h.b16 %v308
    %v1100 = vunpack.c.l.b16 %v309
    %v1101 = vunpack.c.h.b16 %v309
    %v1102 = vunpack.c.l.b16 %v310
    %v1103 = vunpack.c.h.b16 %v310
    %v1104 = vunpack.c.l.b16 %v311
    %v1105 = vunpack.c.h.b16 %v311
    %v1106 = vunpack.c.l.b16 %v312
    %v1107 = vunpack.c.h.b16 %v312
    %v1108 = vunpack.c.l.b16 %v313
    %v1109 = vunpack.c.h.b16 %v313
    %v1110 = vunpack.c.l.b16 %v314
    %v1111 = vunpack.c.h.b16 %v314
    %v1112 = vunpack.c.l.b16 %v315
    %v1113 = vunpack.c.h.b16 %v315
    %v1114 = vunpack.c.l.b16 %v316
    %v1115 = vunpack.c.h.b16 %v316
    %v1116 = vunpack.c.l.b16 %v317
    %v1117 = vunpack.c.h.b16 %v317
    %v1118 = vunpack.c.l.b16 %v318
    %v1119 = vunpack.c.h.b16 %v318
    %v1120 = vunpack.c.l.b16 %v319
    %v1121 = vunpack.c.h.b16 %v319
    %v1122 = vunpack.c.l.b16 %v320
    %v1123 = vunpack.c.h.b16 %v320
    %v1124 = vunpack.c.l.b16 %v321
    %v1125 = vunpack.c.h.b16 %v321
    %v1126 = vunpack.c.l.b16 %v322
    %v1127 = vunpack.c.h.b16 %v322
    %v1128 = vunpack.c.l.b16 %v323
    %v1129 = vunpack.c.h.b16 %v323
    %v1130 = vpack.c.b16 %v622, %v618
    %v1131 = vpack.c.b16 %v623, %v619
    %v1132 = vpack.c.b16 %v624, %v620
    %v1133 = vpack.c.b16 %v625, %v621
    %v1134 = vpack.c.b16 %v630, %v626
    %v1135 = vpack.c.b16 %v631, %v627
    %v1136 = vpack.c.b16 %v632, %v628
    %v1137 = vpack.c.b16 %v633, %v629
    %v1138 = vpack.c.b16 %v638, %v634
    %v1139 = vpack.c.b16 %v639, %v635
    %v1140 = vpack.c.b16 %v640, %v636
    %v1141 = vpack.c.b16 %v641, %v637
    %v1142 = vpack.c.b16 %v646, %v642
    %v1143 = vpack.c.b16 %v647, %v643
    %v1144 = vpack.c.b16 %v648, %v644
    %v1145 = vpack.c.b16 %v649, %v645
    %v1146 = vpack.c.b16 %v654, %v650
    %v1147 = vpack.c.b16 %v655, %v651
    %v1148 = vpack.c.b16 %v656, %v652
    %v1149 = vpack.c.b16 %v657, %v653
    %v1150 = vpack.c.b16 %v662, %v658
    %v1151 = vpack.c.b16 %v663, %v659
    %v1152 = vpack.c.b16 %v664, %v660
    %v1153 = vpack.c.b16 %v665, %v661
    %v1154 = vpack.c.b16 %v670, %v666
    %v1155 = vpack.c.b16 %v671, %v667
    %v1156 = vpack.c.b16 %v672, %v668
    %v1157 = vpack.c.b16 %v673, %v669
    %v1158 = vpack.c.b16 %v678, %v674
    %v1159 = vpack.c.b16 %v679, %v675
    %v1160 = vpack.c.b16 %v680, %v676
    %v1161 = vpack.c.b16 %v681, %v677
    %v1162 = vpack.c.b16 %v686, %v682
    %v1163 = vpack.c.b16 %v687, %v683
    %v1164 = vpack.c.b16 %v688, %v684
    %v1165 = vpack.c.b16 %v689, %v685
    %v1166 = vpack.c.b16 %v694, %v690
    %v1167 = vpack.c.b16 %v695, %v691
    %v1168 = vpack.c.b16 %v696, %v692
    %v1169 = vpack.c.b16 %v697, %v693
    %v1170 = vpack.c.b16 %v702, %v698
    %v1171 = vpack.c.b16 %v703, %v699
    %v1172 = vpack.c.b16 %v704, %v700
    %v1173 = vpack.c.b16 %v705, %v701
    %v1174 = vpack.c.b16 %v710, %v706
    %v1175 = vpack.c.b16 %v711, %v707
    %v1176 = vpack.c.b16 %v712, %v708
    %v1177 = vpack.c.b16 %v713, %v709
    %v1178 = vpack.c.b16 %v718, %v714
    %v1179 = vpack.c.b16 %v719, %v715
    %v1180 = vpack.c.b16 %v720, %v716
    %v1181 = vpack.c.b16 %v721, %v717
    %v1182 = vpack.c.b16 %v726, %v722
    %v1183 = vpack.c.b16 %v727, %v723
    %v1184 = vpack.c.b16 %v728, %v724
    %v1185 = vpack.c.b16 %v729, %v725
    %v1186 = vpack.c.b16 %v734, %v730
    %v1187 = vpack.c.b16 %v735, %v731
    %v1188 = vpack.c.b16 %v736, %v732
    %v1189 = vpack.c.b16 %v737, %v733
    %v1190 = vpack.c.b16 %v742, %v738
    %v1191 = vpack.c.b16 %v743, %v739
    %v1192 = vpack.c.b16 %v744, %v740
    %v1193 = vpack.c.b16 %v745, %v741
    %v1194 = vpack.c.b16 %v750, %v746
    %v1195 = vpack.c.b16 %v751, %v747
    %v1196 = vpack.c.b16 %v752, %v748
    %v1197 = vpack.c.b16 %v753, %v749
    %v1198 = vpack.c.b16 %v758, %v754
    %v1199 = vpack.c.b16 %v759, %v755
    %v1200 = vpack.c.b16 %v760, %v756
    %v1201 = vpack.c.b16 %v761, %v757
    %v1202 = vpack.c.b16 %v766, %v762
    %v1203 = vpack.c.b16 %v767, %v763
    %v1204 = vpack.c.b16 %v768, %v764
    %v1205 = vpack.c.b16 %v769, %v765
    %v1206 = vpack.c.b16 %v774, %v770
    %v1207 = vpack.c.b16 %v775, %v771
    %v1208 = vpack.c.b16 %v776, %v772
    %v1209 = vpack.c.b16 %v777, %v773
    %v1210 = vpack.c.b16 %v782, %v778
    %v1211 = vpack.c.b16 %v783, %v779
    %v1212 = vpack.c.b16 %v784, %v780
    %v1213 = vpack.c.b16 %v785, %v781
    %v1214 = vpack.c.b16 %v790, %v786
    %v1215 = vpack.c.b16 %v791, %v787
    %v1216 = vpack.c.b16 %v792, %v788
    %v1217 = vpack.c.b16 %v793, %v789
    %v1218 = vpack.c.b16 %v798, %v794
    %v1219 = vpack.c.b16 %v799, %v795
    %v1220 = vpack.c.b16 %v800, %v796
    %v1221 = vpack.c.b16 %v801, %v797
    %v1222 = vpack.c.b16 %v806, %v802
    %v1223 = vpack.c.b16 %v807, %v803
    %v1224 = vpack.c.b16 %v808, %v804
    %v1225 = vpack.c.b16 %v809, %v805
    %v1226 = vpack.c.b16 %v814, %v810
    %v1227 = vpack.c.b16 %v815, %v811
    %v1228 = vpack.c.b16 %v816, %v812
    %v1229 = vpack.c.b16 %v817, %v813
    %v1230 = vpack.c.b16 %v822, %v818
    %v1231 = vpack.c.b16 %v823, %v819
    %v1232 = vpack.c.b16 %v824, %v820
    %v1233 = vpack.c.b16 %v825, %v821
    %v1234 = vpack.c.b16 %v830, %v826
    %v1235 = vpack.c.b16 %v831, %v827
    %v1236 = vpack.c.b16 %v832, %v828
    %v1237 = vpack.c.b16 %v833, %v829
    %v1238 = vpack.c.b16 %v838, %v834
    %v1239 = vpack.c.b16 %v839, %v835
    %v1240 = vpack.c.b16 %v840, %v836
    %v1241 = vpack.c.b16 %v841, %v837
    %v1242 = vpack.c.b16 %v846, %v842
    %v1243 = vpack.c.b16 %v847, %v843
    %v1244 = vpack.c.b16 %v848, %v844
    %v1245 = vpack.c.b16 %v849, %v845
    %v1246 = vpack.c.b16 %v854, %v850
    %v1247 = vpack.c.b16 %v855, %v851
    %v1248 = vpack.c.b16 %v856, %v852
    %v1249 = vpack.c.b16 %v857, %v853
    %v1250 = vpack.c.b16 %v862, %v858
    %v1251 = vpack.c.b16 %v863, %v859
    %v1252 = vpack.c.b16 %v864, %v860
    %v1253 = vpack.c.b16 %v865, %v861
    %v1254 = vpack.c.b16 %v870, %v866
    %v1255 = vpack.c.b16 %v871, %v867
    %v1256 = vpack.c.b16 %v872, %v868
    %v1257 = vpack.c.b16 %v873, %v869
    %v1258 = vpack.c.b16 %v878, %v874
    %v1259 = vpack.c.b16 %v879, %v875
    %v1260 = vpack.c.b16 %v880, %v876
    %v1261 = vpack.c.b16 %v881, %v877
    %v1262 = vpack.c.b16 %v886, %v882
    %v1263 = vpack.c.b16 %v887, %v883
    %v1264 = vpack.c.b16 %v888, %v884
    %v1265 = vpack.c.b16 %v889, %v885
    %v1266 = vpack.c.b16 %v894, %v890
    %v1267 = vpack.c.b16 %v895, %v891
    %v1268 = vpack.c.b16 %v896, %v892
    %v1269 = vpack.c.b16 %v897, %v893
    %v1270 = vpack.c.b16 %v902, %v898
    %v1271 = vpack.c.b16 %v903, %v899
    %v1272 = vpack.c.b16 %v904, %v900
    %v1273 = vpack.c.b16 %v905, %v901
    %v1274 = vpack.c.b16 %v910, %v906
    %v1275 = vpack.c.b16 %v911, %v907
    %v1276 = vpack.c.b16 %v912, %v908
    %v1277 = vpack.c.b16 %v913, %v909
    %v1278 = vpack.c.b16 %v918, %v914
    %v1279 = vpack.c.b16 %v919, %v915
    %v1280 = vpack.c.b16 %v920, %v916
    %v1281 = vpack.c.b16 %v921, %v917
    %v1282 = vpack.c.b16 %v926, %v922
    %v1283 = vpack.c.b16 %v927, %v923
    %v1284 = vpack.c.b16 %v928, %v924
    %v1285 = vpack.c.b16 %v929, %v925
    %v1286 = vpack.c.b16 %v934, %v930
    %v1287 = vpack.c.b16 %v935, %v931
    %v1288 = vpack.c.b16 %v936, %v932
    %v1289 = vpack.c.b16 %v937, %v933
    %v1290 = vpack.c.b16 %v942, %v938
    %v1291 = vpack.c.b16 %v943, %v939
    %v1292 = vpack.c.b16 %v944, %v940
    %v1293 = vpack.c.b16 %v945, %v941
    %v1294 = vpack.c.b16 %v950, %v946
    %v1295 = vpack.c.b16 %v951, %v947
    %v1296 = vpack.c.b16 %v952, %v948
    %v1297 = vpack.c.b16 %v953, %v949
    %v1298 = vpack.c.b16 %v958, %v954
    %v1299 = vpack.c.b16 %v959, %v955
    %v1300 = vpack.c.b16 %v960, %v956
    %v1301 = vpack.c.b16 %v961, %v957
    %v1302 = vpack.c.b16 %v966, %v962
    %v1303 = vpack.c.b16 %v967, %v963
    %v1304 = vpack.c.b16 %v968, %v964
    %v1305 = vpack.c.b16 %v969, %v965
    %v1306 = vpack.c.b16 %v974, %v970
    %v1307 = vpack.c.b16 %v975, %v971
    %v1308 = vpack.c.b16 %v976, %v972
    %v1309 = vpack.c.b16 %v977, %v973
    %v1310 = vpack.c.b16 %v982, %v978
    %v1311 = vpack.c.b16 %v983, %v979
    %v1312 = vpack.c.b16 %v984, %v980
    %v1313 = vpack.c.b16 %v985, %v981
    %v1314 = vpack.c.b16 %v990, %v986
    %v1315 = vpack.c.b16 %v991, %v987
    %v1316 = vpack.c.b16 %v992, %v988
    %v1317 = vpack.c.b16 %v993, %v989
    %v1318 = vpack.c.b16 %v998, %v994
    %v1319 = vpack.c.b16 %v999, %v995
    %v1320 = vpack.c.b16 %v1000, %v996
    %v1321 = vpack.c.b16 %v1001, %v997
    %v1322 = vpack.c.b16 %v1006, %v1002
    %v1323 = vpack.c.b16 %v1007, %v1003
    %v1324 = vpack.c.b16 %v1008, %v1004
    %v1325 = vpack.c.b16 %v1009, %v1005
    %v1326 = vpack.c.b16 %v1014, %v1010
    %v1327 = vpack.c.b16 %v1015, %v1011
    %v1328 = vpack.c.b16 %v1016, %v1012
    %v1329 = vpack.c.b16 %v1017, %v1013
    %v1330 = vpack.c.b16 %v1022, %v1018
    %v1331 = vpack.c.b16 %v1023, %v1019
    %v1332 = vpack.c.b16 %v1024, %v1020
    %v1333 = vpack.c.b16 %v1025, %v1021
    %v1334 = vpack.c.b16 %v1030, %v1026
    %v1335 = vpack.c.b16 %v1031, %v1027
    %v1336 = vpack.c.b16 %v1032, %v1028
    %v1337 = vpack.c.b16 %v1033, %v1029
    %v1338 = vpack.c.b16 %v1038, %v1034
    %v1339 = vpack.c.b16 %v1039, %v1035
    %v1340 = vpack.c.b16 %v1040, %v1036
    %v1341 = vpack.c.b16 %v1041, %v1037
    %v1342 = vpack.c.b16 %v1046, %v1042
    %v1343 = vpack.c.b16 %v1047, %v1043
    %v1344 = vpack.c.b16 %v1048, %v1044
    %v1345 = vpack.c.b16 %v1049, %v1045
    %v1346 = vpack.c.b16 %v1054, %v1050
    %v1347 = vpack.c.b16 %v1055, %v1051
    %v1348 = vpack.c.b16 %v1056, %v1052
    %v1349 = vpack.c.b16 %v1057, %v1053
    %v1350 = vpack.c.b16 %v1062, %v1058
    %v1351 = vpack.c.b16 %v1063, %v1059
    %v1352 = vpack.c.b16 %v1064, %v1060
    %v1353 = vpack.c.b16 %v1065, %v1061
    %v1354 = vpack.c.b16 %v1070, %v1066
    %v1355 = vpack.c.b16 %v1071, %v1067
    %v1356 = vpack.c.b16 %v1072, %v1068
    %v1357 = vpack.c.b16 %v1073, %v1069
    %v1358 = vpack.c.b16 %v1078, %v1074
    %v1359 = vpack.c.b16 %v1079, %v1075
    %v1360 = vpack.c.b16 %v1080, %v1076
    %v1361 = vpack.c.b16 %v1081, %v1077
    %v1362 = vpack.c.b16 %v1086, %v1082
    %v1363 = vpack.c.b16 %v1087, %v1083
    %v1364 = vpack.c.b16 %v1088, %v1084
    %v1365 = vpack.c.b16 %v1089, %v1085
    %v1366 = vpack.c.b16 %v1094, %v1090
    %v1367 = vpack.c.b16 %v1095, %v1091
    %v1368 = vpack.c.b16 %v1096, %v1092
    %v1369 = vpack.c.b16 %v1097, %v1093
    %v1370 = vpack.c.b16 %v1102, %v1098
    %v1371 = vpack.c.b16 %v1103, %v1099
    %v1372 = vpack.c.b16 %v1104, %v1100
    %v1373 = vpack.c.b16 %v1105, %v1101
    %v1374 = vpack.c.b16 %v1110, %v1106
    %v1375 = vpack.c.b16 %v1111, %v1107
    %v1376 = vpack.c.b16 %v1112, %v1108
    %v1377 = vpack.c.b16 %v1113, %v1109
    %v1378 = vpack.c.b16 %v1118, %v1114
    %v1379 = vpack.c.b16 %v1119, %v1115
    %v1380 = vpack.c.b16 %v1120, %v1116
    %v1381 = vpack.c.b16 %v1121, %v1117
    %v1382 = vpack.c.b16 %v1126, %v1122
    %v1383 = vpack.c.b16 %v1127, %v1123
    %v1384 = vpack.c.b16 %v1128, %v1124
    %v1385 = vpack.c.b16 %v1129, %v1125
    %1642 = vmatpush.bf16.msra.mxu0 %v1158
    %1643 = vmatpush.bf16.msra.mxu0 %v1154
    %1644 = vmatpush.bf16.msra.mxu0 %v1150
    %1645 = vmatpush.bf16.msra.mxu0 %v1146
    %1646 = vmatpush.bf16.msra.mxu0 %v1142
    %1647 = vmatpush.bf16.msra.mxu0 %v1138
    %1648 = vmatpush.bf16.msra.mxu0 %v1134
    %1649 = vmatpush.bf16.msra.mxu0 %v1130
    %1650 = vmatmul.bf16.gmra.mxu0 %v346
    %v1651 = vpop.f32.mrf.mxu0
    %v1652 = vadd.f32 %v326, %v1651
    %v1653 = vpop.f32.mrf.mxu0
    %1654 = vdwg.mxu0
    %1655 = vmatpush.bf16.msra.mxu0 %v1190
    %1656 = vmatpush.bf16.msra.mxu0 %v1186
    %1657 = vmatpush.bf16.msra.mxu0 %v1182
    %1658 = vmatpush.bf16.msra.mxu0 %v1178
    %1659 = vmatpush.bf16.msra.mxu0 %v1174
    %1660 = vmatpush.bf16.msra.mxu0 %v1170
    %1661 = vmatpush.bf16.msra.mxu0 %v1166
    %1662 = vmatpush.bf16.msra.mxu0 %v1162
    %1663 = vmatmul.bf16.gmra.mxu0 %v347
    %v1664 = vpop.f32.mrf.mxu0
    %v1665 = vadd.f32 %v1652, %v1664
    %v1666 = vpop.f32.mrf.mxu0
    %1667 = vdwg.mxu0
    %1668 = vmatpush.bf16.msra.mxu0 %v1222
    %1669 = vmatpush.bf16.msra.mxu0 %v1218
    %1670 = vmatpush.bf16.msra.mxu0 %v1214
    %1671 = vmatpush.bf16.msra.mxu0 %v1210
    %1672 = vmatpush.bf16.msra.mxu0 %v1206
    %1673 = vmatpush.bf16.msra.mxu0 %v1202
    %1674 = vmatpush.bf16.msra.mxu0 %v1198
    %1675 = vmatpush.bf16.msra.mxu0 %v1194
    %1676 = vmatmul.bf16.gmra.mxu0 %v348
    %v1677 = vpop.f32.mrf.mxu0
    %v1678 = vadd.f32 %v1665, %v1677
    %v1679 = vpop.f32.mrf.mxu0
    %1680 = vdwg.mxu0
    %1681 = vmatpush.bf16.msra.mxu0 %v1254
    %1682 = vmatpush.bf16.msra.mxu0 %v1250
    %1683 = vmatpush.bf16.msra.mxu0 %v1246
    %1684 = vmatpush.bf16.msra.mxu0 %v1242
    %1685 = vmatpush.bf16.msra.mxu0 %v1238
    %1686 = vmatpush.bf16.msra.mxu0 %v1234
    %1687 = vmatpush.bf16.msra.mxu0 %v1230
    %1688 = vmatpush.bf16.msra.mxu0 %v1226
    %1689 = vmatmul.bf16.gmra.mxu0 %v349
    %v1690 = vpop.f32.mrf.mxu0
    %v1691 = vadd.f32 %v1678, %v1690
    %v1692 = vpop.f32.mrf.mxu0
    %1693 = vdwg.mxu0
    %1694 = vmatpush.bf16.msra.mxu0 %v1286
    %1695 = vmatpush.bf16.msra.mxu0 %v1282
    %1696 = vmatpush.bf16.msra.mxu0 %v1278
    %1697 = vmatpush.bf16.msra.mxu0 %v1274
    %1698 = vmatpush.bf16.msra.mxu0 %v1270
    %1699 = vmatpush.bf16.msra.mxu0 %v1266
    %1700 = vmatpush.bf16.msra.mxu0 %v1262
    %1701 = vmatpush.bf16.msra.mxu0 %v1258
    %1702 = vmatmul.bf16.gmra.mxu0 %v350
    %v1703 = vpop.f32.mrf.mxu0
    %v1704 = vadd.f32 %v1691, %v1703
    %v1705 = vpop.f32.mrf.mxu0
    %1706 = vdwg.mxu0
    %1707 = vmatpush.bf16.msra.mxu0 %v1318
    %1708 = vmatpush.bf16.msra.mxu0 %v1314
    %1709 = vmatpush.bf16.msra.mxu0 %v1310
    %1710 = vmatpush.bf16.msra.mxu0 %v1306
    %1711 = vmatpush.bf16.msra.mxu0 %v1302
    %1712 = vmatpush.bf16.msra.mxu0 %v1298
    %1713 = vmatpush.bf16.msra.mxu0 %v1294
    %1714 = vmatpush.bf16.msra.mxu0 %v1290
    %1715 = vmatmul.bf16.gmra.mxu0 %v351
    %v1716 = vpop.f32.mrf.mxu0
    %v1717 = vadd.f32 %v1704, %v1716
    %v1718 = vpop.f32.mrf.mxu0
    %1719 = vdwg.mxu0
    %1720 = vmatpush.bf16.msra.mxu0 %v1350
    %1721 = vmatpush.bf16.msra.mxu0 %v1346
    %1722 = vmatpush.bf16.msra.mxu0 %v1342
    %1723 = vmatpush.bf16.msra.mxu0 %v1338
    %1724 = vmatpush.bf16.msra.mxu0 %v1334
    %1725 = vmatpush.bf16.msra.mxu0 %v1330
    %1726 = vmatpush.bf16.msra.mxu0 %v1326
    %1727 = vmatpush.bf16.msra.mxu0 %v1322
    %1728 = vmatmul.bf16.gmra.mxu0 %v352
    %v1729 = vpop.f32.mrf.mxu0
    %v1730 = vadd.f32 %v1717, %v1729
    %v1731 = vpop.f32.mrf.mxu0
    %1732 = vdwg.mxu0
    %1733 = vmatpush.bf16.msra.mxu0 %v1382
    %1734 = vmatpush.bf16.msra.mxu0 %v1378
    %1735 = vmatpush.bf16.msra.mxu0 %v1374
    %1736 = vmatpush.bf16.msra.mxu0 %v1370
    %1737 = vmatpush.bf16.msra.mxu0 %v1366
    %1738 = vmatpush.bf16.msra.mxu0 %v1362
    %1739 = vmatpush.bf16.msra.mxu0 %v1358
    %1740 = vmatpush.bf16.msra.mxu0 %v1354
    %1741 = vmatmul.bf16.gmra.mxu0 %v353
    %v1742 = vpop.f32.mrf.mxu0
    %v1743 = vadd.f32 %v1730, %v1742
    %v1744 = vpop.f32.mrf.mxu0
    %1745 = vdwg.mxu0
    %1746 = vmatpush.bf16.msra.mxu0 %v1159
    %1747 = vmatpush.bf16.msra.mxu0 %v1155
    %1748 = vmatpush.bf16.msra.mxu0 %v1151
    %1749 = vmatpush.bf16.msra.mxu0 %v1147
    %1750 = vmatpush.bf16.msra.mxu0 %v1143
    %1751 = vmatpush.bf16.msra.mxu0 %v1139
    %1752 = vmatpush.bf16.msra.mxu0 %v1135
    %1753 = vmatpush.bf16.msra.mxu0 %v1131
    %1754 = vmatmul.bf16.gmra.mxu0 %v346
    %v1755 = vpop.f32.mrf.mxu0
    %v1756 = vadd.f32 %v327, %v1755
    %v1757 = vpop.f32.mrf.mxu0
    %1758 = vdwg.mxu0
    %1759 = vmatpush.bf16.msra.mxu0 %v1191
    %1760 = vmatpush.bf16.msra.mxu0 %v1187
    %1761 = vmatpush.bf16.msra.mxu0 %v1183
    %1762 = vmatpush.bf16.msra.mxu0 %v1179
    %1763 = vmatpush.bf16.msra.mxu0 %v1175
    %1764 = vmatpush.bf16.msra.mxu0 %v1171
    %1765 = vmatpush.bf16.msra.mxu0 %v1167
    %1766 = vmatpush.bf16.msra.mxu0 %v1163
    %1767 = vmatmul.bf16.gmra.mxu0 %v347
    %v1768 = vpop.f32.mrf.mxu0
    %v1769 = vadd.f32 %v1756, %v1768
    %v1770 = vpop.f32.mrf.mxu0
    %1771 = vdwg.mxu0
    %1772 = vmatpush.bf16.msra.mxu0 %v1223
    %1773 = vmatpush.bf16.msra.mxu0 %v1219
    %1774 = vmatpush.bf16.msra.mxu0 %v1215
    %1775 = vmatpush.bf16.msra.mxu0 %v1211
    %1776 = vmatpush.bf16.msra.mxu0 %v1207
    %1777 = vmatpush.bf16.msra.mxu0 %v1203
    %1778 = vmatpush.bf16.msra.mxu0 %v1199
    %1779 = vmatpush.bf16.msra.mxu0 %v1195
    %1780 = vmatmul.bf16.gmra.mxu0 %v348
    %v1781 = vpop.f32.mrf.mxu0
    %v1782 = vadd.f32 %v1769, %v1781
    %v1783 = vpop.f32.mrf.mxu0
    %1784 = vdwg.mxu0
    %1785 = vmatpush.bf16.msra.mxu0 %v1255
    %1786 = vmatpush.bf16.msra.mxu0 %v1251
    %1787 = vmatpush.bf16.msra.mxu0 %v1247
    %1788 = vmatpush.bf16.msra.mxu0 %v1243
    %1789 = vmatpush.bf16.msra.mxu0 %v1239
    %1790 = vmatpush.bf16.msra.mxu0 %v1235
    %1791 = vmatpush.bf16.msra.mxu0 %v1231
    %1792 = vmatpush.bf16.msra.mxu0 %v1227
    %1793 = vmatmul.bf16.gmra.mxu0 %v349
    %v1794 = vpop.f32.mrf.mxu0
    %v1795 = vadd.f32 %v1782, %v1794
    %v1796 = vpop.f32.mrf.mxu0
    %1797 = vdwg.mxu0
    %1798 = vmatpush.bf16.msra.mxu0 %v1287
    %1799 = vmatpush.bf16.msra.mxu0 %v1283
    %1800 = vmatpush.bf16.msra.mxu0 %v1279
    %1801 = vmatpush.bf16.msra.mxu0 %v1275
    %1802 = vmatpush.bf16.msra.mxu0 %v1271
    %1803 = vmatpush.bf16.msra.mxu0 %v1267
    %1804 = vmatpush.bf16.msra.mxu0 %v1263
    %1805 = vmatpush.bf16.msra.mxu0 %v1259
    %1806 = vmatmul.bf16.gmra.mxu0 %v350
    %v1807 = vpop.f32.mrf.mxu0
    %v1808 = vadd.f32 %v1795, %v1807
    %v1809 = vpop.f32.mrf.mxu0
    %1810 = vdwg.mxu0
    %1811 = vmatpush.bf16.msra.mxu0 %v1319
    %1812 = vmatpush.bf16.msra.mxu0 %v1315
    %1813 = vmatpush.bf16.msra.mxu0 %v1311
    %1814 = vmatpush.bf16.msra.mxu0 %v1307
    %1815 = vmatpush.bf16.msra.mxu0 %v1303
    %1816 = vmatpush.bf16.msra.mxu0 %v1299
    %1817 = vmatpush.bf16.msra.mxu0 %v1295
    %1818 = vmatpush.bf16.msra.mxu0 %v1291
    %1819 = vmatmul.bf16.gmra.mxu0 %v351
    %v1820 = vpop.f32.mrf.mxu0
    %v1821 = vadd.f32 %v1808, %v1820
    %v1822 = vpop.f32.mrf.mxu0
    %1823 = vdwg.mxu0
    %1824 = vmatpush.bf16.msra.mxu0 %v1351
    %1825 = vmatpush.bf16.msra.mxu0 %v1347
    %1826 = vmatpush.bf16.msra.mxu0 %v1343
    %1827 = vmatpush.bf16.msra.mxu0 %v1339
    %1828 = vmatpush.bf16.msra.mxu0 %v1335
    %1829 = vmatpush.bf16.msra.mxu0 %v1331
    %1830 = vmatpush.bf16.msra.mxu0 %v1327
    %1831 = vmatpush.bf16.msra.mxu0 %v1323
    %1832 = vmatmul.bf16.gmra.mxu0 %v352
    %v1833 = vpop.f32.mrf.mxu0
    %v1834 = vadd.f32 %v1821, %v1833
    %v1835 = vpop.f32.mrf.mxu0
    %1836 = vdwg.mxu0
    %1837 = vmatpush.bf16.msra.mxu0 %v1383
    %1838 = vmatpush.bf16.msra.mxu0 %v1379
    %1839 = vmatpush.bf16.msra.mxu0 %v1375
    %1840 = vmatpush.bf16.msra.mxu0 %v1371
    %1841 = vmatpush.bf16.msra.mxu0 %v1367
    %1842 = vmatpush.bf16.msra.mxu0 %v1363
    %1843 = vmatpush.bf16.msra.mxu0 %v1359
    %1844 = vmatpush.bf16.msra.mxu0 %v1355
    %1845 = vmatmul.bf16.gmra.mxu0 %v353
    %v1846 = vpop.f32.mrf.mxu0
    %v1847 = vadd.f32 %v1834, %v1846
    %v1848 = vpop.f32.mrf.mxu0
    %1849 = vdwg.mxu0
    %1850 = vmatpush.bf16.msra.mxu0 %v1160
    %1851 = vmatpush.bf16.msra.mxu0 %v1156
    %1852 = vmatpush.bf16.msra.mxu0 %v1152
    %1853 = vmatpush.bf16.msra.mxu0 %v1148
    %1854 = vmatpush.bf16.msra.mxu0 %v1144
    %1855 = vmatpush.bf16.msra.mxu0 %v1140
    %1856 = vmatpush.bf16.msra.mxu0 %v1136
    %1857 = vmatpush.bf16.msra.mxu0 %v1132
    %1858 = vmatmul.bf16.gmra.mxu0 %v346
    %v1859 = vpop.f32.mrf.mxu0
    %v1860 = vadd.f32 %v328, %v1859
    %v1861 = vpop.f32.mrf.mxu0
    %1862 = vdwg.mxu0
    %1863 = vmatpush.bf16.msra.mxu0 %v1192
    %1864 = vmatpush.bf16.msra.mxu0 %v1188
    %1865 = vmatpush.bf16.msra.mxu0 %v1184
    %1866 = vmatpush.bf16.msra.mxu0 %v1180
    %1867 = vmatpush.bf16.msra.mxu0 %v1176
    %1868 = vmatpush.bf16.msra.mxu0 %v1172
    %1869 = vmatpush.bf16.msra.mxu0 %v1168
    %1870 = vmatpush.bf16.msra.mxu0 %v1164
    %1871 = vmatmul.bf16.gmra.mxu0 %v347
    %v1872 = vpop.f32.mrf.mxu0
    %v1873 = vadd.f32 %v1860, %v1872
    %v1874 = vpop.f32.mrf.mxu0
    %1875 = vdwg.mxu0
    %1876 = vmatpush.bf16.msra.mxu0 %v1224
    %1877 = vmatpush.bf16.msra.mxu0 %v1220
    %1878 = vmatpush.bf16.msra.mxu0 %v1216
    %1879 = vmatpush.bf16.msra.mxu0 %v1212
    %1880 = vmatpush.bf16.msra.mxu0 %v1208
    %1881 = vmatpush.bf16.msra.mxu0 %v1204
    %1882 = vmatpush.bf16.msra.mxu0 %v1200
    %1883 = vmatpush.bf16.msra.mxu0 %v1196
    %1884 = vmatmul.bf16.gmra.mxu0 %v348
    %v1885 = vpop.f32.mrf.mxu0
    %v1886 = vadd.f32 %v1873, %v1885
    %v1887 = vpop.f32.mrf.mxu0
    %1888 = vdwg.mxu0
    %1889 = vmatpush.bf16.msra.mxu0 %v1256
    %1890 = vmatpush.bf16.msra.mxu0 %v1252
    %1891 = vmatpush.bf16.msra.mxu0 %v1248
    %1892 = vmatpush.bf16.msra.mxu0 %v1244
    %1893 = vmatpush.bf16.msra.mxu0 %v1240
    %1894 = vmatpush.bf16.msra.mxu0 %v1236
    %1895 = vmatpush.bf16.msra.mxu0 %v1232
    %1896 = vmatpush.bf16.msra.mxu0 %v1228
    %1897 = vmatmul.bf16.gmra.mxu0 %v349
    %v1898 = vpop.f32.mrf.mxu0
    %v1899 = vadd.f32 %v1886, %v1898
    %v1900 = vpop.f32.mrf.mxu0
    %1901 = vdwg.mxu0
    %1902 = vmatpush.bf16.msra.mxu0 %v1288
    %1903 = vmatpush.bf16.msra.mxu0 %v1284
    %1904 = vmatpush.bf16.msra.mxu0 %v1280
    %1905 = vmatpush.bf16.msra.mxu0 %v1276
    %1906 = vmatpush.bf16.msra.mxu0 %v1272
    %1907 = vmatpush.bf16.msra.mxu0 %v1268
    %1908 = vmatpush.bf16.msra.mxu0 %v1264
    %1909 = vmatpush.bf16.msra.mxu0 %v1260
    %1910 = vmatmul.bf16.gmra.mxu0 %v350
    %v1911 = vpop.f32.mrf.mxu0
    %v1912 = vadd.f32 %v1899, %v1911
    %v1913 = vpop.f32.mrf.mxu0
    %1914 = vdwg.mxu0
    %1915 = vmatpush.bf16.msra.mxu0 %v1320
    %1916 = vmatpush.bf16.msra.mxu0 %v1316
    %1917 = vmatpush.bf16.msra.mxu0 %v1312
    %1918 = vmatpush.bf16.msra.mxu0 %v1308
    %1919 = vmatpush.bf16.msra.mxu0 %v1304
    %1920 = vmatpush.bf16.msra.mxu0 %v1300
    %1921 = vmatpush.bf16.msra.mxu0 %v1296
    %1922 = vmatpush.bf16.msra.mxu0 %v1292
    %1923 = vmatmul.bf16.gmra.mxu0 %v351
    %v1924 = vpop.f32.mrf.mxu0
    %v1925 = vadd.f32 %v1912, %v1924
    %v1926 = vpop.f32.mrf.mxu0
    %1927 = vdwg.mxu0
    %1928 = vmatpush.bf16.msra.mxu0 %v1352
    %1929 = vmatpush.bf16.msra.mxu0 %v1348
    %1930 = vmatpush.bf16.msra.mxu0 %v1344
    %1931 = vmatpush.bf16.msra.mxu0 %v1340
    %1932 = vmatpush.bf16.msra.mxu0 %v1336
    %1933 = vmatpush.bf16.msra.mxu0 %v1332
    %1934 = vmatpush.bf16.msra.mxu0 %v1328
    %1935 = vmatpush.bf16.msra.mxu0 %v1324
    %1936 = vmatmul.bf16.gmra.mxu0 %v352
    %v1937 = vpop.f32.mrf.mxu0
    %v1938 = vadd.f32 %v1925, %v1937
    %v1939 = vpop.f32.mrf.mxu0
    %1940 = vdwg.mxu0
    %1941 = vmatpush.bf16.msra.mxu0 %v1384
    %1942 = vmatpush.bf16.msra.mxu0 %v1380
    %1943 = vmatpush.bf16.msra.mxu0 %v1376
    %1944 = vmatpush.bf16.msra.mxu0 %v1372
    %1945 = vmatpush.bf16.msra.mxu0 %v1368
    %1946 = vmatpush.bf16.msra.mxu0 %v1364
    %1947 = vmatpush.bf16.msra.mxu0 %v1360
    %1948 = vmatpush.bf16.msra.mxu0 %v1356
    %1949 = vmatmul.bf16.gmra.mxu0 %v353
    %v1950 = vpop.f32.mrf.mxu0
    %v1951 = vadd.f32 %v1938, %v1950
    %v1952 = vpop.f32.mrf.mxu0
    %1953 = vdwg.mxu0
    %1954 = vmatpush.bf16.msra.mxu0 %v1161
    %1955 = vmatpush.bf16.msra.mxu0 %v1157
    %1956 = vmatpush.bf16.msra.mxu0 %v1153
    %1957 = vmatpush.bf16.msra.mxu0 %v1149
    %1958 = vmatpush.bf16.msra.mxu0 %v1145
    %1959 = vmatpush.bf16.msra.mxu0 %v1141
    %1960 = vmatpush.bf16.msra.mxu0 %v1137
    %1961 = vmatpush.bf16.msra.mxu0 %v1133
    %1962 = vmatmul.bf16.gmra.mxu0 %v346
    %v1963 = vpop.f32.mrf.mxu0
    %v1964 = vadd.f32 %v329, %v1963
    %v1965 = vpop.f32.mrf.mxu0
    %1966 = vdwg.mxu0
    %1967 = vmatpush.bf16.msra.mxu0 %v1193
    %1968 = vmatpush.bf16.msra.mxu0 %v1189
    %1969 = vmatpush.bf16.msra.mxu0 %v1185
    %1970 = vmatpush.bf16.msra.mxu0 %v1181
    %1971 = vmatpush.bf16.msra.mxu0 %v1177
    %1972 = vmatpush.bf16.msra.mxu0 %v1173
    %1973 = vmatpush.bf16.msra.mxu0 %v1169
    %1974 = vmatpush.bf16.msra.mxu0 %v1165
    %1975 = vmatmul.bf16.gmra.mxu0 %v347
    %v1976 = vpop.f32.mrf.mxu0
    %v1977 = vadd.f32 %v1964, %v1976
    %v1978 = vpop.f32.mrf.mxu0
    %1979 = vdwg.mxu0
    %1980 = vmatpush.bf16.msra.mxu0 %v1225
    %1981 = vmatpush.bf16.msra.mxu0 %v1221
    %1982 = vmatpush.bf16.msra.mxu0 %v1217
    %1983 = vmatpush.bf16.msra.mxu0 %v1213
    %1984 = vmatpush.bf16.msra.mxu0 %v1209
    %1985 = vmatpush.bf16.msra.mxu0 %v1205
    %1986 = vmatpush.bf16.msra.mxu0 %v1201
    %1987 = vmatpush.bf16.msra.mxu0 %v1197
    %1988 = vmatmul.bf16.gmra.mxu0 %v348
    %v1989 = vpop.f32.mrf.mxu0
    %v1990 = vadd.f32 %v1977, %v1989
    %v1991 = vpop.f32.mrf.mxu0
    %1992 = vdwg.mxu0
    %1993 = vmatpush.bf16.msra.mxu0 %v1257
    %1994 = vmatpush.bf16.msra.mxu0 %v1253
    %1995 = vmatpush.bf16.msra.mxu0 %v1249
    %1996 = vmatpush.bf16.msra.mxu0 %v1245
    %1997 = vmatpush.bf16.msra.mxu0 %v1241
    %1998 = vmatpush.bf16.msra.mxu0 %v1237
    %1999 = vmatpush.bf16.msra.mxu0 %v1233
    %2000 = vmatpush.bf16.msra.mxu0 %v1229
    %2001 = vmatmul.bf16.gmra.mxu0 %v349
    %v2002 = vpop.f32.mrf.mxu0
    %v2003 = vadd.f32 %v1990, %v2002
    %v2004 = vpop.f32.mrf.mxu0
    %2005 = vdwg.mxu0
    %2006 = vmatpush.bf16.msra.mxu0 %v1289
    %2007 = vmatpush.bf16.msra.mxu0 %v1285
    %2008 = vmatpush.bf16.msra.mxu0 %v1281
    %2009 = vmatpush.bf16.msra.mxu0 %v1277
    %2010 = vmatpush.bf16.msra.mxu0 %v1273
    %2011 = vmatpush.bf16.msra.mxu0 %v1269
    %2012 = vmatpush.bf16.msra.mxu0 %v1265
    %2013 = vmatpush.bf16.msra.mxu0 %v1261
    %2014 = vmatmul.bf16.gmra.mxu0 %v350
    %v2015 = vpop.f32.mrf.mxu0
    %v2016 = vadd.f32 %v2003, %v2015
    %v2017 = vpop.f32.mrf.mxu0
    %2018 = vdwg.mxu0
    %2019 = vmatpush.bf16.msra.mxu0 %v1321
    %2020 = vmatpush.bf16.msra.mxu0 %v1317
    %2021 = vmatpush.bf16.msra.mxu0 %v1313
    %2022 = vmatpush.bf16.msra.mxu0 %v1309
    %2023 = vmatpush.bf16.msra.mxu0 %v1305
    %2024 = vmatpush.bf16.msra.mxu0 %v1301
    %2025 = vmatpush.bf16.msra.mxu0 %v1297
    %2026 = vmatpush.bf16.msra.mxu0 %v1293
    %2027 = vmatmul.bf16.gmra.mxu0 %v351
    %v2028 = vpop.f32.mrf.mxu0
    %v2029 = vadd.f32 %v2016, %v2028
    %v2030 = vpop.f32.mrf.mxu0
    %2031 = vdwg.mxu0
    %2032 = vmatpush.bf16.msra.mxu0 %v1353
    %2033 = vmatpush.bf16.msra.mxu0 %v1349
    %2034 = vmatpush.bf16.msra.mxu0 %v1345
    %2035 = vmatpush.bf16.msra.mxu0 %v1341
    %2036 = vmatpush.bf16.msra.mxu0 %v1337
    %2037 = vmatpush.bf16.msra.mxu0 %v1333
    %2038 = vmatpush.bf16.msra.mxu0 %v1329
    %2039 = vmatpush.bf16.msra.mxu0 %v1325
    %2040 = vmatmul.bf16.gmra.mxu0 %v352
    %v2041 = vpop.f32.mrf.mxu0
    %v2042 = vadd.f32 %v2029, %v2041
    %v2043 = vpop.f32.mrf.mxu0
    %2044 = vdwg.mxu0
    %2045 = vmatpush.bf16.msra.mxu0 %v1385
    %2046 = vmatpush.bf16.msra.mxu0 %v1381
    %2047 = vmatpush.bf16.msra.mxu0 %v1377
    %2048 = vmatpush.bf16.msra.mxu0 %v1373
    %2049 = vmatpush.bf16.msra.mxu0 %v1369
    %2050 = vmatpush.bf16.msra.mxu0 %v1365
    %2051 = vmatpush.bf16.msra.mxu0 %v1361
    %2052 = vmatpush.bf16.msra.mxu0 %v1357
    %2053 = vmatmul.bf16.gmra.mxu0 %v353
    %v2054 = vpop.f32.mrf.mxu0
    %v2055 = vadd.f32 %v2042, %v2054
    %v2056 = vpop.f32.mrf.mxu0
    %2057 = vdwg.mxu0
    %v2058 = vmax.f32 %v1743, 0.0
    %v2059 = vmax.f32 %v1847, 0.0
    %v2060 = vmax.f32 %v1951, 0.0
    %v2061 = vmax.f32 %v2055, 0.0
    %v2062 = vpack.c.bf16 %v2058, %v2058
    %v2063 = vpack.c.bf16 %v2059, %v2059
    %v2064 = vpack.c.bf16 %v2060, %v2060
    %v2065 = vpack.c.bf16 %v2061, %v2061
    %v2066 = vld [vmem:[%s3] sm:$0xf]
    %v2067 = vld [vmem:[%s3 + $0x4] sm:$0xf]
    %v2068 = vld [vmem:[%s3 + $0x8] sm:$0xf]
    %v2069 = vld [vmem:[%s3 + $0xc] sm:$0xf]
    %v2070 = vld [vmem:[%s3 + $0x10] sm:$0xf]
    %v2071 = vld [vmem:[%s3 + $0x14] sm:$0xf]
    %v2072 = vld [vmem:[%s3 + $0x18] sm:$0xf]
    %v2073 = vld [vmem:[%s3 + $0x1c] sm:$0xf]
    %v2074 = vld [vmem:[%s3 + $0x20] sm:$0xf]
    %v2075 = vld [vmem:[%s3 + $0x24] sm:$0xf]
    %v2076 = vld [vmem:[%s3 + $0x28] sm:$0xf]
    %v2077 = vld [vmem:[%s3 + $0x2c] sm:$0xf]
    %v2078 = vld [vmem:[%s3 + $0x30] sm:$0xf]
    %v2079 = vld [vmem:[%s3 + $0x34] sm:$0xf]
    %v2080 = vld [vmem:[%s3 + $0x38] sm:$0xf]
    %v2081 = vld [vmem:[%s3 + $0x3c] sm:$0xf]
    %v2082 = vld [vmem:[%s3 + $0x40] sm:$0xf]
    %v2083 = vld [vmem:[%s3 + $0x44] sm:$0xf]
    %v2084 = vld [vmem:[%s3 + $0x48] sm:$0xf]
    %v2085 = vld [vmem:[%s3 + $0x4c] sm:$0xf]
    %v2086 = vld [vmem:[%s3 + $0x50] sm:$0xf]
    %v2087 = vld [vmem:[%s3 + $0x54] sm:$0xf]
    %v2088 = vld [vmem:[%s3 + $0x58] sm:$0xf]
    %v2089 = vld [vmem:[%s3 + $0x5c] sm:$0xf]
    %v2090 = vld [vmem:[%s3 + $0x60] sm:$0xf]
    %v2091 = vld [vmem:[%s3 + $0x64] sm:$0xf]
    %v2092 = vld [vmem:[%s3 + $0x68] sm:$0xf]
    %v2093 = vld [vmem:[%s3 + $0x6c] sm:$0xf]
    %v2094 = vld [vmem:[%s3 + $0x70] sm:$0xf]
    %v2095 = vld [vmem:[%s3 + $0x74] sm:$0xf]
    %v2096 = vld [vmem:[%s3 + $0x78] sm:$0xf]
    %v2097 = vld [vmem:[%s3 + $0x7c] sm:$0xf]
    %v2098 = vld [vmem:[%s3 + $0x80] sm:$0xf]
    %v2099 = vld [vmem:[%s3 + $0x84] sm:$0xf]
    %v2100 = vld [vmem:[%s3 + $0x88] sm:$0xf]
    %v2101 = vld [vmem:[%s3 + $0x8c] sm:$0xf]
    %v2102 = vld [vmem:[%s3 + $0x90] sm:$0xf]
    %v2103 = vld [vmem:[%s3 + $0x94] sm:$0xf]
    %v2104 = vld [vmem:[%s3 + $0x98] sm:$0xf]
    %v2105 = vld [vmem:[%s3 + $0x9c] sm:$0xf]
    %v2106 = vld [vmem:[%s3 + $0xa0] sm:$0xf]
    %v2107 = vld [vmem:[%s3 + $0xa4] sm:$0xf]
    %v2108 = vld [vmem:[%s3 + $0xa8] sm:$0xf]
    %v2109 = vld [vmem:[%s3 + $0xac] sm:$0xf]
    %v2110 = vld [vmem:[%s3 + $0xb0] sm:$0xf]
    %v2111 = vld [vmem:[%s3 + $0xb4] sm:$0xf]
    %v2112 = vld [vmem:[%s3 + $0xb8] sm:$0xf]
    %v2113 = vld [vmem:[%s3 + $0xbc] sm:$0xf]
    %v2114 = vld [vmem:[%s3 + $0xc0] sm:$0xf]
    %v2115 = vld [vmem:[%s3 + $0xc4] sm:$0xf]
    %v2116 = vld [vmem:[%s3 + $0xc8] sm:$0xf]
    %v2117 = vld [vmem:[%s3 + $0xcc] sm:$0xf]
    %v2118 = vld [vmem:[%s3 + $0xd0] sm:$0xf]
    %v2119 = vld [vmem:[%s3 + $0xd4] sm:$0xf]
    %v2120 = vld [vmem:[%s3 + $0xd8] sm:$0xf]
    %v2121 = vld [vmem:[%s3 + $0xdc] sm:$0xf]
    %v2122 = vld [vmem:[%s3 + $0xe0] sm:$0xf]
    %v2123 = vld [vmem:[%s3 + $0xe4] sm:$0xf]
    %v2124 = vld [vmem:[%s3 + $0xe8] sm:$0xf]
    %v2125 = vld [vmem:[%s3 + $0xec] sm:$0xf]
    %v2126 = vld [vmem:[%s3 + $0xf0] sm:$0xf]
    %v2127 = vld [vmem:[%s3 + $0xf4] sm:$0xf]
    %v2128 = vld [vmem:[%s3 + $0xf8] sm:$0xf]
    %v2129 = vld [vmem:[%s3 + $0xfc] sm:$0xf]
    %v2130 = vld [vmem:[#allocation7] sm:$0x1]
    %v2132 = vperm.slane %v2130, 0
    %v2198 = vunpack.c.l.b16 %v2066
    %v2199 = vunpack.c.l.b16 %v2067
    %v2200 = vunpack.c.l.b16 %v2068
    %v2201 = vunpack.c.l.b16 %v2069
    %v2202 = vunpack.c.l.b16 %v2070
    %v2203 = vunpack.c.l.b16 %v2071
    %v2204 = vunpack.c.l.b16 %v2072
    %v2205 = vunpack.c.l.b16 %v2073
    %v2206 = vunpack.c.l.b16 %v2074
    %v2207 = vunpack.c.l.b16 %v2075
    %v2208 = vunpack.c.l.b16 %v2076
    %v2209 = vunpack.c.l.b16 %v2077
    %v2210 = vunpack.c.l.b16 %v2078
    %v2211 = vunpack.c.l.b16 %v2079
    %v2212 = vunpack.c.l.b16 %v2080
    %v2213 = vunpack.c.l.b16 %v2081
    %v2214 = vunpack.c.l.b16 %v2082
    %v2215 = vunpack.c.l.b16 %v2083
    %v2216 = vunpack.c.l.b16 %v2084
    %v2217 = vunpack.c.l.b16 %v2085
    %v2218 = vunpack.c.l.b16 %v2086
    %v2219 = vunpack.c.l.b16 %v2087
    %v2220 = vunpack.c.l.b16 %v2088
    %v2221 = vunpack.c.l.b16 %v2089
    %v2222 = vunpack.c.l.b16 %v2090
    %v2223 = vunpack.c.l.b16 %v2091
    %v2224 = vunpack.c.l.b16 %v2092
    %v2225 = vunpack.c.l.b16 %v2093
    %v2226 = vunpack.c.l.b16 %v2094
    %v2227 = vunpack.c.l.b16 %v2095
    %v2228 = vunpack.c.l.b16 %v2096
    %v2229 = vunpack.c.l.b16 %v2097
    %v2230 = vunpack.c.l.b16 %v2098
    %v2231 = vunpack.c.l.b16 %v2099
    %v2232 = vunpack.c.l.b16 %v2100
    %v2233 = vunpack.c.l.b16 %v2101
    %v2234 = vunpack.c.l.b16 %v2102
    %v2235 = vunpack.c.l.b16 %v2103
    %v2236 = vunpack.c.l.b16 %v2104
    %v2237 = vunpack.c.l.b16 %v2105
    %v2238 = vunpack.c.l.b16 %v2106
    %v2239 = vunpack.c.l.b16 %v2107
    %v2240 = vunpack.c.l.b16 %v2108
    %v2241 = vunpack.c.l.b16 %v2109
    %v2242 = vunpack.c.l.b16 %v2110
    %v2243 = vunpack.c.l.b16 %v2111
    %v2244 = vunpack.c.l.b16 %v2112
    %v2245 = vunpack.c.l.b16 %v2113
    %v2246 = vunpack.c.l.b16 %v2114
    %v2247 = vunpack.c.l.b16 %v2115
    %v2248 = vunpack.c.l.b16 %v2116
    %v2249 = vunpack.c.l.b16 %v2117
    %v2250 = vunpack.c.l.b16 %v2118
    %v2251 = vunpack.c.l.b16 %v2119
    %v2252 = vunpack.c.l.b16 %v2120
    %v2253 = vunpack.c.l.b16 %v2121
    %v2254 = vunpack.c.l.b16 %v2122
    %v2255 = vunpack.c.l.b16 %v2123
    %v2256 = vunpack.c.l.b16 %v2124
    %v2257 = vunpack.c.l.b16 %v2125
    %v2258 = vunpack.c.l.b16 %v2126
    %v2259 = vunpack.c.l.b16 %v2127
    %v2260 = vunpack.c.l.b16 %v2128
    %v2261 = vunpack.c.l.b16 %v2129
    %v2262 = vpack.c.b16 %v2199, %v2198
    %v2263 = vpack.c.b16 %v2201, %v2200
    %v2264 = vpack.c.b16 %v2203, %v2202
    %v2265 = vpack.c.b16 %v2205, %v2204
    %v2266 = vpack.c.b16 %v2207, %v2206
    %v2267 = vpack.c.b16 %v2209, %v2208
    %v2268 = vpack.c.b16 %v2211, %v2210
    %v2269 = vpack.c.b16 %v2213, %v2212
    %v2270 = vpack.c.b16 %v2215, %v2214
    %v2271 = vpack.c.b16 %v2217, %v2216
    %v2272 = vpack.c.b16 %v2219, %v2218
    %v2273 = vpack.c.b16 %v2221, %v2220
    %v2274 = vpack.c.b16 %v2223, %v2222
    %v2275 = vpack.c.b16 %v2225, %v2224
    %v2276 = vpack.c.b16 %v2227, %v2226
    %v2277 = vpack.c.b16 %v2229, %v2228
    %v2278 = vpack.c.b16 %v2231, %v2230
    %v2279 = vpack.c.b16 %v2233, %v2232
    %v2280 = vpack.c.b16 %v2235, %v2234
    %v2281 = vpack.c.b16 %v2237, %v2236
    %v2282 = vpack.c.b16 %v2239, %v2238
    %v2283 = vpack.c.b16 %v2241, %v2240
    %v2284 = vpack.c.b16 %v2243, %v2242
    %v2285 = vpack.c.b16 %v2245, %v2244
    %v2286 = vpack.c.b16 %v2247, %v2246
    %v2287 = vpack.c.b16 %v2249, %v2248
    %v2288 = vpack.c.b16 %v2251, %v2250
    %v2289 = vpack.c.b16 %v2253, %v2252
    %v2290 = vpack.c.b16 %v2255, %v2254
    %v2291 = vpack.c.b16 %v2257, %v2256
    %v2292 = vpack.c.b16 %v2259, %v2258
    %v2293 = vpack.c.b16 %v2261, %v2260
    %2326 = vmatpush.bf16.msra.mxu0 %v2269
    %2327 = vmatpush.bf16.msra.mxu0 %v2268
    %2328 = vmatpush.bf16.msra.mxu0 %v2267
    %2329 = vmatpush.bf16.msra.mxu0 %v2266
    %2330 = vmatpush.bf16.msra.mxu0 %v2265
    %2331 = vmatpush.bf16.msra.mxu0 %v2264
    %2332 = vmatpush.bf16.msra.mxu0 %v2263
    %2333 = vmatpush.bf16.msra.mxu0 %v2262
    %2334 = vmatmul.bf16.gmra.mxu0 %v2062
    %v2335 = vpop.f32.mrf.mxu0
    %v2336 = vadd.f32 %v2132, %v2335
    %v2337 = vpop.f32.mrf.mxu0
    %2338 = vdwg.mxu0
    %2339 = vmatpush.bf16.msra.mxu0 %v2277
    %2340 = vmatpush.bf16.msra.mxu0 %v2276
    %2341 = vmatpush.bf16.msra.mxu0 %v2275
    %2342 = vmatpush.bf16.msra.mxu0 %v2274
    %2343 = vmatpush.bf16.msra.mxu0 %v2273
    %2344 = vmatpush.bf16.msra.mxu0 %v2272
    %2345 = vmatpush.bf16.msra.mxu0 %v2271
    %2346 = vmatpush.bf16.msra.mxu0 %v2270
    %2347 = vmatmul.bf16.gmra.mxu0 %v2063
    %v2348 = vpop.f32.mrf.mxu0
    %v2349 = vadd.f32 %v2336, %v2348
    %v2350 = vpop.f32.mrf.mxu0
    %2351 = vdwg.mxu0
    %2352 = vmatpush.bf16.msra.mxu0 %v2285
    %2353 = vmatpush.bf16.msra.mxu0 %v2284
    %2354 = vmatpush.bf16.msra.mxu0 %v2283
    %2355 = vmatpush.bf16.msra.mxu0 %v2282
    %2356 = vmatpush.bf16.msra.mxu0 %v2281
    %2357 = vmatpush.bf16.msra.mxu0 %v2280
    %2358 = vmatpush.bf16.msra.mxu0 %v2279
    %2359 = vmatpush.bf16.msra.mxu0 %v2278
    %2360 = vmatmul.bf16.gmra.mxu0 %v2064
    %v2361 = vpop.f32.mrf.mxu0
    %v2362 = vadd.f32 %v2349, %v2361
    %v2363 = vpop.f32.mrf.mxu0
    %2364 = vdwg.mxu0
    %2365 = vmatpush.bf16.msra.mxu0 %v2293
    %2366 = vmatpush.bf16.msra.mxu0 %v2292
    %2367 = vmatpush.bf16.msra.mxu0 %v2291
    %2368 = vmatpush.bf16.msra.mxu0 %v2290
    %2369 = vmatpush.bf16.msra.mxu0 %v2289
    %2370 = vmatpush.bf16.msra.mxu0 %v2288
    %2371 = vmatpush.bf16.msra.mxu0 %v2287
    %2372 = vmatpush.bf16.msra.mxu0 %v2286
    %2373 = vmatmul.bf16.gmra.mxu0 %v2065
    %v2374 = vpop.f32.mrf.mxu0
    %v2375 = vadd.f32 %v2362, %v2374
    %v2376 = vpop.f32.mrf.mxu0
    %2377 = vdwg.mxu0
    %vm2378 = vcmask 39936
    %v2379 = vsel %vm2378, %v2375, -inf
    %2380 = vmax.xlane.f32.xlu0 %v2379
    %v2381 = vpop.xlane.xlu0 %2380
    %v2382 = vsub.f32 %v2375, %v2381
    %v2383 = vmul.f32 %v2382, 1.442695
    %v2384 = vpow.pop %v2383
    %v2385 = vsel %vm2378, %v2384, 0.0
    %2386 = vadd.xlane.f32.xlu0 %v2385
    %v2387 = vpop.xlane.xlu0 %2386
    %v2388 = vlog2.pop %v2387
    %v2389 = vmul.f32 %v2388, 0.6931472
    %v2390 = vsub.f32 %v2382, %v2389
    %2391 = vst.msk [vmem:[#allocation8] sm:$0xff] %vm2378, %v2390
    // Predicated region
    $region34: #{forward.7} parent=1 // pred_check
      _
    $region35: #{forward.7} parent=1 // pred_check_branch
      %2393 = sbr.rel (0) target = $region37
    $region36: #{forward.7} parent=1 // pred_region
      %2395 = vsyncadd [#allocation4], 0
      %s2397 = sshll.u32 [#allocation8], 4
      %s2398 = int_to_ptr.vmem [resolvable:$true] %s2397
      %s2399 = sshll.u32 %s5, 4
      %s2400 = int_to_ptr.hbm [resolvable:$true] %s2399
      %2402 = dma.vmem_to_hbm [thread:$0]  %s2398, 128, %s2400, [#allocation4]
    $region37: #{forward.7} parent=1 // pred_fallthru
      _
    // Predicated region
    $region38: #{forward.7} parent=1 // pred_check
      _
    $region39: #{forward.7} parent=1 // pred_check_branch
      %2404 = sbr.rel (0) target = $region41
    $region40: #{forward.7} parent=1 // pred_region
      %2406 = dma.done [#allocation4], 128
    $region41: #{forward.7} parent=1 // pred_fallthru
      _
    %2407 = vsyncpa [#allocation3], 1
    %2408 = vsyncpa [#allocation6], 1
    %2409 = vsyncpa [#allocation4], 1

</llo_original>
